<compile_context>
chip_gen: v6e
topology: v6e:2x2x1
jax: 0.10.0
libtpu: 0.0.40
codegen_flags: <defaults>
</compile_context>

<pallas_src>
import functools

import jax
import jax.numpy as jnp
from jax import lax
from jax.experimental import pallas as pl
from jax.experimental.pallas import tpu as pltpu


# ---------------------------------------------------------------------------
# host-side helpers
# ---------------------------------------------------------------------------
def _round_up(v, m):
    return (v + m - 1) // m * m


def _conv_w_wide(w):
    """PyTorch Conv2d weight (Cout, Cin, 3, 3) -> (9*Cin, Cout) bf16.

    Row block t = ky*3 + kx holds w[:, :, ky, kx].T, matching the in-kernel
    tap concatenation order (tap-major, channel-minor).
    """
    cout, cin, kh, kw = w.shape
    return jnp.transpose(w, (2, 3, 1, 0)).reshape(kh * kw * cin, cout).astype(jnp.bfloat16)


def _bias_row(b):
    return b.reshape(1, -1).astype(jnp.float32)


# sub-pixel decomposition of ConvTranspose2d(k=3, s=2, p=1, op=1):
#   output parity s -> {input offset a : kernel index k}
_SUBPIX = {0: {0: 1}, 1: {0: 2, 1: 0}}


def _convT_w_fused(w):
    """PyTorch ConvTranspose2d weight (Cin, Cout, 3, 3) -> (4*Cin, 4*Cout) bf16.

    Operand row block ia = ay*2 + ax holds the input offset (ay, ax); output
    column block s = sy*2 + sx is the output sub-position (pixel parity).
    """
    cin, cout = w.shape[0], w.shape[1]
    zeros = jnp.zeros((cin, cout), w.dtype)

    def block(ay, ax, sy, sx):
        ky = _SUBPIX[sy].get(ay)
        kx = _SUBPIX[sx].get(ax)
        if ky is None or kx is None:
            return zeros
        return w[:, :, ky, kx]

    rows = []
    for ay in range(2):
        for ax in range(2):
            cols = [block(ay, ax, sy, sx) for sy in range(2) for sx in range(2)]
            rows.append(jnp.concatenate(cols, axis=1))
    return jnp.concatenate(rows, axis=0).astype(jnp.bfloat16)


def _convT_bias_fused(b):
    return jnp.concatenate([b, b, b, b]).reshape(1, -1).astype(jnp.float32)


# ---------------------------------------------------------------------------
# fused kernel: whole encoder + decoder for one image per grid step
# ---------------------------------------------------------------------------
def _autoencoder_kernel(x_ref,
                        w1, b1, w2, b2, w3, b3,
                        wd1, bd1, wd2, bd2, w6, b6,
                        o_ref,
                        buf_f, buf_h, buf_q,
                        *, H, W, P):
    H2, W2, H4, W4 = H // 2, W // 2, H // 4, W // 4
    M1, M2, M4 = H * P, H2 * P, H4 * P
    f32 = jnp.float32

    # ---- zero only the guard margins; the interior is fully rewritten below ----
    def zero_margins(buf, h_img):
        n, c = buf.shape
        lo = P + 1
        hi = (h_img + 1) * P + 1
        buf[pl.ds(0, lo), :] = jnp.zeros((lo, c), buf.dtype)
        buf[pl.ds(hi, n - hi), :] = jnp.zeros((n - hi, c), buf.dtype)

    zero_margins(buf_f, H)
    zero_margins(buf_h, H2)
    zero_margins(buf_q, H4)

    # ---- hoisted column-validity masks: ONE iota/mod per resolution ----
    def col_mask(m, w_valid):
        col = lax.broadcasted_iota(jnp.int32, (m, 1), 0) % P
        return col < w_valid

    mask1 = col_mask(M1, W)
    mask2 = col_mask(M2, W2)
    mask4 = col_mask(M4, W4)

    # ---- building blocks ----
    def read_x(start, m, stride):
        del stride  # always 1 for the input layer
        return x_ref[0, pl.ds(start, m), :]

    def make_reader(buf):
        def read(start, m, stride):
            if stride == 1:
                return buf[pl.ds(start, m), :]
            return buf[pl.ds(start, m, stride=stride), :]
        return read

    def conv3x3(read, m, stride, w_ref, b_ref):
        """3x3 conv: 9 shifted tap slices -> one (m, 9*Cin) x (9*Cin, Cout) matmul.
        stride=2 folds the downsample into the tap reads (strided sublane loads)."""
        parts = []
        for ky in range(3):
            for kx in range(3):
                parts.append(read(ky * P + kx, m, stride))
        op = jnp.concatenate(parts, axis=1).astype(jnp.bfloat16)
        return jnp.dot(op, w_ref[...], preferred_element_type=f32) + b_ref[...]

    def store_act(buf, m, mask, val):
        # masked store keeps the guard columns of the pitched buffer at zero
        buf[pl.ds(P + 1, m), :] = jnp.where(mask, jnp.maximum(val, 0.0), 0.0).astype(buf.dtype)

    def convT_up(buf_in, h_in, w_in, w_ref, b_ref, buf_out, cout):
        """ConvTranspose2d(k=3, s=2, p=1, op=1) + ReLU.

        One fused sub-pixel matmul (operand = 4 input-offset blocks, weight =
        (4*Cin, 4*Cout)), then per-row strided sub-pixel scatter stores into the
        2x-resolution pitched buffer (no pixel-shuffle matmul)."""
        m_in = h_in * P
        parts = []
        for ay in range(2):
            for ax in range(2):
                parts.append(buf_in[pl.ds((ay + 1) * P + ax + 1, m_in), :])
        op = jnp.concatenate(parts, axis=1).astype(jnp.bfloat16)
        plane = jnp.dot(op, w_ref[...], preferred_element_type=f32) + b_ref[...]
        plane = jnp.maximum(plane, 0.0).astype(buf_out.dtype)      # (m_in, 4*cout)
        for yi in range(h_in):
            rows = plane[yi * P: yi * P + w_in, :]                 # valid columns only
            for sy in range(2):
                for sx in range(2):
                    s = sy * 2 + sx
                    dst = (2 * yi + sy + 1) * P + sx + 1
                    buf_out[pl.ds(dst, w_in, stride=2), :] = rows[:, s * cout:(s + 1) * cout]

    read_f = make_reader(buf_f)
    read_h = make_reader(buf_h)
    read_q = make_reader(buf_q)

    # ---------------- encoder ----------------
    # e1: Conv2d(3 -> 32, s=1, p=1) + ReLU
    a1 = conv3x3(read_x, M1, 1, w1, b1)
    store_act(buf_f, M1, mask1, a1)

    # e2: Conv2d(32 -> 64, s=2, p=1) + ReLU   (stride folded into tap reads)
    a2 = conv3x3(read_f, M2, 2, w2, b2)
    store_act(buf_h, M2, mask2, a2)

    # e3: Conv2d(64 -> 128, s=2, p=1) + ReLU
    a3 = conv3x3(read_h, M4, 2, w3, b3)
    store_act(buf_q, M4, mask4, a3)

    # ---------------- decoder ----------------
    # d1: ConvTranspose2d(128 -> 64) + ReLU     (quarter -> half res)
    convT_up(buf_q, H4, W4, wd1, bd1, buf_h, 64)

    # d2: ConvTranspose2d(64 -> 32) + ReLU      (half -> full res)
    convT_up(buf_h, H2, W2, wd2, bd2, buf_f, 32)

    # d3: Conv2d(32 -> 3, s=1, p=1) + Sigmoid
    a6 = conv3x3(read_f, M1, 1, w6, b6)
    o_ref[0] = jax.nn.sigmoid(a6)


# ---------------------------------------------------------------------------
# wrapper: layout plumbing + pallas_call
# ---------------------------------------------------------------------------
def carpet_patch_autoencoder(x_nchw, p):
    B, Cin, H, W = x_nchw.shape
    assert Cin == 3 and H % 4 == 0 and W % 4 == 0
    P = W + 2                       # uniform row pitch (guard column padding)
    M1 = H * P
    NX = (H + 3) * P                # padded/pitched input rows (covers all tap reads)
    NF = _round_up((H + 3) * P, 8)          # full-res activation rows
    NH = _round_up((H // 2 + 3) * P, 8)     # half-res
    NQ = _round_up((H // 4 + 3) * P, 8)     # quarter-res

    # stage the input in padded, row-pitched layout (XLA side, cheap)
    x_nhwc = jnp.transpose(x_nchw, (0, 2, 3, 1))
    x_pad = jnp.pad(x_nhwc, ((0, 0), (1, 2), (1, 1), (0, 0)))
    x_rows = x_pad.reshape(B, NX, 3).astype(jnp.bfloat16)

    args = [
        x_rows,
        _conv_w_wide(p["e1_w"]), _bias_row(p["e1_b"]),
        _conv_w_wide(p["e2_w"]), _bias_row(p["e2_b"]),
        _conv_w_wide(p["e3_w"]), _bias_row(p["e3_b"]),
        _convT_w_fused(p["d1_w"]), _convT_bias_fused(p["d1_b"]),
        _convT_w_fused(p["d2_w"]), _convT_bias_fused(p["d2_b"]),
        _conv_w_wide(p["d3_w"]), _bias_row(p["d3_b"]),
    ]

    def bcast_spec(a):
        nd = a.ndim
        return pl.BlockSpec(a.shape, lambda b, _nd=nd: (0,) * _nd)

    in_specs = [pl.BlockSpec((1, NX, 3), lambda b: (b, 0, 0))]
    in_specs += [bcast_spec(a) for a in args[1:]]
    out_spec = pl.BlockSpec((1, M1, 3), lambda b: (b, 0, 0))

    kernel = functools.partial(_autoencoder_kernel, H=H, W=W, P=P)

    out_rows = pl.pallas_call(
        kernel,
        out_shape=jax.ShapeDtypeStruct((B, M1, 3), jnp.float32),
        grid=(B,),
        in_specs=in_specs,
        out_specs=out_spec,
        scratch_shapes=[
            pltpu.VMEM((NF, 32), jnp.float32),     # full-res (strided-access target -> f32)
            pltpu.VMEM((NH, 64), jnp.float32),     # half-res (strided-access target -> f32)
            pltpu.VMEM((NQ, 128), jnp.bfloat16),   # quarter-res (contiguous access only)
        ],
        compiler_params=pltpu.CompilerParams(
            dimension_semantics=("parallel",),
            vmem_limit_bytes=32 * 1024 * 1024,
        ),
    )(*args)

    # pitched rows -> dense NCHW (drop per-row guard columns)
    out = out_rows.reshape(B, H, P, 3)[:, :, :W, :]
    return jnp.transpose(out, (0, 3, 1, 2))


# ---------------------------------------------------------------------------
# pure-JAX reference (for a numerical sanity check)
# ---------------------------------------------------------------------------
def _reference_forward(x, p):
    dn = ("NCHW", "OIHW", "NCHW")

    def conv(x, w, b, stride):
        y = lax.conv_general_dilated(x, w, (stride, stride), ((1, 1), (1, 1)),
                                     dimension_numbers=dn)
        return y + b.reshape(1, -1, 1, 1)

    def convT(x, w, b):
        # ConvTranspose2d(k=3, s=2, p=1, op=1) == lhs-dilated conv with the
        # spatially flipped kernel and padding (1, 2) on each spatial dim.
        w_t = jnp.flip(jnp.transpose(w, (1, 0, 2, 3)), axis=(2, 3))
        y = lax.conv_general_dilated(x, w_t, (1, 1), ((1, 2), (1, 2)),
                                     lhs_dilation=(2, 2), dimension_numbers=dn)
        return y + b.reshape(1, -1, 1, 1)

    relu = jax.nn.relu
    h = relu(conv(x, p["e1_w"], p["e1_b"], 1))
    h = relu(conv(h, p["e2_w"], p["e2_b"], 2))
    h = relu(conv(h, p["e3_w"], p["e3_b"], 2))
    h = relu(convT(h, p["d1_w"], p["d1_b"]))
    h = relu(convT(h, p["d2_w"], p["d2_b"]))
    return jax.nn.sigmoid(conv(h, p["d3_w"], p["d3_b"], 1))


# ---------------------------------------------------------------------------
# parameters (PyTorch-style init)
# ---------------------------------------------------------------------------
def init_params(key):
    def conv_init(key, cout, cin, k):
        kw, kb = jax.random.split(key)
        bound = 1.0 / jnp.sqrt(cin * k * k)
        w = jax.random.uniform(kw, (cout, cin, k, k), jnp.float32, -bound, bound)
        b = jax.random.uniform(kb, (cout,), jnp.float32, -bound, bound)
        return w, b

    def convT_init(key, cin, cout, k):
        kw, kb = jax.random.split(key)
        bound = 1.0 / jnp.sqrt(cin * k * k)
        w = jax.random.uniform(kw, (cin, cout, k, k), jnp.float32, -bound, bound)
        b = jax.random.uniform(kb, (cout,), jnp.float32, -bound, bound)
        return w, b

    ks = jax.random.split(key, 6)
    p = {}
    p["e1_w"], p["e1_b"] = conv_init(ks[0], 32, 3, 3)
    p["e2_w"], p["e2_b"] = conv_init(ks[1], 64, 32, 3)
    p["e3_w"], p["e3_b"] = conv_init(ks[2], 128, 64, 3)
    p["d1_w"], p["d1_b"] = convT_init(ks[3], 128, 64, 3)
    p["d2_w"], p["d2_b"] = convT_init(ks[4], 64, 32, 3)
    p["d3_w"], p["d3_b"] = conv_init(ks[5], 3, 32, 3)
    return p


if __name__ == "__main__":
    key = jax.random.PRNGKey(0)
    k_param, k_in = jax.random.split(key)
    params = init_params(k_param)

    x = jax.random.uniform(k_in, (2, 3, 16, 16), jnp.float32)  # NCHW, matches PyTorch

    fwd = jax.jit(carpet_patch_autoencoder)
    out = jax.block_until_ready(fwd(x, params))

    assert out.shape == (2, 3, 16, 16), out.shape
    assert out.dtype == jnp.float32
    assert bool(jnp.all(jnp.isfinite(out)))
    assert bool(jnp.all((out >= 0.0) & (out <= 1.0)))  # sigmoid output range

    # sanity check against a pure-JAX/XLA reference (bf16 operands => loose tol)
    ref = _reference_forward(x, params)
    max_err = float(jnp.max(jnp.abs(out - ref)))
    assert max_err < 8e-2, f"max abs err vs reference: {max_err}"

    print("KERNEL_OK")
</pallas_src>

<mosaic_0001>
module attributes {stable_mosaic.version = 11 : i64} {
  func.func @_autoencoder_kernel(%arg0: i32, %arg1: memref<1x342x3xbf16, #tpu.memory_space<vmem>>, %arg2: memref<27x32xbf16, #tpu.memory_space<vmem>>, %arg3: memref<1x32xf32, #tpu.memory_space<vmem>>, %arg4: memref<288x64xbf16, #tpu.memory_space<vmem>>, %arg5: memref<1x64xf32, #tpu.memory_space<vmem>>, %arg6: memref<576x128xbf16, #tpu.memory_space<vmem>>, %arg7: memref<1x128xf32, #tpu.memory_space<vmem>>, %arg8: memref<512x256xbf16, #tpu.memory_space<vmem>>, %arg9: memref<1x256xf32, #tpu.memory_space<vmem>>, %arg10: memref<256x128xbf16, #tpu.memory_space<vmem>>, %arg11: memref<1x128xf32, #tpu.memory_space<vmem>>, %arg12: memref<288x3xbf16, #tpu.memory_space<vmem>>, %arg13: memref<1x3xf32, #tpu.memory_space<vmem>>, %arg14: memref<1x288x3xf32, #tpu.memory_space<vmem>>, %arg15: memref<344x32xf32, #tpu.memory_space<vmem>>, %arg16: memref<200x64xf32, #tpu.memory_space<vmem>>, %arg17: memref<128x128xbf16, #tpu.memory_space<vmem>>) attributes {dimension_semantics = [#tpu.dimension_semantics<parallel>], iteration_bounds = array<i64: 2>, scalar_prefetch = 0 : i64, scratch_operands = 3 : i64, tpu.core_type = #tpu.core_type<tc>, window_params = [{transform_indices = @transform_0, window_bounds = array<i64: 1, 342, 3>}, {pipeline_mode = #tpu.pipeline_mode<synchronous>, transform_indices = @transform_1, window_bounds = array<i64: 27, 32>}, {pipeline_mode = #tpu.pipeline_mode<synchronous>, transform_indices = @transform_2, window_bounds = array<i64: 1, 32>}, {pipeline_mode = #tpu.pipeline_mode<synchronous>, transform_indices = @transform_3, window_bounds = array<i64: 288, 64>}, {pipeline_mode = #tpu.pipeline_mode<synchronous>, transform_indices = @transform_4, window_bounds = array<i64: 1, 64>}, {pipeline_mode = #tpu.pipeline_mode<synchronous>, transform_indices = @transform_5, window_bounds = array<i64: 576, 128>}, {pipeline_mode = #tpu.pipeline_mode<synchronous>, transform_indices = @transform_6, window_bounds = array<i64: 1, 128>}, {pipeline_mode = #tpu.pipeline_mode<synchronous>, transform_indices = @transform_7, window_bounds = array<i64: 512, 256>}, {pipeline_mode = #tpu.pipeline_mode<synchronous>, transform_indices = @transform_8, window_bounds = array<i64: 1, 256>}, {pipeline_mode = #tpu.pipeline_mode<synchronous>, transform_indices = @transform_9, window_bounds = array<i64: 256, 128>}, {pipeline_mode = #tpu.pipeline_mode<synchronous>, transform_indices = @transform_10, window_bounds = array<i64: 1, 128>}, {pipeline_mode = #tpu.pipeline_mode<synchronous>, transform_indices = @transform_11, window_bounds = array<i64: 288, 3>}, {pipeline_mode = #tpu.pipeline_mode<synchronous>, transform_indices = @transform_12, window_bounds = array<i64: 1, 3>}, {transform_indices = @transform_13, window_bounds = array<i64: 1, 288, 3>}]} {
    %cst = arith.constant 0.000000e+00 : f32
    %0 = vector.broadcast %cst : f32 to vector<19x32xf32>
    %c0 = arith.constant 0 : index
    %c0_0 = arith.constant 0 : index
    %1 = vector.load %arg15[%c0, %c0_0] : memref<344x32xf32, #tpu.memory_space<vmem>>, vector<19x32xf32>
    tpu.vector_store %arg15[%c0, %c0_0], %0 {strides = array<i32>} : memref<344x32xf32, #tpu.memory_space<vmem>>, vector<19x32xf32>,
    %cst_1 = arith.constant 0.000000e+00 : f32
    %2 = vector.broadcast %cst_1 : f32 to vector<37x32xf32>
    %c307 = arith.constant 307 : index
    %c0_2 = arith.constant 0 : index
    %3 = vector.load %arg15[%c307, %c0_2] : memref<344x32xf32, #tpu.memory_space<vmem>>, vector<37x32xf32>
    tpu.vector_store %arg15[%c307, %c0_2], %2 {strides = array<i32>} : memref<344x32xf32, #tpu.memory_space<vmem>>, vector<37x32xf32>,
    %cst_3 = arith.constant 0.000000e+00 : f32
    %4 = vector.broadcast %cst_3 : f32 to vector<19x64xf32>
    %c0_4 = arith.constant 0 : index
    %c0_5 = arith.constant 0 : index
    %5 = vector.load %arg16[%c0_4, %c0_5] : memref<200x64xf32, #tpu.memory_space<vmem>>, vector<19x64xf32>
    tpu.vector_store %arg16[%c0_4, %c0_5], %4 {strides = array<i32>} : memref<200x64xf32, #tpu.memory_space<vmem>>, vector<19x64xf32>,
    %cst_6 = arith.constant 0.000000e+00 : f32
    %6 = vector.broadcast %cst_6 : f32 to vector<37x64xf32>
    %c163 = arith.constant 163 : index
    %c0_7 = arith.constant 0 : index
    %7 = vector.load %arg16[%c163, %c0_7] : memref<200x64xf32, #tpu.memory_space<vmem>>, vector<37x64xf32>
    tpu.vector_store %arg16[%c163, %c0_7], %6 {strides = array<i32>} : memref<200x64xf32, #tpu.memory_space<vmem>>, vector<37x64xf32>,
    %cst_8 = arith.constant 0.000000e+00 : bf16
    %8 = vector.broadcast %cst_8 : bf16 to vector<19x128xbf16>
    %c0_9 = arith.constant 0 : index
    %c0_10 = arith.constant 0 : index
    %9 = vector.load %arg17[%c0_9, %c0_10] : memref<128x128xbf16, #tpu.memory_space<vmem>>, vector<19x128xbf16>
    tpu.vector_store %arg17[%c0_9, %c0_10], %8 {strides = array<i32>} : memref<128x128xbf16, #tpu.memory_space<vmem>>, vector<19x128xbf16>,
    %cst_11 = arith.constant 0.000000e+00 : bf16
    %10 = vector.broadcast %cst_11 : bf16 to vector<37x128xbf16>
    %c91 = arith.constant 91 : index
    %c0_12 = arith.constant 0 : index
    %11 = vector.load %arg17[%c91, %c0_12] : memref<128x128xbf16, #tpu.memory_space<vmem>>, vector<37x128xbf16>
    tpu.vector_store %arg17[%c91, %c0_12], %10 {strides = array<i32>} : memref<128x128xbf16, #tpu.memory_space<vmem>>, vector<37x128xbf16>,
    %12 = tpu.iota {dimensions = array<i32: 0>} : vector<288x1xi32>
    %c18_i32 = arith.constant 18 : i32
    %c0_i32 = arith.constant 0 : i32
    %13 = arith.cmpi eq, %c18_i32, %c0_i32 : i32
    %c1_i32 = arith.constant 1 : i32
    %14 = arith.select %13, %c1_i32, %c18_i32 : i32
    %15 = vector.broadcast %14 : i32 to vector<288x1xi32>
    %16 = arith.remsi %12, %15 : vector<288x1xi32>
    %c0_i32_13 = arith.constant 0 : i32
    %17 = vector.broadcast %c0_i32_13 : i32 to vector<288x1xi32>
    %18 = arith.cmpi ne, %16, %17 : vector<288x1xi32>
    %c0_i32_14 = arith.constant 0 : i32
    %19 = vector.broadcast %c0_i32_14 : i32 to vector<288x1xi32>
    %20 = arith.cmpi slt, %16, %19 : vector<288x1xi32>
    %c0_i32_15 = arith.constant 0 : i32
    %21 = arith.cmpi slt, %14, %c0_i32_15 : i32
    %22 = vector.broadcast %21 : i1 to vector<288x1xi1>
    %23 = vector.broadcast %22 : vector<288x1xi1> to vector<288x1xi1>
    %24 = arith.xori %20, %23 : vector<288x1xi1>
    %25 = arith.andi %24, %18 : vector<288x1xi1>
    %26 = vector.broadcast %14 : i32 to vector<288x1xi32>
    %27 = arith.addi %16, %26 : vector<288x1xi32>
    %28 = arith.select %25, %27, %16 : vector<288x1xi1>, vector<288x1xi32>
    %c16_i32 = arith.constant 16 : i32
    %29 = vector.broadcast %c16_i32 : i32 to vector<288x1xi32>
    %30 = arith.cmpi slt, %28, %29 : vector<288x1xi32>
    %31 = tpu.iota {dimensions = array<i32: 0>} : vector<144x1xi32>
    %c18_i32_16 = arith.constant 18 : i32
    %c0_i32_17 = arith.constant 0 : i32
    %32 = arith.cmpi eq, %c18_i32_16, %c0_i32_17 : i32
    %c1_i32_18 = arith.constant 1 : i32
    %33 = arith.select %32, %c1_i32_18, %c18_i32_16 : i32
    %34 = vector.broadcast %33 : i32 to vector<144x1xi32>
    %35 = arith.remsi %31, %34 : vector<144x1xi32>
    %c0_i32_19 = arith.constant 0 : i32
    %36 = vector.broadcast %c0_i32_19 : i32 to vector<144x1xi32>
    %37 = arith.cmpi ne, %35, %36 : vector<144x1xi32>
    %c0_i32_20 = arith.constant 0 : i32
    %38 = vector.broadcast %c0_i32_20 : i32 to vector<144x1xi32>
    %39 = arith.cmpi slt, %35, %38 : vector<144x1xi32>
    %c0_i32_21 = arith.constant 0 : i32
    %40 = arith.cmpi slt, %33, %c0_i32_21 : i32
    %41 = vector.broadcast %40 : i1 to vector<144x1xi1>
    %42 = vector.broadcast %41 : vector<144x1xi1> to vector<144x1xi1>
    %43 = arith.xori %39, %42 : vector<144x1xi1>
    %44 = arith.andi %43, %37 : vector<144x1xi1>
    %45 = vector.broadcast %33 : i32 to vector<144x1xi32>
    %46 = arith.addi %35, %45 : vector<144x1xi32>
    %47 = arith.select %44, %46, %35 : vector<144x1xi1>, vector<144x1xi32>
    %c8_i32 = arith.constant 8 : i32
    %48 = vector.broadcast %c8_i32 : i32 to vector<144x1xi32>
    %49 = arith.cmpi slt, %47, %48 : vector<144x1xi32>
    %50 = tpu.iota {dimensions = array<i32: 0>} : vector<72x1xi32>
    %c18_i32_22 = arith.constant 18 : i32
    %c0_i32_23 = arith.constant 0 : i32
    %51 = arith.cmpi eq, %c18_i32_22, %c0_i32_23 : i32
    %c1_i32_24 = arith.constant 1 : i32
    %52 = arith.select %51, %c1_i32_24, %c18_i32_22 : i32
    %53 = vector.broadcast %52 : i32 to vector<72x1xi32>
    %54 = arith.remsi %50, %53 : vector<72x1xi32>
    %c0_i32_25 = arith.constant 0 : i32
    %55 = vector.broadcast %c0_i32_25 : i32 to vector<72x1xi32>
    %56 = arith.cmpi ne, %54, %55 : vector<72x1xi32>
    %c0_i32_26 = arith.constant 0 : i32
    %57 = vector.broadcast %c0_i32_26 : i32 to vector<72x1xi32>
    %58 = arith.cmpi slt, %54, %57 : vector<72x1xi32>
    %c0_i32_27 = arith.constant 0 : i32
    %59 = arith.cmpi slt, %52, %c0_i32_27 : i32
    %60 = vector.broadcast %59 : i1 to vector<72x1xi1>
    %61 = vector.broadcast %60 : vector<72x1xi1> to vector<72x1xi1>
    %62 = arith.xori %58, %61 : vector<72x1xi1>
    %63 = arith.andi %62, %56 : vector<72x1xi1>
    %64 = vector.broadcast %52 : i32 to vector<72x1xi32>
    %65 = arith.addi %54, %64 : vector<72x1xi32>
    %66 = arith.select %63, %65, %54 : vector<72x1xi1>, vector<72x1xi32>
    %c4_i32 = arith.constant 4 : i32
    %67 = vector.broadcast %c4_i32 : i32 to vector<72x1xi32>
    %68 = arith.cmpi slt, %66, %67 : vector<72x1xi32>
    %c0_28 = arith.constant 0 : index
    %c0_29 = arith.constant 0 : index
    %c0_30 = arith.constant 0 : index
    %69 = vector.load %arg1[%c0_28, %c0_29, %c0_30] : memref<1x342x3xbf16, #tpu.memory_space<vmem>>, vector<1x288x3xbf16>
    %70 = vector.shape_cast %69 : vector<1x288x3xbf16> to vector<288x3xbf16>
    %c0_31 = arith.constant 0 : index
    %c1 = arith.constant 1 : index
    %c0_32 = arith.constant 0 : index
    %71 = vector.load %arg1[%c0_31, %c1, %c0_32] : memref<1x342x3xbf16, #tpu.memory_space<vmem>>, vector<1x288x3xbf16>
    %72 = vector.shape_cast %71 : vector<1x288x3xbf16> to vector<288x3xbf16>
    %c0_33 = arith.constant 0 : index
    %c2 = arith.constant 2 : index
    %c0_34 = arith.constant 0 : index
    %73 = vector.load %arg1[%c0_33, %c2, %c0_34] : memref<1x342x3xbf16, #tpu.memory_space<vmem>>, vector<1x288x3xbf16>
    %74 = vector.shape_cast %73 : vector<1x288x3xbf16> to vector<288x3xbf16>
    %c0_35 = arith.constant 0 : index
    %c18 = arith.constant 18 : index
    %c0_36 = arith.constant 0 : index
    %75 = vector.load %arg1[%c0_35, %c18, %c0_36] : memref<1x342x3xbf16, #tpu.memory_space<vmem>>, vector<1x288x3xbf16>
    %76 = vector.shape_cast %75 : vector<1x288x3xbf16> to vector<288x3xbf16>
    %c0_37 = arith.constant 0 : index
    %c19 = arith.constant 19 : index
    %c0_38 = arith.constant 0 : index
    %77 = vector.load %arg1[%c0_37, %c19, %c0_38] : memref<1x342x3xbf16, #tpu.memory_space<vmem>>, vector<1x288x3xbf16>
    %78 = vector.shape_cast %77 : vector<1x288x3xbf16> to vector<288x3xbf16>
    %c0_39 = arith.constant 0 : index
    %c20 = arith.constant 20 : index
    %c0_40 = arith.constant 0 : index
    %79 = vector.load %arg1[%c0_39, %c20, %c0_40] : memref<1x342x3xbf16, #tpu.memory_space<vmem>>, vector<1x288x3xbf16>
    %80 = vector.shape_cast %79 : vector<1x288x3xbf16> to vector<288x3xbf16>
    %c0_41 = arith.constant 0 : index
    %c36 = arith.constant 36 : index
    %c0_42 = arith.constant 0 : index
    %81 = vector.load %arg1[%c0_41, %c36, %c0_42] : memref<1x342x3xbf16, #tpu.memory_space<vmem>>, vector<1x288x3xbf16>
    %82 = vector.shape_cast %81 : vector<1x288x3xbf16> to vector<288x3xbf16>
    %c0_43 = arith.constant 0 : index
    %c37 = arith.constant 37 : index
    %c0_44 = arith.constant 0 : index
    %83 = vector.load %arg1[%c0_43, %c37, %c0_44] : memref<1x342x3xbf16, #tpu.memory_space<vmem>>, vector<1x288x3xbf16>
    %84 = vector.shape_cast %83 : vector<1x288x3xbf16> to vector<288x3xbf16>
    %c0_45 = arith.constant 0 : index
    %c38 = arith.constant 38 : index
    %c0_46 = arith.constant 0 : index
    %85 = vector.load %arg1[%c0_45, %c38, %c0_46] : memref<1x342x3xbf16, #tpu.memory_space<vmem>>, vector<1x288x3xbf16>
    %86 = vector.shape_cast %85 : vector<1x288x3xbf16> to vector<288x3xbf16>
    %87 = tpu.concatenate %70, %72, %74, %76, %78, %80, %82, %84, %86 in 1 : vector<288x3xbf16>, vector<288x3xbf16>, vector<288x3xbf16>, vector<288x3xbf16>, vector<288x3xbf16>, vector<288x3xbf16>, vector<288x3xbf16>, vector<288x3xbf16>, vector<288x3xbf16> -> vector<288x27xbf16>
    %c0_47 = arith.constant 0 : index
    %c0_48 = arith.constant 0 : index
    %88 = vector.load %arg2[%c0_47, %c0_48] : memref<27x32xbf16, #tpu.memory_space<vmem>>, vector<27x32xbf16>
    %cst_49 = arith.constant dense<0.000000e+00> : vector<288x32xf32>
    %89 = tpu.matmul %87, %88, %cst_49 {dimension_numbers = #tpu.dot_dimension_numbers<[1], [0], [0], [1], [0, 0, 1, 1], [], []>} : vector<288x27xbf16>, vector<27x32xbf16>, vector<288x32xf32> -> vector<288x32xf32>
    %c0_50 = arith.constant 0 : index
    %c0_51 = arith.constant 0 : index
    %90 = vector.load %arg3[%c0_50, %c0_51] : memref<1x32xf32, #tpu.memory_space<vmem>>, vector<1x32xf32>
    %91 = vector.broadcast %90 : vector<1x32xf32> to vector<288x32xf32>
    %92 = arith.addf %89, %91 : vector<288x32xf32>
    %cst_52 = arith.constant 0.000000e+00 : f32
    %93 = vector.broadcast %cst_52 : f32 to vector<288x32xf32>
    %94 = arith.maximumf %92, %93 : vector<288x32xf32>
    %cst_53 = arith.constant 0.000000e+00 : f32
    %95 = vector.shape_cast %30 : vector<288x1xi1> to vector<288x1xi1>
    %96 = vector.broadcast %95 : vector<288x1xi1> to vector<288x32xi1>
    %97 = vector.broadcast %cst_53 : f32 to vector<288x32xf32>
    %98 = arith.select %96, %94, %97 : vector<288x32xi1>, vector<288x32xf32>
    %c19_54 = arith.constant 19 : index
    %c0_55 = arith.constant 0 : index
    %99 = vector.load %arg15[%c19_54, %c0_55] : memref<344x32xf32, #tpu.memory_space<vmem>>, vector<288x32xf32>
    tpu.vector_store %arg15[%c19_54, %c0_55], %98 {strides = array<i32>} : memref<344x32xf32, #tpu.memory_space<vmem>>, vector<288x32xf32>,
    %c0_56 = arith.constant 0 : index
    %c0_57 = arith.constant 0 : index
    %100 = tpu.strided_load %arg15[%c0_56, %c0_57] {strides = array<i32: 2, 1>} : memref<344x32xf32, #tpu.memory_space<vmem>>, vector<144x32xf32>
    %c1_58 = arith.constant 1 : index
    %c0_59 = arith.constant 0 : index
    %101 = tpu.strided_load %arg15[%c1_58, %c0_59] {strides = array<i32: 2, 1>} : memref<344x32xf32, #tpu.memory_space<vmem>>, vector<144x32xf32>
    %c2_60 = arith.constant 2 : index
    %c0_61 = arith.constant 0 : index
    %102 = tpu.strided_load %arg15[%c2_60, %c0_61] {strides = array<i32: 2, 1>} : memref<344x32xf32, #tpu.memory_space<vmem>>, vector<144x32xf32>
    %c18_62 = arith.constant 18 : index
    %c0_63 = arith.constant 0 : index
    %103 = tpu.strided_load %arg15[%c18_62, %c0_63] {strides = array<i32: 2, 1>} : memref<344x32xf32, #tpu.memory_space<vmem>>, vector<144x32xf32>
    %c19_64 = arith.constant 19 : index
    %c0_65 = arith.constant 0 : index
    %104 = tpu.strided_load %arg15[%c19_64, %c0_65] {strides = array<i32: 2, 1>} : memref<344x32xf32, #tpu.memory_space<vmem>>, vector<144x32xf32>
    %c20_66 = arith.constant 20 : index
    %c0_67 = arith.constant 0 : index
    %105 = tpu.strided_load %arg15[%c20_66, %c0_67] {strides = array<i32: 2, 1>} : memref<344x32xf32, #tpu.memory_space<vmem>>, vector<144x32xf32>
    %c36_68 = arith.constant 36 : index
    %c0_69 = arith.constant 0 : index
    %106 = tpu.strided_load %arg15[%c36_68, %c0_69] {strides = array<i32: 2, 1>} : memref<344x32xf32, #tpu.memory_space<vmem>>, vector<144x32xf32>
    %c37_70 = arith.constant 37 : index
    %c0_71 = arith.constant 0 : index
    %107 = tpu.strided_load %arg15[%c37_70, %c0_71] {strides = array<i32: 2, 1>} : memref<344x32xf32, #tpu.memory_space<vmem>>, vector<144x32xf32>
    %c38_72 = arith.constant 38 : index
    %c0_73 = arith.constant 0 : index
    %108 = tpu.strided_load %arg15[%c38_72, %c0_73] {strides = array<i32: 2, 1>} : memref<344x32xf32, #tpu.memory_space<vmem>>, vector<144x32xf32>
    %109 = tpu.concatenate %100, %101, %102, %103, %104, %105, %106, %107, %108 in 1 : vector<144x32xf32>, vector<144x32xf32>, vector<144x32xf32>, vector<144x32xf32>, vector<144x32xf32>, vector<144x32xf32>, vector<144x32xf32>, vector<144x32xf32>, vector<144x32xf32> -> vector<144x288xf32>
    %110 = arith.truncf %109 : vector<144x288xf32> to vector<144x288xbf16>
    %c0_74 = arith.constant 0 : index
    %c0_75 = arith.constant 0 : index
    %111 = vector.load %arg4[%c0_74, %c0_75] : memref<288x64xbf16, #tpu.memory_space<vmem>>, vector<288x64xbf16>
    %cst_76 = arith.constant dense<0.000000e+00> : vector<144x64xf32>
    %112 = tpu.matmul %110, %111, %cst_76 {dimension_numbers = #tpu.dot_dimension_numbers<[1], [0], [0], [1], [0, 0, 1, 1], [], []>} : vector<144x288xbf16>, vector<288x64xbf16>, vector<144x64xf32> -> vector<144x64xf32>
    %c0_77 = arith.constant 0 : index
    %c0_78 = arith.constant 0 : index
    %113 = vector.load %arg5[%c0_77, %c0_78] : memref<1x64xf32, #tpu.memory_space<vmem>>, vector<1x64xf32>
    %114 = vector.broadcast %113 : vector<1x64xf32> to vector<144x64xf32>
    %115 = arith.addf %112, %114 : vector<144x64xf32>
    %cst_79 = arith.constant 0.000000e+00 : f32
    %116 = vector.broadcast %cst_79 : f32 to vector<144x64xf32>
    %117 = arith.maximumf %115, %116 : vector<144x64xf32>
    %cst_80 = arith.constant 0.000000e+00 : f32
    %118 = vector.shape_cast %49 : vector<144x1xi1> to vector<144x1xi1>
    %119 = vector.broadcast %118 : vector<144x1xi1> to vector<144x64xi1>
    %120 = vector.broadcast %cst_80 : f32 to vector<144x64xf32>
    %121 = arith.select %119, %117, %120 : vector<144x64xi1>, vector<144x64xf32>
    %c19_81 = arith.constant 19 : index
    %c0_82 = arith.constant 0 : index
    %122 = vector.load %arg16[%c19_81, %c0_82] : memref<200x64xf32, #tpu.memory_space<vmem>>, vector<144x64xf32>
    tpu.vector_store %arg16[%c19_81, %c0_82], %121 {strides = array<i32>} : memref<200x64xf32, #tpu.memory_space<vmem>>, vector<144x64xf32>,
    %c0_83 = arith.constant 0 : index
    %c0_84 = arith.constant 0 : index
    %123 = tpu.strided_load %arg16[%c0_83, %c0_84] {strides = array<i32: 2, 1>} : memref<200x64xf32, #tpu.memory_space<vmem>>, vector<72x64xf32>
    %c1_85 = arith.constant 1 : index
    %c0_86 = arith.constant 0 : index
    %124 = tpu.strided_load %arg16[%c1_85, %c0_86] {strides = array<i32: 2, 1>} : memref<200x64xf32, #tpu.memory_space<vmem>>, vector<72x64xf32>
    %c2_87 = arith.constant 2 : index
    %c0_88 = arith.constant 0 : index
    %125 = tpu.strided_load %arg16[%c2_87, %c0_88] {strides = array<i32: 2, 1>} : memref<200x64xf32, #tpu.memory_space<vmem>>, vector<72x64xf32>
    %c18_89 = arith.constant 18 : index
    %c0_90 = arith.constant 0 : index
    %126 = tpu.strided_load %arg16[%c18_89, %c0_90] {strides = array<i32: 2, 1>} : memref<200x64xf32, #tpu.memory_space<vmem>>, vector<72x64xf32>
    %c19_91 = arith.constant 19 : index
    %c0_92 = arith.constant 0 : index
    %127 = tpu.strided_load %arg16[%c19_91, %c0_92] {strides = array<i32: 2, 1>} : memref<200x64xf32, #tpu.memory_space<vmem>>, vector<72x64xf32>
    %c20_93 = arith.constant 20 : index
    %c0_94 = arith.constant 0 : index
    %128 = tpu.strided_load %arg16[%c20_93, %c0_94] {strides = array<i32: 2, 1>} : memref<200x64xf32, #tpu.memory_space<vmem>>, vector<72x64xf32>
    %c36_95 = arith.constant 36 : index
    %c0_96 = arith.constant 0 : index
    %129 = tpu.strided_load %arg16[%c36_95, %c0_96] {strides = array<i32: 2, 1>} : memref<200x64xf32, #tpu.memory_space<vmem>>, vector<72x64xf32>
    %c37_97 = arith.constant 37 : index
    %c0_98 = arith.constant 0 : index
    %130 = tpu.strided_load %arg16[%c37_97, %c0_98] {strides = array<i32: 2, 1>} : memref<200x64xf32, #tpu.memory_space<vmem>>, vector<72x64xf32>
    %c38_99 = arith.constant 38 : index
    %c0_100 = arith.constant 0 : index
    %131 = tpu.strided_load %arg16[%c38_99, %c0_100] {strides = array<i32: 2, 1>} : memref<200x64xf32, #tpu.memory_space<vmem>>, vector<72x64xf32>
    %132 = tpu.concatenate %123, %124, %125, %126, %127, %128, %129, %130, %131 in 1 : vector<72x64xf32>, vector<72x64xf32>, vector<72x64xf32>, vector<72x64xf32>, vector<72x64xf32>, vector<72x64xf32>, vector<72x64xf32>, vector<72x64xf32>, vector<72x64xf32> -> vector<72x576xf32>
    %133 = arith.truncf %132 : vector<72x576xf32> to vector<72x576xbf16>
    %c0_101 = arith.constant 0 : index
    %c0_102 = arith.constant 0 : index
    %134 = vector.load %arg6[%c0_101, %c0_102] : memref<576x128xbf16, #tpu.memory_space<vmem>>, vector<576x128xbf16>
    %cst_103 = arith.constant dense<0.000000e+00> : vector<72x128xf32>
    %135 = tpu.matmul %133, %134, %cst_103 {dimension_numbers = #tpu.dot_dimension_numbers<[1], [0], [0], [1], [0, 0, 1, 1], [], []>} : vector<72x576xbf16>, vector<576x128xbf16>, vector<72x128xf32> -> vector<72x128xf32>
    %c0_104 = arith.constant 0 : index
    %c0_105 = arith.constant 0 : index
    %136 = vector.load %arg7[%c0_104, %c0_105] : memref<1x128xf32, #tpu.memory_space<vmem>>, vector<1x128xf32>
    %137 = vector.broadcast %136 : vector<1x128xf32> to vector<72x128xf32>
    %138 = arith.addf %135, %137 : vector<72x128xf32>
    %cst_106 = arith.constant 0.000000e+00 : f32
    %139 = vector.broadcast %cst_106 : f32 to vector<72x128xf32>
    %140 = arith.maximumf %138, %139 : vector<72x128xf32>
    %cst_107 = arith.constant 0.000000e+00 : f32
    %141 = vector.shape_cast %68 : vector<72x1xi1> to vector<72x1xi1>
    %142 = vector.broadcast %141 : vector<72x1xi1> to vector<72x128xi1>
    %143 = vector.broadcast %cst_107 : f32 to vector<72x128xf32>
    %144 = arith.select %142, %140, %143 : vector<72x128xi1>, vector<72x128xf32>
    %145 = arith.truncf %144 : vector<72x128xf32> to vector<72x128xbf16>
    %c19_108 = arith.constant 19 : index
    %c0_109 = arith.constant 0 : index
    %146 = vector.load %arg17[%c19_108, %c0_109] : memref<128x128xbf16, #tpu.memory_space<vmem>>, vector<72x128xbf16>
    tpu.vector_store %arg17[%c19_108, %c0_109], %145 {strides = array<i32>} : memref<128x128xbf16, #tpu.memory_space<vmem>>, vector<72x128xbf16>,
    %c19_110 = arith.constant 19 : index
    %c0_111 = arith.constant 0 : index
    %147 = vector.load %arg17[%c19_110, %c0_111] : memref<128x128xbf16, #tpu.memory_space<vmem>>, vector<72x128xbf16>
    %c20_112 = arith.constant 20 : index
    %c0_113 = arith.constant 0 : index
    %148 = vector.load %arg17[%c20_112, %c0_113] : memref<128x128xbf16, #tpu.memory_space<vmem>>, vector<72x128xbf16>
    %c37_114 = arith.constant 37 : index
    %c0_115 = arith.constant 0 : index
    %149 = vector.load %arg17[%c37_114, %c0_115] : memref<128x128xbf16, #tpu.memory_space<vmem>>, vector<72x128xbf16>
    %c38_116 = arith.constant 38 : index
    %c0_117 = arith.constant 0 : index
    %150 = vector.load %arg17[%c38_116, %c0_117] : memref<128x128xbf16, #tpu.memory_space<vmem>>, vector<72x128xbf16>
    %151 = tpu.concatenate %147, %148, %149, %150 in 1 : vector<72x128xbf16>, vector<72x128xbf16>, vector<72x128xbf16>, vector<72x128xbf16> -> vector<72x512xbf16>
    %c0_118 = arith.constant 0 : index
    %c0_119 = arith.constant 0 : index
    %152 = vector.load %arg8[%c0_118, %c0_119] : memref<512x256xbf16, #tpu.memory_space<vmem>>, vector<512x256xbf16>
    %cst_120 = arith.constant dense<0.000000e+00> : vector<72x256xf32>
    %153 = tpu.matmul %151, %152, %cst_120 {dimension_numbers = #tpu.dot_dimension_numbers<[1], [0], [0], [1], [0, 0, 1, 1], [], []>} : vector<72x512xbf16>, vector<512x256xbf16>, vector<72x256xf32> -> vector<72x256xf32>
    %c0_121 = arith.constant 0 : index
    %c0_122 = arith.constant 0 : index
    %154 = vector.load %arg9[%c0_121, %c0_122] : memref<1x256xf32, #tpu.memory_space<vmem>>, vector<1x256xf32>
    %155 = vector.broadcast %154 : vector<1x256xf32> to vector<72x256xf32>
    %156 = arith.addf %153, %155 : vector<72x256xf32>
    %cst_123 = arith.constant 0.000000e+00 : f32
    %157 = vector.broadcast %cst_123 : f32 to vector<72x256xf32>
    %158 = arith.maximumf %156, %157 : vector<72x256xf32>
    %159 = vector.extract_strided_slice %158 {offsets = [0, 0], sizes = [4, 256], strides = [1, 1]} : vector<72x256xf32> to vector<4x256xf32>
    %160 = vector.extract_strided_slice %159 {offsets = [0, 0], sizes = [4, 64], strides = [1, 1]} : vector<4x256xf32> to vector<4x64xf32>
    %c19_124 = arith.constant 19 : index
    %c0_125 = arith.constant 0 : index
    %161 = tpu.strided_load %arg16[%c19_124, %c0_125] {strides = array<i32: 2, 1>} : memref<200x64xf32, #tpu.memory_space<vmem>>, vector<4x64xf32>
    tpu.strided_store %arg16[%c19_124, %c0_125], %160 {strides = array<i32: 2, 1>} : memref<200x64xf32, #tpu.memory_space<vmem>>, vector<4x64xf32>
    %162 = vector.extract_strided_slice %159 {offsets = [0, 64], sizes = [4, 64], strides = [1, 1]} : vector<4x256xf32> to vector<4x64xf32>
    %c20_126 = arith.constant 20 : index
    %c0_127 = arith.constant 0 : index
    %163 = tpu.strided_load %arg16[%c20_126, %c0_127] {strides = array<i32: 2, 1>} : memref<200x64xf32, #tpu.memory_space<vmem>>, vector<4x64xf32>
    tpu.strided_store %arg16[%c20_126, %c0_127], %162 {strides = array<i32: 2, 1>} : memref<200x64xf32, #tpu.memory_space<vmem>>, vector<4x64xf32>
    %164 = vector.extract_strided_slice %159 {offsets = [0, 128], sizes = [4, 64], strides = [1, 1]} : vector<4x256xf32> to vector<4x64xf32>
    %c37_128 = arith.constant 37 : index
    %c0_129 = arith.constant 0 : index
    %165 = tpu.strided_load %arg16[%c37_128, %c0_129] {strides = array<i32: 2, 1>} : memref<200x64xf32, #tpu.memory_space<vmem>>, vector<4x64xf32>
    tpu.strided_store %arg16[%c37_128, %c0_129], %164 {strides = array<i32: 2, 1>} : memref<200x64xf32, #tpu.memory_space<vmem>>, vector<4x64xf32>
    %166 = vector.extract_strided_slice %159 {offsets = [0, 192], sizes = [4, 64], strides = [1, 1]} : vector<4x256xf32> to vector<4x64xf32>
    %c38_130 = arith.constant 38 : index
    %c0_131 = arith.constant 0 : index
    %167 = tpu.strided_load %arg16[%c38_130, %c0_131] {strides = array<i32: 2, 1>} : memref<200x64xf32, #tpu.memory_space<vmem>>, vector<4x64xf32>
    tpu.strided_store %arg16[%c38_130, %c0_131], %166 {strides = array<i32: 2, 1>} : memref<200x64xf32, #tpu.memory_space<vmem>>, vector<4x64xf32>
    %168 = vector.extract_strided_slice %158 {offsets = [18, 0], sizes = [4, 256], strides = [1, 1]} : vector<72x256xf32> to vector<4x256xf32>
    %169 = vector.extract_strided_slice %168 {offsets = [0, 0], sizes = [4, 64], strides = [1, 1]} : vector<4x256xf32> to vector<4x64xf32>
    %c55 = arith.constant 55 : index
    %c0_132 = arith.constant 0 : index
    %170 = tpu.strided_load %arg16[%c55, %c0_132] {strides = array<i32: 2, 1>} : memref<200x64xf32, #tpu.memory_space<vmem>>, vector<4x64xf32>
    tpu.strided_store %arg16[%c55, %c0_132], %169 {strides = array<i32: 2, 1>} : memref<200x64xf32, #tpu.memory_space<vmem>>, vector<4x64xf32>
    %171 = vector.extract_strided_slice %168 {offsets = [0, 64], sizes = [4, 64], strides = [1, 1]} : vector<4x256xf32> to vector<4x64xf32>
    %c56 = arith.constant 56 : index
    %c0_133 = arith.constant 0 : index
    %172 = tpu.strided_load %arg16[%c56, %c0_133] {strides = array<i32: 2, 1>} : memref<200x64xf32, #tpu.memory_space<vmem>>, vector<4x64xf32>
    tpu.strided_store %arg16[%c56, %c0_133], %171 {strides = array<i32: 2, 1>} : memref<200x64xf32, #tpu.memory_space<vmem>>, vector<4x64xf32>
    %173 = vector.extract_strided_slice %168 {offsets = [0, 128], sizes = [4, 64], strides = [1, 1]} : vector<4x256xf32> to vector<4x64xf32>
    %c73 = arith.constant 73 : index
    %c0_134 = arith.constant 0 : index
    %174 = tpu.strided_load %arg16[%c73, %c0_134] {strides = array<i32: 2, 1>} : memref<200x64xf32, #tpu.memory_space<vmem>>, vector<4x64xf32>
    tpu.strided_store %arg16[%c73, %c0_134], %173 {strides = array<i32: 2, 1>} : memref<200x64xf32, #tpu.memory_space<vmem>>, vector<4x64xf32>
    %175 = vector.extract_strided_slice %168 {offsets = [0, 192], sizes = [4, 64], strides = [1, 1]} : vector<4x256xf32> to vector<4x64xf32>
    %c74 = arith.constant 74 : index
    %c0_135 = arith.constant 0 : index
    %176 = tpu.strided_load %arg16[%c74, %c0_135] {strides = array<i32: 2, 1>} : memref<200x64xf32, #tpu.memory_space<vmem>>, vector<4x64xf32>
    tpu.strided_store %arg16[%c74, %c0_135], %175 {strides = array<i32: 2, 1>} : memref<200x64xf32, #tpu.memory_space<vmem>>, vector<4x64xf32>
    %177 = vector.extract_strided_slice %158 {offsets = [36, 0], sizes = [4, 256], strides = [1, 1]} : vector<72x256xf32> to vector<4x256xf32>
    %178 = vector.extract_strided_slice %177 {offsets = [0, 0], sizes = [4, 64], strides = [1, 1]} : vector<4x256xf32> to vector<4x64xf32>
    %c91_136 = arith.constant 91 : index
    %c0_137 = arith.constant 0 : index
    %179 = tpu.strided_load %arg16[%c91_136, %c0_137] {strides = array<i32: 2, 1>} : memref<200x64xf32, #tpu.memory_space<vmem>>, vector<4x64xf32>
    tpu.strided_store %arg16[%c91_136, %c0_137], %178 {strides = array<i32: 2, 1>} : memref<200x64xf32, #tpu.memory_space<vmem>>, vector<4x64xf32>
    %180 = vector.extract_strided_slice %177 {offsets = [0, 64], sizes = [4, 64], strides = [1, 1]} : vector<4x256xf32> to vector<4x64xf32>
    %c92 = arith.constant 92 : index
    %c0_138 = arith.constant 0 : index
    %181 = tpu.strided_load %arg16[%c92, %c0_138] {strides = array<i32: 2, 1>} : memref<200x64xf32, #tpu.memory_space<vmem>>, vector<4x64xf32>
    tpu.strided_store %arg16[%c92, %c0_138], %180 {strides = array<i32: 2, 1>} : memref<200x64xf32, #tpu.memory_space<vmem>>, vector<4x64xf32>
    %182 = vector.extract_strided_slice %177 {offsets = [0, 128], sizes = [4, 64], strides = [1, 1]} : vector<4x256xf32> to vector<4x64xf32>
    %c109 = arith.constant 109 : index
    %c0_139 = arith.constant 0 : index
    %183 = tpu.strided_load %arg16[%c109, %c0_139] {strides = array<i32: 2, 1>} : memref<200x64xf32, #tpu.memory_space<vmem>>, vector<4x64xf32>
    tpu.strided_store %arg16[%c109, %c0_139], %182 {strides = array<i32: 2, 1>} : memref<200x64xf32, #tpu.memory_space<vmem>>, vector<4x64xf32>
    %184 = vector.extract_strided_slice %177 {offsets = [0, 192], sizes = [4, 64], strides = [1, 1]} : vector<4x256xf32> to vector<4x64xf32>
    %c110 = arith.constant 110 : index
    %c0_140 = arith.constant 0 : index
    %185 = tpu.strided_load %arg16[%c110, %c0_140] {strides = array<i32: 2, 1>} : memref<200x64xf32, #tpu.memory_space<vmem>>, vector<4x64xf32>
    tpu.strided_store %arg16[%c110, %c0_140], %184 {strides = array<i32: 2, 1>} : memref<200x64xf32, #tpu.memory_space<vmem>>, vector<4x64xf32>
    %186 = vector.extract_strided_slice %158 {offsets = [54, 0], sizes = [4, 256], strides = [1, 1]} : vector<72x256xf32> to vector<4x256xf32>
    %187 = vector.extract_strided_slice %186 {offsets = [0, 0], sizes = [4, 64], strides = [1, 1]} : vector<4x256xf32> to vector<4x64xf32>
    %c127 = arith.constant 127 : index
    %c0_141 = arith.constant 0 : index
    %188 = tpu.strided_load %arg16[%c127, %c0_141] {strides = array<i32: 2, 1>} : memref<200x64xf32, #tpu.memory_space<vmem>>, vector<4x64xf32>
    tpu.strided_store %arg16[%c127, %c0_141], %187 {strides = array<i32: 2, 1>} : memref<200x64xf32, #tpu.memory_space<vmem>>, vector<4x64xf32>
    %189 = vector.extract_strided_slice %186 {offsets = [0, 64], sizes = [4, 64], strides = [1, 1]} : vector<4x256xf32> to vector<4x64xf32>
    %c128 = arith.constant 128 : index
    %c0_142 = arith.constant 0 : index
    %190 = tpu.strided_load %arg16[%c128, %c0_142] {strides = array<i32: 2, 1>} : memref<200x64xf32, #tpu.memory_space<vmem>>, vector<4x64xf32>
    tpu.strided_store %arg16[%c128, %c0_142], %189 {strides = array<i32: 2, 1>} : memref<200x64xf32, #tpu.memory_space<vmem>>, vector<4x64xf32>
    %191 = vector.extract_strided_slice %186 {offsets = [0, 128], sizes = [4, 64], strides = [1, 1]} : vector<4x256xf32> to vector<4x64xf32>
    %c145 = arith.constant 145 : index
    %c0_143 = arith.constant 0 : index
    %192 = tpu.strided_load %arg16[%c145, %c0_143] {strides = array<i32: 2, 1>} : memref<200x64xf32, #tpu.memory_space<vmem>>, vector<4x64xf32>
    tpu.strided_store %arg16[%c145, %c0_143], %191 {strides = array<i32: 2, 1>} : memref<200x64xf32, #tpu.memory_space<vmem>>, vector<4x64xf32>
    %193 = vector.extract_strided_slice %186 {offsets = [0, 192], sizes = [4, 64], strides = [1, 1]} : vector<4x256xf32> to vector<4x64xf32>
    %c146 = arith.constant 146 : index
    %c0_144 = arith.constant 0 : index
    %194 = tpu.strided_load %arg16[%c146, %c0_144] {strides = array<i32: 2, 1>} : memref<200x64xf32, #tpu.memory_space<vmem>>, vector<4x64xf32>
    tpu.strided_store %arg16[%c146, %c0_144], %193 {strides = array<i32: 2, 1>} : memref<200x64xf32, #tpu.memory_space<vmem>>, vector<4x64xf32>
    %c19_145 = arith.constant 19 : index
    %c0_146 = arith.constant 0 : index
    %195 = vector.load %arg16[%c19_145, %c0_146] : memref<200x64xf32, #tpu.memory_space<vmem>>, vector<144x64xf32>
    %c20_147 = arith.constant 20 : index
    %c0_148 = arith.constant 0 : index
    %196 = vector.load %arg16[%c20_147, %c0_148] : memref<200x64xf32, #tpu.memory_space<vmem>>, vector<144x64xf32>
    %c37_149 = arith.constant 37 : index
    %c0_150 = arith.constant 0 : index
    %197 = vector.load %arg16[%c37_149, %c0_150] : memref<200x64xf32, #tpu.memory_space<vmem>>, vector<144x64xf32>
    %c38_151 = arith.constant 38 : index
    %c0_152 = arith.constant 0 : index
    %198 = vector.load %arg16[%c38_151, %c0_152] : memref<200x64xf32, #tpu.memory_space<vmem>>, vector<144x64xf32>
    %199 = tpu.concatenate %195, %196, %197, %198 in 1 : vector<144x64xf32>, vector<144x64xf32>, vector<144x64xf32>, vector<144x64xf32> -> vector<144x256xf32>
    %200 = arith.truncf %199 : vector<144x256xf32> to vector<144x256xbf16>
    %c0_153 = arith.constant 0 : index
    %c0_154 = arith.constant 0 : index
    %201 = vector.load %arg10[%c0_153, %c0_154] : memref<256x128xbf16, #tpu.memory_space<vmem>>, vector<256x128xbf16>
    %cst_155 = arith.constant dense<0.000000e+00> : vector<144x128xf32>
    %202 = tpu.matmul %200, %201, %cst_155 {dimension_numbers = #tpu.dot_dimension_numbers<[1], [0], [0], [1], [0, 0, 1, 1], [], []>} : vector<144x256xbf16>, vector<256x128xbf16>, vector<144x128xf32> -> vector<144x128xf32>
    %c0_156 = arith.constant 0 : index
    %c0_157 = arith.constant 0 : index
    %203 = vector.load %arg11[%c0_156, %c0_157] : memref<1x128xf32, #tpu.memory_space<vmem>>, vector<1x128xf32>
    %204 = vector.broadcast %203 : vector<1x128xf32> to vector<144x128xf32>
    %205 = arith.addf %202, %204 : vector<144x128xf32>
    %cst_158 = arith.constant 0.000000e+00 : f32
    %206 = vector.broadcast %cst_158 : f32 to vector<144x128xf32>
    %207 = arith.maximumf %205, %206 : vector<144x128xf32>
    %208 = vector.extract_strided_slice %207 {offsets = [0, 0], sizes = [8, 128], strides = [1, 1]} : vector<144x128xf32> to vector<8x128xf32>
    %209 = vector.extract_strided_slice %208 {offsets = [0, 0], sizes = [8, 32], strides = [1, 1]} : vector<8x128xf32> to vector<8x32xf32>
    %c19_159 = arith.constant 19 : index
    %c0_160 = arith.constant 0 : index
    %210 = tpu.strided_load %arg15[%c19_159, %c0_160] {strides = array<i32: 2, 1>} : memref<344x32xf32, #tpu.memory_space<vmem>>, vector<8x32xf32>
    tpu.strided_store %arg15[%c19_159, %c0_160], %209 {strides = array<i32: 2, 1>} : memref<344x32xf32, #tpu.memory_space<vmem>>, vector<8x32xf32>
    %211 = vector.extract_strided_slice %208 {offsets = [0, 32], sizes = [8, 32], strides = [1, 1]} : vector<8x128xf32> to vector<8x32xf32>
    %c20_161 = arith.constant 20 : index
    %c0_162 = arith.constant 0 : index
    %212 = tpu.strided_load %arg15[%c20_161, %c0_162] {strides = array<i32: 2, 1>} : memref<344x32xf32, #tpu.memory_space<vmem>>, vector<8x32xf32>
    tpu.strided_store %arg15[%c20_161, %c0_162], %211 {strides = array<i32: 2, 1>} : memref<344x32xf32, #tpu.memory_space<vmem>>, vector<8x32xf32>
    %213 = vector.extract_strided_slice %208 {offsets = [0, 64], sizes = [8, 32], strides = [1, 1]} : vector<8x128xf32> to vector<8x32xf32>
    %c37_163 = arith.constant 37 : index
    %c0_164 = arith.constant 0 : index
    %214 = tpu.strided_load %arg15[%c37_163, %c0_164] {strides = array<i32: 2, 1>} : memref<344x32xf32, #tpu.memory_space<vmem>>, vector<8x32xf32>
    tpu.strided_store %arg15[%c37_163, %c0_164], %213 {strides = array<i32: 2, 1>} : memref<344x32xf32, #tpu.memory_space<vmem>>, vector<8x32xf32>
    %215 = vector.extract_strided_slice %208 {offsets = [0, 96], sizes = [8, 32], strides = [1, 1]} : vector<8x128xf32> to vector<8x32xf32>
    %c38_165 = arith.constant 38 : index
    %c0_166 = arith.constant 0 : index
    %216 = tpu.strided_load %arg15[%c38_165, %c0_166] {strides = array<i32: 2, 1>} : memref<344x32xf32, #tpu.memory_space<vmem>>, vector<8x32xf32>
    tpu.strided_store %arg15[%c38_165, %c0_166], %215 {strides = array<i32: 2, 1>} : memref<344x32xf32, #tpu.memory_space<vmem>>, vector<8x32xf32>
    %217 = vector.extract_strided_slice %207 {offsets = [18, 0], sizes = [8, 128], strides = [1, 1]} : vector<144x128xf32> to vector<8x128xf32>
    %218 = vector.extract_strided_slice %217 {offsets = [0, 0], sizes = [8, 32], strides = [1, 1]} : vector<8x128xf32> to vector<8x32xf32>
    %c55_167 = arith.constant 55 : index
    %c0_168 = arith.constant 0 : index
    %219 = tpu.strided_load %arg15[%c55_167, %c0_168] {strides = array<i32: 2, 1>} : memref<344x32xf32, #tpu.memory_space<vmem>>, vector<8x32xf32>
    tpu.strided_store %arg15[%c55_167, %c0_168], %218 {strides = array<i32: 2, 1>} : memref<344x32xf32, #tpu.memory_space<vmem>>, vector<8x32xf32>
    %220 = vector.extract_strided_slice %217 {offsets = [0, 32], sizes = [8, 32], strides = [1, 1]} : vector<8x128xf32> to vector<8x32xf32>
    %c56_169 = arith.constant 56 : index
    %c0_170 = arith.constant 0 : index
    %221 = tpu.strided_load %arg15[%c56_169, %c0_170] {strides = array<i32: 2, 1>} : memref<344x32xf32, #tpu.memory_space<vmem>>, vector<8x32xf32>
    tpu.strided_store %arg15[%c56_169, %c0_170], %220 {strides = array<i32: 2, 1>} : memref<344x32xf32, #tpu.memory_space<vmem>>, vector<8x32xf32>
    %222 = vector.extract_strided_slice %217 {offsets = [0, 64], sizes = [8, 32], strides = [1, 1]} : vector<8x128xf32> to vector<8x32xf32>
    %c73_171 = arith.constant 73 : index
    %c0_172 = arith.constant 0 : index
    %223 = tpu.strided_load %arg15[%c73_171, %c0_172] {strides = array<i32: 2, 1>} : memref<344x32xf32, #tpu.memory_space<vmem>>, vector<8x32xf32>
    tpu.strided_store %arg15[%c73_171, %c0_172], %222 {strides = array<i32: 2, 1>} : memref<344x32xf32, #tpu.memory_space<vmem>>, vector<8x32xf32>
    %224 = vector.extract_strided_slice %217 {offsets = [0, 96], sizes = [8, 32], strides = [1, 1]} : vector<8x128xf32> to vector<8x32xf32>
    %c74_173 = arith.constant 74 : index
    %c0_174 = arith.constant 0 : index
    %225 = tpu.strided_load %arg15[%c74_173, %c0_174] {strides = array<i32: 2, 1>} : memref<344x32xf32, #tpu.memory_space<vmem>>, vector<8x32xf32>
    tpu.strided_store %arg15[%c74_173, %c0_174], %224 {strides = array<i32: 2, 1>} : memref<344x32xf32, #tpu.memory_space<vmem>>, vector<8x32xf32>
    %226 = vector.extract_strided_slice %207 {offsets = [36, 0], sizes = [8, 128], strides = [1, 1]} : vector<144x128xf32> to vector<8x128xf32>
    %227 = vector.extract_strided_slice %226 {offsets = [0, 0], sizes = [8, 32], strides = [1, 1]} : vector<8x128xf32> to vector<8x32xf32>
    %c91_175 = arith.constant 91 : index
    %c0_176 = arith.constant 0 : index
    %228 = tpu.strided_load %arg15[%c91_175, %c0_176] {strides = array<i32: 2, 1>} : memref<344x32xf32, #tpu.memory_space<vmem>>, vector<8x32xf32>
    tpu.strided_store %arg15[%c91_175, %c0_176], %227 {strides = array<i32: 2, 1>} : memref<344x32xf32, #tpu.memory_space<vmem>>, vector<8x32xf32>
    %229 = vector.extract_strided_slice %226 {offsets = [0, 32], sizes = [8, 32], strides = [1, 1]} : vector<8x128xf32> to vector<8x32xf32>
    %c92_177 = arith.constant 92 : index
    %c0_178 = arith.constant 0 : index
    %230 = tpu.strided_load %arg15[%c92_177, %c0_178] {strides = array<i32: 2, 1>} : memref<344x32xf32, #tpu.memory_space<vmem>>, vector<8x32xf32>
    tpu.strided_store %arg15[%c92_177, %c0_178], %229 {strides = array<i32: 2, 1>} : memref<344x32xf32, #tpu.memory_space<vmem>>, vector<8x32xf32>
    %231 = vector.extract_strided_slice %226 {offsets = [0, 64], sizes = [8, 32], strides = [1, 1]} : vector<8x128xf32> to vector<8x32xf32>
    %c109_179 = arith.constant 109 : index
    %c0_180 = arith.constant 0 : index
    %232 = tpu.strided_load %arg15[%c109_179, %c0_180] {strides = array<i32: 2, 1>} : memref<344x32xf32, #tpu.memory_space<vmem>>, vector<8x32xf32>
    tpu.strided_store %arg15[%c109_179, %c0_180], %231 {strides = array<i32: 2, 1>} : memref<344x32xf32, #tpu.memory_space<vmem>>, vector<8x32xf32>
    %233 = vector.extract_strided_slice %226 {offsets = [0, 96], sizes = [8, 32], strides = [1, 1]} : vector<8x128xf32> to vector<8x32xf32>
    %c110_181 = arith.constant 110 : index
    %c0_182 = arith.constant 0 : index
    %234 = tpu.strided_load %arg15[%c110_181, %c0_182] {strides = array<i32: 2, 1>} : memref<344x32xf32, #tpu.memory_space<vmem>>, vector<8x32xf32>
    tpu.strided_store %arg15[%c110_181, %c0_182], %233 {strides = array<i32: 2, 1>} : memref<344x32xf32, #tpu.memory_space<vmem>>, vector<8x32xf32>
    %235 = vector.extract_strided_slice %207 {offsets = [54, 0], sizes = [8, 128], strides = [1, 1]} : vector<144x128xf32> to vector<8x128xf32>
    %236 = vector.extract_strided_slice %235 {offsets = [0, 0], sizes = [8, 32], strides = [1, 1]} : vector<8x128xf32> to vector<8x32xf32>
    %c127_183 = arith.constant 127 : index
    %c0_184 = arith.constant 0 : index
    %237 = tpu.strided_load %arg15[%c127_183, %c0_184] {strides = array<i32: 2, 1>} : memref<344x32xf32, #tpu.memory_space<vmem>>, vector<8x32xf32>
    tpu.strided_store %arg15[%c127_183, %c0_184], %236 {strides = array<i32: 2, 1>} : memref<344x32xf32, #tpu.memory_space<vmem>>, vector<8x32xf32>
    %238 = vector.extract_strided_slice %235 {offsets = [0, 32], sizes = [8, 32], strides = [1, 1]} : vector<8x128xf32> to vector<8x32xf32>
    %c128_185 = arith.constant 128 : index
    %c0_186 = arith.constant 0 : index
    %239 = tpu.strided_load %arg15[%c128_185, %c0_186] {strides = array<i32: 2, 1>} : memref<344x32xf32, #tpu.memory_space<vmem>>, vector<8x32xf32>
    tpu.strided_store %arg15[%c128_185, %c0_186], %238 {strides = array<i32: 2, 1>} : memref<344x32xf32, #tpu.memory_space<vmem>>, vector<8x32xf32>
    %240 = vector.extract_strided_slice %235 {offsets = [0, 64], sizes = [8, 32], strides = [1, 1]} : vector<8x128xf32> to vector<8x32xf32>
    %c145_187 = arith.constant 145 : index
    %c0_188 = arith.constant 0 : index
    %241 = tpu.strided_load %arg15[%c145_187, %c0_188] {strides = array<i32: 2, 1>} : memref<344x32xf32, #tpu.memory_space<vmem>>, vector<8x32xf32>
    tpu.strided_store %arg15[%c145_187, %c0_188], %240 {strides = array<i32: 2, 1>} : memref<344x32xf32, #tpu.memory_space<vmem>>, vector<8x32xf32>
    %242 = vector.extract_strided_slice %235 {offsets = [0, 96], sizes = [8, 32], strides = [1, 1]} : vector<8x128xf32> to vector<8x32xf32>
    %c146_189 = arith.constant 146 : index
    %c0_190 = arith.constant 0 : index
    %243 = tpu.strided_load %arg15[%c146_189, %c0_190] {strides = array<i32: 2, 1>} : memref<344x32xf32, #tpu.memory_space<vmem>>, vector<8x32xf32>
    tpu.strided_store %arg15[%c146_189, %c0_190], %242 {strides = array<i32: 2, 1>} : memref<344x32xf32, #tpu.memory_space<vmem>>, vector<8x32xf32>
    %244 = vector.extract_strided_slice %207 {offsets = [72, 0], sizes = [8, 128], strides = [1, 1]} : vector<144x128xf32> to vector<8x128xf32>
    %245 = vector.extract_strided_slice %244 {offsets = [0, 0], sizes = [8, 32], strides = [1, 1]} : vector<8x128xf32> to vector<8x32xf32>
    %c163_191 = arith.constant 163 : index
    %c0_192 = arith.constant 0 : index
    %246 = tpu.strided_load %arg15[%c163_191, %c0_192] {strides = array<i32: 2, 1>} : memref<344x32xf32, #tpu.memory_space<vmem>>, vector<8x32xf32>
    tpu.strided_store %arg15[%c163_191, %c0_192], %245 {strides = array<i32: 2, 1>} : memref<344x32xf32, #tpu.memory_space<vmem>>, vector<8x32xf32>
    %247 = vector.extract_strided_slice %244 {offsets = [0, 32], sizes = [8, 32], strides = [1, 1]} : vector<8x128xf32> to vector<8x32xf32>
    %c164 = arith.constant 164 : index
    %c0_193 = arith.constant 0 : index
    %248 = tpu.strided_load %arg15[%c164, %c0_193] {strides = array<i32: 2, 1>} : memref<344x32xf32, #tpu.memory_space<vmem>>, vector<8x32xf32>
    tpu.strided_store %arg15[%c164, %c0_193], %247 {strides = array<i32: 2, 1>} : memref<344x32xf32, #tpu.memory_space<vmem>>, vector<8x32xf32>
    %249 = vector.extract_strided_slice %244 {offsets = [0, 64], sizes = [8, 32], strides = [1, 1]} : vector<8x128xf32> to vector<8x32xf32>
    %c181 = arith.constant 181 : index
    %c0_194 = arith.constant 0 : index
    %250 = tpu.strided_load %arg15[%c181, %c0_194] {strides = array<i32: 2, 1>} : memref<344x32xf32, #tpu.memory_space<vmem>>, vector<8x32xf32>
    tpu.strided_store %arg15[%c181, %c0_194], %249 {strides = array<i32: 2, 1>} : memref<344x32xf32, #tpu.memory_space<vmem>>, vector<8x32xf32>
    %251 = vector.extract_strided_slice %244 {offsets = [0, 96], sizes = [8, 32], strides = [1, 1]} : vector<8x128xf32> to vector<8x32xf32>
    %c182 = arith.constant 182 : index
    %c0_195 = arith.constant 0 : index
    %252 = tpu.strided_load %arg15[%c182, %c0_195] {strides = array<i32: 2, 1>} : memref<344x32xf32, #tpu.memory_space<vmem>>, vector<8x32xf32>
    tpu.strided_store %arg15[%c182, %c0_195], %251 {strides = array<i32: 2, 1>} : memref<344x32xf32, #tpu.memory_space<vmem>>, vector<8x32xf32>
    %253 = vector.extract_strided_slice %207 {offsets = [90, 0], sizes = [8, 128], strides = [1, 1]} : vector<144x128xf32> to vector<8x128xf32>
    %254 = vector.extract_strided_slice %253 {offsets = [0, 0], sizes = [8, 32], strides = [1, 1]} : vector<8x128xf32> to vector<8x32xf32>
    %c199 = arith.constant 199 : index
    %c0_196 = arith.constant 0 : index
    %255 = tpu.strided_load %arg15[%c199, %c0_196] {strides = array<i32: 2, 1>} : memref<344x32xf32, #tpu.memory_space<vmem>>, vector<8x32xf32>
    tpu.strided_store %arg15[%c199, %c0_196], %254 {strides = array<i32: 2, 1>} : memref<344x32xf32, #tpu.memory_space<vmem>>, vector<8x32xf32>
    %256 = vector.extract_strided_slice %253 {offsets = [0, 32], sizes = [8, 32], strides = [1, 1]} : vector<8x128xf32> to vector<8x32xf32>
    %c200 = arith.constant 200 : index
    %c0_197 = arith.constant 0 : index
    %257 = tpu.strided_load %arg15[%c200, %c0_197] {strides = array<i32: 2, 1>} : memref<344x32xf32, #tpu.memory_space<vmem>>, vector<8x32xf32>
    tpu.strided_store %arg15[%c200, %c0_197], %256 {strides = array<i32: 2, 1>} : memref<344x32xf32, #tpu.memory_space<vmem>>, vector<8x32xf32>
    %258 = vector.extract_strided_slice %253 {offsets = [0, 64], sizes = [8, 32], strides = [1, 1]} : vector<8x128xf32> to vector<8x32xf32>
    %c217 = arith.constant 217 : index
    %c0_198 = arith.constant 0 : index
    %259 = tpu.strided_load %arg15[%c217, %c0_198] {strides = array<i32: 2, 1>} : memref<344x32xf32, #tpu.memory_space<vmem>>, vector<8x32xf32>
    tpu.strided_store %arg15[%c217, %c0_198], %258 {strides = array<i32: 2, 1>} : memref<344x32xf32, #tpu.memory_space<vmem>>, vector<8x32xf32>
    %260 = vector.extract_strided_slice %253 {offsets = [0, 96], sizes = [8, 32], strides = [1, 1]} : vector<8x128xf32> to vector<8x32xf32>
    %c218 = arith.constant 218 : index
    %c0_199 = arith.constant 0 : index
    %261 = tpu.strided_load %arg15[%c218, %c0_199] {strides = array<i32: 2, 1>} : memref<344x32xf32, #tpu.memory_space<vmem>>, vector<8x32xf32>
    tpu.strided_store %arg15[%c218, %c0_199], %260 {strides = array<i32: 2, 1>} : memref<344x32xf32, #tpu.memory_space<vmem>>, vector<8x32xf32>
    %262 = vector.extract_strided_slice %207 {offsets = [108, 0], sizes = [8, 128], strides = [1, 1]} : vector<144x128xf32> to vector<8x128xf32>
    %263 = vector.extract_strided_slice %262 {offsets = [0, 0], sizes = [8, 32], strides = [1, 1]} : vector<8x128xf32> to vector<8x32xf32>
    %c235 = arith.constant 235 : index
    %c0_200 = arith.constant 0 : index
    %264 = tpu.strided_load %arg15[%c235, %c0_200] {strides = array<i32: 2, 1>} : memref<344x32xf32, #tpu.memory_space<vmem>>, vector<8x32xf32>
    tpu.strided_store %arg15[%c235, %c0_200], %263 {strides = array<i32: 2, 1>} : memref<344x32xf32, #tpu.memory_space<vmem>>, vector<8x32xf32>
    %265 = vector.extract_strided_slice %262 {offsets = [0, 32], sizes = [8, 32], strides = [1, 1]} : vector<8x128xf32> to vector<8x32xf32>
    %c236 = arith.constant 236 : index
    %c0_201 = arith.constant 0 : index
    %266 = tpu.strided_load %arg15[%c236, %c0_201] {strides = array<i32: 2, 1>} : memref<344x32xf32, #tpu.memory_space<vmem>>, vector<8x32xf32>
    tpu.strided_store %arg15[%c236, %c0_201], %265 {strides = array<i32: 2, 1>} : memref<344x32xf32, #tpu.memory_space<vmem>>, vector<8x32xf32>
    %267 = vector.extract_strided_slice %262 {offsets = [0, 64], sizes = [8, 32], strides = [1, 1]} : vector<8x128xf32> to vector<8x32xf32>
    %c253 = arith.constant 253 : index
    %c0_202 = arith.constant 0 : index
    %268 = tpu.strided_load %arg15[%c253, %c0_202] {strides = array<i32: 2, 1>} : memref<344x32xf32, #tpu.memory_space<vmem>>, vector<8x32xf32>
    tpu.strided_store %arg15[%c253, %c0_202], %267 {strides = array<i32: 2, 1>} : memref<344x32xf32, #tpu.memory_space<vmem>>, vector<8x32xf32>
    %269 = vector.extract_strided_slice %262 {offsets = [0, 96], sizes = [8, 32], strides = [1, 1]} : vector<8x128xf32> to vector<8x32xf32>
    %c254 = arith.constant 254 : index
    %c0_203 = arith.constant 0 : index
    %270 = tpu.strided_load %arg15[%c254, %c0_203] {strides = array<i32: 2, 1>} : memref<344x32xf32, #tpu.memory_space<vmem>>, vector<8x32xf32>
    tpu.strided_store %arg15[%c254, %c0_203], %269 {strides = array<i32: 2, 1>} : memref<344x32xf32, #tpu.memory_space<vmem>>, vector<8x32xf32>
    %271 = vector.extract_strided_slice %207 {offsets = [126, 0], sizes = [8, 128], strides = [1, 1]} : vector<144x128xf32> to vector<8x128xf32>
    %272 = vector.extract_strided_slice %271 {offsets = [0, 0], sizes = [8, 32], strides = [1, 1]} : vector<8x128xf32> to vector<8x32xf32>
    %c271 = arith.constant 271 : index
    %c0_204 = arith.constant 0 : index
    %273 = tpu.strided_load %arg15[%c271, %c0_204] {strides = array<i32: 2, 1>} : memref<344x32xf32, #tpu.memory_space<vmem>>, vector<8x32xf32>
    tpu.strided_store %arg15[%c271, %c0_204], %272 {strides = array<i32: 2, 1>} : memref<344x32xf32, #tpu.memory_space<vmem>>, vector<8x32xf32>
    %274 = vector.extract_strided_slice %271 {offsets = [0, 32], sizes = [8, 32], strides = [1, 1]} : vector<8x128xf32> to vector<8x32xf32>
    %c272 = arith.constant 272 : index
    %c0_205 = arith.constant 0 : index
    %275 = tpu.strided_load %arg15[%c272, %c0_205] {strides = array<i32: 2, 1>} : memref<344x32xf32, #tpu.memory_space<vmem>>, vector<8x32xf32>
    tpu.strided_store %arg15[%c272, %c0_205], %274 {strides = array<i32: 2, 1>} : memref<344x32xf32, #tpu.memory_space<vmem>>, vector<8x32xf32>
    %276 = vector.extract_strided_slice %271 {offsets = [0, 64], sizes = [8, 32], strides = [1, 1]} : vector<8x128xf32> to vector<8x32xf32>
    %c289 = arith.constant 289 : index
    %c0_206 = arith.constant 0 : index
    %277 = tpu.strided_load %arg15[%c289, %c0_206] {strides = array<i32: 2, 1>} : memref<344x32xf32, #tpu.memory_space<vmem>>, vector<8x32xf32>
    tpu.strided_store %arg15[%c289, %c0_206], %276 {strides = array<i32: 2, 1>} : memref<344x32xf32, #tpu.memory_space<vmem>>, vector<8x32xf32>
    %278 = vector.extract_strided_slice %271 {offsets = [0, 96], sizes = [8, 32], strides = [1, 1]} : vector<8x128xf32> to vector<8x32xf32>
    %c290 = arith.constant 290 : index
    %c0_207 = arith.constant 0 : index
    %279 = tpu.strided_load %arg15[%c290, %c0_207] {strides = array<i32: 2, 1>} : memref<344x32xf32, #tpu.memory_space<vmem>>, vector<8x32xf32>
    tpu.strided_store %arg15[%c290, %c0_207], %278 {strides = array<i32: 2, 1>} : memref<344x32xf32, #tpu.memory_space<vmem>>, vector<8x32xf32>
    %c0_208 = arith.constant 0 : index
    %c0_209 = arith.constant 0 : index
    %280 = vector.load %arg15[%c0_208, %c0_209] : memref<344x32xf32, #tpu.memory_space<vmem>>, vector<288x32xf32>
    %c1_210 = arith.constant 1 : index
    %c0_211 = arith.constant 0 : index
    %281 = vector.load %arg15[%c1_210, %c0_211] : memref<344x32xf32, #tpu.memory_space<vmem>>, vector<288x32xf32>
    %c2_212 = arith.constant 2 : index
    %c0_213 = arith.constant 0 : index
    %282 = vector.load %arg15[%c2_212, %c0_213] : memref<344x32xf32, #tpu.memory_space<vmem>>, vector<288x32xf32>
    %c18_214 = arith.constant 18 : index
    %c0_215 = arith.constant 0 : index
    %283 = vector.load %arg15[%c18_214, %c0_215] : memref<344x32xf32, #tpu.memory_space<vmem>>, vector<288x32xf32>
    %c19_216 = arith.constant 19 : index
    %c0_217 = arith.constant 0 : index
    %284 = vector.load %arg15[%c19_216, %c0_217] : memref<344x32xf32, #tpu.memory_space<vmem>>, vector<288x32xf32>
    %c20_218 = arith.constant 20 : index
    %c0_219 = arith.constant 0 : index
    %285 = vector.load %arg15[%c20_218, %c0_219] : memref<344x32xf32, #tpu.memory_space<vmem>>, vector<288x32xf32>
    %c36_220 = arith.constant 36 : index
    %c0_221 = arith.constant 0 : index
    %286 = vector.load %arg15[%c36_220, %c0_221] : memref<344x32xf32, #tpu.memory_space<vmem>>, vector<288x32xf32>
    %c37_222 = arith.constant 37 : index
    %c0_223 = arith.constant 0 : index
    %287 = vector.load %arg15[%c37_222, %c0_223] : memref<344x32xf32, #tpu.memory_space<vmem>>, vector<288x32xf32>
    %c38_224 = arith.constant 38 : index
    %c0_225 = arith.constant 0 : index
    %288 = vector.load %arg15[%c38_224, %c0_225] : memref<344x32xf32, #tpu.memory_space<vmem>>, vector<288x32xf32>
    %289 = tpu.concatenate %280, %281, %282, %283, %284, %285, %286, %287, %288 in 1 : vector<288x32xf32>, vector<288x32xf32>, vector<288x32xf32>, vector<288x32xf32>, vector<288x32xf32>, vector<288x32xf32>, vector<288x32xf32>, vector<288x32xf32>, vector<288x32xf32> -> vector<288x288xf32>
    %290 = arith.truncf %289 : vector<288x288xf32> to vector<288x288xbf16>
    %c0_226 = arith.constant 0 : index
    %c0_227 = arith.constant 0 : index
    %291 = vector.load %arg12[%c0_226, %c0_227] : memref<288x3xbf16, #tpu.memory_space<vmem>>, vector<288x3xbf16>
    %cst_228 = arith.constant dense<0.000000e+00> : vector<288x3xf32>
    %292 = tpu.matmul %290, %291, %cst_228 {dimension_numbers = #tpu.dot_dimension_numbers<[1], [0], [0], [1], [0, 0, 1, 1], [], []>} : vector<288x288xbf16>, vector<288x3xbf16>, vector<288x3xf32> -> vector<288x3xf32>
    %c0_229 = arith.constant 0 : index
    %c0_230 = arith.constant 0 : index
    %293 = vector.load %arg13[%c0_229, %c0_230] : memref<1x3xf32, #tpu.memory_space<vmem>>, vector<1x3xf32>
    %294 = vector.broadcast %293 : vector<1x3xf32> to vector<288x3xf32>
    %295 = arith.addf %292, %294 : vector<288x3xf32>
    %296 = arith.negf %295 : vector<288x3xf32>
    %297 = math.exp %296 : vector<288x3xf32>
    %cst_231 = arith.constant 1.000000e+00 : f32
    %298 = vector.broadcast %cst_231 : f32 to vector<288x3xf32>
    %299 = arith.addf %298, %297 : vector<288x3xf32>
    %300 = arith.divf %298, %299 : vector<288x3xf32>
    %c0_232 = arith.constant 0 : index
    %c0_233 = arith.constant 0 : index
    %c0_234 = arith.constant 0 : index
    %301 = vector.load %arg14[%c0_232, %c0_233, %c0_234] : memref<1x288x3xf32, #tpu.memory_space<vmem>>, vector<1x288x3xf32>
    %302 = vector.shape_cast %301 : vector<1x288x3xf32> to vector<288x3xf32>
    %303 = vector.shape_cast %300 : vector<288x3xf32> to vector<1x288x3xf32>
    tpu.vector_store %arg14[%c0_232, %c0_233, %c0_234], %303 {strides = array<i32>} : memref<1x288x3xf32, #tpu.memory_space<vmem>>, vector<1x288x3xf32>,
    return
  }
  func.func @transform_0(%arg0: i32) -> (i32, i32, i32) {
    %c0_i32 = arith.constant 0 : i32
    %c0_i32_0 = arith.constant 0 : i32
    %c0_i32_1 = arith.constant 0 : i32
    return %arg0, %c0_i32, %c0_i32_0 : i32, i32, i32
  }
  func.func @transform_1(%arg0: i32) -> (i32, i32) {
    %c0_i32 = arith.constant 0 : i32
    %c0_i32_0 = arith.constant 0 : i32
    %c0_i32_1 = arith.constant 0 : i32
    return %c0_i32, %c0_i32_0 : i32, i32
  }
  func.func @transform_2(%arg0: i32) -> (i32, i32) {
    %c0_i32 = arith.constant 0 : i32
    %c0_i32_0 = arith.constant 0 : i32
    %c0_i32_1 = arith.constant 0 : i32
    return %c0_i32, %c0_i32_0 : i32, i32
  }
  func.func @transform_3(%arg0: i32) -> (i32, i32) {
    %c0_i32 = arith.constant 0 : i32
    %c0_i32_0 = arith.constant 0 : i32
    %c0_i32_1 = arith.constant 0 : i32
    return %c0_i32, %c0_i32_0 : i32, i32
  }
  func.func @transform_4(%arg0: i32) -> (i32, i32) {
    %c0_i32 = arith.constant 0 : i32
    %c0_i32_0 = arith.constant 0 : i32
    %c0_i32_1 = arith.constant 0 : i32
    return %c0_i32, %c0_i32_0 : i32, i32
  }
  func.func @transform_5(%arg0: i32) -> (i32, i32) {
    %c0_i32 = arith.constant 0 : i32
    %c0_i32_0 = arith.constant 0 : i32
    %c0_i32_1 = arith.constant 0 : i32
    return %c0_i32, %c0_i32_0 : i32, i32
  }
  func.func @transform_6(%arg0: i32) -> (i32, i32) {
    %c0_i32 = arith.constant 0 : i32
    %c0_i32_0 = arith.constant 0 : i32
    %c0_i32_1 = arith.constant 0 : i32
    return %c0_i32, %c0_i32_0 : i32, i32
  }
  func.func @transform_7(%arg0: i32) -> (i32, i32) {
    %c0_i32 = arith.constant 0 : i32
    %c0_i32_0 = arith.constant 0 : i32
    %c0_i32_1 = arith.constant 0 : i32
    return %c0_i32, %c0_i32_0 : i32, i32
  }
  func.func @transform_8(%arg0: i32) -> (i32, i32) {
    %c0_i32 = arith.constant 0 : i32
    %c0_i32_0 = arith.constant 0 : i32
    %c0_i32_1 = arith.constant 0 : i32
    return %c0_i32, %c0_i32_0 : i32, i32
  }
  func.func @transform_9(%arg0: i32) -> (i32, i32) {
    %c0_i32 = arith.constant 0 : i32
    %c0_i32_0 = arith.constant 0 : i32
    %c0_i32_1 = arith.constant 0 : i32
    return %c0_i32, %c0_i32_0 : i32, i32
  }
  func.func @transform_10(%arg0: i32) -> (i32, i32) {
    %c0_i32 = arith.constant 0 : i32
    %c0_i32_0 = arith.constant 0 : i32
    %c0_i32_1 = arith.constant 0 : i32
    return %c0_i32, %c0_i32_0 : i32, i32
  }
  func.func @transform_11(%arg0: i32) -> (i32, i32) {
    %c0_i32 = arith.constant 0 : i32
    %c0_i32_0 = arith.constant 0 : i32
    %c0_i32_1 = arith.constant 0 : i32
    return %c0_i32, %c0_i32_0 : i32, i32
  }
  func.func @transform_12(%arg0: i32) -> (i32, i32) {
    %c0_i32 = arith.constant 0 : i32
    %c0_i32_0 = arith.constant 0 : i32
    %c0_i32_1 = arith.constant 0 : i32
    return %c0_i32, %c0_i32_0 : i32, i32
  }
  func.func @transform_13(%arg0: i32) -> (i32, i32, i32) {
    %c0_i32 = arith.constant 0 : i32
    %c0_i32_0 = arith.constant 0 : i32
    %c0_i32_1 = arith.constant 0 : i32
    return %arg0, %c0_i32, %c0_i32_0 : i32, i32, i32
  }
}

</mosaic_0001>

<llo_original>
// kernel: carpet_patch_autoencoder.1
$region0: #{carpet_patch_autoencoder.1}
  #allocation0 [shape = 'u32[]', space=smem, size = 0x4, offset = 0x4, fixed_abs, tag = 'smem constant byte address 0x4 - core index']
  #allocation1 [shape = 'u32[144,128]{1,0:T(1,128)}', space=vmem, size = 0x12000, scoped, tag = 'internal scratch']
  #allocation2 [shape = 'f32[344,32]{1,0:T(8,128)}', space=vmem, size = 0x2b000, scoped, tag = 'scratch operand']
  #allocation3 [shape = 'f32[200,64]{1,0:T(8,128)}', space=vmem, size = 0x19000, scoped, tag = 'scratch operand']
  #allocation4 [shape = 'bf16[128,128]{1,0:T(8,128)(2,1)}', space=vmem, size = 0x8000, scoped, tag = 'scratch operand']
  %s0 = inlined_call_operand.vmem [shape: bf16[2,342,3], index: 0, kind: input, shape index: {}]
  %s1 = inlined_call_operand.vmem [shape: bf16[27,32], index: 1, kind: input, shape index: {}]
  %s2 = inlined_call_operand.vmem [shape: f32[1,32], index: 2, kind: input, shape index: {}]
  %s3 = inlined_call_operand.vmem [shape: bf16[288,64], index: 3, kind: input, shape index: {}]
  %s4 = inlined_call_operand.vmem [shape: f32[1,64], index: 4, kind: input, shape index: {}]
  %s5 = inlined_call_operand.vmem [shape: bf16[576,128], index: 5, kind: input, shape index: {}]
  %s6 = inlined_call_operand.vmem [shape: f32[1,128], index: 6, kind: input, shape index: {}]
  %s7 = inlined_call_operand.vmem [shape: bf16[512,256], index: 7, kind: input, shape index: {}]
  %s8 = inlined_call_operand.vmem [shape: f32[1,256], index: 8, kind: input, shape index: {}]
  %s9 = inlined_call_operand.vmem [shape: bf16[256,128], index: 9, kind: input, shape index: {}]
  %s10 = inlined_call_operand.vmem [shape: f32[1,128], index: 10, kind: input, shape index: {}]
  %s11 = inlined_call_operand.vmem [shape: bf16[288,3], index: 11, kind: input, shape index: {}]
  %s12 = inlined_call_operand.vmem [shape: f32[1,3], index: 12, kind: input, shape index: {}]
  %s13 = inlined_call_operand.vmem [shape: f32[2,288,3], index: 13, kind: output, shape index: {}]
  %s14 = sld [smem:[#allocation0]]
  $region85: #{carpet_patch_autoencoder.1} parent=0
    _
  %s16 = ssub.s32 1, %s14
  %s17 = scalar_select 0, %s16, %s14
  loop: start=0, step=1, limit=4
  $region2: #{carpet_patch_autoencoder.1} parent=0 // loop_pre_header
    _
  $region3: #{carpet_patch_autoencoder.1} parent=0 // loop_header
    %s19 = sphi 0, %s23
    %p20 = scmp.ge.s32.totalorder %s19, 4
    %s29 = sphi 0, %s31
    %s32 = sphi 0, %s29
    %s33 = sphi 0, %s32
    %s49 = sphi 0, %s33
    %s53 = sphi 0, %s53
    %s55 = sphi 0, %s53
    %s56 = sphi 0, %s55
    %s70 = sphi 0, %s56
    %s74 = sphi 0, %s74
    %s76 = sphi 0, %s74
    %s77 = sphi 0, %s76
    %s91 = sphi 0, %s77
    %s95 = sphi 0, %s95
    %s97 = sphi 0, %s95
    %s98 = sphi 0, %s97
    %s112 = sphi 0, %s98
    %s116 = sphi 0, %s116
    %s118 = sphi 0, %s116
    %s119 = sphi 0, %s118
    %s133 = sphi 0, %s119
    %s137 = sphi 0, %s137
    %s139 = sphi 0, %s137
    %s140 = sphi 0, %s139
    %s154 = sphi 0, %s140
    %s158 = sphi 0, %s158
    %s160 = sphi 0, %s158
    %s161 = sphi 0, %s160
    %s175 = sphi 0, %s161
    %s179 = sphi 0, %s179
    %s181 = sphi 0, %s179
    %s182 = sphi 0, %s181
    %s196 = sphi 0, %s182
    %s200 = sphi 0, %s200
    %s202 = sphi 0, %s200
    %s203 = sphi 0, %s202
    %s217 = sphi 0, %s203
    %s221 = sphi 0, %s221
    %s223 = sphi 0, %s221
    %s224 = sphi 0, %s223
    %s238 = sphi 0, %s224
    %s242 = sphi 0, %s242
    %s244 = sphi 0, %s242
    %s245 = sphi 0, %s244
    %s259 = sphi 0, %s245
    %s263 = sphi 0, %s263
    %s265 = sphi 0, %s263
    %s266 = sphi 0, %s265
    %s280 = sphi 0, %s266
    %s284 = sphi 0, %s284
    %s286 = sphi 0, %s284
    %s287 = sphi 0, %s286
    %s301 = sphi 0, %s287
    %s307 = sphi 0, %s309
    %s310 = sphi 0, %s307
    %s311 = sphi 0, %s310
    %s327 = sphi 0, %s311
  $region4: #{carpet_patch_autoencoder.1} parent=0 // loop_header_branch
    %22 = sbr.rel (%p20) target = $region8
  $region5: #{carpet_patch_autoencoder.1} parent=0 // loop_body
    %s24 = ssub.s32 %s19, 1
    %s25 = ssub.s32 %s19, 2
    %s26 = sadd.s32 %s19, 1
    %s27 = ssub.s32 %s19, %s26
    %p28 = scmp.eq.s32.totalorder %s27, 0
    %s30 = sadd.s32 %s29, 1
    %s31 = scalar_select %p28, %s29, %s30
    %p34 = pneg %p28
    %p35 = scmp.eq.s32.totalorder %s19, 1
    %p36 = por %p34, %p35
    %p37 = scmp.ne.s32.totalorder %s29, %s32
    %p38 = scmp.eq.s32.totalorder %s19, 0
    %p39 = por %p37, %p38
    %p40 = scmp.ne.s32.totalorder %s29, %s32
    %p41 = scmp.eq.s32.totalorder %s24, 1
    %p42 = por %p40, %p41
    %p43 = scmp.ne.s32.totalorder %s32, %s33
    %p44 = scmp.eq.s32.totalorder %s24, 0
    %p45 = por %p43, %p44
    %p46 = scmp.ne.s32.totalorder %s32, %s33
    %p47 = scmp.eq.s32.totalorder %s25, 1
    %p48 = por %p46, %p47
    %p50 = scmp.ne.s32.totalorder %s33, %s49
    %p51 = scmp.eq.s32.totalorder %s25, 0
    %p52 = por %p50, %p51
    %s54 = sadd.s32 %s53, 1
    %p57 = scmp.eq.s32.totalorder %s19, 1
    %p58 = scmp.ne.s32.totalorder %s53, %s55
    %p59 = scmp.eq.s32.totalorder %s19, 0
    %p60 = por %p58, %p59
    %p61 = scmp.ne.s32.totalorder %s53, %s55
    %p62 = scmp.eq.s32.totalorder %s24, 1
    %p63 = por %p61, %p62
    %p64 = scmp.ne.s32.totalorder %s55, %s56
    %p65 = scmp.eq.s32.totalorder %s24, 0
    %p66 = por %p64, %p65
    %p67 = scmp.ne.s32.totalorder %s55, %s56
    %p68 = scmp.eq.s32.totalorder %s25, 1
    %p69 = por %p67, %p68
    %p71 = scmp.ne.s32.totalorder %s56, %s70
    %p72 = scmp.eq.s32.totalorder %s25, 0
    %p73 = por %p71, %p72
    %s75 = sadd.s32 %s74, 1
    %p78 = scmp.eq.s32.totalorder %s19, 1
    %p79 = scmp.ne.s32.totalorder %s74, %s76
    %p80 = scmp.eq.s32.totalorder %s19, 0
    %p81 = por %p79, %p80
    %p82 = scmp.ne.s32.totalorder %s74, %s76
    %p83 = scmp.eq.s32.totalorder %s24, 1
    %p84 = por %p82, %p83
    %p85 = scmp.ne.s32.totalorder %s76, %s77
    %p86 = scmp.eq.s32.totalorder %s24, 0
    %p87 = por %p85, %p86
    %p88 = scmp.ne.s32.totalorder %s76, %s77
    %p89 = scmp.eq.s32.totalorder %s25, 1
    %p90 = por %p88, %p89
    %p92 = scmp.ne.s32.totalorder %s77, %s91
    %p93 = scmp.eq.s32.totalorder %s25, 0
    %p94 = por %p92, %p93
    %s96 = sadd.s32 %s95, 1
    %p99 = scmp.eq.s32.totalorder %s19, 1
    %p100 = scmp.ne.s32.totalorder %s95, %s97
    %p101 = scmp.eq.s32.totalorder %s19, 0
    %p102 = por %p100, %p101
    %p103 = scmp.ne.s32.totalorder %s95, %s97
    %p104 = scmp.eq.s32.totalorder %s24, 1
    %p105 = por %p103, %p104
    %p106 = scmp.ne.s32.totalorder %s97, %s98
    %p107 = scmp.eq.s32.totalorder %s24, 0
    %p108 = por %p106, %p107
    %p109 = scmp.ne.s32.totalorder %s97, %s98
    %p110 = scmp.eq.s32.totalorder %s25, 1
    %p111 = por %p109, %p110
    %p113 = scmp.ne.s32.totalorder %s98, %s112
    %p114 = scmp.eq.s32.totalorder %s25, 0
    %p115 = por %p113, %p114
    %s117 = sadd.s32 %s116, 1
    %p120 = scmp.eq.s32.totalorder %s19, 1
    %p121 = scmp.ne.s32.totalorder %s116, %s118
    %p122 = scmp.eq.s32.totalorder %s19, 0
    %p123 = por %p121, %p122
    %p124 = scmp.ne.s32.totalorder %s116, %s118
    %p125 = scmp.eq.s32.totalorder %s24, 1
    %p126 = por %p124, %p125
    %p127 = scmp.ne.s32.totalorder %s118, %s119
    %p128 = scmp.eq.s32.totalorder %s24, 0
    %p129 = por %p127, %p128
    %p130 = scmp.ne.s32.totalorder %s118, %s119
    %p131 = scmp.eq.s32.totalorder %s25, 1
    %p132 = por %p130, %p131
    %p134 = scmp.ne.s32.totalorder %s119, %s133
    %p135 = scmp.eq.s32.totalorder %s25, 0
    %p136 = por %p134, %p135
    %s138 = sadd.s32 %s137, 1
    %p141 = scmp.eq.s32.totalorder %s19, 1
    %p142 = scmp.ne.s32.totalorder %s137, %s139
    %p143 = scmp.eq.s32.totalorder %s19, 0
    %p144 = por %p142, %p143
    %p145 = scmp.ne.s32.totalorder %s137, %s139
    %p146 = scmp.eq.s32.totalorder %s24, 1
    %p147 = por %p145, %p146
    %p148 = scmp.ne.s32.totalorder %s139, %s140
    %p149 = scmp.eq.s32.totalorder %s24, 0
    %p150 = por %p148, %p149
    %p151 = scmp.ne.s32.totalorder %s139, %s140
    %p152 = scmp.eq.s32.totalorder %s25, 1
    %p153 = por %p151, %p152
    %p155 = scmp.ne.s32.totalorder %s140, %s154
    %p156 = scmp.eq.s32.totalorder %s25, 0
    %p157 = por %p155, %p156
    %s159 = sadd.s32 %s158, 1
    %p162 = scmp.eq.s32.totalorder %s19, 1
    %p163 = scmp.ne.s32.totalorder %s158, %s160
    %p164 = scmp.eq.s32.totalorder %s19, 0
    %p165 = por %p163, %p164
    %p166 = scmp.ne.s32.totalorder %s158, %s160
    %p167 = scmp.eq.s32.totalorder %s24, 1
    %p168 = por %p166, %p167
    %p169 = scmp.ne.s32.totalorder %s160, %s161
    %p170 = scmp.eq.s32.totalorder %s24, 0
    %p171 = por %p169, %p170
    %p172 = scmp.ne.s32.totalorder %s160, %s161
    %p173 = scmp.eq.s32.totalorder %s25, 1
    %p174 = por %p172, %p173
    %p176 = scmp.ne.s32.totalorder %s161, %s175
    %p177 = scmp.eq.s32.totalorder %s25, 0
    %p178 = por %p176, %p177
    %s180 = sadd.s32 %s179, 1
    %p183 = scmp.eq.s32.totalorder %s19, 1
    %p184 = scmp.ne.s32.totalorder %s179, %s181
    %p185 = scmp.eq.s32.totalorder %s19, 0
    %p186 = por %p184, %p185
    %p187 = scmp.ne.s32.totalorder %s179, %s181
    %p188 = scmp.eq.s32.totalorder %s24, 1
    %p189 = por %p187, %p188
    %p190 = scmp.ne.s32.totalorder %s181, %s182
    %p191 = scmp.eq.s32.totalorder %s24, 0
    %p192 = por %p190, %p191
    %p193 = scmp.ne.s32.totalorder %s181, %s182
    %p194 = scmp.eq.s32.totalorder %s25, 1
    %p195 = por %p193, %p194
    %p197 = scmp.ne.s32.totalorder %s182, %s196
    %p198 = scmp.eq.s32.totalorder %s25, 0
    %p199 = por %p197, %p198
    %s201 = sadd.s32 %s200, 1
    %p204 = scmp.eq.s32.totalorder %s19, 1
    %p205 = scmp.ne.s32.totalorder %s200, %s202
    %p206 = scmp.eq.s32.totalorder %s19, 0
    %p207 = por %p205, %p206
    %p208 = scmp.ne.s32.totalorder %s200, %s202
    %p209 = scmp.eq.s32.totalorder %s24, 1
    %p210 = por %p208, %p209
    %p211 = scmp.ne.s32.totalorder %s202, %s203
    %p212 = scmp.eq.s32.totalorder %s24, 0
    %p213 = por %p211, %p212
    %p214 = scmp.ne.s32.totalorder %s202, %s203
    %p215 = scmp.eq.s32.totalorder %s25, 1
    %p216 = por %p214, %p215
    %p218 = scmp.ne.s32.totalorder %s203, %s217
    %p219 = scmp.eq.s32.totalorder %s25, 0
    %p220 = por %p218, %p219
    %s222 = sadd.s32 %s221, 1
    %p225 = scmp.eq.s32.totalorder %s19, 1
    %p226 = scmp.ne.s32.totalorder %s221, %s223
    %p227 = scmp.eq.s32.totalorder %s19, 0
    %p228 = por %p226, %p227
    %p229 = scmp.ne.s32.totalorder %s221, %s223
    %p230 = scmp.eq.s32.totalorder %s24, 1
    %p231 = por %p229, %p230
    %p232 = scmp.ne.s32.totalorder %s223, %s224
    %p233 = scmp.eq.s32.totalorder %s24, 0
    %p234 = por %p232, %p233
    %p235 = scmp.ne.s32.totalorder %s223, %s224
    %p236 = scmp.eq.s32.totalorder %s25, 1
    %p237 = por %p235, %p236
    %p239 = scmp.ne.s32.totalorder %s224, %s238
    %p240 = scmp.eq.s32.totalorder %s25, 0
    %p241 = por %p239, %p240
    %s243 = sadd.s32 %s242, 1
    %p246 = scmp.eq.s32.totalorder %s19, 1
    %p247 = scmp.ne.s32.totalorder %s242, %s244
    %p248 = scmp.eq.s32.totalorder %s19, 0
    %p249 = por %p247, %p248
    %p250 = scmp.ne.s32.totalorder %s242, %s244
    %p251 = scmp.eq.s32.totalorder %s24, 1
    %p252 = por %p250, %p251
    %p253 = scmp.ne.s32.totalorder %s244, %s245
    %p254 = scmp.eq.s32.totalorder %s24, 0
    %p255 = por %p253, %p254
    %p256 = scmp.ne.s32.totalorder %s244, %s245
    %p257 = scmp.eq.s32.totalorder %s25, 1
    %p258 = por %p256, %p257
    %p260 = scmp.ne.s32.totalorder %s245, %s259
    %p261 = scmp.eq.s32.totalorder %s25, 0
    %p262 = por %p260, %p261
    %s264 = sadd.s32 %s263, 1
    %p267 = scmp.eq.s32.totalorder %s19, 1
    %p268 = scmp.ne.s32.totalorder %s263, %s265
    %p269 = scmp.eq.s32.totalorder %s19, 0
    %p270 = por %p268, %p269
    %p271 = scmp.ne.s32.totalorder %s263, %s265
    %p272 = scmp.eq.s32.totalorder %s24, 1
    %p273 = por %p271, %p272
    %p274 = scmp.ne.s32.totalorder %s265, %s266
    %p275 = scmp.eq.s32.totalorder %s24, 0
    %p276 = por %p274, %p275
    %p277 = scmp.ne.s32.totalorder %s265, %s266
    %p278 = scmp.eq.s32.totalorder %s25, 1
    %p279 = por %p277, %p278
    %p281 = scmp.ne.s32.totalorder %s266, %s280
    %p282 = scmp.eq.s32.totalorder %s25, 0
    %p283 = por %p281, %p282
    %s285 = sadd.s32 %s284, 1
    %p288 = scmp.eq.s32.totalorder %s19, 1
    %p289 = scmp.ne.s32.totalorder %s284, %s286
    %p290 = scmp.eq.s32.totalorder %s19, 0
    %p291 = por %p289, %p290
    %p292 = scmp.ne.s32.totalorder %s284, %s286
    %p293 = scmp.eq.s32.totalorder %s24, 1
    %p294 = por %p292, %p293
    %p295 = scmp.ne.s32.totalorder %s286, %s287
    %p296 = scmp.eq.s32.totalorder %s24, 0
    %p297 = por %p295, %p296
    %p298 = scmp.ne.s32.totalorder %s286, %s287
    %p299 = scmp.eq.s32.totalorder %s25, 1
    %p300 = por %p298, %p299
    %p302 = scmp.ne.s32.totalorder %s287, %s301
    %p303 = scmp.eq.s32.totalorder %s25, 0
    %p304 = por %p302, %p303
    %s305 = ssub.s32 %s19, %s26
    %p306 = scmp.eq.s32.totalorder %s305, 0
    %s308 = sadd.s32 %s307, 1
    %s309 = scalar_select %p306, %s307, %s308
    %p312 = pneg %p306
    %p313 = scmp.eq.s32.totalorder %s19, 1
    %p314 = por %p312, %p313
    %p315 = scmp.ne.s32.totalorder %s307, %s310
    %p316 = scmp.eq.s32.totalorder %s19, 0
    %p317 = por %p315, %p316
    %p318 = scmp.ne.s32.totalorder %s307, %s310
    %p319 = scmp.eq.s32.totalorder %s24, 1
    %p320 = por %p318, %p319
    %p321 = scmp.ne.s32.totalorder %s310, %s311
    %p322 = scmp.eq.s32.totalorder %s24, 0
    %p323 = por %p321, %p322
    %p324 = scmp.ne.s32.totalorder %s310, %s311
    %p325 = scmp.eq.s32.totalorder %s25, 1
    %p326 = por %p324, %p325
    %p328 = scmp.ne.s32.totalorder %s311, %s327
    %p329 = scmp.eq.s32.totalorder %s25, 0
    %p330 = por %p328, %p329
    %p331 = scmp.le.s32.totalorder 1, %s19
    %p332 = scmp.lt.s32.totalorder %s19, 3
    %p333 = pnand %p331, %p332
    %p334 = pneg %p333
    // Predicated region
    $region9: #{carpet_patch_autoencoder.1} parent=5 // pred_check
      _
    $region10: #{carpet_patch_autoencoder.1} parent=5 // pred_check_branch
      %336 = sbr.rel (%p333) target = $region12
    $region11: #{carpet_patch_autoencoder.1} parent=5 // pred_region
      %s337 = ssub.s32 %s19, 1
      // Predicated region
      $region13: #{carpet_patch_autoencoder.1} parent=11 // pred_check
        %p338 = pneg %p66
      $region14: #{carpet_patch_autoencoder.1} parent=11 // pred_check_branch
        %340 = sbr.rel (%p338) target = $region16
      $region15: #{carpet_patch_autoencoder.1} parent=11 // pred_region
        _
      $region16: #{carpet_patch_autoencoder.1} parent=11 // pred_fallthru
        _
      // Predicated region
      $region17: #{carpet_patch_autoencoder.1} parent=11 // pred_check
        %p341 = pneg %p87
      $region18: #{carpet_patch_autoencoder.1} parent=11 // pred_check_branch
        %343 = sbr.rel (%p341) target = $region20
      $region19: #{carpet_patch_autoencoder.1} parent=11 // pred_region
        _
      $region20: #{carpet_patch_autoencoder.1} parent=11 // pred_fallthru
        _
      // Predicated region
      $region21: #{carpet_patch_autoencoder.1} parent=11 // pred_check
        %p344 = pneg %p108
      $region22: #{carpet_patch_autoencoder.1} parent=11 // pred_check_branch
        %346 = sbr.rel (%p344) target = $region24
      $region23: #{carpet_patch_autoencoder.1} parent=11 // pred_region
        _
      $region24: #{carpet_patch_autoencoder.1} parent=11 // pred_fallthru
        _
      // Predicated region
      $region25: #{carpet_patch_autoencoder.1} parent=11 // pred_check
        %p347 = pneg %p129
      $region26: #{carpet_patch_autoencoder.1} parent=11 // pred_check_branch
        %349 = sbr.rel (%p347) target = $region28
      $region27: #{carpet_patch_autoencoder.1} parent=11 // pred_region
        _
      $region28: #{carpet_patch_autoencoder.1} parent=11 // pred_fallthru
        _
      // Predicated region
      $region29: #{carpet_patch_autoencoder.1} parent=11 // pred_check
        %p350 = pneg %p150
      $region30: #{carpet_patch_autoencoder.1} parent=11 // pred_check_branch
        %352 = sbr.rel (%p350) target = $region32
      $region31: #{carpet_patch_autoencoder.1} parent=11 // pred_region
        _
      $region32: #{carpet_patch_autoencoder.1} parent=11 // pred_fallthru
        _
      // Predicated region
      $region33: #{carpet_patch_autoencoder.1} parent=11 // pred_check
        %p353 = pneg %p171
      $region34: #{carpet_patch_autoencoder.1} parent=11 // pred_check_branch
        %355 = sbr.rel (%p353) target = $region36
      $region35: #{carpet_patch_autoencoder.1} parent=11 // pred_region
        _
      $region36: #{carpet_patch_autoencoder.1} parent=11 // pred_fallthru
        _
      // Predicated region
      $region37: #{carpet_patch_autoencoder.1} parent=11 // pred_check
        %p356 = pneg %p192
      $region38: #{carpet_patch_autoencoder.1} parent=11 // pred_check_branch
        %358 = sbr.rel (%p356) target = $region40
      $region39: #{carpet_patch_autoencoder.1} parent=11 // pred_region
        _
      $region40: #{carpet_patch_autoencoder.1} parent=11 // pred_fallthru
        _
      // Predicated region
      $region41: #{carpet_patch_autoencoder.1} parent=11 // pred_check
        %p359 = pneg %p213
      $region42: #{carpet_patch_autoencoder.1} parent=11 // pred_check_branch
        %361 = sbr.rel (%p359) target = $region44
      $region43: #{carpet_patch_autoencoder.1} parent=11 // pred_region
        _
      $region44: #{carpet_patch_autoencoder.1} parent=11 // pred_fallthru
        _
      // Predicated region
      $region45: #{carpet_patch_autoencoder.1} parent=11 // pred_check
        %p362 = pneg %p234
      $region46: #{carpet_patch_autoencoder.1} parent=11 // pred_check_branch
        %364 = sbr.rel (%p362) target = $region48
      $region47: #{carpet_patch_autoencoder.1} parent=11 // pred_region
        _
      $region48: #{carpet_patch_autoencoder.1} parent=11 // pred_fallthru
        _
      // Predicated region
      $region49: #{carpet_patch_autoencoder.1} parent=11 // pred_check
        %p365 = pneg %p255
      $region50: #{carpet_patch_autoencoder.1} parent=11 // pred_check_branch
        %367 = sbr.rel (%p365) target = $region52
      $region51: #{carpet_patch_autoencoder.1} parent=11 // pred_region
        _
      $region52: #{carpet_patch_autoencoder.1} parent=11 // pred_fallthru
        _
      // Predicated region
      $region53: #{carpet_patch_autoencoder.1} parent=11 // pred_check
        %p368 = pneg %p276
      $region54: #{carpet_patch_autoencoder.1} parent=11 // pred_check_branch
        %370 = sbr.rel (%p368) target = $region56
      $region55: #{carpet_patch_autoencoder.1} parent=11 // pred_region
        _
      $region56: #{carpet_patch_autoencoder.1} parent=11 // pred_fallthru
        _
      // Predicated region
      $region57: #{carpet_patch_autoencoder.1} parent=11 // pred_check
        %p371 = pneg %p297
      $region58: #{carpet_patch_autoencoder.1} parent=11 // pred_check_branch
        %373 = sbr.rel (%p371) target = $region60
      $region59: #{carpet_patch_autoencoder.1} parent=11 // pred_region
        _
      $region60: #{carpet_patch_autoencoder.1} parent=11 // pred_fallthru
        _
    $region12: #{carpet_patch_autoencoder.1} parent=5 // pred_fallthru
      _
    %p374 = scmp.lt.s32.totalorder %s19, 2
    // Predicated region
    $region61: #{carpet_patch_autoencoder.1} parent=5 // pred_check
      %p375 = pneg %p374
    $region62: #{carpet_patch_autoencoder.1} parent=5 // pred_check_branch
      %377 = sbr.rel (%p375) target = $region64
    $region63: #{carpet_patch_autoencoder.1} parent=5 // pred_region
      // Predicated region
      $region65: #{carpet_patch_autoencoder.1} parent=63 // pred_check
        %p378 = pneg %p39
      $region66: #{carpet_patch_autoencoder.1} parent=63 // pred_check_branch
        %380 = sbr.rel (%p378) target = $region68
      $region67: #{carpet_patch_autoencoder.1} parent=63 // pred_region
        %p381 = scmp.lt.s32.totalorder %s19, 1
        %s382 = scalar_select %p381, %s19, 1
        %s383 = smul.addr %s382, 43
        %s384 = smul.addr %s383, 4
        %s385 = scalar_lea.vmem %s0, %s384
      $region68: #{carpet_patch_autoencoder.1} parent=63 // pred_fallthru
        _
    $region64: #{carpet_patch_autoencoder.1} parent=5 // pred_fallthru
      _
    %p386 = scmp.le.s32.totalorder 1, %s19
    %p387 = scmp.lt.s32.totalorder %s19, 3
    %p388 = pnand %p386, %p387
    %p389 = pneg %p388
    // Predicated region
    $region69: #{carpet_patch_autoencoder.1} parent=5 // pred_check
      _
    $region70: #{carpet_patch_autoencoder.1} parent=5 // pred_check_branch
      %391 = sbr.rel (%p388) target = $region72
    $region71: #{carpet_patch_autoencoder.1} parent=5 // pred_region
      %s392 = ssub.s32 %s19, 1
      %p393 = scmp.lt.s32.totalorder %s24, 1
      %s394 = scalar_select %p393, %s24, 1
      %s395 = smul.addr %s394, 43
      %s396 = smul.addr %s395, 4
      %s397 = scalar_lea.vmem %s0, %s396
      %p398 = pneg %p45
      %p399 = pneg %p42
      %p400 = pneg %p66
      %p401 = pneg %p63
      %p402 = pneg %p87
      %p403 = pneg %p84
      %p404 = pneg %p108
      %p405 = pneg %p105
      %p406 = pneg %p129
      %p407 = pneg %p126
      %p408 = pneg %p150
      %p409 = pneg %p147
      %p410 = pneg %p171
      %p411 = pneg %p168
      %p412 = pneg %p192
      %p413 = pneg %p189
      %p414 = pneg %p213
      %p415 = pneg %p210
      %p416 = pneg %p234
      %p417 = pneg %p231
      %p418 = pneg %p255
      %p419 = pneg %p252
      %p420 = pneg %p276
      %p421 = pneg %p273
      %p422 = pneg %p297
      %p423 = pneg %p294
      %p424 = pneg %p323
      %p425 = pneg %p320
      %p426 = scmp.lt.s32.totalorder %s24, 1
      %s427 = scalar_select %p426, %s24, 1
      %s428 = smul.addr %s427, 36
      %s429 = smul.addr %s428, 8
      %s430 = scalar_lea.vmem %s13, %s429
      %p431 = scmp.lt.s32.totalorder %s24, 1
      %s432 = scalar_select %p431, %s24, 1
      %s433 = smul.addr %s432, 43
      %s434 = smul.addr %s433, 4
      %s435 = scalar_lea.vmem %s0, %s434
      %p436 = scmp.lt.s32.totalorder %s24, 1
      %s437 = scalar_select %p436, %s24, 1
      %s438 = smul.addr %s437, 36
      %s439 = smul.addr %s438, 8
      %s440 = scalar_lea.vmem %s13, %s439
      %vm442 = vcmask 261120
      %443 = vst.msk [vmem:[#allocation2] sm:$0xff] %vm442, 0.0
      %444 = vst.msk [vmem:[#allocation2 + $0x8] sm:$0xff] %vm442, 0.0
      %vm445 = vcmask 256000
      %446 = vst.msk [vmem:[#allocation2 + $0x10] sm:$0x7] %vm445, 0.0
      %447 = vst.msk [vmem:[#allocation2 + $0x133] sm:$0xff] %vm442, 0.0
      %448 = vst.msk [vmem:[#allocation2 + $0x13b] sm:$0xff] %vm442, 0.0
      %449 = vst.msk [vmem:[#allocation2 + $0x143] sm:$0xff] %vm442, 0.0
      %450 = vst.msk [vmem:[#allocation2 + $0x14b] sm:$0xff] %vm442, 0.0
      %vm451 = vcmask 258048
      %452 = vst.msk [vmem:[#allocation2 + $0x153] sm:$0x1f] %vm451, 0.0
      %vm453 = vcmask 523264
      %454 = vst.msk [vmem:[#allocation3] sm:$0xff] %vm453, 0.0
      %455 = vst.msk [vmem:[#allocation3 + $0x8] sm:$0xff] %vm453, 0.0
      %vm456 = vcmask 518144
      %457 = vst.msk [vmem:[#allocation3 + $0x10] sm:$0x7] %vm456, 0.0
      %458 = vst.msk [vmem:[#allocation3 + $0xa3] sm:$0xff] %vm453, 0.0
      %459 = vst.msk [vmem:[#allocation3 + $0xab] sm:$0xff] %vm453, 0.0
      %460 = vst.msk [vmem:[#allocation3 + $0xb3] sm:$0xff] %vm453, 0.0
      %461 = vst.msk [vmem:[#allocation3 + $0xbb] sm:$0xff] %vm453, 0.0
      %vm462 = vcmask 520192
      %463 = vst.msk [vmem:[#allocation3 + $0xc3] sm:$0x1f] %vm462, 0.0
      %464 = vst [vmem:[#allocation4] sm:$0xf] 0
      %465 = vst [vmem:[#allocation4 + $0x4] sm:$0xf] 0
      %vm466 = vcmask 1041408
      %vm467 = vsmask.f32 1280
      %vm468 = vmand %vm466, %vm467
      %v469 = vld [vmem:[#allocation4 + $0x8] sm:$0x3]
      %v470 = vsel %vm468, 0, %v469
      %471 = vst [vmem:[#allocation4 + $0x8] sm:$0x3] %v470
      %vm472 = vcmask 1043457
      %vm473 = vsmask.f32 7942
      %vm474 = vmand %vm472, %vm473
      %v475 = vld [vmem:[#allocation4 + $0x2c] sm:$0xe]
      %v476 = vsel %vm474, 0, %v475
      %477 = vst [vmem:[#allocation4 + $0x2c] sm:$0xe] %v476
      %478 = vst [vmem:[#allocation4 + $0x30] sm:$0xf] 0
      %479 = vst [vmem:[#allocation4 + $0x34] sm:$0xf] 0
      %480 = vst [vmem:[#allocation4 + $0x38] sm:$0xf] 0
      %481 = vst [vmem:[#allocation4 + $0x3c] sm:$0xf] 0
      %v482 = vlaneseq
      %v483 = vshrl.u32 %v482, 7
      %v484 = vadd.s32 %v483, 8
      %v485 = vadd.s32 %v483, 16
      %v486 = vadd.s32 %v483, 24
      %v487 = vadd.s32 %v483, 32
      %v488 = vadd.s32 %v483, 40
      %v489 = vadd.s32 %v483, 48
      %v490 = vadd.s32 %v483, 56
      %v491 = vadd.s32 %v483, 64
      %v492 = vadd.s32 %v483, 72
      %v493 = vadd.s32 %v483, 80
      %v494 = vadd.s32 %v483, 88
      %v495 = vadd.s32 %v483, 96
      %v496 = vadd.s32 %v483, 104
      %v497 = vadd.s32 %v483, 112
      %v498 = vadd.s32 %v483, 120
      %v499 = vadd.s32 %v483, 128
      %v500 = vadd.s32 %v483, 136
      %v501 = vadd.s32 %v483, 144
      %v502 = vadd.s32 %v483, 152
      %v503 = vadd.s32 %v483, 160
      %v504 = vadd.s32 %v483, 168
      %v505 = vadd.s32 %v483, 176
      %v506 = vadd.s32 %v483, 184
      %v507 = vadd.s32 %v483, 192
      %v508 = vadd.s32 %v483, 200
      %v509 = vadd.s32 %v483, 208
      %v510 = vadd.s32 %v483, 216
      %v511 = vadd.s32 %v483, 224
      %v512 = vadd.s32 %v483, 232
      %v513 = vadd.s32 %v483, 240
      %v514 = vadd.s32 %v483, 248
      %v515 = vadd.s32 %v483, 256
      %v516 = vadd.s32 %v483, 264
      %v517 = vadd.s32 %v483, 272
      %v518 = vadd.s32 %v483, 280
      %vm519 = vcmp.lt.s32.totalorder %v483, 0
      %v520 = vsub.s32 0, %v483
      %v521 = vsel %vm519, %v520, %v483
      %v522 = vmul.u32.u64.compose %v521, 3817748708
      %v523 = vextract.low.u32 %v522
      %v524 = vextract.high.u32 %v522
      %v525 = vshrl.u32 %v524, 4
      %v526 = vmul.u32 %v525, 18
      %v527 = vsub.s32 %v521, %v526
      %v528 = vsub.s32 0, %v527
      %v529 = vsel %vm519, %v528, %v527
      %vm530 = vcmp.lt.s32.totalorder %v484, 0
      %v531 = vsub.s32 0, %v484
      %v532 = vsel %vm530, %v531, %v484
      %v533 = vmul.u32.u64.compose %v532, 3817748708
      %v534 = vextract.low.u32 %v533
      %v535 = vextract.high.u32 %v533
      %v536 = vshrl.u32 %v535, 4
      %v537 = vmul.u32 %v536, 18
      %v538 = vsub.s32 %v532, %v537
      %v539 = vsub.s32 0, %v538
      %v540 = vsel %vm530, %v539, %v538
      %vm541 = vcmp.lt.s32.totalorder %v485, 0
      %v542 = vsub.s32 0, %v485
      %v543 = vsel %vm541, %v542, %v485
      %v544 = vmul.u32.u64.compose %v543, 3817748708
      %v545 = vextract.low.u32 %v544
      %v546 = vextract.high.u32 %v544
      %v547 = vshrl.u32 %v546, 4
      %v548 = vmul.u32 %v547, 18
      %v549 = vsub.s32 %v543, %v548
      %v550 = vsub.s32 0, %v549
      %v551 = vsel %vm541, %v550, %v549
      %vm552 = vcmp.lt.s32.totalorder %v486, 0
      %v553 = vsub.s32 0, %v486
      %v554 = vsel %vm552, %v553, %v486
      %v555 = vmul.u32.u64.compose %v554, 3817748708
      %v556 = vextract.low.u32 %v555
      %v557 = vextract.high.u32 %v555
      %v558 = vshrl.u32 %v557, 4
      %v559 = vmul.u32 %v558, 18
      %v560 = vsub.s32 %v554, %v559
      %v561 = vsub.s32 0, %v560
      %v562 = vsel %vm552, %v561, %v560
      %vm563 = vcmp.lt.s32.totalorder %v487, 0
      %v564 = vsub.s32 0, %v487
      %v565 = vsel %vm563, %v564, %v487
      %v566 = vmul.u32.u64.compose %v565, 3817748708
      %v567 = vextract.low.u32 %v566
      %v568 = vextract.high.u32 %v566
      %v569 = vshrl.u32 %v568, 4
      %v570 = vmul.u32 %v569, 18
      %v571 = vsub.s32 %v565, %v570
      %v572 = vsub.s32 0, %v571
      %v573 = vsel %vm563, %v572, %v571
      %vm574 = vcmp.lt.s32.totalorder %v488, 0
      %v575 = vsub.s32 0, %v488
      %v576 = vsel %vm574, %v575, %v488
      %v577 = vmul.u32.u64.compose %v576, 3817748708
      %v578 = vextract.low.u32 %v577
      %v579 = vextract.high.u32 %v577
      %v580 = vshrl.u32 %v579, 4
      %v581 = vmul.u32 %v580, 18
      %v582 = vsub.s32 %v576, %v581
      %v583 = vsub.s32 0, %v582
      %v584 = vsel %vm574, %v583, %v582
      %vm585 = vcmp.lt.s32.totalorder %v489, 0
      %v586 = vsub.s32 0, %v489
      %v587 = vsel %vm585, %v586, %v489
      %v588 = vmul.u32.u64.compose %v587, 3817748708
      %v589 = vextract.low.u32 %v588
      %v590 = vextract.high.u32 %v588
      %v591 = vshrl.u32 %v590, 4
      %v592 = vmul.u32 %v591, 18
      %v593 = vsub.s32 %v587, %v592
      %v594 = vsub.s32 0, %v593
      %v595 = vsel %vm585, %v594, %v593
      %vm596 = vcmp.lt.s32.totalorder %v490, 0
      %v597 = vsub.s32 0, %v490
      %v598 = vsel %vm596, %v597, %v490
      %v599 = vmul.u32.u64.compose %v598, 3817748708
      %v600 = vextract.low.u32 %v599
      %v601 = vextract.high.u32 %v599
      %v602 = vshrl.u32 %v601, 4
      %v603 = vmul.u32 %v602, 18
      %v604 = vsub.s32 %v598, %v603
      %v605 = vsub.s32 0, %v604
      %v606 = vsel %vm596, %v605, %v604
      %vm607 = vcmp.lt.s32.totalorder %v491, 0
      %v608 = vsub.s32 0, %v491
      %v609 = vsel %vm607, %v608, %v491
      %v610 = vmul.u32.u64.compose %v609, 3817748708
      %v611 = vextract.low.u32 %v610
      %v612 = vextract.high.u32 %v610
      %v613 = vshrl.u32 %v612, 4
      %v614 = vmul.u32 %v613, 18
      %v615 = vsub.s32 %v609, %v614
      %v616 = vsub.s32 0, %v615
      %v617 = vsel %vm607, %v616, %v615
      %vm618 = vcmp.lt.s32.totalorder %v492, 0
      %v619 = vsub.s32 0, %v492
      %v620 = vsel %vm618, %v619, %v492
      %v621 = vmul.u32.u64.compose %v620, 3817748708
      %v622 = vextract.low.u32 %v621
      %v623 = vextract.high.u32 %v621
      %v624 = vshrl.u32 %v623, 4
      %v625 = vmul.u32 %v624, 18
      %v626 = vsub.s32 %v620, %v625
      %v627 = vsub.s32 0, %v626
      %v628 = vsel %vm618, %v627, %v626
      %vm629 = vcmp.lt.s32.totalorder %v493, 0
      %v630 = vsub.s32 0, %v493
      %v631 = vsel %vm629, %v630, %v493
      %v632 = vmul.u32.u64.compose %v631, 3817748708
      %v633 = vextract.low.u32 %v632
      %v634 = vextract.high.u32 %v632
      %v635 = vshrl.u32 %v634, 4
      %v636 = vmul.u32 %v635, 18
      %v637 = vsub.s32 %v631, %v636
      %v638 = vsub.s32 0, %v637
      %v639 = vsel %vm629, %v638, %v637
      %vm640 = vcmp.lt.s32.totalorder %v494, 0
      %v641 = vsub.s32 0, %v494
      %v642 = vsel %vm640, %v641, %v494
      %v643 = vmul.u32.u64.compose %v642, 3817748708
      %v644 = vextract.low.u32 %v643
      %v645 = vextract.high.u32 %v643
      %v646 = vshrl.u32 %v645, 4
      %v647 = vmul.u32 %v646, 18
      %v648 = vsub.s32 %v642, %v647
      %v649 = vsub.s32 0, %v648
      %v650 = vsel %vm640, %v649, %v648
      %vm651 = vcmp.lt.s32.totalorder %v495, 0
      %v652 = vsub.s32 0, %v495
      %v653 = vsel %vm651, %v652, %v495
      %v654 = vmul.u32.u64.compose %v653, 3817748708
      %v655 = vextract.low.u32 %v654
      %v656 = vextract.high.u32 %v654
      %v657 = vshrl.u32 %v656, 4
      %v658 = vmul.u32 %v657, 18
      %v659 = vsub.s32 %v653, %v658
      %v660 = vsub.s32 0, %v659
      %v661 = vsel %vm651, %v660, %v659
      %vm662 = vcmp.lt.s32.totalorder %v496, 0
      %v663 = vsub.s32 0, %v496
      %v664 = vsel %vm662, %v663, %v496
      %v665 = vmul.u32.u64.compose %v664, 3817748708
      %v666 = vextract.low.u32 %v665
      %v667 = vextract.high.u32 %v665
      %v668 = vshrl.u32 %v667, 4
      %v669 = vmul.u32 %v668, 18
      %v670 = vsub.s32 %v664, %v669
      %v671 = vsub.s32 0, %v670
      %v672 = vsel %vm662, %v671, %v670
      %vm673 = vcmp.lt.s32.totalorder %v497, 0
      %v674 = vsub.s32 0, %v497
      %v675 = vsel %vm673, %v674, %v497
      %v676 = vmul.u32.u64.compose %v675, 3817748708
      %v677 = vextract.low.u32 %v676
      %v678 = vextract.high.u32 %v676
      %v679 = vshrl.u32 %v678, 4
      %v680 = vmul.u32 %v679, 18
      %v681 = vsub.s32 %v675, %v680
      %v682 = vsub.s32 0, %v681
      %v683 = vsel %vm673, %v682, %v681
      %vm684 = vcmp.lt.s32.totalorder %v498, 0
      %v685 = vsub.s32 0, %v498
      %v686 = vsel %vm684, %v685, %v498
      %v687 = vmul.u32.u64.compose %v686, 3817748708
      %v688 = vextract.low.u32 %v687
      %v689 = vextract.high.u32 %v687
      %v690 = vshrl.u32 %v689, 4
      %v691 = vmul.u32 %v690, 18
      %v692 = vsub.s32 %v686, %v691
      %v693 = vsub.s32 0, %v692
      %v694 = vsel %vm684, %v693, %v692
      %vm695 = vcmp.lt.s32.totalorder %v499, 0
      %v696 = vsub.s32 0, %v499
      %v697 = vsel %vm695, %v696, %v499
      %v698 = vmul.u32.u64.compose %v697, 3817748708
      %v699 = vextract.low.u32 %v698
      %v700 = vextract.high.u32 %v698
      %v701 = vshrl.u32 %v700, 4
      %v702 = vmul.u32 %v701, 18
      %v703 = vsub.s32 %v697, %v702
      %v704 = vsub.s32 0, %v703
      %v705 = vsel %vm695, %v704, %v703
      %vm706 = vcmp.lt.s32.totalorder %v500, 0
      %v707 = vsub.s32 0, %v500
      %v708 = vsel %vm706, %v707, %v500
      %v709 = vmul.u32.u64.compose %v708, 3817748708
      %v710 = vextract.low.u32 %v709
      %v711 = vextract.high.u32 %v709
      %v712 = vshrl.u32 %v711, 4
      %v713 = vmul.u32 %v712, 18
      %v714 = vsub.s32 %v708, %v713
      %v715 = vsub.s32 0, %v714
      %v716 = vsel %vm706, %v715, %v714
      %vm717 = vcmp.lt.s32.totalorder %v501, 0
      %v718 = vsub.s32 0, %v501
      %v719 = vsel %vm717, %v718, %v501
      %v720 = vmul.u32.u64.compose %v719, 3817748708
      %v721 = vextract.low.u32 %v720
      %v722 = vextract.high.u32 %v720
      %v723 = vshrl.u32 %v722, 4
      %v724 = vmul.u32 %v723, 18
      %v725 = vsub.s32 %v719, %v724
      %v726 = vsub.s32 0, %v725
      %v727 = vsel %vm717, %v726, %v725
      %vm728 = vcmp.lt.s32.totalorder %v502, 0
      %v729 = vsub.s32 0, %v502
      %v730 = vsel %vm728, %v729, %v502
      %v731 = vmul.u32.u64.compose %v730, 3817748708
      %v732 = vextract.low.u32 %v731
      %v733 = vextract.high.u32 %v731
      %v734 = vshrl.u32 %v733, 4
      %v735 = vmul.u32 %v734, 18
      %v736 = vsub.s32 %v730, %v735
      %v737 = vsub.s32 0, %v736
      %v738 = vsel %vm728, %v737, %v736
      %vm739 = vcmp.lt.s32.totalorder %v503, 0
      %v740 = vsub.s32 0, %v503
      %v741 = vsel %vm739, %v740, %v503
      %v742 = vmul.u32.u64.compose %v741, 3817748708
      %v743 = vextract.low.u32 %v742
      %v744 = vextract.high.u32 %v742
      %v745 = vshrl.u32 %v744, 4
      %v746 = vmul.u32 %v745, 18
      %v747 = vsub.s32 %v741, %v746
      %v748 = vsub.s32 0, %v747
      %v749 = vsel %vm739, %v748, %v747
      %vm750 = vcmp.lt.s32.totalorder %v504, 0
      %v751 = vsub.s32 0, %v504
      %v752 = vsel %vm750, %v751, %v504
      %v753 = vmul.u32.u64.compose %v752, 3817748708
      %v754 = vextract.low.u32 %v753
      %v755 = vextract.high.u32 %v753
      %v756 = vshrl.u32 %v755, 4
      %v757 = vmul.u32 %v756, 18
      %v758 = vsub.s32 %v752, %v757
      %v759 = vsub.s32 0, %v758
      %v760 = vsel %vm750, %v759, %v758
      %vm761 = vcmp.lt.s32.totalorder %v505, 0
      %v762 = vsub.s32 0, %v505
      %v763 = vsel %vm761, %v762, %v505
      %v764 = vmul.u32.u64.compose %v763, 3817748708
      %v765 = vextract.low.u32 %v764
      %v766 = vextract.high.u32 %v764
      %v767 = vshrl.u32 %v766, 4
      %v768 = vmul.u32 %v767, 18
      %v769 = vsub.s32 %v763, %v768
      %v770 = vsub.s32 0, %v769
      %v771 = vsel %vm761, %v770, %v769
      %vm772 = vcmp.lt.s32.totalorder %v506, 0
      %v773 = vsub.s32 0, %v506
      %v774 = vsel %vm772, %v773, %v506
      %v775 = vmul.u32.u64.compose %v774, 3817748708
      %v776 = vextract.low.u32 %v775
      %v777 = vextract.high.u32 %v775
      %v778 = vshrl.u32 %v777, 4
      %v779 = vmul.u32 %v778, 18
      %v780 = vsub.s32 %v774, %v779
      %v781 = vsub.s32 0, %v780
      %v782 = vsel %vm772, %v781, %v780
      %vm783 = vcmp.lt.s32.totalorder %v507, 0
      %v784 = vsub.s32 0, %v507
      %v785 = vsel %vm783, %v784, %v507
      %v786 = vmul.u32.u64.compose %v785, 3817748708
      %v787 = vextract.low.u32 %v786
      %v788 = vextract.high.u32 %v786
      %v789 = vshrl.u32 %v788, 4
      %v790 = vmul.u32 %v789, 18
      %v791 = vsub.s32 %v785, %v790
      %v792 = vsub.s32 0, %v791
      %v793 = vsel %vm783, %v792, %v791
      %vm794 = vcmp.lt.s32.totalorder %v508, 0
      %v795 = vsub.s32 0, %v508
      %v796 = vsel %vm794, %v795, %v508
      %v797 = vmul.u32.u64.compose %v796, 3817748708
      %v798 = vextract.low.u32 %v797
      %v799 = vextract.high.u32 %v797
      %v800 = vshrl.u32 %v799, 4
      %v801 = vmul.u32 %v800, 18
      %v802 = vsub.s32 %v796, %v801
      %v803 = vsub.s32 0, %v802
      %v804 = vsel %vm794, %v803, %v802
      %vm805 = vcmp.lt.s32.totalorder %v509, 0
      %v806 = vsub.s32 0, %v509
      %v807 = vsel %vm805, %v806, %v509
      %v808 = vmul.u32.u64.compose %v807, 3817748708
      %v809 = vextract.low.u32 %v808
      %v810 = vextract.high.u32 %v808
      %v811 = vshrl.u32 %v810, 4
      %v812 = vmul.u32 %v811, 18
      %v813 = vsub.s32 %v807, %v812
      %v814 = vsub.s32 0, %v813
      %v815 = vsel %vm805, %v814, %v813
      %vm816 = vcmp.lt.s32.totalorder %v510, 0
      %v817 = vsub.s32 0, %v510
      %v818 = vsel %vm816, %v817, %v510
      %v819 = vmul.u32.u64.compose %v818, 3817748708
      %v820 = vextract.low.u32 %v819
      %v821 = vextract.high.u32 %v819
      %v822 = vshrl.u32 %v821, 4
      %v823 = vmul.u32 %v822, 18
      %v824 = vsub.s32 %v818, %v823
      %v825 = vsub.s32 0, %v824
      %v826 = vsel %vm816, %v825, %v824
      %vm827 = vcmp.lt.s32.totalorder %v511, 0
      %v828 = vsub.s32 0, %v511
      %v829 = vsel %vm827, %v828, %v511
      %v830 = vmul.u32.u64.compose %v829, 3817748708
      %v831 = vextract.low.u32 %v830
      %v832 = vextract.high.u32 %v830
      %v833 = vshrl.u32 %v832, 4
      %v834 = vmul.u32 %v833, 18
      %v835 = vsub.s32 %v829, %v834
      %v836 = vsub.s32 0, %v835
      %v837 = vsel %vm827, %v836, %v835
      %vm838 = vcmp.lt.s32.totalorder %v512, 0
      %v839 = vsub.s32 0, %v512
      %v840 = vsel %vm838, %v839, %v512
      %v841 = vmul.u32.u64.compose %v840, 3817748708
      %v842 = vextract.low.u32 %v841
      %v843 = vextract.high.u32 %v841
      %v844 = vshrl.u32 %v843, 4
      %v845 = vmul.u32 %v844, 18
      %v846 = vsub.s32 %v840, %v845
      %v847 = vsub.s32 0, %v846
      %v848 = vsel %vm838, %v847, %v846
      %vm849 = vcmp.lt.s32.totalorder %v513, 0
      %v850 = vsub.s32 0, %v513
      %v851 = vsel %vm849, %v850, %v513
      %v852 = vmul.u32.u64.compose %v851, 3817748708
      %v853 = vextract.low.u32 %v852
      %v854 = vextract.high.u32 %v852
      %v855 = vshrl.u32 %v854, 4
      %v856 = vmul.u32 %v855, 18
      %v857 = vsub.s32 %v851, %v856
      %v858 = vsub.s32 0, %v857
      %v859 = vsel %vm849, %v858, %v857
      %vm860 = vcmp.lt.s32.totalorder %v514, 0
      %v861 = vsub.s32 0, %v514
      %v862 = vsel %vm860, %v861, %v514
      %v863 = vmul.u32.u64.compose %v862, 3817748708
      %v864 = vextract.low.u32 %v863
      %v865 = vextract.high.u32 %v863
      %v866 = vshrl.u32 %v865, 4
      %v867 = vmul.u32 %v866, 18
      %v868 = vsub.s32 %v862, %v867
      %v869 = vsub.s32 0, %v868
      %v870 = vsel %vm860, %v869, %v868
      %vm871 = vcmp.lt.s32.totalorder %v515, 0
      %v872 = vsub.s32 0, %v515
      %v873 = vsel %vm871, %v872, %v515
      %v874 = vmul.u32.u64.compose %v873, 3817748708
      %v875 = vextract.low.u32 %v874
      %v876 = vextract.high.u32 %v874
      %v877 = vshrl.u32 %v876, 4
      %v878 = vmul.u32 %v877, 18
      %v879 = vsub.s32 %v873, %v878
      %v880 = vsub.s32 0, %v879
      %v881 = vsel %vm871, %v880, %v879
      %vm882 = vcmp.lt.s32.totalorder %v516, 0
      %v883 = vsub.s32 0, %v516
      %v884 = vsel %vm882, %v883, %v516
      %v885 = vmul.u32.u64.compose %v884, 3817748708
      %v886 = vextract.low.u32 %v885
      %v887 = vextract.high.u32 %v885
      %v888 = vshrl.u32 %v887, 4
      %v889 = vmul.u32 %v888, 18
      %v890 = vsub.s32 %v884, %v889
      %v891 = vsub.s32 0, %v890
      %v892 = vsel %vm882, %v891, %v890
      %vm893 = vcmp.lt.s32.totalorder %v517, 0
      %v894 = vsub.s32 0, %v517
      %v895 = vsel %vm893, %v894, %v517
      %v896 = vmul.u32.u64.compose %v895, 3817748708
      %v897 = vextract.low.u32 %v896
      %v898 = vextract.high.u32 %v896
      %v899 = vshrl.u32 %v898, 4
      %v900 = vmul.u32 %v899, 18
      %v901 = vsub.s32 %v895, %v900
      %v902 = vsub.s32 0, %v901
      %v903 = vsel %vm893, %v902, %v901
      %vm904 = vcmp.lt.s32.totalorder %v518, 0
      %v905 = vsub.s32 0, %v518
      %v906 = vsel %vm904, %v905, %v518
      %v907 = vmul.u32.u64.compose %v906, 3817748708
      %v908 = vextract.low.u32 %v907
      %v909 = vextract.high.u32 %v907
      %v910 = vshrl.u32 %v909, 4
      %v911 = vmul.u32 %v910, 18
      %v912 = vsub.s32 %v906, %v911
      %v913 = vsub.s32 0, %v912
      %v914 = vsel %vm904, %v913, %v912
      %vm915 = vcmp.ne.s32.totalorder %v529, 0
      %vm916 = vcmp.ne.s32.totalorder %v540, 0
      %vm917 = vcmp.ne.s32.totalorder %v551, 0
      %vm918 = vcmp.ne.s32.totalorder %v562, 0
      %vm919 = vcmp.ne.s32.totalorder %v573, 0
      %vm920 = vcmp.ne.s32.totalorder %v584, 0
      %vm921 = vcmp.ne.s32.totalorder %v595, 0
      %vm922 = vcmp.ne.s32.totalorder %v606, 0
      %vm923 = vcmp.ne.s32.totalorder %v617, 0
      %vm924 = vcmp.ne.s32.totalorder %v628, 0
      %vm925 = vcmp.ne.s32.totalorder %v639, 0
      %vm926 = vcmp.ne.s32.totalorder %v650, 0
      %vm927 = vcmp.ne.s32.totalorder %v661, 0
      %vm928 = vcmp.ne.s32.totalorder %v672, 0
      %vm929 = vcmp.ne.s32.totalorder %v683, 0
      %vm930 = vcmp.ne.s32.totalorder %v694, 0
      %vm931 = vcmp.ne.s32.totalorder %v705, 0
      %vm932 = vcmp.ne.s32.totalorder %v716, 0
      %vm933 = vcmp.ne.s32.totalorder %v727, 0
      %vm934 = vcmp.ne.s32.totalorder %v738, 0
      %vm935 = vcmp.ne.s32.totalorder %v749, 0
      %vm936 = vcmp.ne.s32.totalorder %v760, 0
      %vm937 = vcmp.ne.s32.totalorder %v771, 0
      %vm938 = vcmp.ne.s32.totalorder %v782, 0
      %vm939 = vcmp.ne.s32.totalorder %v793, 0
      %vm940 = vcmp.ne.s32.totalorder %v804, 0
      %vm941 = vcmp.ne.s32.totalorder %v815, 0
      %vm942 = vcmp.ne.s32.totalorder %v826, 0
      %vm943 = vcmp.ne.s32.totalorder %v837, 0
      %vm944 = vcmp.ne.s32.totalorder %v848, 0
      %vm945 = vcmp.ne.s32.totalorder %v859, 0
      %vm946 = vcmp.ne.s32.totalorder %v870, 0
      %vm947 = vcmp.ne.s32.totalorder %v881, 0
      %vm948 = vcmp.ne.s32.totalorder %v892, 0
      %vm949 = vcmp.ne.s32.totalorder %v903, 0
      %vm950 = vcmp.ne.s32.totalorder %v914, 0
      %vm951 = vcmp.lt.s32.totalorder %v529, 0
      %vm952 = vcmp.lt.s32.totalorder %v540, 0
      %vm953 = vcmp.lt.s32.totalorder %v551, 0
      %vm954 = vcmp.lt.s32.totalorder %v562, 0
      %vm955 = vcmp.lt.s32.totalorder %v573, 0
      %vm956 = vcmp.lt.s32.totalorder %v584, 0
      %vm957 = vcmp.lt.s32.totalorder %v595, 0
      %vm958 = vcmp.lt.s32.totalorder %v606, 0
      %vm959 = vcmp.lt.s32.totalorder %v617, 0
      %vm960 = vcmp.lt.s32.totalorder %v628, 0
      %vm961 = vcmp.lt.s32.totalorder %v639, 0
      %vm962 = vcmp.lt.s32.totalorder %v650, 0
      %vm963 = vcmp.lt.s32.totalorder %v661, 0
      %vm964 = vcmp.lt.s32.totalorder %v672, 0
      %vm965 = vcmp.lt.s32.totalorder %v683, 0
      %vm966 = vcmp.lt.s32.totalorder %v694, 0
      %vm967 = vcmp.lt.s32.totalorder %v705, 0
      %vm968 = vcmp.lt.s32.totalorder %v716, 0
      %vm969 = vcmp.lt.s32.totalorder %v727, 0
      %vm970 = vcmp.lt.s32.totalorder %v738, 0
      %vm971 = vcmp.lt.s32.totalorder %v749, 0
      %vm972 = vcmp.lt.s32.totalorder %v760, 0
      %vm973 = vcmp.lt.s32.totalorder %v771, 0
      %vm974 = vcmp.lt.s32.totalorder %v782, 0
      %vm975 = vcmp.lt.s32.totalorder %v793, 0
      %vm976 = vcmp.lt.s32.totalorder %v804, 0
      %vm977 = vcmp.lt.s32.totalorder %v815, 0
      %vm978 = vcmp.lt.s32.totalorder %v826, 0
      %vm979 = vcmp.lt.s32.totalorder %v837, 0
      %vm980 = vcmp.lt.s32.totalorder %v848, 0
      %vm981 = vcmp.lt.s32.totalorder %v859, 0
      %vm982 = vcmp.lt.s32.totalorder %v870, 0
      %vm983 = vcmp.lt.s32.totalorder %v881, 0
      %vm984 = vcmp.lt.s32.totalorder %v892, 0
      %vm985 = vcmp.lt.s32.totalorder %v903, 0
      %vm986 = vcmp.lt.s32.totalorder %v914, 0
      %vm987 = vmand %vm951, %vm915
      %vm988 = vmand %vm952, %vm916
      %vm989 = vmand %vm953, %vm917
      %vm990 = vmand %vm954, %vm918
      %vm991 = vmand %vm955, %vm919
      %vm992 = vmand %vm956, %vm920
      %vm993 = vmand %vm957, %vm921
      %vm994 = vmand %vm958, %vm922
      %vm995 = vmand %vm959, %vm923
      %vm996 = vmand %vm960, %vm924
      %vm997 = vmand %vm961, %vm925
      %vm998 = vmand %vm962, %vm926
      %vm999 = vmand %vm963, %vm927
      %vm1000 = vmand %vm964, %vm928
      %vm1001 = vmand %vm965, %vm929
      %vm1002 = vmand %vm966, %vm930
      %vm1003 = vmand %vm967, %vm931
      %vm1004 = vmand %vm968, %vm932
      %vm1005 = vmand %vm969, %vm933
      %vm1006 = vmand %vm970, %vm934
      %vm1007 = vmand %vm971, %vm935
      %vm1008 = vmand %vm972, %vm936
      %vm1009 = vmand %vm973, %vm937
      %vm1010 = vmand %vm974, %vm938
      %vm1011 = vmand %vm975, %vm939
      %vm1012 = vmand %vm976, %vm940
      %vm1013 = vmand %vm977, %vm941
      %vm1014 = vmand %vm978, %vm942
      %vm1015 = vmand %vm979, %vm943
      %vm1016 = vmand %vm980, %vm944
      %vm1017 = vmand %vm981, %vm945
      %vm1018 = vmand %vm982, %vm946
      %vm1019 = vmand %vm983, %vm947
      %vm1020 = vmand %vm984, %vm948
      %vm1021 = vmand %vm985, %vm949
      %vm1022 = vmand %vm986, %vm950
      %v1023 = vadd.s32 %v529, 18
      %v1024 = vadd.s32 %v540, 18
      %v1025 = vadd.s32 %v551, 18
      %v1026 = vadd.s32 %v562, 18
      %v1027 = vadd.s32 %v573, 18
      %v1028 = vadd.s32 %v584, 18
      %v1029 = vadd.s32 %v595, 18
      %v1030 = vadd.s32 %v606, 18
      %v1031 = vadd.s32 %v617, 18
      %v1032 = vadd.s32 %v628, 18
      %v1033 = vadd.s32 %v639, 18
      %v1034 = vadd.s32 %v650, 18
      %v1035 = vadd.s32 %v661, 18
      %v1036 = vadd.s32 %v672, 18
      %v1037 = vadd.s32 %v683, 18
      %v1038 = vadd.s32 %v694, 18
      %v1039 = vadd.s32 %v705, 18
      %v1040 = vadd.s32 %v716, 18
      %v1041 = vadd.s32 %v727, 18
      %v1042 = vadd.s32 %v738, 18
      %v1043 = vadd.s32 %v749, 18
      %v1044 = vadd.s32 %v760, 18
      %v1045 = vadd.s32 %v771, 18
      %v1046 = vadd.s32 %v782, 18
      %v1047 = vadd.s32 %v793, 18
      %v1048 = vadd.s32 %v804, 18
      %v1049 = vadd.s32 %v815, 18
      %v1050 = vadd.s32 %v826, 18
      %v1051 = vadd.s32 %v837, 18
      %v1052 = vadd.s32 %v848, 18
      %v1053 = vadd.s32 %v859, 18
      %v1054 = vadd.s32 %v870, 18
      %v1055 = vadd.s32 %v881, 18
      %v1056 = vadd.s32 %v892, 18
      %v1057 = vadd.s32 %v903, 18
      %v1058 = vadd.s32 %v914, 18
      %v1059 = vsel %vm987, %v1023, %v529
      %v1060 = vsel %vm988, %v1024, %v540
      %v1061 = vsel %vm989, %v1025, %v551
      %v1062 = vsel %vm990, %v1026, %v562
      %v1063 = vsel %vm991, %v1027, %v573
      %v1064 = vsel %vm992, %v1028, %v584
      %v1065 = vsel %vm993, %v1029, %v595
      %v1066 = vsel %vm994, %v1030, %v606
      %v1067 = vsel %vm995, %v1031, %v617
      %v1068 = vsel %vm996, %v1032, %v628
      %v1069 = vsel %vm997, %v1033, %v639
      %v1070 = vsel %vm998, %v1034, %v650
      %v1071 = vsel %vm999, %v1035, %v661
      %v1072 = vsel %vm1000, %v1036, %v672
      %v1073 = vsel %vm1001, %v1037, %v683
      %v1074 = vsel %vm1002, %v1038, %v694
      %v1075 = vsel %vm1003, %v1039, %v705
      %v1076 = vsel %vm1004, %v1040, %v716
      %v1077 = vsel %vm1005, %v1041, %v727
      %v1078 = vsel %vm1006, %v1042, %v738
      %v1079 = vsel %vm1007, %v1043, %v749
      %v1080 = vsel %vm1008, %v1044, %v760
      %v1081 = vsel %vm1009, %v1045, %v771
      %v1082 = vsel %vm1010, %v1046, %v782
      %v1083 = vsel %vm1011, %v1047, %v793
      %v1084 = vsel %vm1012, %v1048, %v804
      %v1085 = vsel %vm1013, %v1049, %v815
      %v1086 = vsel %vm1014, %v1050, %v826
      %v1087 = vsel %vm1015, %v1051, %v837
      %v1088 = vsel %vm1016, %v1052, %v848
      %v1089 = vsel %vm1017, %v1053, %v859
      %v1090 = vsel %vm1018, %v1054, %v870
      %v1091 = vsel %vm1019, %v1055, %v881
      %v1092 = vsel %vm1020, %v1056, %v892
      %v1093 = vsel %vm1021, %v1057, %v903
      %v1094 = vsel %vm1022, %v1058, %v914
      %vm1095 = vcmp.lt.s32.totalorder %v1059, 16
      %vm1096 = vcmp.lt.s32.totalorder %v1060, 16
      %vm1097 = vcmp.lt.s32.totalorder %v1061, 16
      %vm1098 = vcmp.lt.s32.totalorder %v1062, 16
      %vm1099 = vcmp.lt.s32.totalorder %v1063, 16
      %vm1100 = vcmp.lt.s32.totalorder %v1064, 16
      %vm1101 = vcmp.lt.s32.totalorder %v1065, 16
      %vm1102 = vcmp.lt.s32.totalorder %v1066, 16
      %vm1103 = vcmp.lt.s32.totalorder %v1067, 16
      %vm1104 = vcmp.lt.s32.totalorder %v1068, 16
      %vm1105 = vcmp.lt.s32.totalorder %v1069, 16
      %vm1106 = vcmp.lt.s32.totalorder %v1070, 16
      %vm1107 = vcmp.lt.s32.totalorder %v1071, 16
      %vm1108 = vcmp.lt.s32.totalorder %v1072, 16
      %vm1109 = vcmp.lt.s32.totalorder %v1073, 16
      %vm1110 = vcmp.lt.s32.totalorder %v1074, 16
      %vm1111 = vcmp.lt.s32.totalorder %v1075, 16
      %vm1112 = vcmp.lt.s32.totalorder %v1076, 16
      %vm1113 = vcmp.lt.s32.totalorder %v1077, 16
      %vm1114 = vcmp.lt.s32.totalorder %v1078, 16
      %vm1115 = vcmp.lt.s32.totalorder %v1079, 16
      %vm1116 = vcmp.lt.s32.totalorder %v1080, 16
      %vm1117 = vcmp.lt.s32.totalorder %v1081, 16
      %vm1118 = vcmp.lt.s32.totalorder %v1082, 16
      %vm1119 = vcmp.lt.s32.totalorder %v1083, 16
      %vm1120 = vcmp.lt.s32.totalorder %v1084, 16
      %vm1121 = vcmp.lt.s32.totalorder %v1085, 16
      %vm1122 = vcmp.lt.s32.totalorder %v1086, 16
      %vm1123 = vcmp.lt.s32.totalorder %v1087, 16
      %vm1124 = vcmp.lt.s32.totalorder %v1088, 16
      %vm1125 = vcmp.lt.s32.totalorder %v1089, 16
      %vm1126 = vcmp.lt.s32.totalorder %v1090, 16
      %vm1127 = vcmp.lt.s32.totalorder %v1091, 16
      %vm1128 = vcmp.lt.s32.totalorder %v1092, 16
      %vm1129 = vcmp.lt.s32.totalorder %v1093, 16
      %vm1130 = vcmp.lt.s32.totalorder %v1094, 16
      %vm1131 = vcmp.lt.s32.totalorder %v1059, 8
      %vm1132 = vcmp.lt.s32.totalorder %v1060, 8
      %vm1133 = vcmp.lt.s32.totalorder %v1061, 8
      %vm1134 = vcmp.lt.s32.totalorder %v1062, 8
      %vm1135 = vcmp.lt.s32.totalorder %v1063, 8
      %vm1136 = vcmp.lt.s32.totalorder %v1064, 8
      %vm1137 = vcmp.lt.s32.totalorder %v1065, 8
      %vm1138 = vcmp.lt.s32.totalorder %v1066, 8
      %vm1139 = vcmp.lt.s32.totalorder %v1067, 8
      %vm1140 = vcmp.lt.s32.totalorder %v1068, 8
      %vm1141 = vcmp.lt.s32.totalorder %v1069, 8
      %vm1142 = vcmp.lt.s32.totalorder %v1070, 8
      %vm1143 = vcmp.lt.s32.totalorder %v1071, 8
      %vm1144 = vcmp.lt.s32.totalorder %v1072, 8
      %vm1145 = vcmp.lt.s32.totalorder %v1073, 8
      %vm1146 = vcmp.lt.s32.totalorder %v1074, 8
      %vm1147 = vcmp.lt.s32.totalorder %v1075, 8
      %vm1148 = vcmp.lt.s32.totalorder %v1076, 8
      %vm1149 = vcmp.lt.s32.totalorder %v1059, 4
      %vm1150 = vcmp.lt.s32.totalorder %v1060, 4
      %vm1151 = vcmp.lt.s32.totalorder %v1061, 4
      %vm1152 = vcmp.lt.s32.totalorder %v1062, 4
      %vm1153 = vcmp.lt.s32.totalorder %v1063, 4
      %vm1154 = vcmp.lt.s32.totalorder %v1064, 4
      %vm1155 = vcmp.lt.s32.totalorder %v1065, 4
      %vm1156 = vcmp.lt.s32.totalorder %v1066, 4
      %vm1157 = vcmp.lt.s32.totalorder %v1067, 4
      %v1158 = vld [vmem:[%s435] sm:$0xf]
      %v1159 = vld [vmem:[%s435 + $0x4] sm:$0xf]
      %v1160 = vld [vmem:[%s435 + $0x8] sm:$0xf]
      %v1161 = vld [vmem:[%s435 + $0xc] sm:$0xf]
      %v1162 = vld [vmem:[%s435 + $0x10] sm:$0xf]
      %v1163 = vld [vmem:[%s435 + $0x14] sm:$0xf]
      %v1164 = vld [vmem:[%s435 + $0x18] sm:$0xf]
      %v1165 = vld [vmem:[%s435 + $0x1c] sm:$0xf]
      %v1166 = vld [vmem:[%s435 + $0x20] sm:$0xf]
      %v1167 = vld [vmem:[%s435 + $0x24] sm:$0xf]
      %v1168 = vld [vmem:[%s435 + $0x28] sm:$0xf]
      %v1169 = vld [vmem:[%s435 + $0x2c] sm:$0xf]
      %v1170 = vld [vmem:[%s435 + $0x30] sm:$0xf]
      %v1171 = vld [vmem:[%s435 + $0x34] sm:$0xf]
      %v1172 = vld [vmem:[%s435 + $0x38] sm:$0xf]
      %v1173 = vld [vmem:[%s435 + $0x3c] sm:$0xf]
      %v1174 = vld [vmem:[%s435 + $0x40] sm:$0xf]
      %v1175 = vld [vmem:[%s435 + $0x44] sm:$0xf]
      %v1176 = vld [vmem:[%s435 + $0x48] sm:$0xf]
      %v1177 = vld [vmem:[%s435 + $0x4c] sm:$0xf]
      %v1178 = vld [vmem:[%s435 + $0x50] sm:$0xf]
      %v1179 = vld [vmem:[%s435 + $0x54] sm:$0xf]
      %v1180 = vld [vmem:[%s435 + $0x58] sm:$0xf]
      %v1181 = vld [vmem:[%s435 + $0x5c] sm:$0xf]
      %v1182 = vld [vmem:[%s435 + $0x60] sm:$0xf]
      %v1183 = vld [vmem:[%s435 + $0x64] sm:$0xf]
      %v1184 = vld [vmem:[%s435 + $0x68] sm:$0xf]
      %v1185 = vld [vmem:[%s435 + $0x6c] sm:$0xf]
      %v1186 = vld [vmem:[%s435 + $0x70] sm:$0xf]
      %v1187 = vld [vmem:[%s435 + $0x74] sm:$0xf]
      %v1188 = vld [vmem:[%s435 + $0x78] sm:$0xf]
      %v1189 = vld [vmem:[%s435 + $0x7c] sm:$0xf]
      %v1190 = vld [vmem:[%s435 + $0x80] sm:$0xf]
      %v1191 = vld [vmem:[%s435 + $0x84] sm:$0xf]
      %v1192 = vld [vmem:[%s435 + $0x88] sm:$0xf]
      %v1193 = vld [vmem:[%s435 + $0x8c] sm:$0xf]
      %v1194 = vld [vmem:[%s435 + $0x90] sm:$0x1]
      %v1195 = vld [vmem:[%s435] sm:$0xe]
      %v1196 = vld [vmem:[%s435 + $0x8] sm:$0xe]
      %v1197 = vld [vmem:[%s435 + $0x90] sm:$0xf]
      %v1198 = vld [vmem:[%s435 + $0x94] sm:$0xf]
      %v1199 = vld [vmem:[%s435 + $0x98] sm:$0x1]
      %v1200 = vld [vmem:[%s435 + $0x98] sm:$0x3]
      %v1201 = vld [vmem:[%s435 + $0x8] sm:$0xc]
      %v1202 = vld [vmem:[%s435 + $0x10] sm:$0xc]
      %v1203 = vld [vmem:[%s435 + $0x98] sm:$0xf]
      %v1204 = vld [vmem:[%s435 + $0x9c] sm:$0xf]
      %v1205 = vld [vmem:[%s435 + $0xa0] sm:$0x3]
      %v1206 = vld [vmem:[%s435 + $0xa0] sm:$0x7]
      %v1207 = vld [vmem:[%s435 + $0x10] sm:$0x8]
      %v1244 = vunpack.c.l.b16 %v1158
      %v1245 = vunpack.c.l.b16 %v1159
      %v1246 = vunpack.c.l.b16 %v1160
      %v1247 = vunpack.c.l.b16 %v1161
      %v1248 = vunpack.c.l.b16 %v1162
      %v1249 = vunpack.c.l.b16 %v1163
      %v1250 = vunpack.c.l.b16 %v1164
      %v1251 = vunpack.c.l.b16 %v1165
      %v1252 = vunpack.c.l.b16 %v1166
      %v1253 = vunpack.c.l.b16 %v1167
      %v1254 = vunpack.c.l.b16 %v1168
      %v1255 = vunpack.c.l.b16 %v1169
      %v1256 = vunpack.c.l.b16 %v1170
      %v1257 = vunpack.c.l.b16 %v1171
      %v1258 = vunpack.c.l.b16 %v1172
      %v1259 = vunpack.c.l.b16 %v1173
      %v1260 = vunpack.c.l.b16 %v1174
      %v1261 = vunpack.c.l.b16 %v1175
      %v1262 = vunpack.c.l.b16 %v1176
      %v1263 = vunpack.c.l.b16 %v1177
      %v1264 = vunpack.c.l.b16 %v1178
      %v1265 = vunpack.c.l.b16 %v1179
      %v1266 = vunpack.c.l.b16 %v1180
      %v1267 = vunpack.c.l.b16 %v1181
      %v1268 = vunpack.c.l.b16 %v1182
      %v1269 = vunpack.c.l.b16 %v1183
      %v1270 = vunpack.c.l.b16 %v1184
      %v1271 = vunpack.c.l.b16 %v1185
      %v1272 = vunpack.c.l.b16 %v1186
      %v1273 = vunpack.c.l.b16 %v1187
      %v1274 = vunpack.c.l.b16 %v1188
      %v1275 = vunpack.c.l.b16 %v1189
      %v1276 = vunpack.c.l.b16 %v1190
      %v1277 = vunpack.c.l.b16 %v1191
      %v1278 = vunpack.c.l.b16 %v1192
      %v1279 = vunpack.c.l.b16 %v1193
      %v1280 = vpack.c.b16 %v1245, %v1244
      %v1281 = vpack.c.b16 %v1247, %v1246
      %v1282 = vpack.c.b16 %v1249, %v1248
      %v1283 = vpack.c.b16 %v1251, %v1250
      %v1284 = vpack.c.b16 %v1253, %v1252
      %v1285 = vpack.c.b16 %v1255, %v1254
      %v1286 = vpack.c.b16 %v1257, %v1256
      %v1287 = vpack.c.b16 %v1259, %v1258
      %v1288 = vpack.c.b16 %v1261, %v1260
      %v1289 = vpack.c.b16 %v1263, %v1262
      %v1290 = vpack.c.b16 %v1265, %v1264
      %v1291 = vpack.c.b16 %v1267, %v1266
      %v1292 = vpack.c.b16 %v1269, %v1268
      %v1293 = vpack.c.b16 %v1271, %v1270
      %v1294 = vpack.c.b16 %v1273, %v1272
      %v1295 = vpack.c.b16 %v1275, %v1274
      %v1296 = vpack.c.b16 %v1277, %v1276
      %v1297 = vpack.c.b16 %v1279, %v1278
      %v1299 = vunpack.c.l.b16 %v1194
      %v1300 = vpack.c.b16 %v1299, %v1299
      %vm1301 = vsmask.f32 7424
      %v1303 = vshrl.u32 %v1280, 16
      %v1305 = vshll.u32 %v1280, 16
      %v1307 = vrot.slane %v1305, 1
      %v1308 = vor.u32 %v1303, %v1307
      %v1310 = vshll.u32 %v1281, 16
      %v1312 = vrot.slane %v1310, 1
      %v1313 = vsel %vm1301, %v1308, %v1312
      %v1314 = vshrl.u32 %v1281, 16
      %v1316 = vor.u32 %v1314, %v1312
      %v1318 = vshll.u32 %v1282, 16
      %v1320 = vrot.slane %v1318, 1
      %v1321 = vsel %vm1301, %v1316, %v1320
      %v1322 = vshrl.u32 %v1282, 16
      %v1324 = vor.u32 %v1322, %v1320
      %v1326 = vshll.u32 %v1283, 16
      %v1328 = vrot.slane %v1326, 1
      %v1329 = vsel %vm1301, %v1324, %v1328
      %v1330 = vshrl.u32 %v1283, 16
      %v1332 = vor.u32 %v1330, %v1328
      %v1334 = vshll.u32 %v1284, 16
      %v1336 = vrot.slane %v1334, 1
      %v1337 = vsel %vm1301, %v1332, %v1336
      %v1338 = vshrl.u32 %v1284, 16
      %v1340 = vor.u32 %v1338, %v1336
      %v1342 = vshll.u32 %v1285, 16
      %v1344 = vrot.slane %v1342, 1
      %v1345 = vsel %vm1301, %v1340, %v1344
      %v1346 = vshrl.u32 %v1285, 16
      %v1348 = vor.u32 %v1346, %v1344
      %v1350 = vshll.u32 %v1286, 16
      %v1352 = vrot.slane %v1350, 1
      %v1353 = vsel %vm1301, %v1348, %v1352
      %v1354 = vshrl.u32 %v1286, 16
      %v1356 = vor.u32 %v1354, %v1352
      %v1358 = vshll.u32 %v1287, 16
      %v1360 = vrot.slane %v1358, 1
      %v1361 = vsel %vm1301, %v1356, %v1360
      %v1362 = vshrl.u32 %v1287, 16
      %v1364 = vor.u32 %v1362, %v1360
      %v1366 = vshll.u32 %v1288, 16
      %v1368 = vrot.slane %v1366, 1
      %v1369 = vsel %vm1301, %v1364, %v1368
      %v1370 = vshrl.u32 %v1288, 16
      %v1372 = vor.u32 %v1370, %v1368
      %v1374 = vshll.u32 %v1289, 16
      %v1376 = vrot.slane %v1374, 1
      %v1377 = vsel %vm1301, %v1372, %v1376
      %v1378 = vshrl.u32 %v1289, 16
      %v1380 = vor.u32 %v1378, %v1376
      %v1382 = vshll.u32 %v1290, 16
      %v1384 = vrot.slane %v1382, 1
      %v1385 = vsel %vm1301, %v1380, %v1384
      %v1386 = vshrl.u32 %v1290, 16
      %v1388 = vor.u32 %v1386, %v1384
      %v1390 = vshll.u32 %v1291, 16
      %v1392 = vrot.slane %v1390, 1
      %v1393 = vsel %vm1301, %v1388, %v1392
      %v1394 = vshrl.u32 %v1291, 16
      %v1396 = vor.u32 %v1394, %v1392
      %v1398 = vshll.u32 %v1292, 16
      %v1400 = vrot.slane %v1398, 1
      %v1401 = vsel %vm1301, %v1396, %v1400
      %v1402 = vshrl.u32 %v1292, 16
      %v1404 = vor.u32 %v1402, %v1400
      %v1406 = vshll.u32 %v1293, 16
      %v1408 = vrot.slane %v1406, 1
      %v1409 = vsel %vm1301, %v1404, %v1408
      %v1410 = vshrl.u32 %v1293, 16
      %v1412 = vor.u32 %v1410, %v1408
      %v1414 = vshll.u32 %v1294, 16
      %v1416 = vrot.slane %v1414, 1
      %v1417 = vsel %vm1301, %v1412, %v1416
      %v1418 = vshrl.u32 %v1294, 16
      %v1420 = vor.u32 %v1418, %v1416
      %v1422 = vshll.u32 %v1295, 16
      %v1424 = vrot.slane %v1422, 1
      %v1425 = vsel %vm1301, %v1420, %v1424
      %v1426 = vshrl.u32 %v1295, 16
      %v1428 = vor.u32 %v1426, %v1424
      %v1430 = vshll.u32 %v1296, 16
      %v1432 = vrot.slane %v1430, 1
      %v1433 = vsel %vm1301, %v1428, %v1432
      %v1434 = vshrl.u32 %v1296, 16
      %v1436 = vor.u32 %v1434, %v1432
      %v1438 = vshll.u32 %v1297, 16
      %v1440 = vrot.slane %v1438, 1
      %v1441 = vsel %vm1301, %v1436, %v1440
      %v1442 = vshrl.u32 %v1297, 16
      %v1444 = vor.u32 %v1442, %v1440
      %v1446 = vshll.u32 %v1300, 16
      %v1448 = vrot.slane %v1446, 1
      %v1449 = vsel %vm1301, %v1444, %v1448
      %1450 = vrot.lane.b32.xlu0 %v1313, 3
      %v1451 = vpop.permute.xlu0 %1450
      %1452 = vrot.lane.b32.xlu0 %v1321, 3
      %v1453 = vpop.permute.xlu0 %1452
      %1454 = vrot.lane.b32.xlu0 %v1329, 3
      %v1455 = vpop.permute.xlu0 %1454
      %1456 = vrot.lane.b32.xlu0 %v1337, 3
      %v1457 = vpop.permute.xlu0 %1456
      %1458 = vrot.lane.b32.xlu0 %v1345, 3
      %v1459 = vpop.permute.xlu0 %1458
      %1460 = vrot.lane.b32.xlu0 %v1353, 3
      %v1461 = vpop.permute.xlu0 %1460
      %1462 = vrot.lane.b32.xlu0 %v1361, 3
      %v1463 = vpop.permute.xlu0 %1462
      %1464 = vrot.lane.b32.xlu0 %v1369, 3
      %v1465 = vpop.permute.xlu0 %1464
      %1466 = vrot.lane.b32.xlu0 %v1377, 3
      %v1467 = vpop.permute.xlu0 %1466
      %1468 = vrot.lane.b32.xlu0 %v1385, 3
      %v1469 = vpop.permute.xlu0 %1468
      %1470 = vrot.lane.b32.xlu0 %v1393, 3
      %v1471 = vpop.permute.xlu0 %1470
      %1472 = vrot.lane.b32.xlu0 %v1401, 3
      %v1473 = vpop.permute.xlu0 %1472
      %1474 = vrot.lane.b32.xlu0 %v1409, 3
      %v1475 = vpop.permute.xlu0 %1474
      %1476 = vrot.lane.b32.xlu0 %v1417, 3
      %v1477 = vpop.permute.xlu0 %1476
      %1478 = vrot.lane.b32.xlu0 %v1425, 3
      %v1479 = vpop.permute.xlu0 %1478
      %1480 = vrot.lane.b32.xlu0 %v1433, 3
      %v1481 = vpop.permute.xlu0 %1480
      %1482 = vrot.lane.b32.xlu0 %v1441, 3
      %v1483 = vpop.permute.xlu0 %1482
      %1484 = vrot.lane.b32.xlu0 %v1449, 3
      %v1485 = vpop.permute.xlu0 %1484
      %v1487 = vunpack.c.l.b16 %v1195
      %v1488 = vpack.c.b16 %v1245, %v1487
      %vm1489 = vcmask 1046528
      %v1490 = vrot.slane %v1488, 1
      %v1491 = vrot.slane %v1281, 1
      %v1492 = vsel %vm1489, %v1490, %v1491
      %v1493 = vrot.slane %v1282, 1
      %v1494 = vsel %vm1489, %v1491, %v1493
      %v1495 = vrot.slane %v1283, 1
      %v1496 = vsel %vm1489, %v1493, %v1495
      %v1497 = vrot.slane %v1284, 1
      %v1498 = vsel %vm1489, %v1495, %v1497
      %v1499 = vrot.slane %v1285, 1
      %v1500 = vsel %vm1489, %v1497, %v1499
      %v1501 = vrot.slane %v1286, 1
      %v1502 = vsel %vm1489, %v1499, %v1501
      %v1503 = vrot.slane %v1287, 1
      %v1504 = vsel %vm1489, %v1501, %v1503
      %v1505 = vrot.slane %v1288, 1
      %v1506 = vsel %vm1489, %v1503, %v1505
      %v1507 = vrot.slane %v1289, 1
      %v1508 = vsel %vm1489, %v1505, %v1507
      %v1509 = vrot.slane %v1290, 1
      %v1510 = vsel %vm1489, %v1507, %v1509
      %v1511 = vrot.slane %v1291, 1
      %v1512 = vsel %vm1489, %v1509, %v1511
      %v1513 = vrot.slane %v1292, 1
      %v1514 = vsel %vm1489, %v1511, %v1513
      %v1515 = vrot.slane %v1293, 1
      %v1516 = vsel %vm1489, %v1513, %v1515
      %v1517 = vrot.slane %v1294, 1
      %v1518 = vsel %vm1489, %v1515, %v1517
      %v1519 = vrot.slane %v1295, 1
      %v1520 = vsel %vm1489, %v1517, %v1519
      %v1521 = vrot.slane %v1296, 1
      %v1522 = vsel %vm1489, %v1519, %v1521
      %v1523 = vrot.slane %v1297, 1
      %v1524 = vsel %vm1489, %v1521, %v1523
      %v1525 = vrot.slane %v1300, 1
      %v1526 = vsel %vm1489, %v1523, %v1525
      %1527 = vrot.lane.b32.xlu0 %v1492, 6
      %v1528 = vpop.permute.xlu0 %1527
      %1529 = vrot.lane.b32.xlu0 %v1494, 6
      %v1530 = vpop.permute.xlu0 %1529
      %1531 = vrot.lane.b32.xlu0 %v1496, 6
      %v1532 = vpop.permute.xlu0 %1531
      %1533 = vrot.lane.b32.xlu0 %v1498, 6
      %v1534 = vpop.permute.xlu0 %1533
      %1535 = vrot.lane.b32.xlu0 %v1500, 6
      %v1536 = vpop.permute.xlu0 %1535
      %1537 = vrot.lane.b32.xlu0 %v1502, 6
      %v1538 = vpop.permute.xlu0 %1537
      %1539 = vrot.lane.b32.xlu0 %v1504, 6
      %v1540 = vpop.permute.xlu0 %1539
      %1541 = vrot.lane.b32.xlu0 %v1506, 6
      %v1542 = vpop.permute.xlu0 %1541
      %1543 = vrot.lane.b32.xlu0 %v1508, 6
      %v1544 = vpop.permute.xlu0 %1543
      %1545 = vrot.lane.b32.xlu0 %v1510, 6
      %v1546 = vpop.permute.xlu0 %1545
      %1547 = vrot.lane.b32.xlu0 %v1512, 6
      %v1548 = vpop.permute.xlu0 %1547
      %1549 = vrot.lane.b32.xlu0 %v1514, 6
      %v1550 = vpop.permute.xlu0 %1549
      %1551 = vrot.lane.b32.xlu0 %v1516, 6
      %v1552 = vpop.permute.xlu0 %1551
      %1553 = vrot.lane.b32.xlu0 %v1518, 6
      %v1554 = vpop.permute.xlu0 %1553
      %1555 = vrot.lane.b32.xlu0 %v1520, 6
      %v1556 = vpop.permute.xlu0 %1555
      %1557 = vrot.lane.b32.xlu0 %v1522, 6
      %v1558 = vpop.permute.xlu0 %1557
      %1559 = vrot.lane.b32.xlu0 %v1524, 6
      %v1560 = vpop.permute.xlu0 %1559
      %1561 = vrot.lane.b32.xlu0 %v1526, 6
      %v1562 = vpop.permute.xlu0 %1561
      %v1567 = vunpack.c.l.b16 %v1196
      %v1568 = vunpack.c.l.b16 %v1197
      %v1569 = vunpack.c.l.b16 %v1198
      %v1570 = vunpack.c.l.b16 %v1199
      %v1571 = vpack.c.b16 %v1247, %v1567
      %v1572 = vpack.c.b16 %v1569, %v1568
      %v1573 = vpack.c.b16 %v1570, %v1570
      %v1574 = vrot.slane %v1571, 1
      %v1575 = vsel %vm1489, %v1574, %v1493
      %v1576 = vrot.slane %v1572, 1
      %v1577 = vsel %vm1489, %v1523, %v1576
      %v1578 = vrot.slane %v1573, 1
      %v1579 = vsel %vm1489, %v1576, %v1578
      %1580 = vrot.lane.b32.xlu0 %v1575, 9
      %v1581 = vpop.permute.xlu0 %1580
      %1582 = vrot.lane.b32.xlu0 %v1496, 9
      %v1583 = vpop.permute.xlu0 %1582
      %1584 = vrot.lane.b32.xlu0 %v1498, 9
      %v1585 = vpop.permute.xlu0 %1584
      %1586 = vrot.lane.b32.xlu0 %v1500, 9
      %v1587 = vpop.permute.xlu0 %1586
      %1588 = vrot.lane.b32.xlu0 %v1502, 9
      %v1589 = vpop.permute.xlu0 %1588
      %1590 = vrot.lane.b32.xlu0 %v1504, 9
      %v1591 = vpop.permute.xlu0 %1590
      %1592 = vrot.lane.b32.xlu0 %v1506, 9
      %v1593 = vpop.permute.xlu0 %1592
      %1594 = vrot.lane.b32.xlu0 %v1508, 9
      %v1595 = vpop.permute.xlu0 %1594
      %1596 = vrot.lane.b32.xlu0 %v1510, 9
      %v1597 = vpop.permute.xlu0 %1596
      %1598 = vrot.lane.b32.xlu0 %v1512, 9
      %v1599 = vpop.permute.xlu0 %1598
      %1600 = vrot.lane.b32.xlu0 %v1514, 9
      %v1601 = vpop.permute.xlu0 %1600
      %1602 = vrot.lane.b32.xlu0 %v1516, 9
      %v1603 = vpop.permute.xlu0 %1602
      %1604 = vrot.lane.b32.xlu0 %v1518, 9
      %v1605 = vpop.permute.xlu0 %1604
      %1606 = vrot.lane.b32.xlu0 %v1520, 9
      %v1607 = vpop.permute.xlu0 %1606
      %1608 = vrot.lane.b32.xlu0 %v1522, 9
      %v1609 = vpop.permute.xlu0 %1608
      %1610 = vrot.lane.b32.xlu0 %v1524, 9
      %v1611 = vpop.permute.xlu0 %1610
      %1612 = vrot.lane.b32.xlu0 %v1577, 9
      %v1613 = vpop.permute.xlu0 %1612
      %1614 = vrot.lane.b32.xlu0 %v1579, 9
      %v1615 = vpop.permute.xlu0 %1614
      %v1617 = vunpack.c.l.b16 %v1200
      %v1618 = vpack.c.b16 %v1617, %v1617
      %vm1619 = vsmask.f32 6400
      %v1621 = vshrl.u32 %v1571, 16
      %v1623 = vrot.slane %v1621, 1
      %v1624 = vshll.u32 %v1571, 16
      %v1626 = vrot.slane %v1624, 2
      %v1627 = vor.u32 %v1623, %v1626
      %v1628 = vrot.slane %v1322, 1
      %v1629 = vrot.slane %v1318, 2
      %v1630 = vor.u32 %v1628, %v1629
      %v1631 = vsel %vm1619, %v1627, %v1630
      %v1632 = vrot.slane %v1330, 1
      %v1633 = vrot.slane %v1326, 2
      %v1634 = vor.u32 %v1632, %v1633
      %v1635 = vsel %vm1619, %v1630, %v1634
      %v1636 = vrot.slane %v1338, 1
      %v1637 = vrot.slane %v1334, 2
      %v1638 = vor.u32 %v1636, %v1637
      %v1639 = vsel %vm1619, %v1634, %v1638
      %v1640 = vrot.slane %v1346, 1
      %v1641 = vrot.slane %v1342, 2
      %v1642 = vor.u32 %v1640, %v1641
      %v1643 = vsel %vm1619, %v1638, %v1642
      %v1644 = vrot.slane %v1354, 1
      %v1645 = vrot.slane %v1350, 2
      %v1646 = vor.u32 %v1644, %v1645
      %v1647 = vsel %vm1619, %v1642, %v1646
      %v1648 = vrot.slane %v1362, 1
      %v1649 = vrot.slane %v1358, 2
      %v1650 = vor.u32 %v1648, %v1649
      %v1651 = vsel %vm1619, %v1646, %v1650
      %v1652 = vrot.slane %v1370, 1
      %v1653 = vrot.slane %v1366, 2
      %v1654 = vor.u32 %v1652, %v1653
      %v1655 = vsel %vm1619, %v1650, %v1654
      %v1656 = vrot.slane %v1378, 1
      %v1657 = vrot.slane %v1374, 2
      %v1658 = vor.u32 %v1656, %v1657
      %v1659 = vsel %vm1619, %v1654, %v1658
      %v1660 = vrot.slane %v1386, 1
      %v1661 = vrot.slane %v1382, 2
      %v1662 = vor.u32 %v1660, %v1661
      %v1663 = vsel %vm1619, %v1658, %v1662
      %v1664 = vrot.slane %v1394, 1
      %v1665 = vrot.slane %v1390, 2
      %v1666 = vor.u32 %v1664, %v1665
      %v1667 = vsel %vm1619, %v1662, %v1666
      %v1668 = vrot.slane %v1402, 1
      %v1669 = vrot.slane %v1398, 2
      %v1670 = vor.u32 %v1668, %v1669
      %v1671 = vsel %vm1619, %v1666, %v1670
      %v1672 = vrot.slane %v1410, 1
      %v1673 = vrot.slane %v1406, 2
      %v1674 = vor.u32 %v1672, %v1673
      %v1675 = vsel %vm1619, %v1670, %v1674
      %v1676 = vrot.slane %v1418, 1
      %v1677 = vrot.slane %v1414, 2
      %v1678 = vor.u32 %v1676, %v1677
      %v1679 = vsel %vm1619, %v1674, %v1678
      %v1680 = vrot.slane %v1426, 1
      %v1681 = vrot.slane %v1422, 2
      %v1682 = vor.u32 %v1680, %v1681
      %v1683 = vsel %vm1619, %v1678, %v1682
      %v1684 = vrot.slane %v1434, 1
      %v1685 = vrot.slane %v1430, 2
      %v1686 = vor.u32 %v1684, %v1685
      %v1687 = vsel %vm1619, %v1682, %v1686
      %v1688 = vrot.slane %v1442, 1
      %v1689 = vrot.slane %v1438, 2
      %v1690 = vor.u32 %v1688, %v1689
      %v1691 = vsel %vm1619, %v1686, %v1690
      %v1693 = vshrl.u32 %v1572, 16
      %v1695 = vrot.slane %v1693, 1
      %v1696 = vshll.u32 %v1572, 16
      %v1698 = vrot.slane %v1696, 2
      %v1699 = vor.u32 %v1695, %v1698
      %v1700 = vsel %vm1619, %v1690, %v1699
      %v1702 = vshrl.u32 %v1618, 16
      %v1704 = vrot.slane %v1702, 1
      %v1705 = vshll.u32 %v1618, 16
      %v1707 = vrot.slane %v1705, 2
      %v1708 = vor.u32 %v1704, %v1707
      %v1709 = vsel %vm1619, %v1699, %v1708
      %1710 = vrot.lane.b32.xlu0 %v1631, 12
      %v1711 = vpop.permute.xlu0 %1710
      %1712 = vrot.lane.b32.xlu0 %v1635, 12
      %v1713 = vpop.permute.xlu0 %1712
      %1714 = vrot.lane.b32.xlu0 %v1639, 12
      %v1715 = vpop.permute.xlu0 %1714
      %1716 = vrot.lane.b32.xlu0 %v1643, 12
      %v1717 = vpop.permute.xlu0 %1716
      %1718 = vrot.lane.b32.xlu0 %v1647, 12
      %v1719 = vpop.permute.xlu0 %1718
      %1720 = vrot.lane.b32.xlu0 %v1651, 12
      %v1721 = vpop.permute.xlu0 %1720
      %1722 = vrot.lane.b32.xlu0 %v1655, 12
      %v1723 = vpop.permute.xlu0 %1722
      %1724 = vrot.lane.b32.xlu0 %v1659, 12
      %v1725 = vpop.permute.xlu0 %1724
      %1726 = vrot.lane.b32.xlu0 %v1663, 12
      %v1727 = vpop.permute.xlu0 %1726
      %1728 = vrot.lane.b32.xlu0 %v1667, 12
      %v1729 = vpop.permute.xlu0 %1728
      %1730 = vrot.lane.b32.xlu0 %v1671, 12
      %v1731 = vpop.permute.xlu0 %1730
      %1732 = vrot.lane.b32.xlu0 %v1675, 12
      %v1733 = vpop.permute.xlu0 %1732
      %1734 = vrot.lane.b32.xlu0 %v1679, 12
      %v1735 = vpop.permute.xlu0 %1734
      %1736 = vrot.lane.b32.xlu0 %v1683, 12
      %v1737 = vpop.permute.xlu0 %1736
      %1738 = vrot.lane.b32.xlu0 %v1687, 12
      %v1739 = vpop.permute.xlu0 %1738
      %1740 = vrot.lane.b32.xlu0 %v1691, 12
      %v1741 = vpop.permute.xlu0 %1740
      %1742 = vrot.lane.b32.xlu0 %v1700, 12
      %v1743 = vpop.permute.xlu0 %1742
      %1744 = vrot.lane.b32.xlu0 %v1709, 12
      %v1745 = vpop.permute.xlu0 %1744
      %v1747 = vunpack.c.l.b16 %v1201
      %v1748 = vpack.c.b16 %v1247, %v1747
      %vm1749 = vcmask 1045504
      %v1750 = vrot.slane %v1748, 2
      %v1751 = vrot.slane %v1282, 2
      %v1752 = vsel %vm1749, %v1750, %v1751
      %v1753 = vrot.slane %v1283, 2
      %v1754 = vsel %vm1749, %v1751, %v1753
      %v1755 = vrot.slane %v1284, 2
      %v1756 = vsel %vm1749, %v1753, %v1755
      %v1757 = vrot.slane %v1285, 2
      %v1758 = vsel %vm1749, %v1755, %v1757
      %v1759 = vrot.slane %v1286, 2
      %v1760 = vsel %vm1749, %v1757, %v1759
      %v1761 = vrot.slane %v1287, 2
      %v1762 = vsel %vm1749, %v1759, %v1761
      %v1763 = vrot.slane %v1288, 2
      %v1764 = vsel %vm1749, %v1761, %v1763
      %v1765 = vrot.slane %v1289, 2
      %v1766 = vsel %vm1749, %v1763, %v1765
      %v1767 = vrot.slane %v1290, 2
      %v1768 = vsel %vm1749, %v1765, %v1767
      %v1769 = vrot.slane %v1291, 2
      %v1770 = vsel %vm1749, %v1767, %v1769
      %v1771 = vrot.slane %v1292, 2
      %v1772 = vsel %vm1749, %v1769, %v1771
      %v1773 = vrot.slane %v1293, 2
      %v1774 = vsel %vm1749, %v1771, %v1773
      %v1775 = vrot.slane %v1294, 2
      %v1776 = vsel %vm1749, %v1773, %v1775
      %v1777 = vrot.slane %v1295, 2
      %v1778 = vsel %vm1749, %v1775, %v1777
      %v1779 = vrot.slane %v1296, 2
      %v1780 = vsel %vm1749, %v1777, %v1779
      %v1781 = vrot.slane %v1297, 2
      %v1782 = vsel %vm1749, %v1779, %v1781
      %v1783 = vrot.slane %v1572, 2
      %v1784 = vsel %vm1749, %v1781, %v1783
      %v1785 = vrot.slane %v1618, 2
      %v1786 = vsel %vm1749, %v1783, %v1785
      %1787 = vrot.lane.b32.xlu0 %v1752, 15
      %v1788 = vpop.permute.xlu0 %1787
      %1789 = vrot.lane.b32.xlu0 %v1754, 15
      %v1790 = vpop.permute.xlu0 %1789
      %1791 = vrot.lane.b32.xlu0 %v1756, 15
      %v1792 = vpop.permute.xlu0 %1791
      %1793 = vrot.lane.b32.xlu0 %v1758, 15
      %v1794 = vpop.permute.xlu0 %1793
      %1795 = vrot.lane.b32.xlu0 %v1760, 15
      %v1796 = vpop.permute.xlu0 %1795
      %1797 = vrot.lane.b32.xlu0 %v1762, 15
      %v1798 = vpop.permute.xlu0 %1797
      %1799 = vrot.lane.b32.xlu0 %v1764, 15
      %v1800 = vpop.permute.xlu0 %1799
      %1801 = vrot.lane.b32.xlu0 %v1766, 15
      %v1802 = vpop.permute.xlu0 %1801
      %1803 = vrot.lane.b32.xlu0 %v1768, 15
      %v1804 = vpop.permute.xlu0 %1803
      %1805 = vrot.lane.b32.xlu0 %v1770, 15
      %v1806 = vpop.permute.xlu0 %1805
      %1807 = vrot.lane.b32.xlu0 %v1772, 15
      %v1808 = vpop.permute.xlu0 %1807
      %1809 = vrot.lane.b32.xlu0 %v1774, 15
      %v1810 = vpop.permute.xlu0 %1809
      %1811 = vrot.lane.b32.xlu0 %v1776, 15
      %v1812 = vpop.permute.xlu0 %1811
      %1813 = vrot.lane.b32.xlu0 %v1778, 15
      %v1814 = vpop.permute.xlu0 %1813
      %1815 = vrot.lane.b32.xlu0 %v1780, 15
      %v1816 = vpop.permute.xlu0 %1815
      %1817 = vrot.lane.b32.xlu0 %v1782, 15
      %v1818 = vpop.permute.xlu0 %1817
      %1819 = vrot.lane.b32.xlu0 %v1784, 15
      %v1820 = vpop.permute.xlu0 %1819
      %1821 = vrot.lane.b32.xlu0 %v1786, 15
      %v1822 = vpop.permute.xlu0 %1821
      %v1827 = vunpack.c.l.b16 %v1202
      %v1828 = vunpack.c.l.b16 %v1203
      %v1829 = vunpack.c.l.b16 %v1204
      %v1830 = vunpack.c.l.b16 %v1205
      %v1831 = vpack.c.b16 %v1249, %v1827
      %v1832 = vpack.c.b16 %v1829, %v1828
      %v1833 = vpack.c.b16 %v1830, %v1830
      %v1834 = vrot.slane %v1831, 2
      %v1835 = vsel %vm1749, %v1834, %v1753
      %v1836 = vrot.slane %v1832, 2
      %v1837 = vsel %vm1749, %v1783, %v1836
      %v1838 = vrot.slane %v1833, 2
      %v1839 = vsel %vm1749, %v1836, %v1838
      %1840 = vrot.lane.b32.xlu0 %v1835, 18
      %v1841 = vpop.permute.xlu0 %1840
      %1842 = vrot.lane.b32.xlu0 %v1756, 18
      %v1843 = vpop.permute.xlu0 %1842
      %1844 = vrot.lane.b32.xlu0 %v1758, 18
      %v1845 = vpop.permute.xlu0 %1844
      %1846 = vrot.lane.b32.xlu0 %v1760, 18
      %v1847 = vpop.permute.xlu0 %1846
      %1848 = vrot.lane.b32.xlu0 %v1762, 18
      %v1849 = vpop.permute.xlu0 %1848
      %1850 = vrot.lane.b32.xlu0 %v1764, 18
      %v1851 = vpop.permute.xlu0 %1850
      %1852 = vrot.lane.b32.xlu0 %v1766, 18
      %v1853 = vpop.permute.xlu0 %1852
      %1854 = vrot.lane.b32.xlu0 %v1768, 18
      %v1855 = vpop.permute.xlu0 %1854
      %1856 = vrot.lane.b32.xlu0 %v1770, 18
      %v1857 = vpop.permute.xlu0 %1856
      %1858 = vrot.lane.b32.xlu0 %v1772, 18
      %v1859 = vpop.permute.xlu0 %1858
      %1860 = vrot.lane.b32.xlu0 %v1774, 18
      %v1861 = vpop.permute.xlu0 %1860
      %1862 = vrot.lane.b32.xlu0 %v1776, 18
      %v1863 = vpop.permute.xlu0 %1862
      %1864 = vrot.lane.b32.xlu0 %v1778, 18
      %v1865 = vpop.permute.xlu0 %1864
      %1866 = vrot.lane.b32.xlu0 %v1780, 18
      %v1867 = vpop.permute.xlu0 %1866
      %1868 = vrot.lane.b32.xlu0 %v1782, 18
      %v1869 = vpop.permute.xlu0 %1868
      %1870 = vrot.lane.b32.xlu0 %v1784, 18
      %v1871 = vpop.permute.xlu0 %1870
      %1872 = vrot.lane.b32.xlu0 %v1837, 18
      %v1873 = vpop.permute.xlu0 %1872
      %1874 = vrot.lane.b32.xlu0 %v1839, 18
      %v1875 = vpop.permute.xlu0 %1874
      %v1877 = vunpack.c.l.b16 %v1206
      %v1878 = vpack.c.b16 %v1877, %v1877
      %vm1879 = vsmask.f32 5376
      %v1881 = vshrl.u32 %v1831, 16
      %v1883 = vrot.slane %v1881, 2
      %v1884 = vshll.u32 %v1831, 16
      %v1886 = vrot.slane %v1884, 3
      %v1887 = vor.u32 %v1883, %v1886
      %v1888 = vrot.slane %v1330, 2
      %v1889 = vrot.slane %v1326, 3
      %v1890 = vor.u32 %v1888, %v1889
      %v1891 = vsel %vm1879, %v1887, %v1890
      %v1892 = vrot.slane %v1338, 2
      %v1893 = vrot.slane %v1334, 3
      %v1894 = vor.u32 %v1892, %v1893
      %v1895 = vsel %vm1879, %v1890, %v1894
      %v1896 = vrot.slane %v1346, 2
      %v1897 = vrot.slane %v1342, 3
      %v1898 = vor.u32 %v1896, %v1897
      %v1899 = vsel %vm1879, %v1894, %v1898
      %v1900 = vrot.slane %v1354, 2
      %v1901 = vrot.slane %v1350, 3
      %v1902 = vor.u32 %v1900, %v1901
      %v1903 = vsel %vm1879, %v1898, %v1902
      %v1904 = vrot.slane %v1362, 2
      %v1905 = vrot.slane %v1358, 3
      %v1906 = vor.u32 %v1904, %v1905
      %v1907 = vsel %vm1879, %v1902, %v1906
      %v1908 = vrot.slane %v1370, 2
      %v1909 = vrot.slane %v1366, 3
      %v1910 = vor.u32 %v1908, %v1909
      %v1911 = vsel %vm1879, %v1906, %v1910
      %v1912 = vrot.slane %v1378, 2
      %v1913 = vrot.slane %v1374, 3
      %v1914 = vor.u32 %v1912, %v1913
      %v1915 = vsel %vm1879, %v1910, %v1914
      %v1916 = vrot.slane %v1386, 2
      %v1917 = vrot.slane %v1382, 3
      %v1918 = vor.u32 %v1916, %v1917
      %v1919 = vsel %vm1879, %v1914, %v1918
      %v1920 = vrot.slane %v1394, 2
      %v1921 = vrot.slane %v1390, 3
      %v1922 = vor.u32 %v1920, %v1921
      %v1923 = vsel %vm1879, %v1918, %v1922
      %v1924 = vrot.slane %v1402, 2
      %v1925 = vrot.slane %v1398, 3
      %v1926 = vor.u32 %v1924, %v1925
      %v1927 = vsel %vm1879, %v1922, %v1926
      %v1928 = vrot.slane %v1410, 2
      %v1929 = vrot.slane %v1406, 3
      %v1930 = vor.u32 %v1928, %v1929
      %v1931 = vsel %vm1879, %v1926, %v1930
      %v1932 = vrot.slane %v1418, 2
      %v1933 = vrot.slane %v1414, 3
      %v1934 = vor.u32 %v1932, %v1933
      %v1935 = vsel %vm1879, %v1930, %v1934
      %v1936 = vrot.slane %v1426, 2
      %v1937 = vrot.slane %v1422, 3
      %v1938 = vor.u32 %v1936, %v1937
      %v1939 = vsel %vm1879, %v1934, %v1938
      %v1940 = vrot.slane %v1434, 2
      %v1941 = vrot.slane %v1430, 3
      %v1942 = vor.u32 %v1940, %v1941
      %v1943 = vsel %vm1879, %v1938, %v1942
      %v1944 = vrot.slane %v1442, 2
      %v1945 = vrot.slane %v1438, 3
      %v1946 = vor.u32 %v1944, %v1945
      %v1947 = vsel %vm1879, %v1942, %v1946
      %v1948 = vrot.slane %v1693, 2
      %v1949 = vrot.slane %v1696, 3
      %v1950 = vor.u32 %v1948, %v1949
      %v1951 = vsel %vm1879, %v1946, %v1950
      %v1953 = vshrl.u32 %v1832, 16
      %v1955 = vrot.slane %v1953, 2
      %v1956 = vshll.u32 %v1832, 16
      %v1958 = vrot.slane %v1956, 3
      %v1959 = vor.u32 %v1955, %v1958
      %v1960 = vsel %vm1879, %v1950, %v1959
      %v1962 = vshrl.u32 %v1878, 16
      %v1964 = vrot.slane %v1962, 2
      %v1965 = vshll.u32 %v1878, 16
      %v1967 = vrot.slane %v1965, 3
      %v1968 = vor.u32 %v1964, %v1967
      %v1969 = vsel %vm1879, %v1959, %v1968
      %1970 = vrot.lane.b32.xlu0 %v1891, 21
      %v1971 = vpop.permute.xlu0 %1970
      %1972 = vrot.lane.b32.xlu0 %v1895, 21
      %v1973 = vpop.permute.xlu0 %1972
      %1974 = vrot.lane.b32.xlu0 %v1899, 21
      %v1975 = vpop.permute.xlu0 %1974
      %1976 = vrot.lane.b32.xlu0 %v1903, 21
      %v1977 = vpop.permute.xlu0 %1976
      %1978 = vrot.lane.b32.xlu0 %v1907, 21
      %v1979 = vpop.permute.xlu0 %1978
      %1980 = vrot.lane.b32.xlu0 %v1911, 21
      %v1981 = vpop.permute.xlu0 %1980
      %1982 = vrot.lane.b32.xlu0 %v1915, 21
      %v1983 = vpop.permute.xlu0 %1982
      %1984 = vrot.lane.b32.xlu0 %v1919, 21
      %v1985 = vpop.permute.xlu0 %1984
      %1986 = vrot.lane.b32.xlu0 %v1923, 21
      %v1987 = vpop.permute.xlu0 %1986
      %1988 = vrot.lane.b32.xlu0 %v1927, 21
      %v1989 = vpop.permute.xlu0 %1988
      %1990 = vrot.lane.b32.xlu0 %v1931, 21
      %v1991 = vpop.permute.xlu0 %1990
      %1992 = vrot.lane.b32.xlu0 %v1935, 21
      %v1993 = vpop.permute.xlu0 %1992
      %1994 = vrot.lane.b32.xlu0 %v1939, 21
      %v1995 = vpop.permute.xlu0 %1994
      %1996 = vrot.lane.b32.xlu0 %v1943, 21
      %v1997 = vpop.permute.xlu0 %1996
      %1998 = vrot.lane.b32.xlu0 %v1947, 21
      %v1999 = vpop.permute.xlu0 %1998
      %2000 = vrot.lane.b32.xlu0 %v1951, 21
      %v2001 = vpop.permute.xlu0 %2000
      %2002 = vrot.lane.b32.xlu0 %v1960, 21
      %v2003 = vpop.permute.xlu0 %2002
      %2004 = vrot.lane.b32.xlu0 %v1969, 21
      %v2005 = vpop.permute.xlu0 %2004
      %v2007 = vunpack.c.l.b16 %v1207
      %v2008 = vpack.c.b16 %v1249, %v2007
      %vm2009 = vcmask 1044480
      %v2010 = vrot.slane %v2008, 3
      %v2011 = vrot.slane %v1283, 3
      %v2012 = vsel %vm2009, %v2010, %v2011
      %v2013 = vrot.slane %v1284, 3
      %v2014 = vsel %vm2009, %v2011, %v2013
      %v2015 = vrot.slane %v1285, 3
      %v2016 = vsel %vm2009, %v2013, %v2015
      %v2017 = vrot.slane %v1286, 3
      %v2018 = vsel %vm2009, %v2015, %v2017
      %v2019 = vrot.slane %v1287, 3
      %v2020 = vsel %vm2009, %v2017, %v2019
      %v2021 = vrot.slane %v1288, 3
      %v2022 = vsel %vm2009, %v2019, %v2021
      %v2023 = vrot.slane %v1289, 3
      %v2024 = vsel %vm2009, %v2021, %v2023
      %v2025 = vrot.slane %v1290, 3
      %v2026 = vsel %vm2009, %v2023, %v2025
      %v2027 = vrot.slane %v1291, 3
      %v2028 = vsel %vm2009, %v2025, %v2027
      %v2029 = vrot.slane %v1292, 3
      %v2030 = vsel %vm2009, %v2027, %v2029
      %v2031 = vrot.slane %v1293, 3
      %v2032 = vsel %vm2009, %v2029, %v2031
      %v2033 = vrot.slane %v1294, 3
      %v2034 = vsel %vm2009, %v2031, %v2033
      %v2035 = vrot.slane %v1295, 3
      %v2036 = vsel %vm2009, %v2033, %v2035
      %v2037 = vrot.slane %v1296, 3
      %v2038 = vsel %vm2009, %v2035, %v2037
      %v2039 = vrot.slane %v1297, 3
      %v2040 = vsel %vm2009, %v2037, %v2039
      %v2041 = vrot.slane %v1572, 3
      %v2042 = vsel %vm2009, %v2039, %v2041
      %v2043 = vrot.slane %v1832, 3
      %v2044 = vsel %vm2009, %v2041, %v2043
      %v2045 = vrot.slane %v1878, 3
      %v2046 = vsel %vm2009, %v2043, %v2045
      %2047 = vrot.lane.b32.xlu0 %v2012, 24
      %v2048 = vpop.permute.xlu0 %2047
      %2049 = vrot.lane.b32.xlu0 %v2014, 24
      %v2050 = vpop.permute.xlu0 %2049
      %2051 = vrot.lane.b32.xlu0 %v2016, 24
      %v2052 = vpop.permute.xlu0 %2051
      %2053 = vrot.lane.b32.xlu0 %v2018, 24
      %v2054 = vpop.permute.xlu0 %2053
      %2055 = vrot.lane.b32.xlu0 %v2020, 24
      %v2056 = vpop.permute.xlu0 %2055
      %2057 = vrot.lane.b32.xlu0 %v2022, 24
      %v2058 = vpop.permute.xlu0 %2057
      %2059 = vrot.lane.b32.xlu0 %v2024, 24
      %v2060 = vpop.permute.xlu0 %2059
      %2061 = vrot.lane.b32.xlu0 %v2026, 24
      %v2062 = vpop.permute.xlu0 %2061
      %2063 = vrot.lane.b32.xlu0 %v2028, 24
      %v2064 = vpop.permute.xlu0 %2063
      %2065 = vrot.lane.b32.xlu0 %v2030, 24
      %v2066 = vpop.permute.xlu0 %2065
      %2067 = vrot.lane.b32.xlu0 %v2032, 24
      %v2068 = vpop.permute.xlu0 %2067
      %2069 = vrot.lane.b32.xlu0 %v2034, 24
      %v2070 = vpop.permute.xlu0 %2069
      %2071 = vrot.lane.b32.xlu0 %v2036, 24
      %v2072 = vpop.permute.xlu0 %2071
      %2073 = vrot.lane.b32.xlu0 %v2038, 24
      %v2074 = vpop.permute.xlu0 %2073
      %2075 = vrot.lane.b32.xlu0 %v2040, 24
      %v2076 = vpop.permute.xlu0 %2075
      %2077 = vrot.lane.b32.xlu0 %v2042, 24
      %v2078 = vpop.permute.xlu0 %2077
      %2079 = vrot.lane.b32.xlu0 %v2044, 24
      %v2080 = vpop.permute.xlu0 %2079
      %2081 = vrot.lane.b32.xlu0 %v2046, 24
      %v2082 = vpop.permute.xlu0 %2081
      %vm2083 = vcmask 23552
      %v2085 = vsel %vm2083, %v1280, %v1451
      %v2087 = vsel %vm2083, %v1281, %v1453
      %v2089 = vsel %vm2083, %v1282, %v1455
      %v2091 = vsel %vm2083, %v1283, %v1457
      %v2093 = vsel %vm2083, %v1284, %v1459
      %v2095 = vsel %vm2083, %v1285, %v1461
      %v2097 = vsel %vm2083, %v1286, %v1463
      %v2099 = vsel %vm2083, %v1287, %v1465
      %v2101 = vsel %vm2083, %v1288, %v1467
      %v2103 = vsel %vm2083, %v1289, %v1469
      %v2105 = vsel %vm2083, %v1290, %v1471
      %v2107 = vsel %vm2083, %v1291, %v1473
      %v2109 = vsel %vm2083, %v1292, %v1475
      %v2111 = vsel %vm2083, %v1293, %v1477
      %v2113 = vsel %vm2083, %v1294, %v1479
      %v2115 = vsel %vm2083, %v1295, %v1481
      %v2117 = vsel %vm2083, %v1296, %v1483
      %v2119 = vsel %vm2083, %v1297, %v1485
      %vm2120 = vcmask 48128
      %v2122 = vsel %vm2120, %v2085, %v1528
      %v2124 = vsel %vm2120, %v2087, %v1530
      %v2126 = vsel %vm2120, %v2089, %v1532
      %v2128 = vsel %vm2120, %v2091, %v1534
      %v2130 = vsel %vm2120, %v2093, %v1536
      %v2132 = vsel %vm2120, %v2095, %v1538
      %v2134 = vsel %vm2120, %v2097, %v1540
      %v2136 = vsel %vm2120, %v2099, %v1542
      %v2138 = vsel %vm2120, %v2101, %v1544
      %v2140 = vsel %vm2120, %v2103, %v1546
      %v2142 = vsel %vm2120, %v2105, %v1548
      %v2144 = vsel %vm2120, %v2107, %v1550
      %v2146 = vsel %vm2120, %v2109, %v1552
      %v2148 = vsel %vm2120, %v2111, %v1554
      %v2150 = vsel %vm2120, %v2113, %v1556
      %v2152 = vsel %vm2120, %v2115, %v1558
      %v2154 = vsel %vm2120, %v2117, %v1560
      %v2156 = vsel %vm2120, %v2119, %v1562
      %vm2157 = vcmask 72704
      %v2159 = vsel %vm2157, %v2122, %v1581
      %v2161 = vsel %vm2157, %v2124, %v1583
      %v2163 = vsel %vm2157, %v2126, %v1585
      %v2165 = vsel %vm2157, %v2128, %v1587
      %v2167 = vsel %vm2157, %v2130, %v1589
      %v2169 = vsel %vm2157, %v2132, %v1591
      %v2171 = vsel %vm2157, %v2134, %v1593
      %v2173 = vsel %vm2157, %v2136, %v1595
      %v2175 = vsel %vm2157, %v2138, %v1597
      %v2177 = vsel %vm2157, %v2140, %v1599
      %v2179 = vsel %vm2157, %v2142, %v1601
      %v2181 = vsel %vm2157, %v2144, %v1603
      %v2183 = vsel %vm2157, %v2146, %v1605
      %v2185 = vsel %vm2157, %v2148, %v1607
      %v2187 = vsel %vm2157, %v2150, %v1609
      %v2189 = vsel %vm2157, %v2152, %v1611
      %v2191 = vsel %vm2157, %v2154, %v1613
      %v2193 = vsel %vm2157, %v2156, %v1615
      %vm2194 = vcmask 97280
      %v2196 = vsel %vm2194, %v2159, %v1711
      %v2198 = vsel %vm2194, %v2161, %v1713
      %v2200 = vsel %vm2194, %v2163, %v1715
      %v2202 = vsel %vm2194, %v2165, %v1717
      %v2204 = vsel %vm2194, %v2167, %v1719
      %v2206 = vsel %vm2194, %v2169, %v1721
      %v2208 = vsel %vm2194, %v2171, %v1723
      %v2210 = vsel %vm2194, %v2173, %v1725
      %v2212 = vsel %vm2194, %v2175, %v1727
      %v2214 = vsel %vm2194, %v2177, %v1729
      %v2216 = vsel %vm2194, %v2179, %v1731
      %v2218 = vsel %vm2194, %v2181, %v1733
      %v2220 = vsel %vm2194, %v2183, %v1735
      %v2222 = vsel %vm2194, %v2185, %v1737
      %v2224 = vsel %vm2194, %v2187, %v1739
      %v2226 = vsel %vm2194, %v2189, %v1741
      %v2228 = vsel %vm2194, %v2191, %v1743
      %v2230 = vsel %vm2194, %v2193, %v1745
      %vm2231 = vcmask 121856
      %v2233 = vsel %vm2231, %v2196, %v1788
      %v2235 = vsel %vm2231, %v2198, %v1790
      %v2237 = vsel %vm2231, %v2200, %v1792
      %v2239 = vsel %vm2231, %v2202, %v1794
      %v2241 = vsel %vm2231, %v2204, %v1796
      %v2243 = vsel %vm2231, %v2206, %v1798
      %v2245 = vsel %vm2231, %v2208, %v1800
      %v2247 = vsel %vm2231, %v2210, %v1802
      %v2249 = vsel %vm2231, %v2212, %v1804
      %v2251 = vsel %vm2231, %v2214, %v1806
      %v2253 = vsel %vm2231, %v2216, %v1808
      %v2255 = vsel %vm2231, %v2218, %v1810
      %v2257 = vsel %vm2231, %v2220, %v1812
      %v2259 = vsel %vm2231, %v2222, %v1814
      %v2261 = vsel %vm2231, %v2224, %v1816
      %v2263 = vsel %vm2231, %v2226, %v1818
      %v2265 = vsel %vm2231, %v2228, %v1820
      %v2267 = vsel %vm2231, %v2230, %v1822
      %vm2268 = vcmask 146432
      %v2270 = vsel %vm2268, %v2233, %v1841
      %v2272 = vsel %vm2268, %v2235, %v1843
      %v2274 = vsel %vm2268, %v2237, %v1845
      %v2276 = vsel %vm2268, %v2239, %v1847
      %v2278 = vsel %vm2268, %v2241, %v1849
      %v2280 = vsel %vm2268, %v2243, %v1851
      %v2282 = vsel %vm2268, %v2245, %v1853
      %v2284 = vsel %vm2268, %v2247, %v1855
      %v2286 = vsel %vm2268, %v2249, %v1857
      %v2288 = vsel %vm2268, %v2251, %v1859
      %v2290 = vsel %vm2268, %v2253, %v1861
      %v2292 = vsel %vm2268, %v2255, %v1863
      %v2294 = vsel %vm2268, %v2257, %v1865
      %v2296 = vsel %vm2268, %v2259, %v1867
      %v2298 = vsel %vm2268, %v2261, %v1869
      %v2300 = vsel %vm2268, %v2263, %v1871
      %v2302 = vsel %vm2268, %v2265, %v1873
      %v2304 = vsel %vm2268, %v2267, %v1875
      %vm2305 = vcmask 171008
      %v2307 = vsel %vm2305, %v2270, %v1971
      %v2309 = vsel %vm2305, %v2272, %v1973
      %v2311 = vsel %vm2305, %v2274, %v1975
      %v2313 = vsel %vm2305, %v2276, %v1977
      %v2315 = vsel %vm2305, %v2278, %v1979
      %v2317 = vsel %vm2305, %v2280, %v1981
      %v2319 = vsel %vm2305, %v2282, %v1983
      %v2321 = vsel %vm2305, %v2284, %v1985
      %v2323 = vsel %vm2305, %v2286, %v1987
      %v2325 = vsel %vm2305, %v2288, %v1989
      %v2327 = vsel %vm2305, %v2290, %v1991
      %v2329 = vsel %vm2305, %v2292, %v1993
      %v2331 = vsel %vm2305, %v2294, %v1995
      %v2333 = vsel %vm2305, %v2296, %v1997
      %v2335 = vsel %vm2305, %v2298, %v1999
      %v2337 = vsel %vm2305, %v2300, %v2001
      %v2339 = vsel %vm2305, %v2302, %v2003
      %v2341 = vsel %vm2305, %v2304, %v2005
      %vm2342 = vcmask 195584
      %v2344 = vsel %vm2342, %v2307, %v2048
      %v2346 = vsel %vm2342, %v2309, %v2050
      %v2348 = vsel %vm2342, %v2311, %v2052
      %v2350 = vsel %vm2342, %v2313, %v2054
      %v2352 = vsel %vm2342, %v2315, %v2056
      %v2354 = vsel %vm2342, %v2317, %v2058
      %v2356 = vsel %vm2342, %v2319, %v2060
      %v2358 = vsel %vm2342, %v2321, %v2062
      %v2360 = vsel %vm2342, %v2323, %v2064
      %v2362 = vsel %vm2342, %v2325, %v2066
      %v2364 = vsel %vm2342, %v2327, %v2068
      %v2366 = vsel %vm2342, %v2329, %v2070
      %v2368 = vsel %vm2342, %v2331, %v2072
      %v2370 = vsel %vm2342, %v2333, %v2074
      %v2372 = vsel %vm2342, %v2335, %v2076
      %v2374 = vsel %vm2342, %v2337, %v2078
      %v2376 = vsel %vm2342, %v2339, %v2080
      %v2378 = vsel %vm2342, %v2341, %v2082
      %v2379 = vld [vmem:[%s1] sm:$0xf]
      %v2380 = vld [vmem:[%s1 + $0x4] sm:$0xf]
      %v2381 = vld [vmem:[%s1 + $0x8] sm:$0xf]
      %v2382 = vld [vmem:[%s1 + $0xc] sm:$0x3]
      %v2383 = vld [vmem:[%s2] sm:$0x1]
      %v2385 = vlaneseq
      %v2386 = vshrl.u32 %v2385, 7
      %v2387 = vsub.s32 0, %v2386
      %v2388 = vrot.slane %v2383, %v2387
      %v2394 = vunpack.c.l.b16 %v2379
      %v2395 = vunpack.c.l.b16 %v2380
      %v2396 = vunpack.c.l.b16 %v2381
      %v2397 = vunpack.c.l.b16 %v2382
      %v2398 = vpack.c.b16 %v2395, %v2394
      %v2399 = vpack.c.b16 %v2397, %v2396
      %vm2401 = vcmask 220160
      %v2402 = vsel %vm2401, %v2344, 0
      %v2404 = vsel %vm2401, %v2346, 0
      %v2406 = vsel %vm2401, %v2348, 0
      %v2408 = vsel %vm2401, %v2350, 0
      %v2410 = vsel %vm2401, %v2352, 0
      %v2412 = vsel %vm2401, %v2354, 0
      %v2414 = vsel %vm2401, %v2356, 0
      %v2416 = vsel %vm2401, %v2358, 0
      %v2418 = vsel %vm2401, %v2360, 0
      %v2420 = vsel %vm2401, %v2362, 0
      %v2422 = vsel %vm2401, %v2364, 0
      %v2424 = vsel %vm2401, %v2366, 0
      %v2426 = vsel %vm2401, %v2368, 0
      %v2428 = vsel %vm2401, %v2370, 0
      %v2430 = vsel %vm2401, %v2372, 0
      %v2432 = vsel %vm2401, %v2374, 0
      %v2434 = vsel %vm2401, %v2376, 0
      %v2436 = vsel %vm2401, %v2378, 0
      %vm2438 = vcmask 1044480
      %vm2439 = vcmask 1045504
      %v2440 = vsel %vm2438, 4294967295, 65535
      %v2441 = vsel %vm2439, %v2440, 0
      %v2443 = vand.u32 %v2399, %v2441
      %2445 = vmatprep.subr.bf16.mxu0 0
      %2446 = vmatpush1.bf16.msra.mxu0 0
      %2447 = vmatprep.subr.bf16.mxu0 0
      %2448 = vmatpush1.bf16.msra.mxu0 0
      %2449 = vmatprep.subr.bf16.mxu0 0
      %2450 = vmatpush1.bf16.msra.mxu0 0
      %2451 = vmatprep.subr.bf16.mxu0 0
      %2452 = vmatpush1.bf16.msra.mxu0 0
      %2453 = vmatprep.subr.bf16.mxu0 0
      %2454 = vmatpush1.bf16.msra.mxu0 0
      %2455 = vmatprep.subr.bf16.mxu0 0
      %2456 = vmatpush1.bf16.msra.mxu0 0
      %2457 = vmatprep.subr.bf16.mxu0 0
      %2458 = vmatpush1.bf16.msra.mxu0 %v2443
      %2459 = vmatprep.subr.bf16.mxu0 0
      %2460 = vmatpush1.bf16.msra.mxu0 %v2398
      %2461 = vmatprep.subr.bf16.mxu0 0
      %2462 = vmatpush2.bf16.msra.mxu0 0
      %2463 = vmatprep.subr.bf16.mxu0 0
      %2464 = vmatpush2.bf16.msra.mxu0 0
      %2465 = vmatprep.subr.bf16.mxu0 0
      %2466 = vmatpush2.bf16.msra.mxu0 0
      %2467 = vmatprep.subr.bf16.mxu0 0
      %2468 = vmatpush2.bf16.msra.mxu0 0
      %2469 = vmatprep.subr.bf16.mxu0 0
      %2470 = vmatpush2.bf16.msra.mxu0 0
      %2471 = vmatprep.subr.bf16.mxu0 0
      %2472 = vmatpush2.bf16.msra.mxu0 0
      %2473 = vmatprep.subr.bf16.mxu0 0
      %2474 = vmatpush2.bf16.msra.mxu0 0
      %2475 = vmatprep.subr.bf16.mxu0 0
      %2476 = vmatpush2.bf16.msra.mxu0 0
      %2477 = vmatprep.mubr.bf16.mxu0 0
      %2478 = vmatmul.mubr.bf16.gmra.mxu0 %v2402
      %v2479 = vpop.f32.mrf.mxu0
      %v2480 = vadd.f32 %v2388, %v2479
      %v2481 = vpop.f32.mrf.mxu0
      %v2482 = vpop.f32.mrf.mxu0
      %v2483 = vadd.f32 %v2388, %v2482
      %v2484 = vpop.f32.mrf.mxu0
      %2485 = vmatprep.mubr.bf16.mxu0 0
      %2486 = vmatmul.mubr.bf16.gmra.mxu0 %v2404
      %v2487 = vpop.f32.mrf.mxu0
      %v2488 = vadd.f32 %v2388, %v2487
      %v2489 = vpop.f32.mrf.mxu0
      %v2490 = vpop.f32.mrf.mxu0
      %v2491 = vadd.f32 %v2388, %v2490
      %v2492 = vpop.f32.mrf.mxu0
      %2493 = vmatprep.mubr.bf16.mxu0 0
      %2494 = vmatmul.mubr.bf16.gmra.mxu0 %v2406
      %v2495 = vpop.f32.mrf.mxu0
      %v2496 = vadd.f32 %v2388, %v2495
      %v2497 = vpop.f32.mrf.mxu0
      %v2498 = vpop.f32.mrf.mxu0
      %v2499 = vadd.f32 %v2388, %v2498
      %v2500 = vpop.f32.mrf.mxu0
      %2501 = vmatprep.mubr.bf16.mxu0 0
      %2502 = vmatmul.mubr.bf16.gmra.mxu0 %v2408
      %v2503 = vpop.f32.mrf.mxu0
      %v2504 = vadd.f32 %v2388, %v2503
      %v2505 = vpop.f32.mrf.mxu0
      %v2506 = vpop.f32.mrf.mxu0
      %v2507 = vadd.f32 %v2388, %v2506
      %v2508 = vpop.f32.mrf.mxu0
      %2509 = vmatprep.mubr.bf16.mxu0 0
      %2510 = vmatmul.mubr.bf16.gmra.mxu0 %v2410
      %v2511 = vpop.f32.mrf.mxu0
      %v2512 = vadd.f32 %v2388, %v2511
      %v2513 = vpop.f32.mrf.mxu0
      %v2514 = vpop.f32.mrf.mxu0
      %v2515 = vadd.f32 %v2388, %v2514
      %v2516 = vpop.f32.mrf.mxu0
      %2517 = vmatprep.mubr.bf16.mxu0 0
      %2518 = vmatmul.mubr.bf16.gmra.mxu0 %v2412
      %v2519 = vpop.f32.mrf.mxu0
      %v2520 = vadd.f32 %v2388, %v2519
      %v2521 = vpop.f32.mrf.mxu0
      %v2522 = vpop.f32.mrf.mxu0
      %v2523 = vadd.f32 %v2388, %v2522
      %v2524 = vpop.f32.mrf.mxu0
      %2525 = vmatprep.mubr.bf16.mxu0 0
      %2526 = vmatmul.mubr.bf16.gmra.mxu0 %v2414
      %v2527 = vpop.f32.mrf.mxu0
      %v2528 = vadd.f32 %v2388, %v2527
      %v2529 = vpop.f32.mrf.mxu0
      %v2530 = vpop.f32.mrf.mxu0
      %v2531 = vadd.f32 %v2388, %v2530
      %v2532 = vpop.f32.mrf.mxu0
      %2533 = vmatprep.mubr.bf16.mxu0 0
      %2534 = vmatmul.mubr.bf16.gmra.mxu0 %v2416
      %v2535 = vpop.f32.mrf.mxu0
      %v2536 = vadd.f32 %v2388, %v2535
      %v2537 = vpop.f32.mrf.mxu0
      %v2538 = vpop.f32.mrf.mxu0
      %v2539 = vadd.f32 %v2388, %v2538
      %v2540 = vpop.f32.mrf.mxu0
      %2541 = vmatprep.mubr.bf16.mxu0 0
      %2542 = vmatmul.mubr.bf16.gmra.mxu0 %v2418
      %v2543 = vpop.f32.mrf.mxu0
      %v2544 = vadd.f32 %v2388, %v2543
      %v2545 = vpop.f32.mrf.mxu0
      %v2546 = vpop.f32.mrf.mxu0
      %v2547 = vadd.f32 %v2388, %v2546
      %v2548 = vpop.f32.mrf.mxu0
      %2549 = vmatprep.mubr.bf16.mxu0 0
      %2550 = vmatmul.mubr.bf16.gmra.mxu0 %v2420
      %v2551 = vpop.f32.mrf.mxu0
      %v2552 = vadd.f32 %v2388, %v2551
      %v2553 = vpop.f32.mrf.mxu0
      %v2554 = vpop.f32.mrf.mxu0
      %v2555 = vadd.f32 %v2388, %v2554
      %v2556 = vpop.f32.mrf.mxu0
      %2557 = vmatprep.mubr.bf16.mxu0 0
      %2558 = vmatmul.mubr.bf16.gmra.mxu0 %v2422
      %v2559 = vpop.f32.mrf.mxu0
      %v2560 = vadd.f32 %v2388, %v2559
      %v2561 = vpop.f32.mrf.mxu0
      %v2562 = vpop.f32.mrf.mxu0
      %v2563 = vadd.f32 %v2388, %v2562
      %v2564 = vpop.f32.mrf.mxu0
      %2565 = vmatprep.mubr.bf16.mxu0 0
      %2566 = vmatmul.mubr.bf16.gmra.mxu0 %v2424
      %v2567 = vpop.f32.mrf.mxu0
      %v2568 = vadd.f32 %v2388, %v2567
      %v2569 = vpop.f32.mrf.mxu0
      %v2570 = vpop.f32.mrf.mxu0
      %v2571 = vadd.f32 %v2388, %v2570
      %v2572 = vpop.f32.mrf.mxu0
      %2573 = vmatprep.mubr.bf16.mxu0 0
      %2574 = vmatmul.mubr.bf16.gmra.mxu0 %v2426
      %v2575 = vpop.f32.mrf.mxu0
      %v2576 = vadd.f32 %v2388, %v2575
      %v2577 = vpop.f32.mrf.mxu0
      %v2578 = vpop.f32.mrf.mxu0
      %v2579 = vadd.f32 %v2388, %v2578
      %v2580 = vpop.f32.mrf.mxu0
      %2581 = vmatprep.mubr.bf16.mxu0 0
      %2582 = vmatmul.mubr.bf16.gmra.mxu0 %v2428
      %v2583 = vpop.f32.mrf.mxu0
      %v2584 = vadd.f32 %v2388, %v2583
      %v2585 = vpop.f32.mrf.mxu0
      %v2586 = vpop.f32.mrf.mxu0
      %v2587 = vadd.f32 %v2388, %v2586
      %v2588 = vpop.f32.mrf.mxu0
      %2589 = vmatprep.mubr.bf16.mxu0 0
      %2590 = vmatmul.mubr.bf16.gmra.mxu0 %v2430
      %v2591 = vpop.f32.mrf.mxu0
      %v2592 = vadd.f32 %v2388, %v2591
      %v2593 = vpop.f32.mrf.mxu0
      %v2594 = vpop.f32.mrf.mxu0
      %v2595 = vadd.f32 %v2388, %v2594
      %v2596 = vpop.f32.mrf.mxu0
      %2597 = vmatprep.mubr.bf16.mxu0 0
      %2598 = vmatmul.mubr.bf16.gmra.mxu0 %v2432
      %v2599 = vpop.f32.mrf.mxu0
      %v2600 = vadd.f32 %v2388, %v2599
      %v2601 = vpop.f32.mrf.mxu0
      %v2602 = vpop.f32.mrf.mxu0
      %v2603 = vadd.f32 %v2388, %v2602
      %v2604 = vpop.f32.mrf.mxu0
      %2605 = vmatprep.mubr.bf16.mxu0 0
      %2606 = vmatmul.mubr.bf16.gmra.mxu0 %v2434
      %v2607 = vpop.f32.mrf.mxu0
      %v2608 = vadd.f32 %v2388, %v2607
      %v2609 = vpop.f32.mrf.mxu0
      %v2610 = vpop.f32.mrf.mxu0
      %v2611 = vadd.f32 %v2388, %v2610
      %v2612 = vpop.f32.mrf.mxu0
      %2613 = vmatprep.mubr.bf16.mxu0 0
      %2614 = vmatmul.mubr.bf16.gmra.mxu0 %v2436
      %v2615 = vpop.f32.mrf.mxu0
      %v2616 = vadd.f32 %v2388, %v2615
      %v2617 = vpop.f32.mrf.mxu0
      %v2618 = vpop.f32.mrf.mxu0
      %v2619 = vadd.f32 %v2388, %v2618
      %v2620 = vpop.f32.mrf.mxu0
      %2621 = vdwg.mxu0
      %v2622 = vmax.f32 %v2480, 0.0
      %v2623 = vmax.f32 %v2483, 0.0
      %v2624 = vmax.f32 %v2488, 0.0
      %v2625 = vmax.f32 %v2491, 0.0
      %v2626 = vmax.f32 %v2496, 0.0
      %v2627 = vmax.f32 %v2499, 0.0
      %v2628 = vmax.f32 %v2504, 0.0
      %v2629 = vmax.f32 %v2507, 0.0
      %v2630 = vmax.f32 %v2512, 0.0
      %v2631 = vmax.f32 %v2515, 0.0
      %v2632 = vmax.f32 %v2520, 0.0
      %v2633 = vmax.f32 %v2523, 0.0
      %v2634 = vmax.f32 %v2528, 0.0
      %v2635 = vmax.f32 %v2531, 0.0
      %v2636 = vmax.f32 %v2536, 0.0
      %v2637 = vmax.f32 %v2539, 0.0
      %v2638 = vmax.f32 %v2544, 0.0
      %v2639 = vmax.f32 %v2547, 0.0
      %v2640 = vmax.f32 %v2552, 0.0
      %v2641 = vmax.f32 %v2555, 0.0
      %v2642 = vmax.f32 %v2560, 0.0
      %v2643 = vmax.f32 %v2563, 0.0
      %v2644 = vmax.f32 %v2568, 0.0
      %v2645 = vmax.f32 %v2571, 0.0
      %v2646 = vmax.f32 %v2576, 0.0
      %v2647 = vmax.f32 %v2579, 0.0
      %v2648 = vmax.f32 %v2584, 0.0
      %v2649 = vmax.f32 %v2587, 0.0
      %v2650 = vmax.f32 %v2592, 0.0
      %v2651 = vmax.f32 %v2595, 0.0
      %v2652 = vmax.f32 %v2600, 0.0
      %v2653 = vmax.f32 %v2603, 0.0
      %v2654 = vmax.f32 %v2608, 0.0
      %v2655 = vmax.f32 %v2611, 0.0
      %v2656 = vmax.f32 %v2616, 0.0
      %v2657 = vmax.f32 %v2619, 0.0
      %v2658 = vsel %vm1095, 1, 0
      %v2659 = vsel %vm1096, 1, 0
      %v2660 = vsel %vm1097, 1, 0
      %v2661 = vsel %vm1098, 1, 0
      %v2662 = vsel %vm1099, 1, 0
      %v2663 = vsel %vm1100, 1, 0
      %v2664 = vsel %vm1101, 1, 0
      %v2665 = vsel %vm1102, 1, 0
      %v2666 = vsel %vm1103, 1, 0
      %v2667 = vsel %vm1104, 1, 0
      %v2668 = vsel %vm1105, 1, 0
      %v2669 = vsel %vm1106, 1, 0
      %v2670 = vsel %vm1107, 1, 0
      %v2671 = vsel %vm1108, 1, 0
      %v2672 = vsel %vm1109, 1, 0
      %v2673 = vsel %vm1110, 1, 0
      %v2674 = vsel %vm1111, 1, 0
      %v2675 = vsel %vm1112, 1, 0
      %v2676 = vsel %vm1113, 1, 0
      %v2677 = vsel %vm1114, 1, 0
      %v2678 = vsel %vm1115, 1, 0
      %v2679 = vsel %vm1116, 1, 0
      %v2680 = vsel %vm1117, 1, 0
      %v2681 = vsel %vm1118, 1, 0
      %v2682 = vsel %vm1119, 1, 0
      %v2683 = vsel %vm1120, 1, 0
      %v2684 = vsel %vm1121, 1, 0
      %v2685 = vsel %vm1122, 1, 0
      %v2686 = vsel %vm1123, 1, 0
      %v2687 = vsel %vm1124, 1, 0
      %v2688 = vsel %vm1125, 1, 0
      %v2689 = vsel %vm1126, 1, 0
      %v2690 = vsel %vm1127, 1, 0
      %v2691 = vsel %vm1128, 1, 0
      %v2692 = vsel %vm1129, 1, 0
      %v2693 = vsel %vm1130, 1, 0
      %vm2694 = vcmp.eq.s32.totalorder %v2658, 1
      %vm2695 = vcmp.eq.s32.totalorder %v2659, 1
      %vm2696 = vcmp.eq.s32.totalorder %v2660, 1
      %vm2697 = vcmp.eq.s32.totalorder %v2661, 1
      %vm2698 = vcmp.eq.s32.totalorder %v2662, 1
      %vm2699 = vcmp.eq.s32.totalorder %v2663, 1
      %vm2700 = vcmp.eq.s32.totalorder %v2664, 1
      %vm2701 = vcmp.eq.s32.totalorder %v2665, 1
      %vm2702 = vcmp.eq.s32.totalorder %v2666, 1
      %vm2703 = vcmp.eq.s32.totalorder %v2667, 1
      %vm2704 = vcmp.eq.s32.totalorder %v2668, 1
      %vm2705 = vcmp.eq.s32.totalorder %v2669, 1
      %vm2706 = vcmp.eq.s32.totalorder %v2670, 1
      %vm2707 = vcmp.eq.s32.totalorder %v2671, 1
      %vm2708 = vcmp.eq.s32.totalorder %v2672, 1
      %vm2709 = vcmp.eq.s32.totalorder %v2673, 1
      %vm2710 = vcmp.eq.s32.totalorder %v2674, 1
      %vm2711 = vcmp.eq.s32.totalorder %v2675, 1
      %vm2712 = vcmp.eq.s32.totalorder %v2676, 1
      %vm2713 = vcmp.eq.s32.totalorder %v2677, 1
      %vm2714 = vcmp.eq.s32.totalorder %v2678, 1
      %vm2715 = vcmp.eq.s32.totalorder %v2679, 1
      %vm2716 = vcmp.eq.s32.totalorder %v2680, 1
      %vm2717 = vcmp.eq.s32.totalorder %v2681, 1
      %vm2718 = vcmp.eq.s32.totalorder %v2682, 1
      %vm2719 = vcmp.eq.s32.totalorder %v2683, 1
      %vm2720 = vcmp.eq.s32.totalorder %v2684, 1
      %vm2721 = vcmp.eq.s32.totalorder %v2685, 1
      %vm2722 = vcmp.eq.s32.totalorder %v2686, 1
      %vm2723 = vcmp.eq.s32.totalorder %v2687, 1
      %vm2724 = vcmp.eq.s32.totalorder %v2688, 1
      %vm2725 = vcmp.eq.s32.totalorder %v2689, 1
      %vm2726 = vcmp.eq.s32.totalorder %v2690, 1
      %vm2727 = vcmp.eq.s32.totalorder %v2691, 1
      %vm2728 = vcmp.eq.s32.totalorder %v2692, 1
      %vm2729 = vcmp.eq.s32.totalorder %v2693, 1
      %v2730 = vsel %vm2694, %v2622, 0.0
      %v2731 = vsel %vm2695, %v2623, 0.0
      %v2732 = vsel %vm2696, %v2624, 0.0
      %v2733 = vsel %vm2697, %v2625, 0.0
      %v2734 = vsel %vm2698, %v2626, 0.0
      %v2735 = vsel %vm2699, %v2627, 0.0
      %v2736 = vsel %vm2700, %v2628, 0.0
      %v2737 = vsel %vm2701, %v2629, 0.0
      %v2738 = vsel %vm2702, %v2630, 0.0
      %v2739 = vsel %vm2703, %v2631, 0.0
      %v2740 = vsel %vm2704, %v2632, 0.0
      %v2741 = vsel %vm2705, %v2633, 0.0
      %v2742 = vsel %vm2706, %v2634, 0.0
      %v2743 = vsel %vm2707, %v2635, 0.0
      %v2744 = vsel %vm2708, %v2636, 0.0
      %v2745 = vsel %vm2709, %v2637, 0.0
      %v2746 = vsel %vm2710, %v2638, 0.0
      %v2747 = vsel %vm2711, %v2639, 0.0
      %v2748 = vsel %vm2712, %v2640, 0.0
      %v2749 = vsel %vm2713, %v2641, 0.0
      %v2750 = vsel %vm2714, %v2642, 0.0
      %v2751 = vsel %vm2715, %v2643, 0.0
      %v2752 = vsel %vm2716, %v2644, 0.0
      %v2753 = vsel %vm2717, %v2645, 0.0
      %v2754 = vsel %vm2718, %v2646, 0.0
      %v2755 = vsel %vm2719, %v2647, 0.0
      %v2756 = vsel %vm2720, %v2648, 0.0
      %v2757 = vsel %vm2721, %v2649, 0.0
      %v2758 = vsel %vm2722, %v2650, 0.0
      %v2759 = vsel %vm2723, %v2651, 0.0
      %v2760 = vsel %vm2724, %v2652, 0.0
      %v2761 = vsel %vm2725, %v2653, 0.0
      %v2762 = vsel %vm2726, %v2654, 0.0
      %v2763 = vsel %vm2727, %v2655, 0.0
      %v2764 = vsel %vm2728, %v2656, 0.0
      %v2765 = vsel %vm2729, %v2657, 0.0
      %2766 = vst.msk [vmem:[#allocation2 + $0x13] sm:$0xff] %vm442, %v2730
      %2767 = vst.msk [vmem:[#allocation2 + $0x1b] sm:$0xff] %vm442, %v2731
      %2768 = vst.msk [vmem:[#allocation2 + $0x23] sm:$0xff] %vm442, %v2732
      %2769 = vst.msk [vmem:[#allocation2 + $0x2b] sm:$0xff] %vm442, %v2733
      %2770 = vst.msk [vmem:[#allocation2 + $0x33] sm:$0xff] %vm442, %v2734
      %2771 = vst.msk [vmem:[#allocation2 + $0x3b] sm:$0xff] %vm442, %v2735
      %2772 = vst.msk [vmem:[#allocation2 + $0x43] sm:$0xff] %vm442, %v2736
      %2773 = vst.msk [vmem:[#allocation2 + $0x4b] sm:$0xff] %vm442, %v2737
      %2774 = vst.msk [vmem:[#allocation2 + $0x53] sm:$0xff] %vm442, %v2738
      %2775 = vst.msk [vmem:[#allocation2 + $0x5b] sm:$0xff] %vm442, %v2739
      %2776 = vst.msk [vmem:[#allocation2 + $0x63] sm:$0xff] %vm442, %v2740
      %2777 = vst.msk [vmem:[#allocation2 + $0x6b] sm:$0xff] %vm442, %v2741
      %2778 = vst.msk [vmem:[#allocation2 + $0x73] sm:$0xff] %vm442, %v2742
      %2779 = vst.msk [vmem:[#allocation2 + $0x7b] sm:$0xff] %vm442, %v2743
      %2780 = vst.msk [vmem:[#allocation2 + $0x83] sm:$0xff] %vm442, %v2744
      %2781 = vst.msk [vmem:[#allocation2 + $0x8b] sm:$0xff] %vm442, %v2745
      %2782 = vst.msk [vmem:[#allocation2 + $0x93] sm:$0xff] %vm442, %v2746
      %2783 = vst.msk [vmem:[#allocation2 + $0x9b] sm:$0xff] %vm442, %v2747
      %2784 = vst.msk [vmem:[#allocation2 + $0xa3] sm:$0xff] %vm442, %v2748
      %2785 = vst.msk [vmem:[#allocation2 + $0xab] sm:$0xff] %vm442, %v2749
      %2786 = vst.msk [vmem:[#allocation2 + $0xb3] sm:$0xff] %vm442, %v2750
      %2787 = vst.msk [vmem:[#allocation2 + $0xbb] sm:$0xff] %vm442, %v2751
      %2788 = vst.msk [vmem:[#allocation2 + $0xc3] sm:$0xff] %vm442, %v2752
      %2789 = vst.msk [vmem:[#allocation2 + $0xcb] sm:$0xff] %vm442, %v2753
      %2790 = vst.msk [vmem:[#allocation2 + $0xd3] sm:$0xff] %vm442, %v2754
      %2791 = vst.msk [vmem:[#allocation2 + $0xdb] sm:$0xff] %vm442, %v2755
      %2792 = vst.msk [vmem:[#allocation2 + $0xe3] sm:$0xff] %vm442, %v2756
      %2793 = vst.msk [vmem:[#allocation2 + $0xeb] sm:$0xff] %vm442, %v2757
      %2794 = vst.msk [vmem:[#allocation2 + $0xf3] sm:$0xff] %vm442, %v2758
      %2795 = vst.msk [vmem:[#allocation2 + $0xfb] sm:$0xff] %vm442, %v2759
      %2796 = vst.msk [vmem:[#allocation2 + $0x103] sm:$0xff] %vm442, %v2760
      %2797 = vst.msk [vmem:[#allocation2 + $0x10b] sm:$0xff] %vm442, %v2761
      %2798 = vst.msk [vmem:[#allocation2 + $0x113] sm:$0xff] %vm442, %v2762
      %2799 = vst.msk [vmem:[#allocation2 + $0x11b] sm:$0xff] %vm442, %v2763
      %2800 = vst.msk [vmem:[#allocation2 + $0x123] sm:$0xff] %vm442, %v2764
      %2801 = vst.msk [vmem:[#allocation2 + $0x12b] sm:$0xff] %vm442, %v2765
      %v2802 = vld [vmem:[#allocation2] ss:$2 sm:$0xff]
      %s2803 = scalar_lea.vmem [#allocation2], 16
      %v2804 = vld [vmem:[%s2803] ss:$2 sm:$0xff]
      %s2805 = scalar_lea.vmem [#allocation2], 32
      %v2806 = vld [vmem:[%s2805] ss:$2 sm:$0xff]
      %s2807 = scalar_lea.vmem [#allocation2], 48
      %v2808 = vld [vmem:[%s2807] ss:$2 sm:$0xff]
      %s2809 = scalar_lea.vmem [#allocation2], 64
      %v2810 = vld [vmem:[%s2809] ss:$2 sm:$0xff]
      %s2811 = scalar_lea.vmem [#allocation2], 80
      %v2812 = vld [vmem:[%s2811] ss:$2 sm:$0xff]
      %s2813 = scalar_lea.vmem [#allocation2], 96
      %v2814 = vld [vmem:[%s2813] ss:$2 sm:$0xff]
      %s2815 = scalar_lea.vmem [#allocation2], 112
      %v2816 = vld [vmem:[%s2815] ss:$2 sm:$0xff]
      %s2817 = scalar_lea.vmem [#allocation2], 128
      %v2818 = vld [vmem:[%s2817] ss:$2 sm:$0xff]
      %s2819 = scalar_lea.vmem [#allocation2], 144
      %v2820 = vld [vmem:[%s2819] ss:$2 sm:$0xff]
      %s2821 = scalar_lea.vmem [#allocation2], 160
      %v2822 = vld [vmem:[%s2821] ss:$2 sm:$0xff]
      %s2823 = scalar_lea.vmem [#allocation2], 176
      %v2824 = vld [vmem:[%s2823] ss:$2 sm:$0xff]
      %s2825 = scalar_lea.vmem [#allocation2], 192
      %v2826 = vld [vmem:[%s2825] ss:$2 sm:$0xff]
      %s2827 = scalar_lea.vmem [#allocation2], 208
      %v2828 = vld [vmem:[%s2827] ss:$2 sm:$0xff]
      %s2829 = scalar_lea.vmem [#allocation2], 224
      %v2830 = vld [vmem:[%s2829] ss:$2 sm:$0xff]
      %s2831 = scalar_lea.vmem [#allocation2], 240
      %v2832 = vld [vmem:[%s2831] ss:$2 sm:$0xff]
      %s2833 = scalar_lea.vmem [#allocation2], 256
      %v2834 = vld [vmem:[%s2833] ss:$2 sm:$0xff]
      %s2835 = scalar_lea.vmem [#allocation2], 272
      %v2836 = vld [vmem:[%s2835] ss:$2 sm:$0xff]
      %s2837 = scalar_lea.vmem [#allocation2], 1
      %v2838 = vld [vmem:[%s2837] ss:$2 sm:$0xff]
      %s2839 = scalar_lea.vmem [#allocation2], 17
      %v2840 = vld [vmem:[%s2839] ss:$2 sm:$0xff]
      %s2841 = scalar_lea.vmem [#allocation2], 33
      %v2842 = vld [vmem:[%s2841] ss:$2 sm:$0xff]
      %s2843 = scalar_lea.vmem [#allocation2], 49
      %v2844 = vld [vmem:[%s2843] ss:$2 sm:$0xff]
      %s2845 = scalar_lea.vmem [#allocation2], 65
      %v2846 = vld [vmem:[%s2845] ss:$2 sm:$0xff]
      %s2847 = scalar_lea.vmem [#allocation2], 81
      %v2848 = vld [vmem:[%s2847] ss:$2 sm:$0xff]
      %s2849 = scalar_lea.vmem [#allocation2], 97
      %v2850 = vld [vmem:[%s2849] ss:$2 sm:$0xff]
      %s2851 = scalar_lea.vmem [#allocation2], 113
      %v2852 = vld [vmem:[%s2851] ss:$2 sm:$0xff]
      %s2853 = scalar_lea.vmem [#allocation2], 129
      %v2854 = vld [vmem:[%s2853] ss:$2 sm:$0xff]
      %s2855 = scalar_lea.vmem [#allocation2], 145
      %v2856 = vld [vmem:[%s2855] ss:$2 sm:$0xff]
      %s2857 = scalar_lea.vmem [#allocation2], 161
      %v2858 = vld [vmem:[%s2857] ss:$2 sm:$0xff]
      %s2859 = scalar_lea.vmem [#allocation2], 177
      %v2860 = vld [vmem:[%s2859] ss:$2 sm:$0xff]
      %s2861 = scalar_lea.vmem [#allocation2], 193
      %v2862 = vld [vmem:[%s2861] ss:$2 sm:$0xff]
      %s2863 = scalar_lea.vmem [#allocation2], 209
      %v2864 = vld [vmem:[%s2863] ss:$2 sm:$0xff]
      %s2865 = scalar_lea.vmem [#allocation2], 225
      %v2866 = vld [vmem:[%s2865] ss:$2 sm:$0xff]
      %s2867 = scalar_lea.vmem [#allocation2], 241
      %v2868 = vld [vmem:[%s2867] ss:$2 sm:$0xff]
      %s2869 = scalar_lea.vmem [#allocation2], 257
      %v2870 = vld [vmem:[%s2869] ss:$2 sm:$0xff]
      %s2871 = scalar_lea.vmem [#allocation2], 273
      %v2872 = vld [vmem:[%s2871] ss:$2 sm:$0xff]
      %s2873 = scalar_lea.vmem [#allocation2], 2
      %v2874 = vld [vmem:[%s2873] ss:$2 sm:$0xff]
      %s2875 = scalar_lea.vmem [#allocation2], 18
      %v2876 = vld [vmem:[%s2875] ss:$2 sm:$0xff]
      %s2877 = scalar_lea.vmem [#allocation2], 34
      %v2878 = vld [vmem:[%s2877] ss:$2 sm:$0xff]
      %s2879 = scalar_lea.vmem [#allocation2], 50
      %v2880 = vld [vmem:[%s2879] ss:$2 sm:$0xff]
      %s2881 = scalar_lea.vmem [#allocation2], 66
      %v2882 = vld [vmem:[%s2881] ss:$2 sm:$0xff]
      %s2883 = scalar_lea.vmem [#allocation2], 82
      %v2884 = vld [vmem:[%s2883] ss:$2 sm:$0xff]
      %s2885 = scalar_lea.vmem [#allocation2], 98
      %v2886 = vld [vmem:[%s2885] ss:$2 sm:$0xff]
      %s2887 = scalar_lea.vmem [#allocation2], 114
      %v2888 = vld [vmem:[%s2887] ss:$2 sm:$0xff]
      %s2889 = scalar_lea.vmem [#allocation2], 130
      %v2890 = vld [vmem:[%s2889] ss:$2 sm:$0xff]
      %s2891 = scalar_lea.vmem [#allocation2], 146
      %v2892 = vld [vmem:[%s2891] ss:$2 sm:$0xff]
      %s2893 = scalar_lea.vmem [#allocation2], 162
      %v2894 = vld [vmem:[%s2893] ss:$2 sm:$0xff]
      %s2895 = scalar_lea.vmem [#allocation2], 178
      %v2896 = vld [vmem:[%s2895] ss:$2 sm:$0xff]
      %s2897 = scalar_lea.vmem [#allocation2], 194
      %v2898 = vld [vmem:[%s2897] ss:$2 sm:$0xff]
      %s2899 = scalar_lea.vmem [#allocation2], 210
      %v2900 = vld [vmem:[%s2899] ss:$2 sm:$0xff]
      %s2901 = scalar_lea.vmem [#allocation2], 226
      %v2902 = vld [vmem:[%s2901] ss:$2 sm:$0xff]
      %s2903 = scalar_lea.vmem [#allocation2], 242
      %v2904 = vld [vmem:[%s2903] ss:$2 sm:$0xff]
      %s2905 = scalar_lea.vmem [#allocation2], 258
      %v2906 = vld [vmem:[%s2905] ss:$2 sm:$0xff]
      %s2907 = scalar_lea.vmem [#allocation2], 274
      %v2908 = vld [vmem:[%s2907] ss:$2 sm:$0xff]
      %s2909 = scalar_lea.vmem [#allocation2], 290
      %v2910 = vld [vmem:[%s2909] ss:$2 sm:$0xff]
      %s2911 = scalar_lea.vmem [#allocation2], 19
      %v2912 = vld [vmem:[%s2911] ss:$2 sm:$0xff]
      %s2913 = scalar_lea.vmem [#allocation2], 35
      %v2914 = vld [vmem:[%s2913] ss:$2 sm:$0xff]
      %s2915 = scalar_lea.vmem [#allocation2], 51
      %v2916 = vld [vmem:[%s2915] ss:$2 sm:$0xff]
      %s2917 = scalar_lea.vmem [#allocation2], 67
      %v2918 = vld [vmem:[%s2917] ss:$2 sm:$0xff]
      %s2919 = scalar_lea.vmem [#allocation2], 83
      %v2920 = vld [vmem:[%s2919] ss:$2 sm:$0xff]
      %s2921 = scalar_lea.vmem [#allocation2], 99
      %v2922 = vld [vmem:[%s2921] ss:$2 sm:$0xff]
      %s2923 = scalar_lea.vmem [#allocation2], 115
      %v2924 = vld [vmem:[%s2923] ss:$2 sm:$0xff]
      %s2925 = scalar_lea.vmem [#allocation2], 131
      %v2926 = vld [vmem:[%s2925] ss:$2 sm:$0xff]
      %s2927 = scalar_lea.vmem [#allocation2], 147
      %v2928 = vld [vmem:[%s2927] ss:$2 sm:$0xff]
      %s2929 = scalar_lea.vmem [#allocation2], 163
      %v2930 = vld [vmem:[%s2929] ss:$2 sm:$0xff]
      %s2931 = scalar_lea.vmem [#allocation2], 179
      %v2932 = vld [vmem:[%s2931] ss:$2 sm:$0xff]
      %s2933 = scalar_lea.vmem [#allocation2], 195
      %v2934 = vld [vmem:[%s2933] ss:$2 sm:$0xff]
      %s2935 = scalar_lea.vmem [#allocation2], 211
      %v2936 = vld [vmem:[%s2935] ss:$2 sm:$0xff]
      %s2937 = scalar_lea.vmem [#allocation2], 227
      %v2938 = vld [vmem:[%s2937] ss:$2 sm:$0xff]
      %s2939 = scalar_lea.vmem [#allocation2], 243
      %v2940 = vld [vmem:[%s2939] ss:$2 sm:$0xff]
      %s2941 = scalar_lea.vmem [#allocation2], 259
      %v2942 = vld [vmem:[%s2941] ss:$2 sm:$0xff]
      %s2943 = scalar_lea.vmem [#allocation2], 275
      %v2944 = vld [vmem:[%s2943] ss:$2 sm:$0xff]
      %s2945 = scalar_lea.vmem [#allocation2], 291
      %v2946 = vld [vmem:[%s2945] ss:$2 sm:$0xff]
      %s2947 = scalar_lea.vmem [#allocation2], 20
      %v2948 = vld [vmem:[%s2947] ss:$2 sm:$0xff]
      %s2949 = scalar_lea.vmem [#allocation2], 36
      %v2950 = vld [vmem:[%s2949] ss:$2 sm:$0xff]
      %s2951 = scalar_lea.vmem [#allocation2], 52
      %v2952 = vld [vmem:[%s2951] ss:$2 sm:$0xff]
      %s2953 = scalar_lea.vmem [#allocation2], 68
      %v2954 = vld [vmem:[%s2953] ss:$2 sm:$0xff]
      %s2955 = scalar_lea.vmem [#allocation2], 84
      %v2956 = vld [vmem:[%s2955] ss:$2 sm:$0xff]
      %s2957 = scalar_lea.vmem [#allocation2], 100
      %v2958 = vld [vmem:[%s2957] ss:$2 sm:$0xff]
      %s2959 = scalar_lea.vmem [#allocation2], 116
      %v2960 = vld [vmem:[%s2959] ss:$2 sm:$0xff]
      %s2961 = scalar_lea.vmem [#allocation2], 132
      %v2962 = vld [vmem:[%s2961] ss:$2 sm:$0xff]
      %s2963 = scalar_lea.vmem [#allocation2], 148
      %v2964 = vld [vmem:[%s2963] ss:$2 sm:$0xff]
      %s2965 = scalar_lea.vmem [#allocation2], 164
      %v2966 = vld [vmem:[%s2965] ss:$2 sm:$0xff]
      %s2967 = scalar_lea.vmem [#allocation2], 180
      %v2968 = vld [vmem:[%s2967] ss:$2 sm:$0xff]
      %s2969 = scalar_lea.vmem [#allocation2], 196
      %v2970 = vld [vmem:[%s2969] ss:$2 sm:$0xff]
      %s2971 = scalar_lea.vmem [#allocation2], 212
      %v2972 = vld [vmem:[%s2971] ss:$2 sm:$0xff]
      %s2973 = scalar_lea.vmem [#allocation2], 228
      %v2974 = vld [vmem:[%s2973] ss:$2 sm:$0xff]
      %s2975 = scalar_lea.vmem [#allocation2], 244
      %v2976 = vld [vmem:[%s2975] ss:$2 sm:$0xff]
      %s2977 = scalar_lea.vmem [#allocation2], 260
      %v2978 = vld [vmem:[%s2977] ss:$2 sm:$0xff]
      %s2979 = scalar_lea.vmem [#allocation2], 276
      %v2980 = vld [vmem:[%s2979] ss:$2 sm:$0xff]
      %s2981 = scalar_lea.vmem [#allocation2], 292
      %v2982 = vld [vmem:[%s2981] ss:$2 sm:$0xff]
      %s2983 = scalar_lea.vmem [#allocation2], 308
      %v2984 = vld [vmem:[%s2983] ss:$2 sm:$0xff]
      %s2985 = scalar_lea.vmem [#allocation2], 37
      %v2986 = vld [vmem:[%s2985] ss:$2 sm:$0xff]
      %s2987 = scalar_lea.vmem [#allocation2], 53
      %v2988 = vld [vmem:[%s2987] ss:$2 sm:$0xff]
      %s2989 = scalar_lea.vmem [#allocation2], 69
      %v2990 = vld [vmem:[%s2989] ss:$2 sm:$0xff]
      %s2991 = scalar_lea.vmem [#allocation2], 85
      %v2992 = vld [vmem:[%s2991] ss:$2 sm:$0xff]
      %s2993 = scalar_lea.vmem [#allocation2], 101
      %v2994 = vld [vmem:[%s2993] ss:$2 sm:$0xff]
      %s2995 = scalar_lea.vmem [#allocation2], 117
      %v2996 = vld [vmem:[%s2995] ss:$2 sm:$0xff]
      %s2997 = scalar_lea.vmem [#allocation2], 133
      %v2998 = vld [vmem:[%s2997] ss:$2 sm:$0xff]
      %s2999 = scalar_lea.vmem [#allocation2], 149
      %v3000 = vld [vmem:[%s2999] ss:$2 sm:$0xff]
      %s3001 = scalar_lea.vmem [#allocation2], 165
      %v3002 = vld [vmem:[%s3001] ss:$2 sm:$0xff]
      %s3003 = scalar_lea.vmem [#allocation2], 181
      %v3004 = vld [vmem:[%s3003] ss:$2 sm:$0xff]
      %s3005 = scalar_lea.vmem [#allocation2], 197
      %v3006 = vld [vmem:[%s3005] ss:$2 sm:$0xff]
      %s3007 = scalar_lea.vmem [#allocation2], 213
      %v3008 = vld [vmem:[%s3007] ss:$2 sm:$0xff]
      %s3009 = scalar_lea.vmem [#allocation2], 229
      %v3010 = vld [vmem:[%s3009] ss:$2 sm:$0xff]
      %s3011 = scalar_lea.vmem [#allocation2], 245
      %v3012 = vld [vmem:[%s3011] ss:$2 sm:$0xff]
      %s3013 = scalar_lea.vmem [#allocation2], 261
      %v3014 = vld [vmem:[%s3013] ss:$2 sm:$0xff]
      %s3015 = scalar_lea.vmem [#allocation2], 277
      %v3016 = vld [vmem:[%s3015] ss:$2 sm:$0xff]
      %s3017 = scalar_lea.vmem [#allocation2], 293
      %v3018 = vld [vmem:[%s3017] ss:$2 sm:$0xff]
      %s3019 = scalar_lea.vmem [#allocation2], 309
      %v3020 = vld [vmem:[%s3019] ss:$2 sm:$0xff]
      %s3021 = scalar_lea.vmem [#allocation2], 38
      %v3022 = vld [vmem:[%s3021] ss:$2 sm:$0xff]
      %s3023 = scalar_lea.vmem [#allocation2], 54
      %v3024 = vld [vmem:[%s3023] ss:$2 sm:$0xff]
      %s3025 = scalar_lea.vmem [#allocation2], 70
      %v3026 = vld [vmem:[%s3025] ss:$2 sm:$0xff]
      %s3027 = scalar_lea.vmem [#allocation2], 86
      %v3028 = vld [vmem:[%s3027] ss:$2 sm:$0xff]
      %s3029 = scalar_lea.vmem [#allocation2], 102
      %v3030 = vld [vmem:[%s3029] ss:$2 sm:$0xff]
      %s3031 = scalar_lea.vmem [#allocation2], 118
      %v3032 = vld [vmem:[%s3031] ss:$2 sm:$0xff]
      %s3033 = scalar_lea.vmem [#allocation2], 134
      %v3034 = vld [vmem:[%s3033] ss:$2 sm:$0xff]
      %s3035 = scalar_lea.vmem [#allocation2], 150
      %v3036 = vld [vmem:[%s3035] ss:$2 sm:$0xff]
      %s3037 = scalar_lea.vmem [#allocation2], 166
      %v3038 = vld [vmem:[%s3037] ss:$2 sm:$0xff]
      %s3039 = scalar_lea.vmem [#allocation2], 182
      %v3040 = vld [vmem:[%s3039] ss:$2 sm:$0xff]
      %s3041 = scalar_lea.vmem [#allocation2], 198
      %v3042 = vld [vmem:[%s3041] ss:$2 sm:$0xff]
      %s3043 = scalar_lea.vmem [#allocation2], 214
      %v3044 = vld [vmem:[%s3043] ss:$2 sm:$0xff]
      %s3045 = scalar_lea.vmem [#allocation2], 230
      %v3046 = vld [vmem:[%s3045] ss:$2 sm:$0xff]
      %s3047 = scalar_lea.vmem [#allocation2], 246
      %v3048 = vld [vmem:[%s3047] ss:$2 sm:$0xff]
      %s3049 = scalar_lea.vmem [#allocation2], 262
      %v3050 = vld [vmem:[%s3049] ss:$2 sm:$0xff]
      %s3051 = scalar_lea.vmem [#allocation2], 278
      %v3052 = vld [vmem:[%s3051] ss:$2 sm:$0xff]
      %s3053 = scalar_lea.vmem [#allocation2], 294
      %v3054 = vld [vmem:[%s3053] ss:$2 sm:$0xff]
      %s3055 = scalar_lea.vmem [#allocation2], 310
      %v3056 = vld [vmem:[%s3055] ss:$2 sm:$0xff]
      %3075 = vrot.lane.b32.xlu0 %v2838, 32
      %v3076 = vpop.permute.xlu0 %3075
      %3077 = vrot.lane.b32.xlu0 %v2840, 32
      %v3078 = vpop.permute.xlu0 %3077
      %3079 = vrot.lane.b32.xlu0 %v2842, 32
      %v3080 = vpop.permute.xlu0 %3079
      %3081 = vrot.lane.b32.xlu0 %v2844, 32
      %v3082 = vpop.permute.xlu0 %3081
      %3083 = vrot.lane.b32.xlu0 %v2846, 32
      %v3084 = vpop.permute.xlu0 %3083
      %3085 = vrot.lane.b32.xlu0 %v2848, 32
      %v3086 = vpop.permute.xlu0 %3085
      %3087 = vrot.lane.b32.xlu0 %v2850, 32
      %v3088 = vpop.permute.xlu0 %3087
      %3089 = vrot.lane.b32.xlu0 %v2852, 32
      %v3090 = vpop.permute.xlu0 %3089
      %3091 = vrot.lane.b32.xlu0 %v2854, 32
      %v3092 = vpop.permute.xlu0 %3091
      %3093 = vrot.lane.b32.xlu0 %v2856, 32
      %v3094 = vpop.permute.xlu0 %3093
      %3095 = vrot.lane.b32.xlu0 %v2858, 32
      %v3096 = vpop.permute.xlu0 %3095
      %3097 = vrot.lane.b32.xlu0 %v2860, 32
      %v3098 = vpop.permute.xlu0 %3097
      %3099 = vrot.lane.b32.xlu0 %v2862, 32
      %v3100 = vpop.permute.xlu0 %3099
      %3101 = vrot.lane.b32.xlu0 %v2864, 32
      %v3102 = vpop.permute.xlu0 %3101
      %3103 = vrot.lane.b32.xlu0 %v2866, 32
      %v3104 = vpop.permute.xlu0 %3103
      %3105 = vrot.lane.b32.xlu0 %v2868, 32
      %v3106 = vpop.permute.xlu0 %3105
      %3107 = vrot.lane.b32.xlu0 %v2870, 32
      %v3108 = vpop.permute.xlu0 %3107
      %3109 = vrot.lane.b32.xlu0 %v2872, 32
      %v3110 = vpop.permute.xlu0 %3109
      %3147 = vrot.lane.b32.xlu0 %v2874, 64
      %v3148 = vpop.permute.xlu0 %3147
      %3149 = vrot.lane.b32.xlu0 %v2876, 64
      %v3150 = vpop.permute.xlu0 %3149
      %3151 = vrot.lane.b32.xlu0 %v2878, 64
      %v3152 = vpop.permute.xlu0 %3151
      %3153 = vrot.lane.b32.xlu0 %v2880, 64
      %v3154 = vpop.permute.xlu0 %3153
      %3155 = vrot.lane.b32.xlu0 %v2882, 64
      %v3156 = vpop.permute.xlu0 %3155
      %3157 = vrot.lane.b32.xlu0 %v2884, 64
      %v3158 = vpop.permute.xlu0 %3157
      %3159 = vrot.lane.b32.xlu0 %v2886, 64
      %v3160 = vpop.permute.xlu0 %3159
      %3161 = vrot.lane.b32.xlu0 %v2888, 64
      %v3162 = vpop.permute.xlu0 %3161
      %3163 = vrot.lane.b32.xlu0 %v2890, 64
      %v3164 = vpop.permute.xlu0 %3163
      %3165 = vrot.lane.b32.xlu0 %v2892, 64
      %v3166 = vpop.permute.xlu0 %3165
      %3167 = vrot.lane.b32.xlu0 %v2894, 64
      %v3168 = vpop.permute.xlu0 %3167
      %3169 = vrot.lane.b32.xlu0 %v2896, 64
      %v3170 = vpop.permute.xlu0 %3169
      %3171 = vrot.lane.b32.xlu0 %v2898, 64
      %v3172 = vpop.permute.xlu0 %3171
      %3173 = vrot.lane.b32.xlu0 %v2900, 64
      %v3174 = vpop.permute.xlu0 %3173
      %3175 = vrot.lane.b32.xlu0 %v2902, 64
      %v3176 = vpop.permute.xlu0 %3175
      %3177 = vrot.lane.b32.xlu0 %v2904, 64
      %v3178 = vpop.permute.xlu0 %3177
      %3179 = vrot.lane.b32.xlu0 %v2906, 64
      %v3180 = vpop.permute.xlu0 %3179
      %3181 = vrot.lane.b32.xlu0 %v2908, 64
      %v3182 = vpop.permute.xlu0 %3181
      %3202 = vrot.lane.b32.xlu0 %v2876, 96
      %v3203 = vpop.permute.xlu0 %3202
      %3204 = vrot.lane.b32.xlu0 %v2878, 96
      %v3205 = vpop.permute.xlu0 %3204
      %3206 = vrot.lane.b32.xlu0 %v2880, 96
      %v3207 = vpop.permute.xlu0 %3206
      %3208 = vrot.lane.b32.xlu0 %v2882, 96
      %v3209 = vpop.permute.xlu0 %3208
      %3210 = vrot.lane.b32.xlu0 %v2884, 96
      %v3211 = vpop.permute.xlu0 %3210
      %3212 = vrot.lane.b32.xlu0 %v2886, 96
      %v3213 = vpop.permute.xlu0 %3212
      %3214 = vrot.lane.b32.xlu0 %v2888, 96
      %v3215 = vpop.permute.xlu0 %3214
      %3216 = vrot.lane.b32.xlu0 %v2890, 96
      %v3217 = vpop.permute.xlu0 %3216
      %3218 = vrot.lane.b32.xlu0 %v2892, 96
      %v3219 = vpop.permute.xlu0 %3218
      %3220 = vrot.lane.b32.xlu0 %v2894, 96
      %v3221 = vpop.permute.xlu0 %3220
      %3222 = vrot.lane.b32.xlu0 %v2896, 96
      %v3223 = vpop.permute.xlu0 %3222
      %3224 = vrot.lane.b32.xlu0 %v2898, 96
      %v3225 = vpop.permute.xlu0 %3224
      %3226 = vrot.lane.b32.xlu0 %v2900, 96
      %v3227 = vpop.permute.xlu0 %3226
      %3228 = vrot.lane.b32.xlu0 %v2902, 96
      %v3229 = vpop.permute.xlu0 %3228
      %3230 = vrot.lane.b32.xlu0 %v2904, 96
      %v3231 = vpop.permute.xlu0 %3230
      %3232 = vrot.lane.b32.xlu0 %v2906, 96
      %v3233 = vpop.permute.xlu0 %3232
      %3234 = vrot.lane.b32.xlu0 %v2908, 96
      %v3235 = vpop.permute.xlu0 %3234
      %3236 = vrot.lane.b32.xlu0 %v2910, 96
      %v3237 = vpop.permute.xlu0 %3236
      %3274 = vrot.lane.b32.xlu0 %v2948, 32
      %v3275 = vpop.permute.xlu0 %3274
      %3276 = vrot.lane.b32.xlu0 %v2950, 32
      %v3277 = vpop.permute.xlu0 %3276
      %3278 = vrot.lane.b32.xlu0 %v2952, 32
      %v3279 = vpop.permute.xlu0 %3278
      %3280 = vrot.lane.b32.xlu0 %v2954, 32
      %v3281 = vpop.permute.xlu0 %3280
      %3282 = vrot.lane.b32.xlu0 %v2956, 32
      %v3283 = vpop.permute.xlu0 %3282
      %3284 = vrot.lane.b32.xlu0 %v2958, 32
      %v3285 = vpop.permute.xlu0 %3284
      %3286 = vrot.lane.b32.xlu0 %v2960, 32
      %v3287 = vpop.permute.xlu0 %3286
      %3288 = vrot.lane.b32.xlu0 %v2962, 32
      %v3289 = vpop.permute.xlu0 %3288
      %3290 = vrot.lane.b32.xlu0 %v2964, 32
      %v3291 = vpop.permute.xlu0 %3290
      %3292 = vrot.lane.b32.xlu0 %v2966, 32
      %v3293 = vpop.permute.xlu0 %3292
      %3294 = vrot.lane.b32.xlu0 %v2968, 32
      %v3295 = vpop.permute.xlu0 %3294
      %3296 = vrot.lane.b32.xlu0 %v2970, 32
      %v3297 = vpop.permute.xlu0 %3296
      %3298 = vrot.lane.b32.xlu0 %v2972, 32
      %v3299 = vpop.permute.xlu0 %3298
      %3300 = vrot.lane.b32.xlu0 %v2974, 32
      %v3301 = vpop.permute.xlu0 %3300
      %3302 = vrot.lane.b32.xlu0 %v2976, 32
      %v3303 = vpop.permute.xlu0 %3302
      %3304 = vrot.lane.b32.xlu0 %v2978, 32
      %v3305 = vpop.permute.xlu0 %3304
      %3306 = vrot.lane.b32.xlu0 %v2980, 32
      %v3307 = vpop.permute.xlu0 %3306
      %3308 = vrot.lane.b32.xlu0 %v2982, 32
      %v3309 = vpop.permute.xlu0 %3308
      %3329 = vrot.lane.b32.xlu0 %v2950, 64
      %v3330 = vpop.permute.xlu0 %3329
      %3331 = vrot.lane.b32.xlu0 %v2952, 64
      %v3332 = vpop.permute.xlu0 %3331
      %3333 = vrot.lane.b32.xlu0 %v2954, 64
      %v3334 = vpop.permute.xlu0 %3333
      %3335 = vrot.lane.b32.xlu0 %v2956, 64
      %v3336 = vpop.permute.xlu0 %3335
      %3337 = vrot.lane.b32.xlu0 %v2958, 64
      %v3338 = vpop.permute.xlu0 %3337
      %3339 = vrot.lane.b32.xlu0 %v2960, 64
      %v3340 = vpop.permute.xlu0 %3339
      %3341 = vrot.lane.b32.xlu0 %v2962, 64
      %v3342 = vpop.permute.xlu0 %3341
      %3343 = vrot.lane.b32.xlu0 %v2964, 64
      %v3344 = vpop.permute.xlu0 %3343
      %3345 = vrot.lane.b32.xlu0 %v2966, 64
      %v3346 = vpop.permute.xlu0 %3345
      %3347 = vrot.lane.b32.xlu0 %v2968, 64
      %v3348 = vpop.permute.xlu0 %3347
      %3349 = vrot.lane.b32.xlu0 %v2970, 64
      %v3350 = vpop.permute.xlu0 %3349
      %3351 = vrot.lane.b32.xlu0 %v2972, 64
      %v3352 = vpop.permute.xlu0 %3351
      %3353 = vrot.lane.b32.xlu0 %v2974, 64
      %v3354 = vpop.permute.xlu0 %3353
      %3355 = vrot.lane.b32.xlu0 %v2976, 64
      %v3356 = vpop.permute.xlu0 %3355
      %3357 = vrot.lane.b32.xlu0 %v2978, 64
      %v3358 = vpop.permute.xlu0 %3357
      %3359 = vrot.lane.b32.xlu0 %v2980, 64
      %v3360 = vpop.permute.xlu0 %3359
      %3361 = vrot.lane.b32.xlu0 %v2982, 64
      %v3362 = vpop.permute.xlu0 %3361
      %3363 = vrot.lane.b32.xlu0 %v2984, 64
      %v3364 = vpop.permute.xlu0 %3363
      %3401 = vrot.lane.b32.xlu0 %v2986, 96
      %v3402 = vpop.permute.xlu0 %3401
      %3403 = vrot.lane.b32.xlu0 %v2988, 96
      %v3404 = vpop.permute.xlu0 %3403
      %3405 = vrot.lane.b32.xlu0 %v2990, 96
      %v3406 = vpop.permute.xlu0 %3405
      %3407 = vrot.lane.b32.xlu0 %v2992, 96
      %v3408 = vpop.permute.xlu0 %3407
      %3409 = vrot.lane.b32.xlu0 %v2994, 96
      %v3410 = vpop.permute.xlu0 %3409
      %3411 = vrot.lane.b32.xlu0 %v2996, 96
      %v3412 = vpop.permute.xlu0 %3411
      %3413 = vrot.lane.b32.xlu0 %v2998, 96
      %v3414 = vpop.permute.xlu0 %3413
      %3415 = vrot.lane.b32.xlu0 %v3000, 96
      %v3416 = vpop.permute.xlu0 %3415
      %3417 = vrot.lane.b32.xlu0 %v3002, 96
      %v3418 = vpop.permute.xlu0 %3417
      %3419 = vrot.lane.b32.xlu0 %v3004, 96
      %v3420 = vpop.permute.xlu0 %3419
      %3421 = vrot.lane.b32.xlu0 %v3006, 96
      %v3422 = vpop.permute.xlu0 %3421
      %3423 = vrot.lane.b32.xlu0 %v3008, 96
      %v3424 = vpop.permute.xlu0 %3423
      %3425 = vrot.lane.b32.xlu0 %v3010, 96
      %v3426 = vpop.permute.xlu0 %3425
      %3427 = vrot.lane.b32.xlu0 %v3012, 96
      %v3428 = vpop.permute.xlu0 %3427
      %3429 = vrot.lane.b32.xlu0 %v3014, 96
      %v3430 = vpop.permute.xlu0 %3429
      %3431 = vrot.lane.b32.xlu0 %v3016, 96
      %v3432 = vpop.permute.xlu0 %3431
      %3433 = vrot.lane.b32.xlu0 %v3018, 96
      %v3434 = vpop.permute.xlu0 %3433
      %3435 = vrot.lane.b32.xlu0 %v3020, 96
      %v3436 = vpop.permute.xlu0 %3435
      %v3455 = vsel %vm442, %v2802, %v3076
      %v3456 = vsel %vm442, %v2804, %v3078
      %v3457 = vsel %vm442, %v2806, %v3080
      %v3458 = vsel %vm442, %v2808, %v3082
      %v3459 = vsel %vm442, %v2810, %v3084
      %v3460 = vsel %vm442, %v2812, %v3086
      %v3461 = vsel %vm442, %v2814, %v3088
      %v3462 = vsel %vm442, %v2816, %v3090
      %v3463 = vsel %vm442, %v2818, %v3092
      %v3464 = vsel %vm442, %v2820, %v3094
      %v3465 = vsel %vm442, %v2822, %v3096
      %v3466 = vsel %vm442, %v2824, %v3098
      %v3467 = vsel %vm442, %v2826, %v3100
      %v3468 = vsel %vm442, %v2828, %v3102
      %v3469 = vsel %vm442, %v2830, %v3104
      %v3470 = vsel %vm442, %v2832, %v3106
      %v3471 = vsel %vm442, %v2834, %v3108
      %v3472 = vsel %vm442, %v2836, %v3110
      %v3473 = vsel %vm453, %v3455, %v3148
      %v3474 = vsel %vm453, %v3456, %v3150
      %v3475 = vsel %vm453, %v3457, %v3152
      %v3476 = vsel %vm453, %v3458, %v3154
      %v3477 = vsel %vm453, %v3459, %v3156
      %v3478 = vsel %vm453, %v3460, %v3158
      %v3479 = vsel %vm453, %v3461, %v3160
      %v3480 = vsel %vm453, %v3462, %v3162
      %v3481 = vsel %vm453, %v3463, %v3164
      %v3482 = vsel %vm453, %v3464, %v3166
      %v3483 = vsel %vm453, %v3465, %v3168
      %v3484 = vsel %vm453, %v3466, %v3170
      %v3485 = vsel %vm453, %v3467, %v3172
      %v3486 = vsel %vm453, %v3468, %v3174
      %v3487 = vsel %vm453, %v3469, %v3176
      %v3488 = vsel %vm453, %v3470, %v3178
      %v3489 = vsel %vm453, %v3471, %v3180
      %v3490 = vsel %vm453, %v3472, %v3182
      %vm3491 = vcmask 785408
      %v3492 = vsel %vm3491, %v3473, %v3203
      %v3493 = vsel %vm3491, %v3474, %v3205
      %v3494 = vsel %vm3491, %v3475, %v3207
      %v3495 = vsel %vm3491, %v3476, %v3209
      %v3496 = vsel %vm3491, %v3477, %v3211
      %v3497 = vsel %vm3491, %v3478, %v3213
      %v3498 = vsel %vm3491, %v3479, %v3215
      %v3499 = vsel %vm3491, %v3480, %v3217
      %v3500 = vsel %vm3491, %v3481, %v3219
      %v3501 = vsel %vm3491, %v3482, %v3221
      %v3502 = vsel %vm3491, %v3483, %v3223
      %v3503 = vsel %vm3491, %v3484, %v3225
      %v3504 = vsel %vm3491, %v3485, %v3227
      %v3505 = vsel %vm3491, %v3486, %v3229
      %v3506 = vsel %vm3491, %v3487, %v3231
      %v3507 = vsel %vm3491, %v3488, %v3233
      %v3508 = vsel %vm3491, %v3489, %v3235
      %v3509 = vsel %vm3491, %v3490, %v3237
      %v3510 = vsel %vm442, %v2912, %v3275
      %v3511 = vsel %vm442, %v2914, %v3277
      %v3512 = vsel %vm442, %v2916, %v3279
      %v3513 = vsel %vm442, %v2918, %v3281
      %v3514 = vsel %vm442, %v2920, %v3283
      %v3515 = vsel %vm442, %v2922, %v3285
      %v3516 = vsel %vm442, %v2924, %v3287
      %v3517 = vsel %vm442, %v2926, %v3289
      %v3518 = vsel %vm442, %v2928, %v3291
      %v3519 = vsel %vm442, %v2930, %v3293
      %v3520 = vsel %vm442, %v2932, %v3295
      %v3521 = vsel %vm442, %v2934, %v3297
      %v3522 = vsel %vm442, %v2936, %v3299
      %v3523 = vsel %vm442, %v2938, %v3301
      %v3524 = vsel %vm442, %v2940, %v3303
      %v3525 = vsel %vm442, %v2942, %v3305
      %v3526 = vsel %vm442, %v2944, %v3307
      %v3527 = vsel %vm442, %v2946, %v3309
      %v3528 = vsel %vm453, %v3510, %v3330
      %v3529 = vsel %vm453, %v3511, %v3332
      %v3530 = vsel %vm453, %v3512, %v3334
      %v3531 = vsel %vm453, %v3513, %v3336
      %v3532 = vsel %vm453, %v3514, %v3338
      %v3533 = vsel %vm453, %v3515, %v3340
      %v3534 = vsel %vm453, %v3516, %v3342
      %v3535 = vsel %vm453, %v3517, %v3344
      %v3536 = vsel %vm453, %v3518, %v3346
      %v3537 = vsel %vm453, %v3519, %v3348
      %v3538 = vsel %vm453, %v3520, %v3350
      %v3539 = vsel %vm453, %v3521, %v3352
      %v3540 = vsel %vm453, %v3522, %v3354
      %v3541 = vsel %vm453, %v3523, %v3356
      %v3542 = vsel %vm453, %v3524, %v3358
      %v3543 = vsel %vm453, %v3525, %v3360
      %v3544 = vsel %vm453, %v3526, %v3362
      %v3545 = vsel %vm453, %v3527, %v3364
      %v3546 = vsel %vm3491, %v3528, %v3402
      %v3547 = vsel %vm3491, %v3529, %v3404
      %v3548 = vsel %vm3491, %v3530, %v3406
      %v3549 = vsel %vm3491, %v3531, %v3408
      %v3550 = vsel %vm3491, %v3532, %v3410
      %v3551 = vsel %vm3491, %v3533, %v3412
      %v3552 = vsel %vm3491, %v3534, %v3414
      %v3553 = vsel %vm3491, %v3535, %v3416
      %v3554 = vsel %vm3491, %v3536, %v3418
      %v3555 = vsel %vm3491, %v3537, %v3420
      %v3556 = vsel %vm3491, %v3538, %v3422
      %v3557 = vsel %vm3491, %v3539, %v3424
      %v3558 = vsel %vm3491, %v3540, %v3426
      %v3559 = vsel %vm3491, %v3541, %v3428
      %v3560 = vsel %vm3491, %v3542, %v3430
      %v3561 = vsel %vm3491, %v3543, %v3432
      %v3562 = vsel %vm3491, %v3544, %v3434
      %v3563 = vsel %vm3491, %v3545, %v3436
      %v3564 = vpack.c.bf16 %v3493, %v3492
      %v3565 = vpack.c.bf16 %v3547, %v3546
      %v3566 = vpack.c.bf16 %v3024, %v3022
      %v3567 = vpack.c.bf16 %v3495, %v3494
      %v3568 = vpack.c.bf16 %v3549, %v3548
      %v3569 = vpack.c.bf16 %v3028, %v3026
      %v3570 = vpack.c.bf16 %v3497, %v3496
      %v3571 = vpack.c.bf16 %v3551, %v3550
      %v3572 = vpack.c.bf16 %v3032, %v3030
      %v3573 = vpack.c.bf16 %v3499, %v3498
      %v3574 = vpack.c.bf16 %v3553, %v3552
      %v3575 = vpack.c.bf16 %v3036, %v3034
      %v3576 = vpack.c.bf16 %v3501, %v3500
      %v3577 = vpack.c.bf16 %v3555, %v3554
      %v3578 = vpack.c.bf16 %v3040, %v3038
      %v3579 = vpack.c.bf16 %v3503, %v3502
      %v3580 = vpack.c.bf16 %v3557, %v3556
      %v3581 = vpack.c.bf16 %v3044, %v3042
      %v3582 = vpack.c.bf16 %v3505, %v3504
      %v3583 = vpack.c.bf16 %v3559, %v3558
      %v3584 = vpack.c.bf16 %v3048, %v3046
      %v3585 = vpack.c.bf16 %v3507, %v3506
      %v3586 = vpack.c.bf16 %v3561, %v3560
      %v3587 = vpack.c.bf16 %v3052, %v3050
      %v3588 = vpack.c.bf16 %v3509, %v3508
      %v3589 = vpack.c.bf16 %v3563, %v3562
      %v3590 = vpack.c.bf16 %v3056, %v3054
      %v3591 = vld [vmem:[%s3] sm:$0xf]
      %v3592 = vld [vmem:[%s3 + $0x4] sm:$0xf]
      %v3593 = vld [vmem:[%s3 + $0x8] sm:$0xf]
      %v3594 = vld [vmem:[%s3 + $0xc] sm:$0xf]
      %v3595 = vld [vmem:[%s3 + $0x10] sm:$0xf]
      %v3596 = vld [vmem:[%s3 + $0x14] sm:$0xf]
      %v3597 = vld [vmem:[%s3 + $0x18] sm:$0xf]
      %v3598 = vld [vmem:[%s3 + $0x1c] sm:$0xf]
      %v3599 = vld [vmem:[%s3 + $0x20] sm:$0xf]
      %v3600 = vld [vmem:[%s3 + $0x24] sm:$0xf]
      %v3601 = vld [vmem:[%s3 + $0x28] sm:$0xf]
      %v3602 = vld [vmem:[%s3 + $0x2c] sm:$0xf]
      %v3603 = vld [vmem:[%s3 + $0x30] sm:$0xf]
      %v3604 = vld [vmem:[%s3 + $0x34] sm:$0xf]
      %v3605 = vld [vmem:[%s3 + $0x38] sm:$0xf]
      %v3606 = vld [vmem:[%s3 + $0x3c] sm:$0xf]
      %v3607 = vld [vmem:[%s3 + $0x40] sm:$0xf]
      %v3608 = vld [vmem:[%s3 + $0x44] sm:$0xf]
      %v3609 = vld [vmem:[%s3 + $0x48] sm:$0xf]
      %v3610 = vld [vmem:[%s3 + $0x4c] sm:$0xf]
      %v3611 = vld [vmem:[%s3 + $0x50] sm:$0xf]
      %v3612 = vld [vmem:[%s3 + $0x54] sm:$0xf]
      %v3613 = vld [vmem:[%s3 + $0x58] sm:$0xf]
      %v3614 = vld [vmem:[%s3 + $0x5c] sm:$0xf]
      %v3615 = vld [vmem:[%s3 + $0x60] sm:$0xf]
      %v3616 = vld [vmem:[%s3 + $0x64] sm:$0xf]
      %v3617 = vld [vmem:[%s3 + $0x68] sm:$0xf]
      %v3618 = vld [vmem:[%s3 + $0x6c] sm:$0xf]
      %v3619 = vld [vmem:[%s3 + $0x70] sm:$0xf]
      %v3620 = vld [vmem:[%s3 + $0x74] sm:$0xf]
      %v3621 = vld [vmem:[%s3 + $0x78] sm:$0xf]
      %v3622 = vld [vmem:[%s3 + $0x7c] sm:$0xf]
      %v3623 = vld [vmem:[%s3 + $0x80] sm:$0xf]
      %v3624 = vld [vmem:[%s3 + $0x84] sm:$0xf]
      %v3625 = vld [vmem:[%s3 + $0x88] sm:$0xf]
      %v3626 = vld [vmem:[%s3 + $0x8c] sm:$0xf]
      %v3627 = vld [vmem:[%s4] sm:$0x1]
      %v3629 = vlaneseq
      %v3630 = vshrl.u32 %v3629, 7
      %v3631 = vsub.s32 0, %v3630
      %v3632 = vrot.slane %v3627, %v3631
      %v3670 = vunpack.c.l.b16 %v3591
      %v3671 = vunpack.c.l.b16 %v3592
      %v3672 = vunpack.c.l.b16 %v3593
      %v3673 = vunpack.c.l.b16 %v3594
      %v3674 = vunpack.c.l.b16 %v3595
      %v3675 = vunpack.c.l.b16 %v3596
      %v3676 = vunpack.c.l.b16 %v3597
      %v3677 = vunpack.c.l.b16 %v3598
      %v3678 = vunpack.c.l.b16 %v3599
      %v3679 = vunpack.c.l.b16 %v3600
      %v3680 = vunpack.c.l.b16 %v3601
      %v3681 = vunpack.c.l.b16 %v3602
      %v3682 = vunpack.c.l.b16 %v3603
      %v3683 = vunpack.c.l.b16 %v3604
      %v3684 = vunpack.c.l.b16 %v3605
      %v3685 = vunpack.c.l.b16 %v3606
      %v3686 = vunpack.c.l.b16 %v3607
      %v3687 = vunpack.c.l.b16 %v3608
      %v3688 = vunpack.c.l.b16 %v3609
      %v3689 = vunpack.c.l.b16 %v3610
      %v3690 = vunpack.c.l.b16 %v3611
      %v3691 = vunpack.c.l.b16 %v3612
      %v3692 = vunpack.c.l.b16 %v3613
      %v3693 = vunpack.c.l.b16 %v3614
      %v3694 = vunpack.c.l.b16 %v3615
      %v3695 = vunpack.c.l.b16 %v3616
      %v3696 = vunpack.c.l.b16 %v3617
      %v3697 = vunpack.c.l.b16 %v3618
      %v3698 = vunpack.c.l.b16 %v3619
      %v3699 = vunpack.c.l.b16 %v3620
      %v3700 = vunpack.c.l.b16 %v3621
      %v3701 = vunpack.c.l.b16 %v3622
      %v3702 = vunpack.c.l.b16 %v3623
      %v3703 = vunpack.c.l.b16 %v3624
      %v3704 = vunpack.c.l.b16 %v3625
      %v3705 = vunpack.c.l.b16 %v3626
      %v3706 = vpack.c.b16 %v3671, %v3670
      %v3707 = vpack.c.b16 %v3673, %v3672
      %v3708 = vpack.c.b16 %v3675, %v3674
      %v3709 = vpack.c.b16 %v3677, %v3676
      %v3710 = vpack.c.b16 %v3679, %v3678
      %v3711 = vpack.c.b16 %v3681, %v3680
      %v3712 = vpack.c.b16 %v3683, %v3682
      %v3713 = vpack.c.b16 %v3685, %v3684
      %v3714 = vpack.c.b16 %v3687, %v3686
      %v3715 = vpack.c.b16 %v3689, %v3688
      %v3716 = vpack.c.b16 %v3691, %v3690
      %v3717 = vpack.c.b16 %v3693, %v3692
      %v3718 = vpack.c.b16 %v3695, %v3694
      %v3719 = vpack.c.b16 %v3697, %v3696
      %v3720 = vpack.c.b16 %v3699, %v3698
      %v3721 = vpack.c.b16 %v3701, %v3700
      %v3722 = vpack.c.b16 %v3703, %v3702
      %v3723 = vpack.c.b16 %v3705, %v3704
      %v3743 = vsel %vm442, %v3566, 0
      %v3746 = vsel %vm442, %v3569, 0
      %v3749 = vsel %vm442, %v3572, 0
      %v3752 = vsel %vm442, %v3575, 0
      %v3755 = vsel %vm442, %v3578, 0
      %v3758 = vsel %vm442, %v3581, 0
      %v3761 = vsel %vm442, %v3584, 0
      %v3764 = vsel %vm442, %v3587, 0
      %v3767 = vsel %vm442, %v3590, 0
      %3769 = vmatprep.subr.bf16.mxu0 0
      %3770 = vmatpush1.bf16.msra.mxu0 %v3713
      %3771 = vmatprep.subr.bf16.mxu0 0
      %3772 = vmatpush1.bf16.msra.mxu0 %v3712
      %3773 = vmatprep.subr.bf16.mxu0 0
      %3774 = vmatpush1.bf16.msra.mxu0 %v3711
      %3775 = vmatprep.subr.bf16.mxu0 0
      %3776 = vmatpush1.bf16.msra.mxu0 %v3710
      %3777 = vmatprep.subr.bf16.mxu0 0
      %3778 = vmatpush1.bf16.msra.mxu0 %v3709
      %3779 = vmatprep.subr.bf16.mxu0 0
      %3780 = vmatpush1.bf16.msra.mxu0 %v3708
      %3781 = vmatprep.subr.bf16.mxu0 0
      %3782 = vmatpush1.bf16.msra.mxu0 %v3707
      %3783 = vmatprep.subr.bf16.mxu0 0
      %3784 = vmatpush1.bf16.msra.mxu0 %v3706
      %3785 = vmatprep.subr.bf16.mxu0 0
      %3786 = vmatpush2.bf16.msra.mxu0 %v3721
      %3787 = vmatprep.subr.bf16.mxu0 0
      %3788 = vmatpush2.bf16.msra.mxu0 %v3720
      %3789 = vmatprep.subr.bf16.mxu0 0
      %3790 = vmatpush2.bf16.msra.mxu0 %v3719
      %3791 = vmatprep.subr.bf16.mxu0 0
      %3792 = vmatpush2.bf16.msra.mxu0 %v3718
      %3793 = vmatprep.subr.bf16.mxu0 0
      %3794 = vmatpush2.bf16.msra.mxu0 %v3717
      %3795 = vmatprep.subr.bf16.mxu0 0
      %3796 = vmatpush2.bf16.msra.mxu0 %v3716
      %3797 = vmatprep.subr.bf16.mxu0 0
      %3798 = vmatpush2.bf16.msra.mxu0 %v3715
      %3799 = vmatprep.subr.bf16.mxu0 0
      %3800 = vmatpush2.bf16.msra.mxu0 %v3714
      %3801 = vmatprep.mubr.bf16.mxu0 %v3565
      %3802 = vmatmul.mubr.bf16.gmra.mxu0 %v3564
      %v3803 = vpop.f32.mrf.mxu0
      %v3804 = vadd.f32 %v3632, %v3803
      %v3805 = vpop.f32.mrf.mxu0
      %v3806 = vpop.f32.mrf.mxu0
      %v3807 = vadd.f32 %v3632, %v3806
      %v3808 = vpop.f32.mrf.mxu0
      %3809 = vmatprep.mubr.bf16.mxu0 %v3568
      %3810 = vmatmul.mubr.bf16.gmra.mxu0 %v3567
      %v3811 = vpop.f32.mrf.mxu0
      %v3812 = vadd.f32 %v3632, %v3811
      %v3813 = vpop.f32.mrf.mxu0
      %v3814 = vpop.f32.mrf.mxu0
      %v3815 = vadd.f32 %v3632, %v3814
      %v3816 = vpop.f32.mrf.mxu0
      %3817 = vmatprep.mubr.bf16.mxu0 %v3571
      %3818 = vmatmul.mubr.bf16.gmra.mxu0 %v3570
      %v3819 = vpop.f32.mrf.mxu0
      %v3820 = vadd.f32 %v3632, %v3819
      %v3821 = vpop.f32.mrf.mxu0
      %v3822 = vpop.f32.mrf.mxu0
      %v3823 = vadd.f32 %v3632, %v3822
      %v3824 = vpop.f32.mrf.mxu0
      %3825 = vmatprep.mubr.bf16.mxu0 %v3574
      %3826 = vmatmul.mubr.bf16.gmra.mxu0 %v3573
      %v3827 = vpop.f32.mrf.mxu0
      %v3828 = vadd.f32 %v3632, %v3827
      %v3829 = vpop.f32.mrf.mxu0
      %v3830 = vpop.f32.mrf.mxu0
      %v3831 = vadd.f32 %v3632, %v3830
      %v3832 = vpop.f32.mrf.mxu0
      %3833 = vmatprep.mubr.bf16.mxu0 %v3577
      %3834 = vmatmul.mubr.bf16.gmra.mxu0 %v3576
      %v3835 = vpop.f32.mrf.mxu0
      %v3836 = vadd.f32 %v3632, %v3835
      %v3837 = vpop.f32.mrf.mxu0
      %v3838 = vpop.f32.mrf.mxu0
      %v3839 = vadd.f32 %v3632, %v3838
      %v3840 = vpop.f32.mrf.mxu0
      %3841 = vmatprep.mubr.bf16.mxu0 %v3580
      %3842 = vmatmul.mubr.bf16.gmra.mxu0 %v3579
      %v3843 = vpop.f32.mrf.mxu0
      %v3844 = vadd.f32 %v3632, %v3843
      %v3845 = vpop.f32.mrf.mxu0
      %v3846 = vpop.f32.mrf.mxu0
      %v3847 = vadd.f32 %v3632, %v3846
      %v3848 = vpop.f32.mrf.mxu0
      %3849 = vmatprep.mubr.bf16.mxu0 %v3583
      %3850 = vmatmul.mubr.bf16.gmra.mxu0 %v3582
      %v3851 = vpop.f32.mrf.mxu0
      %v3852 = vadd.f32 %v3632, %v3851
      %v3853 = vpop.f32.mrf.mxu0
      %v3854 = vpop.f32.mrf.mxu0
      %v3855 = vadd.f32 %v3632, %v3854
      %v3856 = vpop.f32.mrf.mxu0
      %3857 = vmatprep.mubr.bf16.mxu0 %v3586
      %3858 = vmatmul.mubr.bf16.gmra.mxu0 %v3585
      %v3859 = vpop.f32.mrf.mxu0
      %v3860 = vadd.f32 %v3632, %v3859
      %v3861 = vpop.f32.mrf.mxu0
      %v3862 = vpop.f32.mrf.mxu0
      %v3863 = vadd.f32 %v3632, %v3862
      %v3864 = vpop.f32.mrf.mxu0
      %3865 = vmatprep.mubr.bf16.mxu0 %v3589
      %3866 = vmatmul.mubr.bf16.gmra.mxu0 %v3588
      %v3867 = vpop.f32.mrf.mxu0
      %v3868 = vadd.f32 %v3632, %v3867
      %v3869 = vpop.f32.mrf.mxu0
      %v3870 = vpop.f32.mrf.mxu0
      %v3871 = vadd.f32 %v3632, %v3870
      %v3872 = vpop.f32.mrf.mxu0
      %3873 = vdwg.mxu0
      %3874 = vmatprep.subr.bf16.mxu0 0
      %3875 = vmatpush1.bf16.msra.mxu0 0
      %3876 = vmatprep.subr.bf16.mxu0 0
      %3877 = vmatpush1.bf16.msra.mxu0 0
      %3878 = vmatprep.subr.bf16.mxu0 0
      %3879 = vmatpush1.bf16.msra.mxu0 0
      %3880 = vmatprep.subr.bf16.mxu0 0
      %3881 = vmatpush1.bf16.msra.mxu0 0
      %3882 = vmatprep.subr.bf16.mxu0 0
      %3883 = vmatpush1.bf16.msra.mxu0 0
      %3884 = vmatprep.subr.bf16.mxu0 0
      %3885 = vmatpush1.bf16.msra.mxu0 0
      %3886 = vmatprep.subr.bf16.mxu0 0
      %3887 = vmatpush1.bf16.msra.mxu0 %v3723
      %3888 = vmatprep.subr.bf16.mxu0 0
      %3889 = vmatpush1.bf16.msra.mxu0 %v3722
      %3890 = vmatprep.subr.bf16.mxu0 0
      %3891 = vmatpush2.bf16.msra.mxu0 0
      %3892 = vmatprep.subr.bf16.mxu0 0
      %3893 = vmatpush2.bf16.msra.mxu0 0
      %3894 = vmatprep.subr.bf16.mxu0 0
      %3895 = vmatpush2.bf16.msra.mxu0 0
      %3896 = vmatprep.subr.bf16.mxu0 0
      %3897 = vmatpush2.bf16.msra.mxu0 0
      %3898 = vmatprep.subr.bf16.mxu0 0
      %3899 = vmatpush2.bf16.msra.mxu0 0
      %3900 = vmatprep.subr.bf16.mxu0 0
      %3901 = vmatpush2.bf16.msra.mxu0 0
      %3902 = vmatprep.subr.bf16.mxu0 0
      %3903 = vmatpush2.bf16.msra.mxu0 0
      %3904 = vmatprep.subr.bf16.mxu0 0
      %3905 = vmatpush2.bf16.msra.mxu0 0
      %3906 = vmatprep.mubr.bf16.mxu0 0
      %3907 = vmatmul.mubr.bf16.gmra.mxu0 %v3743
      %v3908 = vpop.f32.mrf.mxu0
      %v3909 = vadd.f32 %v3804, %v3908
      %v3910 = vpop.f32.mrf.mxu0
      %v3911 = vpop.f32.mrf.mxu0
      %v3912 = vadd.f32 %v3807, %v3911
      %v3913 = vpop.f32.mrf.mxu0
      %3914 = vmatprep.mubr.bf16.mxu0 0
      %3915 = vmatmul.mubr.bf16.gmra.mxu0 %v3746
      %v3916 = vpop.f32.mrf.mxu0
      %v3917 = vadd.f32 %v3812, %v3916
      %v3918 = vpop.f32.mrf.mxu0
      %v3919 = vpop.f32.mrf.mxu0
      %v3920 = vadd.f32 %v3815, %v3919
      %v3921 = vpop.f32.mrf.mxu0
      %3922 = vmatprep.mubr.bf16.mxu0 0
      %3923 = vmatmul.mubr.bf16.gmra.mxu0 %v3749
      %v3924 = vpop.f32.mrf.mxu0
      %v3925 = vadd.f32 %v3820, %v3924
      %v3926 = vpop.f32.mrf.mxu0
      %v3927 = vpop.f32.mrf.mxu0
      %v3928 = vadd.f32 %v3823, %v3927
      %v3929 = vpop.f32.mrf.mxu0
      %3930 = vmatprep.mubr.bf16.mxu0 0
      %3931 = vmatmul.mubr.bf16.gmra.mxu0 %v3752
      %v3932 = vpop.f32.mrf.mxu0
      %v3933 = vadd.f32 %v3828, %v3932
      %v3934 = vpop.f32.mrf.mxu0
      %v3935 = vpop.f32.mrf.mxu0
      %v3936 = vadd.f32 %v3831, %v3935
      %v3937 = vpop.f32.mrf.mxu0
      %3938 = vmatprep.mubr.bf16.mxu0 0
      %3939 = vmatmul.mubr.bf16.gmra.mxu0 %v3755
      %v3940 = vpop.f32.mrf.mxu0
      %v3941 = vadd.f32 %v3836, %v3940
      %v3942 = vpop.f32.mrf.mxu0
      %v3943 = vpop.f32.mrf.mxu0
      %v3944 = vadd.f32 %v3839, %v3943
      %v3945 = vpop.f32.mrf.mxu0
      %3946 = vmatprep.mubr.bf16.mxu0 0
      %3947 = vmatmul.mubr.bf16.gmra.mxu0 %v3758
      %v3948 = vpop.f32.mrf.mxu0
      %v3949 = vadd.f32 %v3844, %v3948
      %v3950 = vpop.f32.mrf.mxu0
      %v3951 = vpop.f32.mrf.mxu0
      %v3952 = vadd.f32 %v3847, %v3951
      %v3953 = vpop.f32.mrf.mxu0
      %3954 = vmatprep.mubr.bf16.mxu0 0
      %3955 = vmatmul.mubr.bf16.gmra.mxu0 %v3761
      %v3956 = vpop.f32.mrf.mxu0
      %v3957 = vadd.f32 %v3852, %v3956
      %v3958 = vpop.f32.mrf.mxu0
      %v3959 = vpop.f32.mrf.mxu0
      %v3960 = vadd.f32 %v3855, %v3959
      %v3961 = vpop.f32.mrf.mxu0
      %3962 = vmatprep.mubr.bf16.mxu0 0
      %3963 = vmatmul.mubr.bf16.gmra.mxu0 %v3764
      %v3964 = vpop.f32.mrf.mxu0
      %v3965 = vadd.f32 %v3860, %v3964
      %v3966 = vpop.f32.mrf.mxu0
      %v3967 = vpop.f32.mrf.mxu0
      %v3968 = vadd.f32 %v3863, %v3967
      %v3969 = vpop.f32.mrf.mxu0
      %3970 = vmatprep.mubr.bf16.mxu0 0
      %3971 = vmatmul.mubr.bf16.gmra.mxu0 %v3767
      %v3972 = vpop.f32.mrf.mxu0
      %v3973 = vadd.f32 %v3868, %v3972
      %v3974 = vpop.f32.mrf.mxu0
      %v3975 = vpop.f32.mrf.mxu0
      %v3976 = vadd.f32 %v3871, %v3975
      %v3977 = vpop.f32.mrf.mxu0
      %3978 = vdwg.mxu0
      %v3979 = vmax.f32 %v3909, 0.0
      %v3980 = vmax.f32 %v3912, 0.0
      %v3981 = vmax.f32 %v3917, 0.0
      %v3982 = vmax.f32 %v3920, 0.0
      %v3983 = vmax.f32 %v3925, 0.0
      %v3984 = vmax.f32 %v3928, 0.0
      %v3985 = vmax.f32 %v3933, 0.0
      %v3986 = vmax.f32 %v3936, 0.0
      %v3987 = vmax.f32 %v3941, 0.0
      %v3988 = vmax.f32 %v3944, 0.0
      %v3989 = vmax.f32 %v3949, 0.0
      %v3990 = vmax.f32 %v3952, 0.0
      %v3991 = vmax.f32 %v3957, 0.0
      %v3992 = vmax.f32 %v3960, 0.0
      %v3993 = vmax.f32 %v3965, 0.0
      %v3994 = vmax.f32 %v3968, 0.0
      %v3995 = vmax.f32 %v3973, 0.0
      %v3996 = vmax.f32 %v3976, 0.0
      %v3997 = vsel %vm1131, 1, 0
      %v3998 = vsel %vm1132, 1, 0
      %v3999 = vsel %vm1133, 1, 0
      %v4000 = vsel %vm1134, 1, 0
      %v4001 = vsel %vm1135, 1, 0
      %v4002 = vsel %vm1136, 1, 0
      %v4003 = vsel %vm1137, 1, 0
      %v4004 = vsel %vm1138, 1, 0
      %v4005 = vsel %vm1139, 1, 0
      %v4006 = vsel %vm1140, 1, 0
      %v4007 = vsel %vm1141, 1, 0
      %v4008 = vsel %vm1142, 1, 0
      %v4009 = vsel %vm1143, 1, 0
      %v4010 = vsel %vm1144, 1, 0
      %v4011 = vsel %vm1145, 1, 0
      %v4012 = vsel %vm1146, 1, 0
      %v4013 = vsel %vm1147, 1, 0
      %v4014 = vsel %vm1148, 1, 0
      %vm4015 = vcmp.eq.s32.totalorder %v3997, 1
      %vm4016 = vcmp.eq.s32.totalorder %v3998, 1
      %vm4017 = vcmp.eq.s32.totalorder %v3999, 1
      %vm4018 = vcmp.eq.s32.totalorder %v4000, 1
      %vm4019 = vcmp.eq.s32.totalorder %v4001, 1
      %vm4020 = vcmp.eq.s32.totalorder %v4002, 1
      %vm4021 = vcmp.eq.s32.totalorder %v4003, 1
      %vm4022 = vcmp.eq.s32.totalorder %v4004, 1
      %vm4023 = vcmp.eq.s32.totalorder %v4005, 1
      %vm4024 = vcmp.eq.s32.totalorder %v4006, 1
      %vm4025 = vcmp.eq.s32.totalorder %v4007, 1
      %vm4026 = vcmp.eq.s32.totalorder %v4008, 1
      %vm4027 = vcmp.eq.s32.totalorder %v4009, 1
      %vm4028 = vcmp.eq.s32.totalorder %v4010, 1
      %vm4029 = vcmp.eq.s32.totalorder %v4011, 1
      %vm4030 = vcmp.eq.s32.totalorder %v4012, 1
      %vm4031 = vcmp.eq.s32.totalorder %v4013, 1
      %vm4032 = vcmp.eq.s32.totalorder %v4014, 1
      %v4033 = vsel %vm4015, %v3979, 0.0
      %v4034 = vsel %vm4016, %v3980, 0.0
      %v4035 = vsel %vm4017, %v3981, 0.0
      %v4036 = vsel %vm4018, %v3982, 0.0
      %v4037 = vsel %vm4019, %v3983, 0.0
      %v4038 = vsel %vm4020, %v3984, 0.0
      %v4039 = vsel %vm4021, %v3985, 0.0
      %v4040 = vsel %vm4022, %v3986, 0.0
      %v4041 = vsel %vm4023, %v3987, 0.0
      %v4042 = vsel %vm4024, %v3988, 0.0
      %v4043 = vsel %vm4025, %v3989, 0.0
      %v4044 = vsel %vm4026, %v3990, 0.0
      %v4045 = vsel %vm4027, %v3991, 0.0
      %v4046 = vsel %vm4028, %v3992, 0.0
      %v4047 = vsel %vm4029, %v3993, 0.0
      %v4048 = vsel %vm4030, %v3994, 0.0
      %v4049 = vsel %vm4031, %v3995, 0.0
      %v4050 = vsel %vm4032, %v3996, 0.0
      %4051 = vst.msk [vmem:[#allocation3 + $0x13] sm:$0xff] %vm453, %v4033
      %4052 = vst.msk [vmem:[#allocation3 + $0x1b] sm:$0xff] %vm453, %v4034
      %4053 = vst.msk [vmem:[#allocation3 + $0x23] sm:$0xff] %vm453, %v4035
      %4054 = vst.msk [vmem:[#allocation3 + $0x2b] sm:$0xff] %vm453, %v4036
      %4055 = vst.msk [vmem:[#allocation3 + $0x33] sm:$0xff] %vm453, %v4037
      %4056 = vst.msk [vmem:[#allocation3 + $0x3b] sm:$0xff] %vm453, %v4038
      %4057 = vst.msk [vmem:[#allocation3 + $0x43] sm:$0xff] %vm453, %v4039
      %4058 = vst.msk [vmem:[#allocation3 + $0x4b] sm:$0xff] %vm453, %v4040
      %4059 = vst.msk [vmem:[#allocation3 + $0x53] sm:$0xff] %vm453, %v4041
      %4060 = vst.msk [vmem:[#allocation3 + $0x5b] sm:$0xff] %vm453, %v4042
      %4061 = vst.msk [vmem:[#allocation3 + $0x63] sm:$0xff] %vm453, %v4043
      %4062 = vst.msk [vmem:[#allocation3 + $0x6b] sm:$0xff] %vm453, %v4044
      %4063 = vst.msk [vmem:[#allocation3 + $0x73] sm:$0xff] %vm453, %v4045
      %4064 = vst.msk [vmem:[#allocation3 + $0x7b] sm:$0xff] %vm453, %v4046
      %4065 = vst.msk [vmem:[#allocation3 + $0x83] sm:$0xff] %vm453, %v4047
      %4066 = vst.msk [vmem:[#allocation3 + $0x8b] sm:$0xff] %vm453, %v4048
      %4067 = vst.msk [vmem:[#allocation3 + $0x93] sm:$0xff] %vm453, %v4049
      %4068 = vst.msk [vmem:[#allocation3 + $0x9b] sm:$0xff] %vm453, %v4050
      %v4069 = vld [vmem:[#allocation3] ss:$2 sm:$0xff]
      %s4070 = scalar_lea.vmem [#allocation3], 16
      %v4071 = vld [vmem:[%s4070] ss:$2 sm:$0xff]
      %s4072 = scalar_lea.vmem [#allocation3], 32
      %v4073 = vld [vmem:[%s4072] ss:$2 sm:$0xff]
      %s4074 = scalar_lea.vmem [#allocation3], 48
      %v4075 = vld [vmem:[%s4074] ss:$2 sm:$0xff]
      %s4076 = scalar_lea.vmem [#allocation3], 64
      %v4077 = vld [vmem:[%s4076] ss:$2 sm:$0xff]
      %s4078 = scalar_lea.vmem [#allocation3], 80
      %v4079 = vld [vmem:[%s4078] ss:$2 sm:$0xff]
      %s4080 = scalar_lea.vmem [#allocation3], 96
      %v4081 = vld [vmem:[%s4080] ss:$2 sm:$0xff]
      %s4082 = scalar_lea.vmem [#allocation3], 112
      %v4083 = vld [vmem:[%s4082] ss:$2 sm:$0xff]
      %s4084 = scalar_lea.vmem [#allocation3], 128
      %v4085 = vld [vmem:[%s4084] ss:$2 sm:$0xff]
      %s4086 = scalar_lea.vmem [#allocation3], 1
      %v4087 = vld [vmem:[%s4086] ss:$2 sm:$0xff]
      %s4088 = scalar_lea.vmem [#allocation3], 17
      %v4089 = vld [vmem:[%s4088] ss:$2 sm:$0xff]
      %s4090 = scalar_lea.vmem [#allocation3], 33
      %v4091 = vld [vmem:[%s4090] ss:$2 sm:$0xff]
      %s4092 = scalar_lea.vmem [#allocation3], 49
      %v4093 = vld [vmem:[%s4092] ss:$2 sm:$0xff]
      %s4094 = scalar_lea.vmem [#allocation3], 65
      %v4095 = vld [vmem:[%s4094] ss:$2 sm:$0xff]
      %s4096 = scalar_lea.vmem [#allocation3], 81
      %v4097 = vld [vmem:[%s4096] ss:$2 sm:$0xff]
      %s4098 = scalar_lea.vmem [#allocation3], 97
      %v4099 = vld [vmem:[%s4098] ss:$2 sm:$0xff]
      %s4100 = scalar_lea.vmem [#allocation3], 113
      %v4101 = vld [vmem:[%s4100] ss:$2 sm:$0xff]
      %s4102 = scalar_lea.vmem [#allocation3], 129
      %v4103 = vld [vmem:[%s4102] ss:$2 sm:$0xff]
      %s4104 = scalar_lea.vmem [#allocation3], 2
      %v4105 = vld [vmem:[%s4104] ss:$2 sm:$0xff]
      %s4106 = scalar_lea.vmem [#allocation3], 18
      %v4107 = vld [vmem:[%s4106] ss:$2 sm:$0xff]
      %s4108 = scalar_lea.vmem [#allocation3], 34
      %v4109 = vld [vmem:[%s4108] ss:$2 sm:$0xff]
      %s4110 = scalar_lea.vmem [#allocation3], 50
      %v4111 = vld [vmem:[%s4110] ss:$2 sm:$0xff]
      %s4112 = scalar_lea.vmem [#allocation3], 66
      %v4113 = vld [vmem:[%s4112] ss:$2 sm:$0xff]
      %s4114 = scalar_lea.vmem [#allocation3], 82
      %v4115 = vld [vmem:[%s4114] ss:$2 sm:$0xff]
      %s4116 = scalar_lea.vmem [#allocation3], 98
      %v4117 = vld [vmem:[%s4116] ss:$2 sm:$0xff]
      %s4118 = scalar_lea.vmem [#allocation3], 114
      %v4119 = vld [vmem:[%s4118] ss:$2 sm:$0xff]
      %s4120 = scalar_lea.vmem [#allocation3], 130
      %v4121 = vld [vmem:[%s4120] ss:$2 sm:$0xff]
      %s4122 = scalar_lea.vmem [#allocation3], 146
      %v4123 = vld [vmem:[%s4122] ss:$2 sm:$0xff]
      %s4124 = scalar_lea.vmem [#allocation3], 19
      %v4125 = vld [vmem:[%s4124] ss:$2 sm:$0xff]
      %s4126 = scalar_lea.vmem [#allocation3], 35
      %v4127 = vld [vmem:[%s4126] ss:$2 sm:$0xff]
      %s4128 = scalar_lea.vmem [#allocation3], 51
      %v4129 = vld [vmem:[%s4128] ss:$2 sm:$0xff]
      %s4130 = scalar_lea.vmem [#allocation3], 67
      %v4131 = vld [vmem:[%s4130] ss:$2 sm:$0xff]
      %s4132 = scalar_lea.vmem [#allocation3], 83
      %v4133 = vld [vmem:[%s4132] ss:$2 sm:$0xff]
      %s4134 = scalar_lea.vmem [#allocation3], 99
      %v4135 = vld [vmem:[%s4134] ss:$2 sm:$0xff]
      %s4136 = scalar_lea.vmem [#allocation3], 115
      %v4137 = vld [vmem:[%s4136] ss:$2 sm:$0xff]
      %s4138 = scalar_lea.vmem [#allocation3], 131
      %v4139 = vld [vmem:[%s4138] ss:$2 sm:$0xff]
      %s4140 = scalar_lea.vmem [#allocation3], 147
      %v4141 = vld [vmem:[%s4140] ss:$2 sm:$0xff]
      %s4142 = scalar_lea.vmem [#allocation3], 20
      %v4143 = vld [vmem:[%s4142] ss:$2 sm:$0xff]
      %s4144 = scalar_lea.vmem [#allocation3], 36
      %v4145 = vld [vmem:[%s4144] ss:$2 sm:$0xff]
      %s4146 = scalar_lea.vmem [#allocation3], 52
      %v4147 = vld [vmem:[%s4146] ss:$2 sm:$0xff]
      %s4148 = scalar_lea.vmem [#allocation3], 68
      %v4149 = vld [vmem:[%s4148] ss:$2 sm:$0xff]
      %s4150 = scalar_lea.vmem [#allocation3], 84
      %v4151 = vld [vmem:[%s4150] ss:$2 sm:$0xff]
      %s4152 = scalar_lea.vmem [#allocation3], 100
      %v4153 = vld [vmem:[%s4152] ss:$2 sm:$0xff]
      %s4154 = scalar_lea.vmem [#allocation3], 116
      %v4155 = vld [vmem:[%s4154] ss:$2 sm:$0xff]
      %s4156 = scalar_lea.vmem [#allocation3], 132
      %v4157 = vld [vmem:[%s4156] ss:$2 sm:$0xff]
      %s4158 = scalar_lea.vmem [#allocation3], 148
      %v4159 = vld [vmem:[%s4158] ss:$2 sm:$0xff]
      %s4160 = scalar_lea.vmem [#allocation3], 164
      %v4161 = vld [vmem:[%s4160] ss:$2 sm:$0xff]
      %s4162 = scalar_lea.vmem [#allocation3], 37
      %v4163 = vld [vmem:[%s4162] ss:$2 sm:$0xff]
      %s4164 = scalar_lea.vmem [#allocation3], 53
      %v4165 = vld [vmem:[%s4164] ss:$2 sm:$0xff]
      %s4166 = scalar_lea.vmem [#allocation3], 69
      %v4167 = vld [vmem:[%s4166] ss:$2 sm:$0xff]
      %s4168 = scalar_lea.vmem [#allocation3], 85
      %v4169 = vld [vmem:[%s4168] ss:$2 sm:$0xff]
      %s4170 = scalar_lea.vmem [#allocation3], 101
      %v4171 = vld [vmem:[%s4170] ss:$2 sm:$0xff]
      %s4172 = scalar_lea.vmem [#allocation3], 117
      %v4173 = vld [vmem:[%s4172] ss:$2 sm:$0xff]
      %s4174 = scalar_lea.vmem [#allocation3], 133
      %v4175 = vld [vmem:[%s4174] ss:$2 sm:$0xff]
      %s4176 = scalar_lea.vmem [#allocation3], 149
      %v4177 = vld [vmem:[%s4176] ss:$2 sm:$0xff]
      %s4178 = scalar_lea.vmem [#allocation3], 165
      %v4179 = vld [vmem:[%s4178] ss:$2 sm:$0xff]
      %s4180 = scalar_lea.vmem [#allocation3], 38
      %v4181 = vld [vmem:[%s4180] ss:$2 sm:$0xff]
      %s4182 = scalar_lea.vmem [#allocation3], 54
      %v4183 = vld [vmem:[%s4182] ss:$2 sm:$0xff]
      %s4184 = scalar_lea.vmem [#allocation3], 70
      %v4185 = vld [vmem:[%s4184] ss:$2 sm:$0xff]
      %s4186 = scalar_lea.vmem [#allocation3], 86
      %v4187 = vld [vmem:[%s4186] ss:$2 sm:$0xff]
      %s4188 = scalar_lea.vmem [#allocation3], 102
      %v4189 = vld [vmem:[%s4188] ss:$2 sm:$0xff]
      %s4190 = scalar_lea.vmem [#allocation3], 118
      %v4191 = vld [vmem:[%s4190] ss:$2 sm:$0xff]
      %s4192 = scalar_lea.vmem [#allocation3], 134
      %v4193 = vld [vmem:[%s4192] ss:$2 sm:$0xff]
      %s4194 = scalar_lea.vmem [#allocation3], 150
      %v4195 = vld [vmem:[%s4194] ss:$2 sm:$0xff]
      %s4196 = scalar_lea.vmem [#allocation3], 166
      %v4197 = vld [vmem:[%s4196] ss:$2 sm:$0xff]
      %4207 = vrot.lane.b32.xlu0 %v4087, 64
      %v4208 = vpop.permute.xlu0 %4207
      %4209 = vrot.lane.b32.xlu0 %v4089, 64
      %v4210 = vpop.permute.xlu0 %4209
      %4211 = vrot.lane.b32.xlu0 %v4091, 64
      %v4212 = vpop.permute.xlu0 %4211
      %4213 = vrot.lane.b32.xlu0 %v4093, 64
      %v4214 = vpop.permute.xlu0 %4213
      %4215 = vrot.lane.b32.xlu0 %v4095, 64
      %v4216 = vpop.permute.xlu0 %4215
      %4217 = vrot.lane.b32.xlu0 %v4097, 64
      %v4218 = vpop.permute.xlu0 %4217
      %4219 = vrot.lane.b32.xlu0 %v4099, 64
      %v4220 = vpop.permute.xlu0 %4219
      %4221 = vrot.lane.b32.xlu0 %v4101, 64
      %v4222 = vpop.permute.xlu0 %4221
      %4223 = vrot.lane.b32.xlu0 %v4103, 64
      %v4224 = vpop.permute.xlu0 %4223
      %4243 = vrot.lane.b32.xlu0 %v4107, 64
      %v4244 = vpop.permute.xlu0 %4243
      %4245 = vrot.lane.b32.xlu0 %v4109, 64
      %v4246 = vpop.permute.xlu0 %4245
      %4247 = vrot.lane.b32.xlu0 %v4111, 64
      %v4248 = vpop.permute.xlu0 %4247
      %4249 = vrot.lane.b32.xlu0 %v4113, 64
      %v4250 = vpop.permute.xlu0 %4249
      %4251 = vrot.lane.b32.xlu0 %v4115, 64
      %v4252 = vpop.permute.xlu0 %4251
      %4253 = vrot.lane.b32.xlu0 %v4117, 64
      %v4254 = vpop.permute.xlu0 %4253
      %4255 = vrot.lane.b32.xlu0 %v4119, 64
      %v4256 = vpop.permute.xlu0 %4255
      %4257 = vrot.lane.b32.xlu0 %v4121, 64
      %v4258 = vpop.permute.xlu0 %4257
      %4259 = vrot.lane.b32.xlu0 %v4123, 64
      %v4260 = vpop.permute.xlu0 %4259
      %4279 = vrot.lane.b32.xlu0 %v4143, 64
      %v4280 = vpop.permute.xlu0 %4279
      %4281 = vrot.lane.b32.xlu0 %v4145, 64
      %v4282 = vpop.permute.xlu0 %4281
      %4283 = vrot.lane.b32.xlu0 %v4147, 64
      %v4284 = vpop.permute.xlu0 %4283
      %4285 = vrot.lane.b32.xlu0 %v4149, 64
      %v4286 = vpop.permute.xlu0 %4285
      %4287 = vrot.lane.b32.xlu0 %v4151, 64
      %v4288 = vpop.permute.xlu0 %4287
      %4289 = vrot.lane.b32.xlu0 %v4153, 64
      %v4290 = vpop.permute.xlu0 %4289
      %4291 = vrot.lane.b32.xlu0 %v4155, 64
      %v4292 = vpop.permute.xlu0 %4291
      %4293 = vrot.lane.b32.xlu0 %v4157, 64
      %v4294 = vpop.permute.xlu0 %4293
      %4295 = vrot.lane.b32.xlu0 %v4159, 64
      %v4296 = vpop.permute.xlu0 %4295
      %4315 = vrot.lane.b32.xlu0 %v4163, 64
      %v4316 = vpop.permute.xlu0 %4315
      %4317 = vrot.lane.b32.xlu0 %v4165, 64
      %v4318 = vpop.permute.xlu0 %4317
      %4319 = vrot.lane.b32.xlu0 %v4167, 64
      %v4320 = vpop.permute.xlu0 %4319
      %4321 = vrot.lane.b32.xlu0 %v4169, 64
      %v4322 = vpop.permute.xlu0 %4321
      %4323 = vrot.lane.b32.xlu0 %v4171, 64
      %v4324 = vpop.permute.xlu0 %4323
      %4325 = vrot.lane.b32.xlu0 %v4173, 64
      %v4326 = vpop.permute.xlu0 %4325
      %4327 = vrot.lane.b32.xlu0 %v4175, 64
      %v4328 = vpop.permute.xlu0 %4327
      %4329 = vrot.lane.b32.xlu0 %v4177, 64
      %v4330 = vpop.permute.xlu0 %4329
      %4331 = vrot.lane.b32.xlu0 %v4179, 64
      %v4332 = vpop.permute.xlu0 %4331
      %v4342 = vsel %vm453, %v4069, %v4208
      %v4343 = vsel %vm453, %v4071, %v4210
      %v4344 = vsel %vm453, %v4073, %v4212
      %v4345 = vsel %vm453, %v4075, %v4214
      %v4346 = vsel %vm453, %v4077, %v4216
      %v4347 = vsel %vm453, %v4079, %v4218
      %v4348 = vsel %vm453, %v4081, %v4220
      %v4349 = vsel %vm453, %v4083, %v4222
      %v4350 = vsel %vm453, %v4085, %v4224
      %v4351 = vsel %vm453, %v4105, %v4244
      %v4352 = vsel %vm453, %v4107, %v4246
      %v4353 = vsel %vm453, %v4109, %v4248
      %v4354 = vsel %vm453, %v4111, %v4250
      %v4355 = vsel %vm453, %v4113, %v4252
      %v4356 = vsel %vm453, %v4115, %v4254
      %v4357 = vsel %vm453, %v4117, %v4256
      %v4358 = vsel %vm453, %v4119, %v4258
      %v4359 = vsel %vm453, %v4121, %v4260
      %v4360 = vsel %vm453, %v4125, %v4280
      %v4361 = vsel %vm453, %v4127, %v4282
      %v4362 = vsel %vm453, %v4129, %v4284
      %v4363 = vsel %vm453, %v4131, %v4286
      %v4364 = vsel %vm453, %v4133, %v4288
      %v4365 = vsel %vm453, %v4135, %v4290
      %v4366 = vsel %vm453, %v4137, %v4292
      %v4367 = vsel %vm453, %v4139, %v4294
      %v4368 = vsel %vm453, %v4141, %v4296
      %v4369 = vsel %vm453, %v4145, %v4316
      %v4370 = vsel %vm453, %v4147, %v4318
      %v4371 = vsel %vm453, %v4149, %v4320
      %v4372 = vsel %vm453, %v4151, %v4322
      %v4373 = vsel %vm453, %v4153, %v4324
      %v4374 = vsel %vm453, %v4155, %v4326
      %v4375 = vsel %vm453, %v4157, %v4328
      %v4376 = vsel %vm453, %v4159, %v4330
      %v4377 = vsel %vm453, %v4161, %v4332
      %v4378 = vpack.c.bf16 %v4343, %v4342
      %v4379 = vpack.c.bf16 %v4352, %v4351
      %v4380 = vpack.c.bf16 %v4361, %v4360
      %v4381 = vpack.c.bf16 %v4370, %v4369
      %v4382 = vpack.c.bf16 %v4183, %v4181
      %v4383 = vpack.c.bf16 %v4345, %v4344
      %v4384 = vpack.c.bf16 %v4354, %v4353
      %v4385 = vpack.c.bf16 %v4363, %v4362
      %v4386 = vpack.c.bf16 %v4372, %v4371
      %v4387 = vpack.c.bf16 %v4187, %v4185
      %v4388 = vpack.c.bf16 %v4347, %v4346
      %v4389 = vpack.c.bf16 %v4356, %v4355
      %v4390 = vpack.c.bf16 %v4365, %v4364
      %v4391 = vpack.c.bf16 %v4374, %v4373
      %v4392 = vpack.c.bf16 %v4191, %v4189
      %v4393 = vpack.c.bf16 %v4349, %v4348
      %v4394 = vpack.c.bf16 %v4358, %v4357
      %v4395 = vpack.c.bf16 %v4367, %v4366
      %v4396 = vpack.c.bf16 %v4376, %v4375
      %v4397 = vpack.c.bf16 %v4195, %v4193
      %v4398 = vpack.c.bf16 %v4350, %v4350
      %v4399 = vpack.c.bf16 %v4359, %v4359
      %v4400 = vpack.c.bf16 %v4368, %v4368
      %v4401 = vpack.c.bf16 %v4377, %v4377
      %v4402 = vpack.c.bf16 %v4197, %v4197
      %v4403 = vld [vmem:[%s5] sm:$0xf]
      %v4404 = vld [vmem:[%s5 + $0x4] sm:$0xf]
      %v4405 = vld [vmem:[%s5 + $0x8] sm:$0xf]
      %v4406 = vld [vmem:[%s5 + $0xc] sm:$0xf]
      %v4407 = vld [vmem:[%s5 + $0x10] sm:$0xf]
      %v4408 = vld [vmem:[%s5 + $0x14] sm:$0xf]
      %v4409 = vld [vmem:[%s5 + $0x18] sm:$0xf]
      %v4410 = vld [vmem:[%s5 + $0x1c] sm:$0xf]
      %v4411 = vld [vmem:[%s5 + $0x20] sm:$0xf]
      %v4412 = vld [vmem:[%s5 + $0x24] sm:$0xf]
      %v4413 = vld [vmem:[%s5 + $0x28] sm:$0xf]
      %v4414 = vld [vmem:[%s5 + $0x2c] sm:$0xf]
      %v4415 = vld [vmem:[%s5 + $0x30] sm:$0xf]
      %v4416 = vld [vmem:[%s5 + $0x34] sm:$0xf]
      %v4417 = vld [vmem:[%s5 + $0x38] sm:$0xf]
      %v4418 = vld [vmem:[%s5 + $0x3c] sm:$0xf]
      %v4419 = vld [vmem:[%s5 + $0x40] sm:$0xf]
      %v4420 = vld [vmem:[%s5 + $0x44] sm:$0xf]
      %v4421 = vld [vmem:[%s5 + $0x48] sm:$0xf]
      %v4422 = vld [vmem:[%s5 + $0x4c] sm:$0xf]
      %v4423 = vld [vmem:[%s5 + $0x50] sm:$0xf]
      %v4424 = vld [vmem:[%s5 + $0x54] sm:$0xf]
      %v4425 = vld [vmem:[%s5 + $0x58] sm:$0xf]
      %v4426 = vld [vmem:[%s5 + $0x5c] sm:$0xf]
      %v4427 = vld [vmem:[%s5 + $0x60] sm:$0xf]
      %v4428 = vld [vmem:[%s5 + $0x64] sm:$0xf]
      %v4429 = vld [vmem:[%s5 + $0x68] sm:$0xf]
      %v4430 = vld [vmem:[%s5 + $0x6c] sm:$0xf]
      %v4431 = vld [vmem:[%s5 + $0x70] sm:$0xf]
      %v4432 = vld [vmem:[%s5 + $0x74] sm:$0xf]
      %v4433 = vld [vmem:[%s5 + $0x78] sm:$0xf]
      %v4434 = vld [vmem:[%s5 + $0x7c] sm:$0xf]
      %v4435 = vld [vmem:[%s5 + $0x80] sm:$0xf]
      %v4436 = vld [vmem:[%s5 + $0x84] sm:$0xf]
      %v4437 = vld [vmem:[%s5 + $0x88] sm:$0xf]
      %v4438 = vld [vmem:[%s5 + $0x8c] sm:$0xf]
      %v4439 = vld [vmem:[%s5 + $0x90] sm:$0xf]
      %v4440 = vld [vmem:[%s5 + $0x94] sm:$0xf]
      %v4441 = vld [vmem:[%s5 + $0x98] sm:$0xf]
      %v4442 = vld [vmem:[%s5 + $0x9c] sm:$0xf]
      %v4443 = vld [vmem:[%s5 + $0xa0] sm:$0xf]
      %v4444 = vld [vmem:[%s5 + $0xa4] sm:$0xf]
      %v4445 = vld [vmem:[%s5 + $0xa8] sm:$0xf]
      %v4446 = vld [vmem:[%s5 + $0xac] sm:$0xf]
      %v4447 = vld [vmem:[%s5 + $0xb0] sm:$0xf]
      %v4448 = vld [vmem:[%s5 + $0xb4] sm:$0xf]
      %v4449 = vld [vmem:[%s5 + $0xb8] sm:$0xf]
      %v4450 = vld [vmem:[%s5 + $0xbc] sm:$0xf]
      %v4451 = vld [vmem:[%s5 + $0xc0] sm:$0xf]
      %v4452 = vld [vmem:[%s5 + $0xc4] sm:$0xf]
      %v4453 = vld [vmem:[%s5 + $0xc8] sm:$0xf]
      %v4454 = vld [vmem:[%s5 + $0xcc] sm:$0xf]
      %v4455 = vld [vmem:[%s5 + $0xd0] sm:$0xf]
      %v4456 = vld [vmem:[%s5 + $0xd4] sm:$0xf]
      %v4457 = vld [vmem:[%s5 + $0xd8] sm:$0xf]
      %v4458 = vld [vmem:[%s5 + $0xdc] sm:$0xf]
      %v4459 = vld [vmem:[%s5 + $0xe0] sm:$0xf]
      %v4460 = vld [vmem:[%s5 + $0xe4] sm:$0xf]
      %v4461 = vld [vmem:[%s5 + $0xe8] sm:$0xf]
      %v4462 = vld [vmem:[%s5 + $0xec] sm:$0xf]
      %v4463 = vld [vmem:[%s5 + $0xf0] sm:$0xf]
      %v4464 = vld [vmem:[%s5 + $0xf4] sm:$0xf]
      %v4465 = vld [vmem:[%s5 + $0xf8] sm:$0xf]
      %v4466 = vld [vmem:[%s5 + $0xfc] sm:$0xf]
      %v4467 = vld [vmem:[%s5 + $0x100] sm:$0xf]
      %v4468 = vld [vmem:[%s5 + $0x104] sm:$0xf]
      %v4469 = vld [vmem:[%s5 + $0x108] sm:$0xf]
      %v4470 = vld [vmem:[%s5 + $0x10c] sm:$0xf]
      %v4471 = vld [vmem:[%s5 + $0x110] sm:$0xf]
      %v4472 = vld [vmem:[%s5 + $0x114] sm:$0xf]
      %v4473 = vld [vmem:[%s5 + $0x118] sm:$0xf]
      %v4474 = vld [vmem:[%s5 + $0x11c] sm:$0xf]
      %v4475 = vld [vmem:[%s6] sm:$0x1]
      %v4477 = vlaneseq
      %v4478 = vshrl.u32 %v4477, 7
      %v4479 = vsub.s32 0, %v4478
      %v4480 = vrot.slane %v4475, %v4479
      %v4554 = vunpack.c.l.b16 %v4403
      %v4555 = vunpack.c.l.b16 %v4404
      %v4556 = vunpack.c.l.b16 %v4405
      %v4557 = vunpack.c.l.b16 %v4406
      %v4558 = vunpack.c.l.b16 %v4407
      %v4559 = vunpack.c.l.b16 %v4408
      %v4560 = vunpack.c.l.b16 %v4409
      %v4561 = vunpack.c.l.b16 %v4410
      %v4562 = vunpack.c.l.b16 %v4411
      %v4563 = vunpack.c.l.b16 %v4412
      %v4564 = vunpack.c.l.b16 %v4413
      %v4565 = vunpack.c.l.b16 %v4414
      %v4566 = vunpack.c.l.b16 %v4415
      %v4567 = vunpack.c.l.b16 %v4416
      %v4568 = vunpack.c.l.b16 %v4417
      %v4569 = vunpack.c.l.b16 %v4418
      %v4570 = vunpack.c.l.b16 %v4419
      %v4571 = vunpack.c.l.b16 %v4420
      %v4572 = vunpack.c.l.b16 %v4421
      %v4573 = vunpack.c.l.b16 %v4422
      %v4574 = vunpack.c.l.b16 %v4423
      %v4575 = vunpack.c.l.b16 %v4424
      %v4576 = vunpack.c.l.b16 %v4425
      %v4577 = vunpack.c.l.b16 %v4426
      %v4578 = vunpack.c.l.b16 %v4427
      %v4579 = vunpack.c.l.b16 %v4428
      %v4580 = vunpack.c.l.b16 %v4429
      %v4581 = vunpack.c.l.b16 %v4430
      %v4582 = vunpack.c.l.b16 %v4431
      %v4583 = vunpack.c.l.b16 %v4432
      %v4584 = vunpack.c.l.b16 %v4433
      %v4585 = vunpack.c.l.b16 %v4434
      %v4586 = vunpack.c.l.b16 %v4435
      %v4587 = vunpack.c.l.b16 %v4436
      %v4588 = vunpack.c.l.b16 %v4437
      %v4589 = vunpack.c.l.b16 %v4438
      %v4590 = vunpack.c.l.b16 %v4439
      %v4591 = vunpack.c.l.b16 %v4440
      %v4592 = vunpack.c.l.b16 %v4441
      %v4593 = vunpack.c.l.b16 %v4442
      %v4594 = vunpack.c.l.b16 %v4443
      %v4595 = vunpack.c.l.b16 %v4444
      %v4596 = vunpack.c.l.b16 %v4445
      %v4597 = vunpack.c.l.b16 %v4446
      %v4598 = vunpack.c.l.b16 %v4447
      %v4599 = vunpack.c.l.b16 %v4448
      %v4600 = vunpack.c.l.b16 %v4449
      %v4601 = vunpack.c.l.b16 %v4450
      %v4602 = vunpack.c.l.b16 %v4451
      %v4603 = vunpack.c.l.b16 %v4452
      %v4604 = vunpack.c.l.b16 %v4453
      %v4605 = vunpack.c.l.b16 %v4454
      %v4606 = vunpack.c.l.b16 %v4455
      %v4607 = vunpack.c.l.b16 %v4456
      %v4608 = vunpack.c.l.b16 %v4457
      %v4609 = vunpack.c.l.b16 %v4458
      %v4610 = vunpack.c.l.b16 %v4459
      %v4611 = vunpack.c.l.b16 %v4460
      %v4612 = vunpack.c.l.b16 %v4461
      %v4613 = vunpack.c.l.b16 %v4462
      %v4614 = vunpack.c.l.b16 %v4463
      %v4615 = vunpack.c.l.b16 %v4464
      %v4616 = vunpack.c.l.b16 %v4465
      %v4617 = vunpack.c.l.b16 %v4466
      %v4618 = vunpack.c.l.b16 %v4467
      %v4619 = vunpack.c.l.b16 %v4468
      %v4620 = vunpack.c.l.b16 %v4469
      %v4621 = vunpack.c.l.b16 %v4470
      %v4622 = vunpack.c.l.b16 %v4471
      %v4623 = vunpack.c.l.b16 %v4472
      %v4624 = vunpack.c.l.b16 %v4473
      %v4625 = vunpack.c.l.b16 %v4474
      %v4626 = vpack.c.b16 %v4555, %v4554
      %v4627 = vpack.c.b16 %v4557, %v4556
      %v4628 = vpack.c.b16 %v4559, %v4558
      %v4629 = vpack.c.b16 %v4561, %v4560
      %v4630 = vpack.c.b16 %v4563, %v4562
      %v4631 = vpack.c.b16 %v4565, %v4564
      %v4632 = vpack.c.b16 %v4567, %v4566
      %v4633 = vpack.c.b16 %v4569, %v4568
      %v4634 = vpack.c.b16 %v4571, %v4570
      %v4635 = vpack.c.b16 %v4573, %v4572
      %v4636 = vpack.c.b16 %v4575, %v4574
      %v4637 = vpack.c.b16 %v4577, %v4576
      %v4638 = vpack.c.b16 %v4579, %v4578
      %v4639 = vpack.c.b16 %v4581, %v4580
      %v4640 = vpack.c.b16 %v4583, %v4582
      %v4641 = vpack.c.b16 %v4585, %v4584
      %v4642 = vpack.c.b16 %v4587, %v4586
      %v4643 = vpack.c.b16 %v4589, %v4588
      %v4644 = vpack.c.b16 %v4591, %v4590
      %v4645 = vpack.c.b16 %v4593, %v4592
      %v4646 = vpack.c.b16 %v4595, %v4594
      %v4647 = vpack.c.b16 %v4597, %v4596
      %v4648 = vpack.c.b16 %v4599, %v4598
      %v4649 = vpack.c.b16 %v4601, %v4600
      %v4650 = vpack.c.b16 %v4603, %v4602
      %v4651 = vpack.c.b16 %v4605, %v4604
      %v4652 = vpack.c.b16 %v4607, %v4606
      %v4653 = vpack.c.b16 %v4609, %v4608
      %v4654 = vpack.c.b16 %v4611, %v4610
      %v4655 = vpack.c.b16 %v4613, %v4612
      %v4656 = vpack.c.b16 %v4615, %v4614
      %v4657 = vpack.c.b16 %v4617, %v4616
      %v4658 = vpack.c.b16 %v4619, %v4618
      %v4659 = vpack.c.b16 %v4621, %v4620
      %v4660 = vpack.c.b16 %v4623, %v4622
      %v4661 = vpack.c.b16 %v4625, %v4624
      %v4699 = vsel %vm453, %v4382, 0
      %v4702 = vsel %vm453, %v4387, 0
      %v4705 = vsel %vm453, %v4392, 0
      %v4708 = vsel %vm453, %v4397, 0
      %v4711 = vsel %vm453, %v4402, 0
      %4713 = vmatprep.subr.bf16.mxu0 0
      %4714 = vmatpush1.bf16.msra.mxu0 %v4633
      %4715 = vmatprep.subr.bf16.mxu0 0
      %4716 = vmatpush1.bf16.msra.mxu0 %v4632
      %4717 = vmatprep.subr.bf16.mxu0 0
      %4718 = vmatpush1.bf16.msra.mxu0 %v4631
      %4719 = vmatprep.subr.bf16.mxu0 0
      %4720 = vmatpush1.bf16.msra.mxu0 %v4630
      %4721 = vmatprep.subr.bf16.mxu0 0
      %4722 = vmatpush1.bf16.msra.mxu0 %v4629
      %4723 = vmatprep.subr.bf16.mxu0 0
      %4724 = vmatpush1.bf16.msra.mxu0 %v4628
      %4725 = vmatprep.subr.bf16.mxu0 0
      %4726 = vmatpush1.bf16.msra.mxu0 %v4627
      %4727 = vmatprep.subr.bf16.mxu0 0
      %4728 = vmatpush1.bf16.msra.mxu0 %v4626
      %4729 = vmatprep.subr.bf16.mxu0 0
      %4730 = vmatpush2.bf16.msra.mxu0 %v4641
      %4731 = vmatprep.subr.bf16.mxu0 0
      %4732 = vmatpush2.bf16.msra.mxu0 %v4640
      %4733 = vmatprep.subr.bf16.mxu0 0
      %4734 = vmatpush2.bf16.msra.mxu0 %v4639
      %4735 = vmatprep.subr.bf16.mxu0 0
      %4736 = vmatpush2.bf16.msra.mxu0 %v4638
      %4737 = vmatprep.subr.bf16.mxu0 0
      %4738 = vmatpush2.bf16.msra.mxu0 %v4637
      %4739 = vmatprep.subr.bf16.mxu0 0
      %4740 = vmatpush2.bf16.msra.mxu0 %v4636
      %4741 = vmatprep.subr.bf16.mxu0 0
      %4742 = vmatpush2.bf16.msra.mxu0 %v4635
      %4743 = vmatprep.subr.bf16.mxu0 0
      %4744 = vmatpush2.bf16.msra.mxu0 %v4634
      %4745 = vmatprep.mubr.bf16.mxu0 %v4379
      %4746 = vmatmul.mubr.bf16.gmra.mxu0 %v4378
      %v4747 = vpop.f32.mrf.mxu0
      %v4748 = vadd.f32 %v4480, %v4747
      %v4749 = vpop.f32.mrf.mxu0
      %v4750 = vpop.f32.mrf.mxu0
      %v4751 = vadd.f32 %v4480, %v4750
      %v4752 = vpop.f32.mrf.mxu0
      %4753 = vmatprep.mubr.bf16.mxu0 %v4384
      %4754 = vmatmul.mubr.bf16.gmra.mxu0 %v4383
      %v4755 = vpop.f32.mrf.mxu0
      %v4756 = vadd.f32 %v4480, %v4755
      %v4757 = vpop.f32.mrf.mxu0
      %v4758 = vpop.f32.mrf.mxu0
      %v4759 = vadd.f32 %v4480, %v4758
      %v4760 = vpop.f32.mrf.mxu0
      %4761 = vmatprep.mubr.bf16.mxu0 %v4389
      %4762 = vmatmul.mubr.bf16.gmra.mxu0 %v4388
      %v4763 = vpop.f32.mrf.mxu0
      %v4764 = vadd.f32 %v4480, %v4763
      %v4765 = vpop.f32.mrf.mxu0
      %v4766 = vpop.f32.mrf.mxu0
      %v4767 = vadd.f32 %v4480, %v4766
      %v4768 = vpop.f32.mrf.mxu0
      %4769 = vmatprep.mubr.bf16.mxu0 %v4394
      %4770 = vmatmul.mubr.bf16.gmra.mxu0 %v4393
      %v4771 = vpop.f32.mrf.mxu0
      %v4772 = vadd.f32 %v4480, %v4771
      %v4773 = vpop.f32.mrf.mxu0
      %v4774 = vpop.f32.mrf.mxu0
      %v4775 = vadd.f32 %v4480, %v4774
      %v4776 = vpop.f32.mrf.mxu0
      %4777 = vmatprep.mubr.bf16.mxu0 %v4399
      %4778 = vmatmul.mubr.bf16.gmra.mxu0 %v4398
      %v4779 = vpop.f32.mrf.mxu0
      %v4780 = vadd.f32 %v4480, %v4779
      %v4781 = vpop.f32.mrf.mxu0
      %v4782 = vpop.f32.mrf.mxu0
      %v4783 = vpop.f32.mrf.mxu0
      %4784 = vdwg.mxu0
      %4785 = vmatprep.subr.bf16.mxu0 0
      %4786 = vmatpush1.bf16.msra.mxu0 %v4649
      %4787 = vmatprep.subr.bf16.mxu0 0
      %4788 = vmatpush1.bf16.msra.mxu0 %v4648
      %4789 = vmatprep.subr.bf16.mxu0 0
      %4790 = vmatpush1.bf16.msra.mxu0 %v4647
      %4791 = vmatprep.subr.bf16.mxu0 0
      %4792 = vmatpush1.bf16.msra.mxu0 %v4646
      %4793 = vmatprep.subr.bf16.mxu0 0
      %4794 = vmatpush1.bf16.msra.mxu0 %v4645
      %4795 = vmatprep.subr.bf16.mxu0 0
      %4796 = vmatpush1.bf16.msra.mxu0 %v4644
      %4797 = vmatprep.subr.bf16.mxu0 0
      %4798 = vmatpush1.bf16.msra.mxu0 %v4643
      %4799 = vmatprep.subr.bf16.mxu0 0
      %4800 = vmatpush1.bf16.msra.mxu0 %v4642
      %4801 = vmatprep.subr.bf16.mxu0 0
      %4802 = vmatpush2.bf16.msra.mxu0 %v4657
      %4803 = vmatprep.subr.bf16.mxu0 0
      %4804 = vmatpush2.bf16.msra.mxu0 %v4656
      %4805 = vmatprep.subr.bf16.mxu0 0
      %4806 = vmatpush2.bf16.msra.mxu0 %v4655
      %4807 = vmatprep.subr.bf16.mxu0 0
      %4808 = vmatpush2.bf16.msra.mxu0 %v4654
      %4809 = vmatprep.subr.bf16.mxu0 0
      %4810 = vmatpush2.bf16.msra.mxu0 %v4653
      %4811 = vmatprep.subr.bf16.mxu0 0
      %4812 = vmatpush2.bf16.msra.mxu0 %v4652
      %4813 = vmatprep.subr.bf16.mxu0 0
      %4814 = vmatpush2.bf16.msra.mxu0 %v4651
      %4815 = vmatprep.subr.bf16.mxu0 0
      %4816 = vmatpush2.bf16.msra.mxu0 %v4650
      %4817 = vmatprep.mubr.bf16.mxu0 %v4381
      %4818 = vmatmul.mubr.bf16.gmra.mxu0 %v4380
      %v4819 = vpop.f32.mrf.mxu0
      %v4820 = vadd.f32 %v4748, %v4819
      %v4821 = vpop.f32.mrf.mxu0
      %v4822 = vpop.f32.mrf.mxu0
      %v4823 = vadd.f32 %v4751, %v4822
      %v4824 = vpop.f32.mrf.mxu0
      %4825 = vmatprep.mubr.bf16.mxu0 %v4386
      %4826 = vmatmul.mubr.bf16.gmra.mxu0 %v4385
      %v4827 = vpop.f32.mrf.mxu0
      %v4828 = vadd.f32 %v4756, %v4827
      %v4829 = vpop.f32.mrf.mxu0
      %v4830 = vpop.f32.mrf.mxu0
      %v4831 = vadd.f32 %v4759, %v4830
      %v4832 = vpop.f32.mrf.mxu0
      %4833 = vmatprep.mubr.bf16.mxu0 %v4391
      %4834 = vmatmul.mubr.bf16.gmra.mxu0 %v4390
      %v4835 = vpop.f32.mrf.mxu0
      %v4836 = vadd.f32 %v4764, %v4835
      %v4837 = vpop.f32.mrf.mxu0
      %v4838 = vpop.f32.mrf.mxu0
      %v4839 = vadd.f32 %v4767, %v4838
      %v4840 = vpop.f32.mrf.mxu0
      %4841 = vmatprep.mubr.bf16.mxu0 %v4396
      %4842 = vmatmul.mubr.bf16.gmra.mxu0 %v4395
      %v4843 = vpop.f32.mrf.mxu0
      %v4844 = vadd.f32 %v4772, %v4843
      %v4845 = vpop.f32.mrf.mxu0
      %v4846 = vpop.f32.mrf.mxu0
      %v4847 = vadd.f32 %v4775, %v4846
      %v4848 = vpop.f32.mrf.mxu0
      %4849 = vmatprep.mubr.bf16.mxu0 %v4401
      %4850 = vmatmul.mubr.bf16.gmra.mxu0 %v4400
      %v4851 = vpop.f32.mrf.mxu0
      %v4852 = vadd.f32 %v4780, %v4851
      %v4853 = vpop.f32.mrf.mxu0
      %v4854 = vpop.f32.mrf.mxu0
      %v4855 = vpop.f32.mrf.mxu0
      %4856 = vdwg.mxu0
      %4857 = vmatprep.subr.bf16.mxu0 0
      %4858 = vmatpush1.bf16.msra.mxu0 0
      %4859 = vmatprep.subr.bf16.mxu0 0
      %4860 = vmatpush1.bf16.msra.mxu0 0
      %4861 = vmatprep.subr.bf16.mxu0 0
      %4862 = vmatpush1.bf16.msra.mxu0 0
      %4863 = vmatprep.subr.bf16.mxu0 0
      %4864 = vmatpush1.bf16.msra.mxu0 0
      %4865 = vmatprep.subr.bf16.mxu0 0
      %4866 = vmatpush1.bf16.msra.mxu0 %v4661
      %4867 = vmatprep.subr.bf16.mxu0 0
      %4868 = vmatpush1.bf16.msra.mxu0 %v4660
      %4869 = vmatprep.subr.bf16.mxu0 0
      %4870 = vmatpush1.bf16.msra.mxu0 %v4659
      %4871 = vmatprep.subr.bf16.mxu0 0
      %4872 = vmatpush1.bf16.msra.mxu0 %v4658
      %4873 = vmatprep.subr.bf16.mxu0 0
      %4874 = vmatpush2.bf16.msra.mxu0 0
      %4875 = vmatprep.subr.bf16.mxu0 0
      %4876 = vmatpush2.bf16.msra.mxu0 0
      %4877 = vmatprep.subr.bf16.mxu0 0
      %4878 = vmatpush2.bf16.msra.mxu0 0
      %4879 = vmatprep.subr.bf16.mxu0 0
      %4880 = vmatpush2.bf16.msra.mxu0 0
      %4881 = vmatprep.subr.bf16.mxu0 0
      %4882 = vmatpush2.bf16.msra.mxu0 0
      %4883 = vmatprep.subr.bf16.mxu0 0
      %4884 = vmatpush2.bf16.msra.mxu0 0
      %4885 = vmatprep.subr.bf16.mxu0 0
      %4886 = vmatpush2.bf16.msra.mxu0 0
      %4887 = vmatprep.subr.bf16.mxu0 0
      %4888 = vmatpush2.bf16.msra.mxu0 0
      %4889 = vmatprep.mubr.bf16.mxu0 0
      %4890 = vmatmul.mubr.bf16.gmra.mxu0 %v4699
      %v4891 = vpop.f32.mrf.mxu0
      %v4892 = vadd.f32 %v4820, %v4891
      %v4893 = vpop.f32.mrf.mxu0
      %v4894 = vpop.f32.mrf.mxu0
      %v4895 = vadd.f32 %v4823, %v4894
      %v4896 = vpop.f32.mrf.mxu0
      %4897 = vmatprep.mubr.bf16.mxu0 0
      %4898 = vmatmul.mubr.bf16.gmra.mxu0 %v4702
      %v4899 = vpop.f32.mrf.mxu0
      %v4900 = vadd.f32 %v4828, %v4899
      %v4901 = vpop.f32.mrf.mxu0
      %v4902 = vpop.f32.mrf.mxu0
      %v4903 = vadd.f32 %v4831, %v4902
      %v4904 = vpop.f32.mrf.mxu0
      %4905 = vmatprep.mubr.bf16.mxu0 0
      %4906 = vmatmul.mubr.bf16.gmra.mxu0 %v4705
      %v4907 = vpop.f32.mrf.mxu0
      %v4908 = vadd.f32 %v4836, %v4907
      %v4909 = vpop.f32.mrf.mxu0
      %v4910 = vpop.f32.mrf.mxu0
      %v4911 = vadd.f32 %v4839, %v4910
      %v4912 = vpop.f32.mrf.mxu0
      %4913 = vmatprep.mubr.bf16.mxu0 0
      %4914 = vmatmul.mubr.bf16.gmra.mxu0 %v4708
      %v4915 = vpop.f32.mrf.mxu0
      %v4916 = vadd.f32 %v4844, %v4915
      %v4917 = vpop.f32.mrf.mxu0
      %v4918 = vpop.f32.mrf.mxu0
      %v4919 = vadd.f32 %v4847, %v4918
      %v4920 = vpop.f32.mrf.mxu0
      %4921 = vmatprep.mubr.bf16.mxu0 0
      %4922 = vmatmul.mubr.bf16.gmra.mxu0 %v4711
      %v4923 = vpop.f32.mrf.mxu0
      %v4924 = vadd.f32 %v4852, %v4923
      %v4925 = vpop.f32.mrf.mxu0
      %v4926 = vpop.f32.mrf.mxu0
      %v4927 = vpop.f32.mrf.mxu0
      %4928 = vdwg.mxu0
      %v4929 = vmax.f32 %v4892, 0.0
      %v4930 = vmax.f32 %v4895, 0.0
      %v4931 = vmax.f32 %v4900, 0.0
      %v4932 = vmax.f32 %v4903, 0.0
      %v4933 = vmax.f32 %v4908, 0.0
      %v4934 = vmax.f32 %v4911, 0.0
      %v4935 = vmax.f32 %v4916, 0.0
      %v4936 = vmax.f32 %v4919, 0.0
      %v4937 = vmax.f32 %v4924, 0.0
      %v4938 = vsel %vm1149, 1, 0
      %v4939 = vsel %vm1150, 1, 0
      %v4940 = vsel %vm1151, 1, 0
      %v4941 = vsel %vm1152, 1, 0
      %v4942 = vsel %vm1153, 1, 0
      %v4943 = vsel %vm1154, 1, 0
      %v4944 = vsel %vm1155, 1, 0
      %v4945 = vsel %vm1156, 1, 0
      %v4946 = vsel %vm1157, 1, 0
      %vm4947 = vcmp.eq.s32.totalorder %v4938, 1
      %vm4948 = vcmp.eq.s32.totalorder %v4939, 1
      %vm4949 = vcmp.eq.s32.totalorder %v4940, 1
      %vm4950 = vcmp.eq.s32.totalorder %v4941, 1
      %vm4951 = vcmp.eq.s32.totalorder %v4942, 1
      %vm4952 = vcmp.eq.s32.totalorder %v4943, 1
      %vm4953 = vcmp.eq.s32.totalorder %v4944, 1
      %vm4954 = vcmp.eq.s32.totalorder %v4945, 1
      %vm4955 = vcmp.eq.s32.totalorder %v4946, 1
      %v4956 = vsel %vm4947, %v4929, 0.0
      %v4957 = vsel %vm4948, %v4930, 0.0
      %v4958 = vsel %vm4949, %v4931, 0.0
      %v4959 = vsel %vm4950, %v4932, 0.0
      %v4960 = vsel %vm4951, %v4933, 0.0
      %v4961 = vsel %vm4952, %v4934, 0.0
      %v4962 = vsel %vm4953, %v4935, 0.0
      %v4963 = vsel %vm4954, %v4936, 0.0
      %v4964 = vsel %vm4955, %v4937, 0.0
      %v4965 = vpack.c.bf16 %v4957, %v4956
      %v4966 = vpack.c.bf16 %v4959, %v4958
      %v4967 = vpack.c.bf16 %v4961, %v4960
      %v4968 = vpack.c.bf16 %v4963, %v4962
      %v4969 = vpack.c.bf16 %v4964, %v4964
      %v4975 = vunpack.c.l.b16 %v4965
      %v4976 = vunpack.c.h.b16 %v4965
      %v4977 = vunpack.c.l.b16 %v4966
      %v4978 = vunpack.c.h.b16 %v4966
      %v4979 = vunpack.c.l.b16 %v4967
      %v4980 = vunpack.c.h.b16 %v4967
      %v4981 = vunpack.c.l.b16 %v4968
      %v4982 = vunpack.c.h.b16 %v4968
      %v4983 = vunpack.c.l.b16 %v4969
      %v4984 = vpack.c.b16 %v4975, %v4975
      %v4985 = vpack.c.b16 %v4976, %v4976
      %v4986 = vpack.c.b16 %v4977, %v4977
      %v4987 = vpack.c.b16 %v4978, %v4978
      %v4988 = vpack.c.b16 %v4979, %v4979
      %v4989 = vpack.c.b16 %v4980, %v4980
      %v4990 = vpack.c.b16 %v4981, %v4981
      %v4991 = vpack.c.b16 %v4982, %v4982
      %v4992 = vpack.c.b16 %v4983, %v4983
      %vm4993 = vsmask.f32 5392
      %vm4994 = vmor %vm467, %vm4993
      %v4996 = vshrl.u32 %v4984, 16
      %v4998 = vrot.slane %v4996, 6
      %v4999 = vshll.u32 %v4984, 16
      %v5001 = vrot.slane %v4999, 7
      %v5002 = vor.u32 %v4998, %v5001
      %v5003 = vrot.slane %v5002, 4
      %v5005 = vshrl.u32 %v4985, 16
      %v5007 = vrot.slane %v5005, 6
      %v5008 = vshll.u32 %v4985, 16
      %v5010 = vrot.slane %v5008, 7
      %v5011 = vor.u32 %v5007, %v5010
      %v5012 = vsel %vm4994, %v5003, %v5011
      %v5013 = vrot.slane %v5011, 4
      %v5015 = vshrl.u32 %v4986, 16
      %v5017 = vrot.slane %v5015, 6
      %v5018 = vshll.u32 %v4986, 16
      %v5020 = vrot.slane %v5018, 7
      %v5021 = vor.u32 %v5017, %v5020
      %v5022 = vsel %vm4994, %v5013, %v5021
      %v5023 = vrot.slane %v5021, 4
      %v5025 = vshrl.u32 %v4987, 16
      %v5027 = vrot.slane %v5025, 6
      %v5028 = vshll.u32 %v4987, 16
      %v5030 = vrot.slane %v5028, 7
      %v5031 = vor.u32 %v5027, %v5030
      %v5032 = vsel %vm4994, %v5023, %v5031
      %v5033 = vrot.slane %v5031, 4
      %v5035 = vshrl.u32 %v4988, 16
      %v5037 = vrot.slane %v5035, 6
      %v5038 = vshll.u32 %v4988, 16
      %v5040 = vrot.slane %v5038, 7
      %v5041 = vor.u32 %v5037, %v5040
      %v5042 = vsel %vm4994, %v5033, %v5041
      %v5043 = vrot.slane %v5041, 4
      %v5045 = vshrl.u32 %v4989, 16
      %v5047 = vrot.slane %v5045, 6
      %v5048 = vshll.u32 %v4989, 16
      %v5050 = vrot.slane %v5048, 7
      %v5051 = vor.u32 %v5047, %v5050
      %v5052 = vsel %vm4994, %v5043, %v5051
      %v5053 = vrot.slane %v5051, 4
      %v5055 = vshrl.u32 %v4990, 16
      %v5057 = vrot.slane %v5055, 6
      %v5058 = vshll.u32 %v4990, 16
      %v5060 = vrot.slane %v5058, 7
      %v5061 = vor.u32 %v5057, %v5060
      %v5062 = vsel %vm4994, %v5053, %v5061
      %v5063 = vrot.slane %v5061, 4
      %v5065 = vshrl.u32 %v4991, 16
      %v5067 = vrot.slane %v5065, 6
      %v5068 = vshll.u32 %v4991, 16
      %v5070 = vrot.slane %v5068, 7
      %v5071 = vor.u32 %v5067, %v5070
      %v5072 = vsel %vm4994, %v5063, %v5071
      %v5073 = vrot.slane %v5071, 4
      %v5075 = vshrl.u32 %v4992, 16
      %v5077 = vrot.slane %v5075, 6
      %v5078 = vshll.u32 %v4992, 16
      %v5080 = vrot.slane %v5078, 7
      %v5081 = vor.u32 %v5077, %v5080
      %v5082 = vsel %vm4994, %v5073, %v5081
      %v5083 = vrot.slane %v5081, 4
      %v5094 = vld [vmem:[#allocation4 + $0x8] sm:$0xe]
      %v5095 = vsel %vm474, %v5002, %v5094
      %5096 = vst [vmem:[#allocation4 + $0x8] sm:$0xe] %v5095
      %5097 = vst [vmem:[#allocation4 + $0xc] sm:$0xf] %v5012
      %5098 = vst [vmem:[#allocation4 + $0x10] sm:$0xf] %v5022
      %5099 = vst [vmem:[#allocation4 + $0x14] sm:$0xf] %v5032
      %5100 = vst [vmem:[#allocation4 + $0x18] sm:$0xf] %v5042
      %5101 = vst [vmem:[#allocation4 + $0x1c] sm:$0xf] %v5052
      %5102 = vst [vmem:[#allocation4 + $0x20] sm:$0xf] %v5062
      %5103 = vst [vmem:[#allocation4 + $0x24] sm:$0xf] %v5072
      %5104 = vst [vmem:[#allocation4 + $0x28] sm:$0xf] %v5082
      %v5105 = vld [vmem:[#allocation4 + $0x2c] sm:$0x3]
      %v5106 = vsel %vm468, %v5083, %v5105
      %5107 = vst [vmem:[#allocation4 + $0x2c] sm:$0x3] %v5106
      %v5108 = vld [vmem:[#allocation4 + $0x8] sm:$0xe]
      %v5109 = vld [vmem:[#allocation4 + $0xc] sm:$0xf]
      %v5110 = vld [vmem:[#allocation4 + $0x10] sm:$0xf]
      %v5111 = vld [vmem:[#allocation4 + $0x14] sm:$0xf]
      %v5112 = vld [vmem:[#allocation4 + $0x18] sm:$0xf]
      %v5113 = vld [vmem:[#allocation4 + $0x1c] sm:$0xf]
      %v5114 = vld [vmem:[#allocation4 + $0x20] sm:$0xf]
      %v5115 = vld [vmem:[#allocation4 + $0x24] sm:$0xf]
      %v5116 = vld [vmem:[#allocation4 + $0x28] sm:$0xf]
      %v5117 = vld [vmem:[#allocation4 + $0x2c] sm:$0x3]
      %v5118 = vld [vmem:[#allocation4 + $0x8] sm:$0xc]
      %v5119 = vld [vmem:[#allocation4 + $0x10] sm:$0xc]
      %v5120 = vld [vmem:[#allocation4 + $0x2c] sm:$0xf]
      %v5121 = vld [vmem:[#allocation4 + $0x30] sm:$0xf]
      %v5122 = vld [vmem:[#allocation4 + $0x34] sm:$0x7]
      %v5123 = vld [vmem:[#allocation4 + $0x10] sm:$0x8]
      %v5134 = vunpack.c.l.b16 %v5108
      %v5135 = vunpack.c.l.b16 %v5109
      %v5136 = vunpack.c.l.b16 %v5110
      %v5137 = vunpack.c.l.b16 %v5111
      %v5138 = vunpack.c.l.b16 %v5112
      %v5139 = vunpack.c.l.b16 %v5113
      %v5140 = vunpack.c.l.b16 %v5114
      %v5141 = vunpack.c.l.b16 %v5115
      %v5142 = vunpack.c.l.b16 %v5116
      %v5143 = vunpack.c.l.b16 %v5117
      %v5144 = vpack.c.b16 %v5135, %v5134
      %v5145 = vpack.c.b16 %v5137, %v5136
      %v5146 = vpack.c.b16 %v5139, %v5138
      %v5147 = vpack.c.b16 %v5141, %v5140
      %v5148 = vpack.c.b16 %v5143, %v5142
      %v5150 = vunpack.c.l.b16 %v5118
      %v5151 = vpack.c.b16 %v5135, %v5150
      %v5153 = vshrl.u32 %v5151, 16
      %v5155 = vshll.u32 %v5151, 16
      %v5157 = vrot.slane %v5155, 1
      %v5158 = vor.u32 %v5153, %v5157
      %v5160 = vshll.u32 %v5145, 16
      %v5162 = vrot.slane %v5160, 1
      %v5163 = vsel %vm1301, %v5158, %v5162
      %v5164 = vshrl.u32 %v5145, 16
      %v5166 = vor.u32 %v5164, %v5162
      %v5168 = vshll.u32 %v5146, 16
      %v5170 = vrot.slane %v5168, 1
      %v5171 = vsel %vm1301, %v5166, %v5170
      %v5172 = vshrl.u32 %v5146, 16
      %v5174 = vor.u32 %v5172, %v5170
      %v5176 = vshll.u32 %v5147, 16
      %v5178 = vrot.slane %v5176, 1
      %v5179 = vsel %vm1301, %v5174, %v5178
      %v5180 = vshrl.u32 %v5147, 16
      %v5182 = vor.u32 %v5180, %v5178
      %v5184 = vshll.u32 %v5148, 16
      %v5186 = vrot.slane %v5184, 1
      %v5187 = vsel %vm1301, %v5182, %v5186
      %v5188 = vshrl.u32 %v5148, 16
      %v5190 = vor.u32 %v5188, %v5186
      %v5195 = vunpack.c.l.b16 %v5119
      %v5196 = vunpack.c.l.b16 %v5120
      %v5197 = vunpack.c.l.b16 %v5121
      %v5198 = vunpack.c.l.b16 %v5122
      %v5199 = vpack.c.b16 %v5137, %v5195
      %v5200 = vpack.c.b16 %v5196, %v5142
      %v5201 = vpack.c.b16 %v5198, %v5197
      %v5202 = vrot.slane %v5199, 1
      %v5203 = vrot.slane %v5146, 1
      %v5204 = vsel %vm1489, %v5202, %v5203
      %v5205 = vrot.slane %v5147, 1
      %v5206 = vsel %vm1489, %v5203, %v5205
      %v5207 = vrot.slane %v5200, 1
      %v5208 = vsel %vm1489, %v5205, %v5207
      %v5209 = vrot.slane %v5201, 1
      %v5210 = vsel %vm1489, %v5207, %v5209
      %v5212 = vunpack.c.l.b16 %v5123
      %v5213 = vpack.c.b16 %v5137, %v5212
      %v5215 = vshrl.u32 %v5213, 16
      %v5217 = vrot.slane %v5215, 1
      %v5218 = vshll.u32 %v5213, 16
      %v5220 = vrot.slane %v5218, 2
      %v5221 = vor.u32 %v5217, %v5220
      %v5222 = vrot.slane %v5172, 1
      %v5223 = vrot.slane %v5168, 2
      %v5224 = vor.u32 %v5222, %v5223
      %v5225 = vsel %vm1619, %v5221, %v5224
      %v5226 = vrot.slane %v5180, 1
      %v5227 = vrot.slane %v5176, 2
      %v5228 = vor.u32 %v5226, %v5227
      %v5229 = vsel %vm1619, %v5224, %v5228
      %v5231 = vshrl.u32 %v5200, 16
      %v5233 = vrot.slane %v5231, 1
      %v5234 = vshll.u32 %v5200, 16
      %v5236 = vrot.slane %v5234, 2
      %v5237 = vor.u32 %v5233, %v5236
      %v5238 = vsel %vm1619, %v5228, %v5237
      %v5240 = vshrl.u32 %v5201, 16
      %v5242 = vrot.slane %v5240, 1
      %v5243 = vshll.u32 %v5201, 16
      %v5245 = vrot.slane %v5243, 2
      %v5246 = vor.u32 %v5242, %v5245
      %v5247 = vsel %vm1619, %v5237, %v5246
      %v5248 = vld [vmem:[%s7] sm:$0xff]
      %v5249 = vld [vmem:[%s7 + $0x8] sm:$0xff]
      %v5250 = vld [vmem:[%s7 + $0x10] sm:$0xff]
      %v5251 = vld [vmem:[%s7 + $0x18] sm:$0xff]
      %v5252 = vld [vmem:[%s7 + $0x20] sm:$0xff]
      %v5253 = vld [vmem:[%s7 + $0x28] sm:$0xff]
      %v5254 = vld [vmem:[%s7 + $0x30] sm:$0xff]
      %v5255 = vld [vmem:[%s7 + $0x38] sm:$0xff]
      %v5256 = vld [vmem:[%s7 + $0x40] sm:$0xff]
      %v5257 = vld [vmem:[%s7 + $0x48] sm:$0xff]
      %v5258 = vld [vmem:[%s7 + $0x50] sm:$0xff]
      %v5259 = vld [vmem:[%s7 + $0x58] sm:$0xff]
      %v5260 = vld [vmem:[%s7 + $0x60] sm:$0xff]
      %v5261 = vld [vmem:[%s7 + $0x68] sm:$0xff]
      %v5262 = vld [vmem:[%s7 + $0x70] sm:$0xff]
      %v5263 = vld [vmem:[%s7 + $0x78] sm:$0xff]
      %v5264 = vld [vmem:[%s7 + $0x80] sm:$0xff]
      %v5265 = vld [vmem:[%s7 + $0x88] sm:$0xff]
      %v5266 = vld [vmem:[%s7 + $0x90] sm:$0xff]
      %v5267 = vld [vmem:[%s7 + $0x98] sm:$0xff]
      %v5268 = vld [vmem:[%s7 + $0xa0] sm:$0xff]
      %v5269 = vld [vmem:[%s7 + $0xa8] sm:$0xff]
      %v5270 = vld [vmem:[%s7 + $0xb0] sm:$0xff]
      %v5271 = vld [vmem:[%s7 + $0xb8] sm:$0xff]
      %v5272 = vld [vmem:[%s7 + $0xc0] sm:$0xff]
      %v5273 = vld [vmem:[%s7 + $0xc8] sm:$0xff]
      %v5274 = vld [vmem:[%s7 + $0xd0] sm:$0xff]
      %v5275 = vld [vmem:[%s7 + $0xd8] sm:$0xff]
      %v5276 = vld [vmem:[%s7 + $0xe0] sm:$0xff]
      %v5277 = vld [vmem:[%s7 + $0xe8] sm:$0xff]
      %v5278 = vld [vmem:[%s7 + $0xf0] sm:$0xff]
      %v5279 = vld [vmem:[%s7 + $0xf8] sm:$0xff]
      %v5280 = vld [vmem:[%s7 + $0x100] sm:$0xff]
      %v5281 = vld [vmem:[%s7 + $0x108] sm:$0xff]
      %v5282 = vld [vmem:[%s7 + $0x110] sm:$0xff]
      %v5283 = vld [vmem:[%s7 + $0x118] sm:$0xff]
      %v5284 = vld [vmem:[%s7 + $0x120] sm:$0xff]
      %v5285 = vld [vmem:[%s7 + $0x128] sm:$0xff]
      %v5286 = vld [vmem:[%s7 + $0x130] sm:$0xff]
      %v5287 = vld [vmem:[%s7 + $0x138] sm:$0xff]
      %v5288 = vld [vmem:[%s7 + $0x140] sm:$0xff]
      %v5289 = vld [vmem:[%s7 + $0x148] sm:$0xff]
      %v5290 = vld [vmem:[%s7 + $0x150] sm:$0xff]
      %v5291 = vld [vmem:[%s7 + $0x158] sm:$0xff]
      %v5292 = vld [vmem:[%s7 + $0x160] sm:$0xff]
      %v5293 = vld [vmem:[%s7 + $0x168] sm:$0xff]
      %v5294 = vld [vmem:[%s7 + $0x170] sm:$0xff]
      %v5295 = vld [vmem:[%s7 + $0x178] sm:$0xff]
      %v5296 = vld [vmem:[%s7 + $0x180] sm:$0xff]
      %v5297 = vld [vmem:[%s7 + $0x188] sm:$0xff]
      %v5298 = vld [vmem:[%s7 + $0x190] sm:$0xff]
      %v5299 = vld [vmem:[%s7 + $0x198] sm:$0xff]
      %v5300 = vld [vmem:[%s7 + $0x1a0] sm:$0xff]
      %v5301 = vld [vmem:[%s7 + $0x1a8] sm:$0xff]
      %v5302 = vld [vmem:[%s7 + $0x1b0] sm:$0xff]
      %v5303 = vld [vmem:[%s7 + $0x1b8] sm:$0xff]
      %v5304 = vld [vmem:[%s7 + $0x1c0] sm:$0xff]
      %v5305 = vld [vmem:[%s7 + $0x1c8] sm:$0xff]
      %v5306 = vld [vmem:[%s7 + $0x1d0] sm:$0xff]
      %v5307 = vld [vmem:[%s7 + $0x1d8] sm:$0xff]
      %v5308 = vld [vmem:[%s7 + $0x1e0] sm:$0xff]
      %v5309 = vld [vmem:[%s7 + $0x1e8] sm:$0xff]
      %v5310 = vld [vmem:[%s7 + $0x1f0] sm:$0xff]
      %v5311 = vld [vmem:[%s7 + $0x1f8] sm:$0xff]
      %v5312 = vld [vmem:[%s8] sm:$0x3]
      %v5314 = vlaneseq
      %v5315 = vshrl.u32 %v5314, 7
      %v5316 = vsub.s32 0, %v5315
      %v5317 = vrot.slane %v5312, %v5316
      %v5318 = vlaneseq
      %v5319 = vshrl.u32 %v5318, 7
      %v5320 = vsub.s32 1, %v5319
      %v5321 = vrot.slane %v5312, %v5320
      %v5325 = vshrl.u32 %v5144, 16
      %v5327 = vrot.slane %v5325, 1
      %v5328 = vshll.u32 %v5144, 16
      %v5330 = vrot.slane %v5328, 2
      %v5331 = vor.u32 %v5327, %v5330
      %v5332 = vrot.slane %v5164, 1
      %v5333 = vrot.slane %v5160, 2
      %v5334 = vor.u32 %v5332, %v5333
      %v5335 = vsel %vm1619, %v5331, %v5334
      %v5337 = vshrl.u32 %v5163, 16
      %v5339 = vrot.slane %v5337, 1
      %v5340 = vshll.u32 %v5163, 16
      %v5342 = vrot.slane %v5340, 2
      %v5343 = vor.u32 %v5339, %v5342
      %v5345 = vshrl.u32 %v5171, 16
      %v5347 = vrot.slane %v5345, 1
      %v5348 = vshll.u32 %v5171, 16
      %v5350 = vrot.slane %v5348, 2
      %v5351 = vor.u32 %v5347, %v5350
      %v5352 = vsel %vm1619, %v5343, %v5351
      %v5354 = vshrl.u32 %v5204, 16
      %v5356 = vrot.slane %v5354, 1
      %v5357 = vshll.u32 %v5204, 16
      %v5359 = vrot.slane %v5357, 2
      %v5360 = vor.u32 %v5356, %v5359
      %v5362 = vshrl.u32 %v5206, 16
      %v5364 = vrot.slane %v5362, 1
      %v5365 = vshll.u32 %v5206, 16
      %v5367 = vrot.slane %v5365, 2
      %v5368 = vor.u32 %v5364, %v5367
      %v5369 = vsel %vm1619, %v5360, %v5368
      %v5371 = vshrl.u32 %v5225, 16
      %v5373 = vrot.slane %v5371, 1
      %v5374 = vshll.u32 %v5225, 16
      %v5376 = vrot.slane %v5374, 2
      %v5377 = vor.u32 %v5373, %v5376
      %v5379 = vshrl.u32 %v5229, 16
      %v5381 = vrot.slane %v5379, 1
      %v5382 = vshll.u32 %v5229, 16
      %v5384 = vrot.slane %v5382, 2
      %v5385 = vor.u32 %v5381, %v5384
      %v5386 = vsel %vm1619, %v5377, %v5385
      %v5387 = vsel %vm1619, %v5334, %v5224
      %v5389 = vshrl.u32 %v5179, 16
      %v5391 = vrot.slane %v5389, 1
      %v5392 = vshll.u32 %v5179, 16
      %v5394 = vrot.slane %v5392, 2
      %v5395 = vor.u32 %v5391, %v5394
      %v5396 = vsel %vm1619, %v5351, %v5395
      %v5398 = vshrl.u32 %v5208, 16
      %v5400 = vrot.slane %v5398, 1
      %v5401 = vshll.u32 %v5208, 16
      %v5403 = vrot.slane %v5401, 2
      %v5404 = vor.u32 %v5400, %v5403
      %v5405 = vsel %vm1619, %v5368, %v5404
      %v5407 = vshrl.u32 %v5238, 16
      %v5409 = vrot.slane %v5407, 1
      %v5410 = vshll.u32 %v5238, 16
      %v5412 = vrot.slane %v5410, 2
      %v5413 = vor.u32 %v5409, %v5412
      %v5414 = vsel %vm1619, %v5385, %v5413
      %v5416 = vshrl.u32 %v5187, 16
      %v5418 = vrot.slane %v5416, 1
      %v5419 = vshll.u32 %v5187, 16
      %v5421 = vrot.slane %v5419, 2
      %v5422 = vor.u32 %v5418, %v5421
      %v5423 = vsel %vm1619, %v5395, %v5422
      %v5425 = vshrl.u32 %v5210, 16
      %v5427 = vrot.slane %v5425, 1
      %v5428 = vshll.u32 %v5210, 16
      %v5430 = vrot.slane %v5428, 2
      %v5431 = vor.u32 %v5427, %v5430
      %v5432 = vsel %vm1619, %v5404, %v5431
      %v5434 = vshrl.u32 %v5247, 16
      %v5436 = vrot.slane %v5434, 1
      %v5437 = vshll.u32 %v5247, 16
      %v5439 = vrot.slane %v5437, 2
      %v5440 = vor.u32 %v5436, %v5439
      %v5441 = vsel %vm1619, %v5413, %v5440
      %v5442 = vrot.slane %v5188, 1
      %v5443 = vrot.slane %v5184, 2
      %v5444 = vor.u32 %v5442, %v5443
      %v5445 = vsel %vm1619, %v5228, %v5444
      %v5447 = vshrl.u32 %v5190, 16
      %v5449 = vrot.slane %v5447, 1
      %v5450 = vshll.u32 %v5190, 16
      %v5452 = vrot.slane %v5450, 2
      %v5453 = vor.u32 %v5449, %v5452
      %v5454 = vsel %vm1619, %v5422, %v5453
      %v5456 = vshrl.u32 %v5209, 16
      %v5458 = vrot.slane %v5456, 1
      %v5459 = vshll.u32 %v5209, 16
      %v5461 = vrot.slane %v5459, 2
      %v5462 = vor.u32 %v5458, %v5461
      %v5463 = vsel %vm1619, %v5431, %v5462
      %v5465 = vshrl.u32 %v5246, 16
      %v5467 = vrot.slane %v5465, 1
      %v5468 = vshll.u32 %v5246, 16
      %v5470 = vrot.slane %v5468, 2
      %v5471 = vor.u32 %v5467, %v5470
      %v5472 = vsel %vm1619, %v5440, %v5471
      %v5557 = vunpack.c.l.b16 %v5248
      %v5558 = vunpack.c.h.b16 %v5248
      %v5559 = vunpack.c.l.b16 %v5249
      %v5560 = vunpack.c.h.b16 %v5249
      %v5561 = vunpack.c.l.b16 %v5250
      %v5562 = vunpack.c.h.b16 %v5250
      %v5563 = vunpack.c.l.b16 %v5251
      %v5564 = vunpack.c.h.b16 %v5251
      %v5565 = vunpack.c.l.b16 %v5252
      %v5566 = vunpack.c.h.b16 %v5252
      %v5567 = vunpack.c.l.b16 %v5253
      %v5568 = vunpack.c.h.b16 %v5253
      %v5569 = vunpack.c.l.b16 %v5254
      %v5570 = vunpack.c.h.b16 %v5254
      %v5571 = vunpack.c.l.b16 %v5255
      %v5572 = vunpack.c.h.b16 %v5255
      %v5573 = vunpack.c.l.b16 %v5256
      %v5574 = vunpack.c.h.b16 %v5256
      %v5575 = vunpack.c.l.b16 %v5257
      %v5576 = vunpack.c.h.b16 %v5257
      %v5577 = vunpack.c.l.b16 %v5258
      %v5578 = vunpack.c.h.b16 %v5258
      %v5579 = vunpack.c.l.b16 %v5259
      %v5580 = vunpack.c.h.b16 %v5259
      %v5581 = vunpack.c.l.b16 %v5260
      %v5582 = vunpack.c.h.b16 %v5260
      %v5583 = vunpack.c.l.b16 %v5261
      %v5584 = vunpack.c.h.b16 %v5261
      %v5585 = vunpack.c.l.b16 %v5262
      %v5586 = vunpack.c.h.b16 %v5262
      %v5587 = vunpack.c.l.b16 %v5263
      %v5588 = vunpack.c.h.b16 %v5263
      %v5589 = vunpack.c.l.b16 %v5264
      %v5590 = vunpack.c.h.b16 %v5264
      %v5591 = vunpack.c.l.b16 %v5265
      %v5592 = vunpack.c.h.b16 %v5265
      %v5593 = vunpack.c.l.b16 %v5266
      %v5594 = vunpack.c.h.b16 %v5266
      %v5595 = vunpack.c.l.b16 %v5267
      %v5596 = vunpack.c.h.b16 %v5267
      %v5597 = vunpack.c.l.b16 %v5268
      %v5598 = vunpack.c.h.b16 %v5268
      %v5599 = vunpack.c.l.b16 %v5269
      %v5600 = vunpack.c.h.b16 %v5269
      %v5601 = vunpack.c.l.b16 %v5270
      %v5602 = vunpack.c.h.b16 %v5270
      %v5603 = vunpack.c.l.b16 %v5271
      %v5604 = vunpack.c.h.b16 %v5271
      %v5605 = vunpack.c.l.b16 %v5272
      %v5606 = vunpack.c.h.b16 %v5272
      %v5607 = vunpack.c.l.b16 %v5273
      %v5608 = vunpack.c.h.b16 %v5273
      %v5609 = vunpack.c.l.b16 %v5274
      %v5610 = vunpack.c.h.b16 %v5274
      %v5611 = vunpack.c.l.b16 %v5275
      %v5612 = vunpack.c.h.b16 %v5275
      %v5613 = vunpack.c.l.b16 %v5276
      %v5614 = vunpack.c.h.b16 %v5276
      %v5615 = vunpack.c.l.b16 %v5277
      %v5616 = vunpack.c.h.b16 %v5277
      %v5617 = vunpack.c.l.b16 %v5278
      %v5618 = vunpack.c.h.b16 %v5278
      %v5619 = vunpack.c.l.b16 %v5279
      %v5620 = vunpack.c.h.b16 %v5279
      %v5621 = vunpack.c.l.b16 %v5280
      %v5622 = vunpack.c.h.b16 %v5280
      %v5623 = vunpack.c.l.b16 %v5281
      %v5624 = vunpack.c.h.b16 %v5281
      %v5625 = vunpack.c.l.b16 %v5282
      %v5626 = vunpack.c.h.b16 %v5282
      %v5627 = vunpack.c.l.b16 %v5283
      %v5628 = vunpack.c.h.b16 %v5283
      %v5629 = vunpack.c.l.b16 %v5284
      %v5630 = vunpack.c.h.b16 %v5284
      %v5631 = vunpack.c.l.b16 %v5285
      %v5632 = vunpack.c.h.b16 %v5285
      %v5633 = vunpack.c.l.b16 %v5286
      %v5634 = vunpack.c.h.b16 %v5286
      %v5635 = vunpack.c.l.b16 %v5287
      %v5636 = vunpack.c.h.b16 %v5287
      %v5637 = vunpack.c.l.b16 %v5288
      %v5638 = vunpack.c.h.b16 %v5288
      %v5639 = vunpack.c.l.b16 %v5289
      %v5640 = vunpack.c.h.b16 %v5289
      %v5641 = vunpack.c.l.b16 %v5290
      %v5642 = vunpack.c.h.b16 %v5290
      %v5643 = vunpack.c.l.b16 %v5291
      %v5644 = vunpack.c.h.b16 %v5291
      %v5645 = vunpack.c.l.b16 %v5292
      %v5646 = vunpack.c.h.b16 %v5292
      %v5647 = vunpack.c.l.b16 %v5293
      %v5648 = vunpack.c.h.b16 %v5293
      %v5649 = vunpack.c.l.b16 %v5294
      %v5650 = vunpack.c.h.b16 %v5294
      %v5651 = vunpack.c.l.b16 %v5295
      %v5652 = vunpack.c.h.b16 %v5295
      %v5653 = vunpack.c.l.b16 %v5296
      %v5654 = vunpack.c.h.b16 %v5296
      %v5655 = vunpack.c.l.b16 %v5297
      %v5656 = vunpack.c.h.b16 %v5297
      %v5657 = vunpack.c.l.b16 %v5298
      %v5658 = vunpack.c.h.b16 %v5298
      %v5659 = vunpack.c.l.b16 %v5299
      %v5660 = vunpack.c.h.b16 %v5299
      %v5661 = vunpack.c.l.b16 %v5300
      %v5662 = vunpack.c.h.b16 %v5300
      %v5663 = vunpack.c.l.b16 %v5301
      %v5664 = vunpack.c.h.b16 %v5301
      %v5665 = vunpack.c.l.b16 %v5302
      %v5666 = vunpack.c.h.b16 %v5302
      %v5667 = vunpack.c.l.b16 %v5303
      %v5668 = vunpack.c.h.b16 %v5303
      %v5669 = vunpack.c.l.b16 %v5304
      %v5670 = vunpack.c.h.b16 %v5304
      %v5671 = vunpack.c.l.b16 %v5305
      %v5672 = vunpack.c.h.b16 %v5305
      %v5673 = vunpack.c.l.b16 %v5306
      %v5674 = vunpack.c.h.b16 %v5306
      %v5675 = vunpack.c.l.b16 %v5307
      %v5676 = vunpack.c.h.b16 %v5307
      %v5677 = vunpack.c.l.b16 %v5308
      %v5678 = vunpack.c.h.b16 %v5308
      %v5679 = vunpack.c.l.b16 %v5309
      %v5680 = vunpack.c.h.b16 %v5309
      %v5681 = vunpack.c.l.b16 %v5310
      %v5682 = vunpack.c.h.b16 %v5310
      %v5683 = vunpack.c.l.b16 %v5311
      %v5684 = vunpack.c.h.b16 %v5311
      %v5685 = vpack.c.b16 %v5559, %v5557
      %v5686 = vpack.c.b16 %v5560, %v5558
      %v5687 = vpack.c.b16 %v5563, %v5561
      %v5688 = vpack.c.b16 %v5564, %v5562
      %v5689 = vpack.c.b16 %v5567, %v5565
      %v5690 = vpack.c.b16 %v5568, %v5566
      %v5691 = vpack.c.b16 %v5571, %v5569
      %v5692 = vpack.c.b16 %v5572, %v5570
      %v5693 = vpack.c.b16 %v5575, %v5573
      %v5694 = vpack.c.b16 %v5576, %v5574
      %v5695 = vpack.c.b16 %v5579, %v5577
      %v5696 = vpack.c.b16 %v5580, %v5578
      %v5697 = vpack.c.b16 %v5583, %v5581
      %v5698 = vpack.c.b16 %v5584, %v5582
      %v5699 = vpack.c.b16 %v5587, %v5585
      %v5700 = vpack.c.b16 %v5588, %v5586
      %v5701 = vpack.c.b16 %v5591, %v5589
      %v5702 = vpack.c.b16 %v5592, %v5590
      %v5703 = vpack.c.b16 %v5595, %v5593
      %v5704 = vpack.c.b16 %v5596, %v5594
      %v5705 = vpack.c.b16 %v5599, %v5597
      %v5706 = vpack.c.b16 %v5600, %v5598
      %v5707 = vpack.c.b16 %v5603, %v5601
      %v5708 = vpack.c.b16 %v5604, %v5602
      %v5709 = vpack.c.b16 %v5607, %v5605
      %v5710 = vpack.c.b16 %v5608, %v5606
      %v5711 = vpack.c.b16 %v5611, %v5609
      %v5712 = vpack.c.b16 %v5612, %v5610
      %v5713 = vpack.c.b16 %v5615, %v5613
      %v5714 = vpack.c.b16 %v5616, %v5614
      %v5715 = vpack.c.b16 %v5619, %v5617
      %v5716 = vpack.c.b16 %v5620, %v5618
      %v5717 = vpack.c.b16 %v5623, %v5621
      %v5718 = vpack.c.b16 %v5624, %v5622
      %v5719 = vpack.c.b16 %v5627, %v5625
      %v5720 = vpack.c.b16 %v5628, %v5626
      %v5721 = vpack.c.b16 %v5631, %v5629
      %v5722 = vpack.c.b16 %v5632, %v5630
      %v5723 = vpack.c.b16 %v5635, %v5633
      %v5724 = vpack.c.b16 %v5636, %v5634
      %v5725 = vpack.c.b16 %v5639, %v5637
      %v5726 = vpack.c.b16 %v5640, %v5638
      %v5727 = vpack.c.b16 %v5643, %v5641
      %v5728 = vpack.c.b16 %v5644, %v5642
      %v5729 = vpack.c.b16 %v5647, %v5645
      %v5730 = vpack.c.b16 %v5648, %v5646
      %v5731 = vpack.c.b16 %v5651, %v5649
      %v5732 = vpack.c.b16 %v5652, %v5650
      %v5733 = vpack.c.b16 %v5655, %v5653
      %v5734 = vpack.c.b16 %v5656, %v5654
      %v5735 = vpack.c.b16 %v5659, %v5657
      %v5736 = vpack.c.b16 %v5660, %v5658
      %v5737 = vpack.c.b16 %v5663, %v5661
      %v5738 = vpack.c.b16 %v5664, %v5662
      %v5739 = vpack.c.b16 %v5667, %v5665
      %v5740 = vpack.c.b16 %v5668, %v5666
      %v5741 = vpack.c.b16 %v5671, %v5669
      %v5742 = vpack.c.b16 %v5672, %v5670
      %v5743 = vpack.c.b16 %v5675, %v5673
      %v5744 = vpack.c.b16 %v5676, %v5674
      %v5745 = vpack.c.b16 %v5679, %v5677
      %v5746 = vpack.c.b16 %v5680, %v5678
      %v5747 = vpack.c.b16 %v5683, %v5681
      %v5748 = vpack.c.b16 %v5684, %v5682
      %5813 = vmatprep.subr.bf16.mxu0 %v5700
      %5814 = vmatpush1.bf16.msra.mxu0 %v5699
      %5815 = vmatprep.subr.bf16.mxu0 %v5698
      %5816 = vmatpush1.bf16.msra.mxu0 %v5697
      %5817 = vmatprep.subr.bf16.mxu0 %v5696
      %5818 = vmatpush1.bf16.msra.mxu0 %v5695
      %5819 = vmatprep.subr.bf16.mxu0 %v5694
      %5820 = vmatpush1.bf16.msra.mxu0 %v5693
      %5821 = vmatprep.subr.bf16.mxu0 %v5692
      %5822 = vmatpush1.bf16.msra.mxu0 %v5691
      %5823 = vmatprep.subr.bf16.mxu0 %v5690
      %5824 = vmatpush1.bf16.msra.mxu0 %v5689
      %5825 = vmatprep.subr.bf16.mxu0 %v5688
      %5826 = vmatpush1.bf16.msra.mxu0 %v5687
      %5827 = vmatprep.subr.bf16.mxu0 %v5686
      %5828 = vmatpush1.bf16.msra.mxu0 %v5685
      %5829 = vmatprep.subr.bf16.mxu0 %v5716
      %5830 = vmatpush2.bf16.msra.mxu0 %v5715
      %5831 = vmatprep.subr.bf16.mxu0 %v5714
      %5832 = vmatpush2.bf16.msra.mxu0 %v5713
      %5833 = vmatprep.subr.bf16.mxu0 %v5712
      %5834 = vmatpush2.bf16.msra.mxu0 %v5711
      %5835 = vmatprep.subr.bf16.mxu0 %v5710
      %5836 = vmatpush2.bf16.msra.mxu0 %v5709
      %5837 = vmatprep.subr.bf16.mxu0 %v5708
      %5838 = vmatpush2.bf16.msra.mxu0 %v5707
      %5839 = vmatprep.subr.bf16.mxu0 %v5706
      %5840 = vmatpush2.bf16.msra.mxu0 %v5705
      %5841 = vmatprep.subr.bf16.mxu0 %v5704
      %5842 = vmatpush2.bf16.msra.mxu0 %v5703
      %5843 = vmatprep.subr.bf16.mxu0 %v5702
      %5844 = vmatpush2.bf16.msra.mxu0 %v5701
      %5845 = vmatprep.mubr.bf16.mxu0 %v5352
      %5846 = vmatmul.mubr.bf16.gmra.mxu0 %v5335
      %v5847 = vpop.f32.mrf.mxu0
      %v5848 = vadd.f32 %v5317, %v5847
      %v5849 = vpop.f32.mrf.mxu0
      %v5850 = vadd.f32 %v5321, %v5849
      %v5851 = vpop.f32.mrf.mxu0
      %v5852 = vpop.f32.mrf.mxu0
      %5853 = vmatprep.mubr.bf16.mxu0 %v5396
      %5854 = vmatmul.mubr.bf16.gmra.mxu0 %v5387
      %v5855 = vpop.f32.mrf.mxu0
      %v5856 = vadd.f32 %v5317, %v5855
      %v5857 = vpop.f32.mrf.mxu0
      %v5858 = vadd.f32 %v5321, %v5857
      %v5859 = vpop.f32.mrf.mxu0
      %v5860 = vpop.f32.mrf.mxu0
      %5861 = vmatprep.mubr.bf16.mxu0 %v5423
      %5862 = vmatmul.mubr.bf16.gmra.mxu0 %v5229
      %v5863 = vpop.f32.mrf.mxu0
      %v5864 = vadd.f32 %v5317, %v5863
      %v5865 = vpop.f32.mrf.mxu0
      %v5866 = vadd.f32 %v5321, %v5865
      %v5867 = vpop.f32.mrf.mxu0
      %v5868 = vpop.f32.mrf.mxu0
      %5869 = vmatprep.mubr.bf16.mxu0 %v5454
      %5870 = vmatmul.mubr.bf16.gmra.mxu0 %v5445
      %v5871 = vpop.f32.mrf.mxu0
      %v5872 = vadd.f32 %v5317, %v5871
      %v5873 = vpop.f32.mrf.mxu0
      %v5874 = vadd.f32 %v5321, %v5873
      %v5875 = vpop.f32.mrf.mxu0
      %v5876 = vadd.f32 %v5317, %v5875
      %v5877 = vpop.f32.mrf.mxu0
      %v5878 = vadd.f32 %v5321, %v5877
      %5879 = vmatprep.mubr.bf16.mxu0 %v5453
      %5880 = vmatmul.mubr.bf16.gmra.mxu0 %v5444
      %v5881 = vpop.f32.mrf.mxu0
      %v5882 = vpop.f32.mrf.mxu0
      %v5883 = vpop.f32.mrf.mxu0
      %v5884 = vpop.f32.mrf.mxu0
      %5885 = vdwg.mxu0
      %5886 = vmatprep.subr.bf16.mxu0 %v5732
      %5887 = vmatpush1.bf16.msra.mxu0 %v5731
      %5888 = vmatprep.subr.bf16.mxu0 %v5730
      %5889 = vmatpush1.bf16.msra.mxu0 %v5729
      %5890 = vmatprep.subr.bf16.mxu0 %v5728
      %5891 = vmatpush1.bf16.msra.mxu0 %v5727
      %5892 = vmatprep.subr.bf16.mxu0 %v5726
      %5893 = vmatpush1.bf16.msra.mxu0 %v5725
      %5894 = vmatprep.subr.bf16.mxu0 %v5724
      %5895 = vmatpush1.bf16.msra.mxu0 %v5723
      %5896 = vmatprep.subr.bf16.mxu0 %v5722
      %5897 = vmatpush1.bf16.msra.mxu0 %v5721
      %5898 = vmatprep.subr.bf16.mxu0 %v5720
      %5899 = vmatpush1.bf16.msra.mxu0 %v5719
      %5900 = vmatprep.subr.bf16.mxu0 %v5718
      %5901 = vmatpush1.bf16.msra.mxu0 %v5717
      %5902 = vmatprep.subr.bf16.mxu0 %v5748
      %5903 = vmatpush2.bf16.msra.mxu0 %v5747
      %5904 = vmatprep.subr.bf16.mxu0 %v5746
      %5905 = vmatpush2.bf16.msra.mxu0 %v5745
      %5906 = vmatprep.subr.bf16.mxu0 %v5744
      %5907 = vmatpush2.bf16.msra.mxu0 %v5743
      %5908 = vmatprep.subr.bf16.mxu0 %v5742
      %5909 = vmatpush2.bf16.msra.mxu0 %v5741
      %5910 = vmatprep.subr.bf16.mxu0 %v5740
      %5911 = vmatpush2.bf16.msra.mxu0 %v5739
      %5912 = vmatprep.subr.bf16.mxu0 %v5738
      %5913 = vmatpush2.bf16.msra.mxu0 %v5737
      %5914 = vmatprep.subr.bf16.mxu0 %v5736
      %5915 = vmatpush2.bf16.msra.mxu0 %v5735
      %5916 = vmatprep.subr.bf16.mxu0 %v5734
      %5917 = vmatpush2.bf16.msra.mxu0 %v5733
      %5918 = vmatprep.mubr.bf16.mxu0 %v5386
      %5919 = vmatmul.mubr.bf16.gmra.mxu0 %v5369
      %v5920 = vpop.f32.mrf.mxu0
      %v5921 = vadd.f32 %v5848, %v5920
      %v5922 = vpop.f32.mrf.mxu0
      %v5923 = vadd.f32 %v5850, %v5922
      %v5924 = vpop.f32.mrf.mxu0
      %v5925 = vpop.f32.mrf.mxu0
      %5926 = vmatprep.mubr.bf16.mxu0 %v5414
      %5927 = vmatmul.mubr.bf16.gmra.mxu0 %v5405
      %v5928 = vpop.f32.mrf.mxu0
      %v5929 = vadd.f32 %v5856, %v5928
      %v5930 = vpop.f32.mrf.mxu0
      %v5931 = vadd.f32 %v5858, %v5930
      %v5932 = vpop.f32.mrf.mxu0
      %v5933 = vpop.f32.mrf.mxu0
      %5934 = vmatprep.mubr.bf16.mxu0 %v5441
      %5935 = vmatmul.mubr.bf16.gmra.mxu0 %v5432
      %v5936 = vpop.f32.mrf.mxu0
      %v5937 = vadd.f32 %v5864, %v5936
      %v5938 = vpop.f32.mrf.mxu0
      %v5939 = vadd.f32 %v5866, %v5938
      %v5940 = vpop.f32.mrf.mxu0
      %v5941 = vpop.f32.mrf.mxu0
      %5942 = vmatprep.mubr.bf16.mxu0 %v5472
      %5943 = vmatmul.mubr.bf16.gmra.mxu0 %v5463
      %v5944 = vpop.f32.mrf.mxu0
      %v5945 = vadd.f32 %v5872, %v5944
      %v5946 = vpop.f32.mrf.mxu0
      %v5947 = vadd.f32 %v5874, %v5946
      %v5948 = vpop.f32.mrf.mxu0
      %v5949 = vadd.f32 %v5876, %v5948
      %v5950 = vpop.f32.mrf.mxu0
      %v5951 = vadd.f32 %v5878, %v5950
      %5952 = vmatprep.mubr.bf16.mxu0 %v5471
      %5953 = vmatmul.mubr.bf16.gmra.mxu0 %v5462
      %v5954 = vpop.f32.mrf.mxu0
      %v5955 = vpop.f32.mrf.mxu0
      %v5956 = vpop.f32.mrf.mxu0
      %v5957 = vpop.f32.mrf.mxu0
      %5958 = vdwg.mxu0
      %v5959 = vmax.f32 %v5921, 0.0
      %v5960 = vmax.f32 %v5923, 0.0
      %v5961 = vmax.f32 %v5929, 0.0
      %v5962 = vmax.f32 %v5931, 0.0
      %v5963 = vmax.f32 %v5937, 0.0
      %v5964 = vmax.f32 %v5939, 0.0
      %v5965 = vmax.f32 %v5945, 0.0
      %v5966 = vmax.f32 %v5947, 0.0
      %v5967 = vmax.f32 %v5949, 0.0
      %v5968 = vmax.f32 %v5951, 0.0
      %5969 = vst [vmem:[%s4124] ss:$2 sm:$0xf] %v5959
      %5971 = vrot.lane.b32.xlu0 %v5959, 64
      %v5972 = vpop.permute.xlu0 %5971
      %5974 = vst [vmem:[%s4142] ss:$2 sm:$0xf] %v5972
      %5975 = vst [vmem:[%s4162] ss:$2 sm:$0xf] %v5960
      %5977 = vrot.lane.b32.xlu0 %v5960, 64
      %v5978 = vpop.permute.xlu0 %5977
      %5980 = vst [vmem:[%s4180] ss:$2 sm:$0xf] %v5978
      %v5982 = vrot.slane %v5961, 2
      %s5984 = scalar_lea.vmem [#allocation3], 55
      %5985 = vst [vmem:[%s5984] ss:$2 sm:$0xf] %v5982
      %5986 = vrot.lane.b32.xlu0 %v5982, 64
      %v5987 = vpop.permute.xlu0 %5986
      %s5989 = scalar_lea.vmem [#allocation3], 56
      %5990 = vst [vmem:[%s5989] ss:$2 sm:$0xf] %v5987
      %v5992 = vrot.slane %v5962, 2
      %s5994 = scalar_lea.vmem [#allocation3], 73
      %5995 = vst [vmem:[%s5994] ss:$2 sm:$0xf] %v5992
      %5996 = vrot.lane.b32.xlu0 %v5992, 64
      %v5997 = vpop.permute.xlu0 %5996
      %s5999 = scalar_lea.vmem [#allocation3], 74
      %6000 = vst [vmem:[%s5999] ss:$2 sm:$0xf] %v5997
      %v6002 = vrot.slane %v5963, 4
      %s6004 = scalar_lea.vmem [#allocation3], 91
      %6005 = vst [vmem:[%s6004] ss:$2 sm:$0xf] %v6002
      %6006 = vrot.lane.b32.xlu0 %v6002, 64
      %v6007 = vpop.permute.xlu0 %6006
      %s6009 = scalar_lea.vmem [#allocation3], 92
      %6010 = vst [vmem:[%s6009] ss:$2 sm:$0xf] %v6007
      %v6012 = vrot.slane %v5964, 4
      %s6014 = scalar_lea.vmem [#allocation3], 109
      %6015 = vst [vmem:[%s6014] ss:$2 sm:$0xf] %v6012
      %6016 = vrot.lane.b32.xlu0 %v6012, 64
      %v6017 = vpop.permute.xlu0 %6016
      %s6019 = scalar_lea.vmem [#allocation3], 110
      %6020 = vst [vmem:[%s6019] ss:$2 sm:$0xf] %v6017
      %vm6023 = vcmask 1041408
      %v6024 = vrot.slane %v5965, 6
      %v6025 = vrot.slane %v5967, 6
      %v6026 = vsel %vm6023, %v6024, %v6025
      %s6028 = scalar_lea.vmem [#allocation3], 127
      %6029 = vst [vmem:[%s6028] ss:$2 sm:$0xf] %v6026
      %6030 = vrot.lane.b32.xlu0 %v6026, 64
      %v6031 = vpop.permute.xlu0 %6030
      %6033 = vst [vmem:[%s4084] ss:$2 sm:$0xf] %v6031
      %v6036 = vrot.slane %v5966, 6
      %v6037 = vrot.slane %v5968, 6
      %v6038 = vsel %vm6023, %v6036, %v6037
      %s6040 = scalar_lea.vmem [#allocation3], 145
      %6041 = vst [vmem:[%s6040] ss:$2 sm:$0xf] %v6038
      %6042 = vrot.lane.b32.xlu0 %v6038, 64
      %v6043 = vpop.permute.xlu0 %6042
      %6045 = vst [vmem:[%s4122] ss:$2 sm:$0xf] %v6043
      %v6046 = vld [vmem:[#allocation3 + $0x13] sm:$0xff]
      %v6047 = vld [vmem:[#allocation3 + $0x1b] sm:$0xff]
      %v6048 = vld [vmem:[#allocation3 + $0x23] sm:$0xff]
      %v6049 = vld [vmem:[#allocation3 + $0x2b] sm:$0xff]
      %v6050 = vld [vmem:[#allocation3 + $0x33] sm:$0xff]
      %v6051 = vld [vmem:[#allocation3 + $0x3b] sm:$0xff]
      %v6052 = vld [vmem:[#allocation3 + $0x43] sm:$0xff]
      %v6053 = vld [vmem:[#allocation3 + $0x4b] sm:$0xff]
      %v6054 = vld [vmem:[#allocation3 + $0x53] sm:$0xff]
      %v6055 = vld [vmem:[#allocation3 + $0x5b] sm:$0xff]
      %v6056 = vld [vmem:[#allocation3 + $0x63] sm:$0xff]
      %v6057 = vld [vmem:[#allocation3 + $0x6b] sm:$0xff]
      %v6058 = vld [vmem:[#allocation3 + $0x73] sm:$0xff]
      %v6059 = vld [vmem:[#allocation3 + $0x7b] sm:$0xff]
      %v6060 = vld [vmem:[#allocation3 + $0x83] sm:$0xff]
      %v6061 = vld [vmem:[#allocation3 + $0x8b] sm:$0xff]
      %v6062 = vld [vmem:[#allocation3 + $0x93] sm:$0xff]
      %v6063 = vld [vmem:[#allocation3 + $0x9b] sm:$0xff]
      %v6064 = vld [vmem:[#allocation3 + $0x14] sm:$0xff]
      %v6065 = vld [vmem:[#allocation3 + $0x1c] sm:$0xff]
      %v6066 = vld [vmem:[#allocation3 + $0x24] sm:$0xff]
      %v6067 = vld [vmem:[#allocation3 + $0x2c] sm:$0xff]
      %v6068 = vld [vmem:[#allocation3 + $0x34] sm:$0xff]
      %v6069 = vld [vmem:[#allocation3 + $0x3c] sm:$0xff]
      %v6070 = vld [vmem:[#allocation3 + $0x44] sm:$0xff]
      %v6071 = vld [vmem:[#allocation3 + $0x4c] sm:$0xff]
      %v6072 = vld [vmem:[#allocation3 + $0x54] sm:$0xff]
      %v6073 = vld [vmem:[#allocation3 + $0x5c] sm:$0xff]
      %v6074 = vld [vmem:[#allocation3 + $0x64] sm:$0xff]
      %v6075 = vld [vmem:[#allocation3 + $0x6c] sm:$0xff]
      %v6076 = vld [vmem:[#allocation3 + $0x74] sm:$0xff]
      %v6077 = vld [vmem:[#allocation3 + $0x7c] sm:$0xff]
      %v6078 = vld [vmem:[#allocation3 + $0x84] sm:$0xff]
      %v6079 = vld [vmem:[#allocation3 + $0x8c] sm:$0xff]
      %v6080 = vld [vmem:[#allocation3 + $0x94] sm:$0xff]
      %v6081 = vld [vmem:[#allocation3 + $0x9c] sm:$0xff]
      %v6082 = vld [vmem:[#allocation3 + $0x25] sm:$0xff]
      %v6083 = vld [vmem:[#allocation3 + $0x2d] sm:$0xff]
      %v6084 = vld [vmem:[#allocation3 + $0x35] sm:$0xff]
      %v6085 = vld [vmem:[#allocation3 + $0x3d] sm:$0xff]
      %v6086 = vld [vmem:[#allocation3 + $0x45] sm:$0xff]
      %v6087 = vld [vmem:[#allocation3 + $0x4d] sm:$0xff]
      %v6088 = vld [vmem:[#allocation3 + $0x55] sm:$0xff]
      %v6089 = vld [vmem:[#allocation3 + $0x5d] sm:$0xff]
      %v6090 = vld [vmem:[#allocation3 + $0x65] sm:$0xff]
      %v6091 = vld [vmem:[#allocation3 + $0x6d] sm:$0xff]
      %v6092 = vld [vmem:[#allocation3 + $0x75] sm:$0xff]
      %v6093 = vld [vmem:[#allocation3 + $0x7d] sm:$0xff]
      %v6094 = vld [vmem:[#allocation3 + $0x85] sm:$0xff]
      %v6095 = vld [vmem:[#allocation3 + $0x8d] sm:$0xff]
      %v6096 = vld [vmem:[#allocation3 + $0x95] sm:$0xff]
      %v6097 = vld [vmem:[#allocation3 + $0x9d] sm:$0xff]
      %v6098 = vld [vmem:[#allocation3 + $0xa5] sm:$0xff]
      %v6099 = vld [vmem:[#allocation3 + $0xad] sm:$0xff]
      %v6100 = vld [vmem:[#allocation3 + $0x26] sm:$0xff]
      %v6101 = vld [vmem:[#allocation3 + $0x2e] sm:$0xff]
      %v6102 = vld [vmem:[#allocation3 + $0x36] sm:$0xff]
      %v6103 = vld [vmem:[#allocation3 + $0x3e] sm:$0xff]
      %v6104 = vld [vmem:[#allocation3 + $0x46] sm:$0xff]
      %v6105 = vld [vmem:[#allocation3 + $0x4e] sm:$0xff]
      %v6106 = vld [vmem:[#allocation3 + $0x56] sm:$0xff]
      %v6107 = vld [vmem:[#allocation3 + $0x5e] sm:$0xff]
      %v6108 = vld [vmem:[#allocation3 + $0x66] sm:$0xff]
      %v6109 = vld [vmem:[#allocation3 + $0x6e] sm:$0xff]
      %v6110 = vld [vmem:[#allocation3 + $0x76] sm:$0xff]
      %v6111 = vld [vmem:[#allocation3 + $0x7e] sm:$0xff]
      %v6112 = vld [vmem:[#allocation3 + $0x86] sm:$0xff]
      %v6113 = vld [vmem:[#allocation3 + $0x8e] sm:$0xff]
      %v6114 = vld [vmem:[#allocation3 + $0x96] sm:$0xff]
      %v6115 = vld [vmem:[#allocation3 + $0x9e] sm:$0xff]
      %v6116 = vld [vmem:[#allocation3 + $0xa6] sm:$0xff]
      %v6117 = vld [vmem:[#allocation3 + $0xae] sm:$0xff]
      %6136 = vrot.lane.b32.xlu0 %v6064, 64
      %v6137 = vpop.permute.xlu0 %6136
      %6138 = vrot.lane.b32.xlu0 %v6065, 64
      %v6139 = vpop.permute.xlu0 %6138
      %6140 = vrot.lane.b32.xlu0 %v6066, 64
      %v6141 = vpop.permute.xlu0 %6140
      %6142 = vrot.lane.b32.xlu0 %v6067, 64
      %v6143 = vpop.permute.xlu0 %6142
      %6144 = vrot.lane.b32.xlu0 %v6068, 64
      %v6145 = vpop.permute.xlu0 %6144
      %6146 = vrot.lane.b32.xlu0 %v6069, 64
      %v6147 = vpop.permute.xlu0 %6146
      %6148 = vrot.lane.b32.xlu0 %v6070, 64
      %v6149 = vpop.permute.xlu0 %6148
      %6150 = vrot.lane.b32.xlu0 %v6071, 64
      %v6151 = vpop.permute.xlu0 %6150
      %6152 = vrot.lane.b32.xlu0 %v6072, 64
      %v6153 = vpop.permute.xlu0 %6152
      %6154 = vrot.lane.b32.xlu0 %v6073, 64
      %v6155 = vpop.permute.xlu0 %6154
      %6156 = vrot.lane.b32.xlu0 %v6074, 64
      %v6157 = vpop.permute.xlu0 %6156
      %6158 = vrot.lane.b32.xlu0 %v6075, 64
      %v6159 = vpop.permute.xlu0 %6158
      %6160 = vrot.lane.b32.xlu0 %v6076, 64
      %v6161 = vpop.permute.xlu0 %6160
      %6162 = vrot.lane.b32.xlu0 %v6077, 64
      %v6163 = vpop.permute.xlu0 %6162
      %6164 = vrot.lane.b32.xlu0 %v6078, 64
      %v6165 = vpop.permute.xlu0 %6164
      %6166 = vrot.lane.b32.xlu0 %v6079, 64
      %v6167 = vpop.permute.xlu0 %6166
      %6168 = vrot.lane.b32.xlu0 %v6080, 64
      %v6169 = vpop.permute.xlu0 %6168
      %6170 = vrot.lane.b32.xlu0 %v6081, 64
      %v6171 = vpop.permute.xlu0 %6170
      %6208 = vrot.lane.b32.xlu0 %v6100, 64
      %v6209 = vpop.permute.xlu0 %6208
      %6210 = vrot.lane.b32.xlu0 %v6101, 64
      %v6211 = vpop.permute.xlu0 %6210
      %6212 = vrot.lane.b32.xlu0 %v6102, 64
      %v6213 = vpop.permute.xlu0 %6212
      %6214 = vrot.lane.b32.xlu0 %v6103, 64
      %v6215 = vpop.permute.xlu0 %6214
      %6216 = vrot.lane.b32.xlu0 %v6104, 64
      %v6217 = vpop.permute.xlu0 %6216
      %6218 = vrot.lane.b32.xlu0 %v6105, 64
      %v6219 = vpop.permute.xlu0 %6218
      %6220 = vrot.lane.b32.xlu0 %v6106, 64
      %v6221 = vpop.permute.xlu0 %6220
      %6222 = vrot.lane.b32.xlu0 %v6107, 64
      %v6223 = vpop.permute.xlu0 %6222
      %6224 = vrot.lane.b32.xlu0 %v6108, 64
      %v6225 = vpop.permute.xlu0 %6224
      %6226 = vrot.lane.b32.xlu0 %v6109, 64
      %v6227 = vpop.permute.xlu0 %6226
      %6228 = vrot.lane.b32.xlu0 %v6110, 64
      %v6229 = vpop.permute.xlu0 %6228
      %6230 = vrot.lane.b32.xlu0 %v6111, 64
      %v6231 = vpop.permute.xlu0 %6230
      %6232 = vrot.lane.b32.xlu0 %v6112, 64
      %v6233 = vpop.permute.xlu0 %6232
      %6234 = vrot.lane.b32.xlu0 %v6113, 64
      %v6235 = vpop.permute.xlu0 %6234
      %6236 = vrot.lane.b32.xlu0 %v6114, 64
      %v6237 = vpop.permute.xlu0 %6236
      %6238 = vrot.lane.b32.xlu0 %v6115, 64
      %v6239 = vpop.permute.xlu0 %6238
      %6240 = vrot.lane.b32.xlu0 %v6116, 64
      %v6241 = vpop.permute.xlu0 %6240
      %6242 = vrot.lane.b32.xlu0 %v6117, 64
      %v6243 = vpop.permute.xlu0 %6242
      %v6262 = vsel %vm453, %v6046, %v6137
      %v6263 = vsel %vm453, %v6047, %v6139
      %v6264 = vsel %vm453, %v6048, %v6141
      %v6265 = vsel %vm453, %v6049, %v6143
      %v6266 = vsel %vm453, %v6050, %v6145
      %v6267 = vsel %vm453, %v6051, %v6147
      %v6268 = vsel %vm453, %v6052, %v6149
      %v6269 = vsel %vm453, %v6053, %v6151
      %v6270 = vsel %vm453, %v6054, %v6153
      %v6271 = vsel %vm453, %v6055, %v6155
      %v6272 = vsel %vm453, %v6056, %v6157
      %v6273 = vsel %vm453, %v6057, %v6159
      %v6274 = vsel %vm453, %v6058, %v6161
      %v6275 = vsel %vm453, %v6059, %v6163
      %v6276 = vsel %vm453, %v6060, %v6165
      %v6277 = vsel %vm453, %v6061, %v6167
      %v6278 = vsel %vm453, %v6062, %v6169
      %v6279 = vsel %vm453, %v6063, %v6171
      %v6280 = vsel %vm453, %v6082, %v6209
      %v6281 = vsel %vm453, %v6083, %v6211
      %v6282 = vsel %vm453, %v6084, %v6213
      %v6283 = vsel %vm453, %v6085, %v6215
      %v6284 = vsel %vm453, %v6086, %v6217
      %v6285 = vsel %vm453, %v6087, %v6219
      %v6286 = vsel %vm453, %v6088, %v6221
      %v6287 = vsel %vm453, %v6089, %v6223
      %v6288 = vsel %vm453, %v6090, %v6225
      %v6289 = vsel %vm453, %v6091, %v6227
      %v6290 = vsel %vm453, %v6092, %v6229
      %v6291 = vsel %vm453, %v6093, %v6231
      %v6292 = vsel %vm453, %v6094, %v6233
      %v6293 = vsel %vm453, %v6095, %v6235
      %v6294 = vsel %vm453, %v6096, %v6237
      %v6295 = vsel %vm453, %v6097, %v6239
      %v6296 = vsel %vm453, %v6098, %v6241
      %v6297 = vsel %vm453, %v6099, %v6243
      %v6298 = vpack.c.bf16 %v6263, %v6262
      %v6299 = vpack.c.bf16 %v6281, %v6280
      %v6300 = vpack.c.bf16 %v6265, %v6264
      %v6301 = vpack.c.bf16 %v6283, %v6282
      %v6302 = vpack.c.bf16 %v6267, %v6266
      %v6303 = vpack.c.bf16 %v6285, %v6284
      %v6304 = vpack.c.bf16 %v6269, %v6268
      %v6305 = vpack.c.bf16 %v6287, %v6286
      %v6306 = vpack.c.bf16 %v6271, %v6270
      %v6307 = vpack.c.bf16 %v6289, %v6288
      %v6308 = vpack.c.bf16 %v6273, %v6272
      %v6309 = vpack.c.bf16 %v6291, %v6290
      %v6310 = vpack.c.bf16 %v6275, %v6274
      %v6311 = vpack.c.bf16 %v6293, %v6292
      %v6312 = vpack.c.bf16 %v6277, %v6276
      %v6313 = vpack.c.bf16 %v6295, %v6294
      %v6314 = vpack.c.bf16 %v6279, %v6278
      %v6315 = vpack.c.bf16 %v6297, %v6296
      %v6316 = vld [vmem:[%s9] sm:$0xf]
      %v6317 = vld [vmem:[%s9 + $0x4] sm:$0xf]
      %v6318 = vld [vmem:[%s9 + $0x8] sm:$0xf]
      %v6319 = vld [vmem:[%s9 + $0xc] sm:$0xf]
      %v6320 = vld [vmem:[%s9 + $0x10] sm:$0xf]
      %v6321 = vld [vmem:[%s9 + $0x14] sm:$0xf]
      %v6322 = vld [vmem:[%s9 + $0x18] sm:$0xf]
      %v6323 = vld [vmem:[%s9 + $0x1c] sm:$0xf]
      %v6324 = vld [vmem:[%s9 + $0x20] sm:$0xf]
      %v6325 = vld [vmem:[%s9 + $0x24] sm:$0xf]
      %v6326 = vld [vmem:[%s9 + $0x28] sm:$0xf]
      %v6327 = vld [vmem:[%s9 + $0x2c] sm:$0xf]
      %v6328 = vld [vmem:[%s9 + $0x30] sm:$0xf]
      %v6329 = vld [vmem:[%s9 + $0x34] sm:$0xf]
      %v6330 = vld [vmem:[%s9 + $0x38] sm:$0xf]
      %v6331 = vld [vmem:[%s9 + $0x3c] sm:$0xf]
      %v6332 = vld [vmem:[%s9 + $0x40] sm:$0xf]
      %v6333 = vld [vmem:[%s9 + $0x44] sm:$0xf]
      %v6334 = vld [vmem:[%s9 + $0x48] sm:$0xf]
      %v6335 = vld [vmem:[%s9 + $0x4c] sm:$0xf]
      %v6336 = vld [vmem:[%s9 + $0x50] sm:$0xf]
      %v6337 = vld [vmem:[%s9 + $0x54] sm:$0xf]
      %v6338 = vld [vmem:[%s9 + $0x58] sm:$0xf]
      %v6339 = vld [vmem:[%s9 + $0x5c] sm:$0xf]
      %v6340 = vld [vmem:[%s9 + $0x60] sm:$0xf]
      %v6341 = vld [vmem:[%s9 + $0x64] sm:$0xf]
      %v6342 = vld [vmem:[%s9 + $0x68] sm:$0xf]
      %v6343 = vld [vmem:[%s9 + $0x6c] sm:$0xf]
      %v6344 = vld [vmem:[%s9 + $0x70] sm:$0xf]
      %v6345 = vld [vmem:[%s9 + $0x74] sm:$0xf]
      %v6346 = vld [vmem:[%s9 + $0x78] sm:$0xf]
      %v6347 = vld [vmem:[%s9 + $0x7c] sm:$0xf]
      %v6348 = vld [vmem:[%s10] sm:$0x1]
      %v6350 = vlaneseq
      %v6351 = vshrl.u32 %v6350, 7
      %v6352 = vsub.s32 0, %v6351
      %v6353 = vrot.slane %v6348, %v6352
      %v6387 = vunpack.c.l.b16 %v6316
      %v6388 = vunpack.c.l.b16 %v6317
      %v6389 = vunpack.c.l.b16 %v6318
      %v6390 = vunpack.c.l.b16 %v6319
      %v6391 = vunpack.c.l.b16 %v6320
      %v6392 = vunpack.c.l.b16 %v6321
      %v6393 = vunpack.c.l.b16 %v6322
      %v6394 = vunpack.c.l.b16 %v6323
      %v6395 = vunpack.c.l.b16 %v6324
      %v6396 = vunpack.c.l.b16 %v6325
      %v6397 = vunpack.c.l.b16 %v6326
      %v6398 = vunpack.c.l.b16 %v6327
      %v6399 = vunpack.c.l.b16 %v6328
      %v6400 = vunpack.c.l.b16 %v6329
      %v6401 = vunpack.c.l.b16 %v6330
      %v6402 = vunpack.c.l.b16 %v6331
      %v6403 = vunpack.c.l.b16 %v6332
      %v6404 = vunpack.c.l.b16 %v6333
      %v6405 = vunpack.c.l.b16 %v6334
      %v6406 = vunpack.c.l.b16 %v6335
      %v6407 = vunpack.c.l.b16 %v6336
      %v6408 = vunpack.c.l.b16 %v6337
      %v6409 = vunpack.c.l.b16 %v6338
      %v6410 = vunpack.c.l.b16 %v6339
      %v6411 = vunpack.c.l.b16 %v6340
      %v6412 = vunpack.c.l.b16 %v6341
      %v6413 = vunpack.c.l.b16 %v6342
      %v6414 = vunpack.c.l.b16 %v6343
      %v6415 = vunpack.c.l.b16 %v6344
      %v6416 = vunpack.c.l.b16 %v6345
      %v6417 = vunpack.c.l.b16 %v6346
      %v6418 = vunpack.c.l.b16 %v6347
      %v6419 = vpack.c.b16 %v6388, %v6387
      %v6420 = vpack.c.b16 %v6390, %v6389
      %v6421 = vpack.c.b16 %v6392, %v6391
      %v6422 = vpack.c.b16 %v6394, %v6393
      %v6423 = vpack.c.b16 %v6396, %v6395
      %v6424 = vpack.c.b16 %v6398, %v6397
      %v6425 = vpack.c.b16 %v6400, %v6399
      %v6426 = vpack.c.b16 %v6402, %v6401
      %v6427 = vpack.c.b16 %v6404, %v6403
      %v6428 = vpack.c.b16 %v6406, %v6405
      %v6429 = vpack.c.b16 %v6408, %v6407
      %v6430 = vpack.c.b16 %v6410, %v6409
      %v6431 = vpack.c.b16 %v6412, %v6411
      %v6432 = vpack.c.b16 %v6414, %v6413
      %v6433 = vpack.c.b16 %v6416, %v6415
      %v6434 = vpack.c.b16 %v6418, %v6417
      %6451 = vmatprep.subr.bf16.mxu0 0
      %6452 = vmatpush1.bf16.msra.mxu0 %v6426
      %6453 = vmatprep.subr.bf16.mxu0 0
      %6454 = vmatpush1.bf16.msra.mxu0 %v6425
      %6455 = vmatprep.subr.bf16.mxu0 0
      %6456 = vmatpush1.bf16.msra.mxu0 %v6424
      %6457 = vmatprep.subr.bf16.mxu0 0
      %6458 = vmatpush1.bf16.msra.mxu0 %v6423
      %6459 = vmatprep.subr.bf16.mxu0 0
      %6460 = vmatpush1.bf16.msra.mxu0 %v6422
      %6461 = vmatprep.subr.bf16.mxu0 0
      %6462 = vmatpush1.bf16.msra.mxu0 %v6421
      %6463 = vmatprep.subr.bf16.mxu0 0
      %6464 = vmatpush1.bf16.msra.mxu0 %v6420
      %6465 = vmatprep.subr.bf16.mxu0 0
      %6466 = vmatpush1.bf16.msra.mxu0 %v6419
      %6467 = vmatprep.subr.bf16.mxu0 0
      %6468 = vmatpush2.bf16.msra.mxu0 %v6434
      %6469 = vmatprep.subr.bf16.mxu0 0
      %6470 = vmatpush2.bf16.msra.mxu0 %v6433
      %6471 = vmatprep.subr.bf16.mxu0 0
      %6472 = vmatpush2.bf16.msra.mxu0 %v6432
      %6473 = vmatprep.subr.bf16.mxu0 0
      %6474 = vmatpush2.bf16.msra.mxu0 %v6431
      %6475 = vmatprep.subr.bf16.mxu0 0
      %6476 = vmatpush2.bf16.msra.mxu0 %v6430
      %6477 = vmatprep.subr.bf16.mxu0 0
      %6478 = vmatpush2.bf16.msra.mxu0 %v6429
      %6479 = vmatprep.subr.bf16.mxu0 0
      %6480 = vmatpush2.bf16.msra.mxu0 %v6428
      %6481 = vmatprep.subr.bf16.mxu0 0
      %6482 = vmatpush2.bf16.msra.mxu0 %v6427
      %6483 = vmatprep.mubr.bf16.mxu0 %v6299
      %6484 = vmatmul.mubr.bf16.gmra.mxu0 %v6298
      %v6485 = vpop.f32.mrf.mxu0
      %v6486 = vadd.f32 %v6353, %v6485
      %v6487 = vpop.f32.mrf.mxu0
      %v6488 = vpop.f32.mrf.mxu0
      %v6489 = vpop.f32.mrf.mxu0
      %6490 = vmatprep.mubr.bf16.mxu0 %v6301
      %6491 = vmatmul.mubr.bf16.gmra.mxu0 %v6300
      %v6492 = vpop.f32.mrf.mxu0
      %v6493 = vadd.f32 %v6353, %v6492
      %v6494 = vpop.f32.mrf.mxu0
      %v6495 = vpop.f32.mrf.mxu0
      %v6496 = vadd.f32 %v6353, %v6495
      %v6497 = vpop.f32.mrf.mxu0
      %6498 = vmatprep.mubr.bf16.mxu0 %v6303
      %6499 = vmatmul.mubr.bf16.gmra.mxu0 %v6302
      %v6500 = vpop.f32.mrf.mxu0
      %v6501 = vadd.f32 %v6353, %v6500
      %v6502 = vpop.f32.mrf.mxu0
      %v6503 = vpop.f32.mrf.mxu0
      %v6504 = vadd.f32 %v6353, %v6503
      %v6505 = vpop.f32.mrf.mxu0
      %6506 = vmatprep.mubr.bf16.mxu0 %v6305
      %6507 = vmatmul.mubr.bf16.gmra.mxu0 %v6304
      %v6508 = vpop.f32.mrf.mxu0
      %v6509 = vadd.f32 %v6353, %v6508
      %v6510 = vpop.f32.mrf.mxu0
      %v6511 = vpop.f32.mrf.mxu0
      %v6512 = vadd.f32 %v6353, %v6511
      %v6513 = vpop.f32.mrf.mxu0
      %6514 = vmatprep.mubr.bf16.mxu0 %v6307
      %6515 = vmatmul.mubr.bf16.gmra.mxu0 %v6306
      %v6516 = vpop.f32.mrf.mxu0
      %v6517 = vpop.f32.mrf.mxu0
      %v6518 = vpop.f32.mrf.mxu0
      %v6519 = vadd.f32 %v6353, %v6518
      %v6520 = vpop.f32.mrf.mxu0
      %6521 = vmatprep.mubr.bf16.mxu0 %v6309
      %6522 = vmatmul.mubr.bf16.gmra.mxu0 %v6308
      %v6523 = vpop.f32.mrf.mxu0
      %v6524 = vpop.f32.mrf.mxu0
      %v6525 = vpop.f32.mrf.mxu0
      %v6526 = vadd.f32 %v6353, %v6525
      %v6527 = vpop.f32.mrf.mxu0
      %6528 = vmatprep.mubr.bf16.mxu0 %v6311
      %6529 = vmatmul.mubr.bf16.gmra.mxu0 %v6310
      %v6530 = vpop.f32.mrf.mxu0
      %v6531 = vadd.f32 %v6353, %v6530
      %v6532 = vpop.f32.mrf.mxu0
      %v6533 = vpop.f32.mrf.mxu0
      %v6534 = vadd.f32 %v6353, %v6533
      %v6535 = vpop.f32.mrf.mxu0
      %6536 = vmatprep.mubr.bf16.mxu0 %v6313
      %6537 = vmatmul.mubr.bf16.gmra.mxu0 %v6312
      %v6538 = vpop.f32.mrf.mxu0
      %v6539 = vadd.f32 %v6353, %v6538
      %v6540 = vpop.f32.mrf.mxu0
      %v6541 = vpop.f32.mrf.mxu0
      %v6542 = vadd.f32 %v6353, %v6541
      %v6543 = vpop.f32.mrf.mxu0
      %6544 = vmatprep.mubr.bf16.mxu0 %v6315
      %6545 = vmatmul.mubr.bf16.gmra.mxu0 %v6314
      %v6546 = vpop.f32.mrf.mxu0
      %v6547 = vadd.f32 %v6353, %v6546
      %v6548 = vpop.f32.mrf.mxu0
      %v6549 = vpop.f32.mrf.mxu0
      %v6550 = vpop.f32.mrf.mxu0
      %6551 = vdwg.mxu0
      %v6552 = vmax.f32 %v6486, 0.0
      %v6553 = vmax.f32 %v6493, 0.0
      %v6554 = vmax.f32 %v6496, 0.0
      %v6555 = vmax.f32 %v6501, 0.0
      %v6556 = vmax.f32 %v6504, 0.0
      %v6557 = vmax.f32 %v6509, 0.0
      %v6558 = vmax.f32 %v6512, 0.0
      %v6559 = vmax.f32 %v6519, 0.0
      %v6560 = vmax.f32 %v6526, 0.0
      %v6561 = vmax.f32 %v6531, 0.0
      %v6562 = vmax.f32 %v6534, 0.0
      %v6563 = vmax.f32 %v6539, 0.0
      %v6564 = vmax.f32 %v6542, 0.0
      %v6565 = vmax.f32 %v6547, 0.0
      %6566 = vst [vmem:[%s2911] ss:$2 sm:$0xff] %v6552
      %6568 = vrot.lane.b32.xlu0 %v6552, 96
      %v6569 = vpop.permute.xlu0 %6568
      %6571 = vst [vmem:[%s2947] ss:$2 sm:$0xff] %v6569
      %6572 = vrot.lane.b32.xlu0 %v6552, 64
      %v6573 = vpop.permute.xlu0 %6572
      %6575 = vst [vmem:[%s2985] ss:$2 sm:$0xff] %v6573
      %6576 = vrot.lane.b32.xlu0 %v6552, 32
      %v6577 = vpop.permute.xlu0 %6576
      %6579 = vst [vmem:[%s3021] ss:$2 sm:$0xff] %v6577
      %v6582 = vrot.slane %v6553, 2
      %v6583 = vrot.slane %v6554, 2
      %v6584 = vsel %vm2439, %v6582, %v6583
      %s6586 = scalar_lea.vmem [#allocation2], 55
      %6587 = vst [vmem:[%s6586] ss:$2 sm:$0xff] %v6584
      %6588 = vrot.lane.b32.xlu0 %v6584, 96
      %v6589 = vpop.permute.xlu0 %6588
      %s6591 = scalar_lea.vmem [#allocation2], 56
      %6592 = vst [vmem:[%s6591] ss:$2 sm:$0xff] %v6589
      %6593 = vrot.lane.b32.xlu0 %v6584, 64
      %v6594 = vpop.permute.xlu0 %6593
      %s6596 = scalar_lea.vmem [#allocation2], 73
      %6597 = vst [vmem:[%s6596] ss:$2 sm:$0xff] %v6594
      %6598 = vrot.lane.b32.xlu0 %v6584, 32
      %v6599 = vpop.permute.xlu0 %6598
      %s6601 = scalar_lea.vmem [#allocation2], 74
      %6602 = vst [vmem:[%s6601] ss:$2 sm:$0xff] %v6599
      %vm6605 = vcmask 1043456
      %v6606 = vrot.slane %v6555, 4
      %v6607 = vrot.slane %v6556, 4
      %v6608 = vsel %vm6605, %v6606, %v6607
      %s6610 = scalar_lea.vmem [#allocation2], 91
      %6611 = vst [vmem:[%s6610] ss:$2 sm:$0xff] %v6608
      %6612 = vrot.lane.b32.xlu0 %v6608, 96
      %v6613 = vpop.permute.xlu0 %6612
      %s6615 = scalar_lea.vmem [#allocation2], 92
      %6616 = vst [vmem:[%s6615] ss:$2 sm:$0xff] %v6613
      %6617 = vrot.lane.b32.xlu0 %v6608, 64
      %v6618 = vpop.permute.xlu0 %6617
      %s6620 = scalar_lea.vmem [#allocation2], 109
      %6621 = vst [vmem:[%s6620] ss:$2 sm:$0xff] %v6618
      %6622 = vrot.lane.b32.xlu0 %v6608, 32
      %v6623 = vpop.permute.xlu0 %6622
      %s6625 = scalar_lea.vmem [#allocation2], 110
      %6626 = vst [vmem:[%s6625] ss:$2 sm:$0xff] %v6623
      %v6629 = vrot.slane %v6557, 6
      %v6630 = vrot.slane %v6558, 6
      %v6631 = vsel %vm6023, %v6629, %v6630
      %s6633 = scalar_lea.vmem [#allocation2], 127
      %6634 = vst [vmem:[%s6633] ss:$2 sm:$0xff] %v6631
      %6635 = vrot.lane.b32.xlu0 %v6631, 96
      %v6636 = vpop.permute.xlu0 %6635
      %6638 = vst [vmem:[%s2817] ss:$2 sm:$0xff] %v6636
      %6639 = vrot.lane.b32.xlu0 %v6631, 64
      %v6640 = vpop.permute.xlu0 %6639
      %6642 = vst [vmem:[%s2855] ss:$2 sm:$0xff] %v6640
      %6643 = vrot.lane.b32.xlu0 %v6631, 32
      %v6644 = vpop.permute.xlu0 %6643
      %6646 = vst [vmem:[%s2891] ss:$2 sm:$0xff] %v6644
      %6647 = vst [vmem:[%s2929] ss:$2 sm:$0xff] %v6559
      %6649 = vrot.lane.b32.xlu0 %v6559, 96
      %v6650 = vpop.permute.xlu0 %6649
      %6652 = vst [vmem:[%s2965] ss:$2 sm:$0xff] %v6650
      %6653 = vrot.lane.b32.xlu0 %v6559, 64
      %v6654 = vpop.permute.xlu0 %6653
      %6656 = vst [vmem:[%s3003] ss:$2 sm:$0xff] %v6654
      %6657 = vrot.lane.b32.xlu0 %v6559, 32
      %v6658 = vpop.permute.xlu0 %6657
      %6660 = vst [vmem:[%s3039] ss:$2 sm:$0xff] %v6658
      %v6663 = vrot.slane %v6560, 2
      %v6664 = vrot.slane %v6561, 2
      %v6665 = vsel %vm2439, %v6663, %v6664
      %s6667 = scalar_lea.vmem [#allocation2], 199
      %6668 = vst [vmem:[%s6667] ss:$2 sm:$0xff] %v6665
      %6669 = vrot.lane.b32.xlu0 %v6665, 96
      %v6670 = vpop.permute.xlu0 %6669
      %s6672 = scalar_lea.vmem [#allocation2], 200
      %6673 = vst [vmem:[%s6672] ss:$2 sm:$0xff] %v6670
      %6674 = vrot.lane.b32.xlu0 %v6665, 64
      %v6675 = vpop.permute.xlu0 %6674
      %s6677 = scalar_lea.vmem [#allocation2], 217
      %6678 = vst [vmem:[%s6677] ss:$2 sm:$0xff] %v6675
      %6679 = vrot.lane.b32.xlu0 %v6665, 32
      %v6680 = vpop.permute.xlu0 %6679
      %s6682 = scalar_lea.vmem [#allocation2], 218
      %6683 = vst [vmem:[%s6682] ss:$2 sm:$0xff] %v6680
      %v6686 = vrot.slane %v6562, 4
      %v6687 = vrot.slane %v6563, 4
      %v6688 = vsel %vm6605, %v6686, %v6687
      %s6690 = scalar_lea.vmem [#allocation2], 235
      %6691 = vst [vmem:[%s6690] ss:$2 sm:$0xff] %v6688
      %6692 = vrot.lane.b32.xlu0 %v6688, 96
      %v6693 = vpop.permute.xlu0 %6692
      %s6695 = scalar_lea.vmem [#allocation2], 236
      %6696 = vst [vmem:[%s6695] ss:$2 sm:$0xff] %v6693
      %6697 = vrot.lane.b32.xlu0 %v6688, 64
      %v6698 = vpop.permute.xlu0 %6697
      %s6700 = scalar_lea.vmem [#allocation2], 253
      %6701 = vst [vmem:[%s6700] ss:$2 sm:$0xff] %v6698
      %6702 = vrot.lane.b32.xlu0 %v6688, 32
      %v6703 = vpop.permute.xlu0 %6702
      %s6705 = scalar_lea.vmem [#allocation2], 254
      %6706 = vst [vmem:[%s6705] ss:$2 sm:$0xff] %v6703
      %v6709 = vrot.slane %v6564, 6
      %v6710 = vrot.slane %v6565, 6
      %v6711 = vsel %vm6023, %v6709, %v6710
      %s6713 = scalar_lea.vmem [#allocation2], 271
      %6714 = vst [vmem:[%s6713] ss:$2 sm:$0xff] %v6711
      %6715 = vrot.lane.b32.xlu0 %v6711, 96
      %v6716 = vpop.permute.xlu0 %6715
      %6718 = vst [vmem:[%s2835] ss:$2 sm:$0xff] %v6716
      %6719 = vrot.lane.b32.xlu0 %v6711, 64
      %v6720 = vpop.permute.xlu0 %6719
      %s6722 = scalar_lea.vmem [#allocation2], 289
      %6723 = vst [vmem:[%s6722] ss:$2 sm:$0xff] %v6720
      %6724 = vrot.lane.b32.xlu0 %v6711, 32
      %v6725 = vpop.permute.xlu0 %6724
      %6727 = vst [vmem:[%s2909] ss:$2 sm:$0xff] %v6725
      %v6728 = vld [vmem:[#allocation2] sm:$0xff]
      %v6729 = vld [vmem:[#allocation2 + $0x8] sm:$0xff]
      %v6730 = vld [vmem:[#allocation2 + $0x10] sm:$0xff]
      %v6731 = vld [vmem:[#allocation2 + $0x18] sm:$0xff]
      %v6732 = vld [vmem:[#allocation2 + $0x20] sm:$0xff]
      %v6733 = vld [vmem:[#allocation2 + $0x28] sm:$0xff]
      %v6734 = vld [vmem:[#allocation2 + $0x30] sm:$0xff]
      %v6735 = vld [vmem:[#allocation2 + $0x38] sm:$0xff]
      %v6736 = vld [vmem:[#allocation2 + $0x40] sm:$0xff]
      %v6737 = vld [vmem:[#allocation2 + $0x48] sm:$0xff]
      %v6738 = vld [vmem:[#allocation2 + $0x50] sm:$0xff]
      %v6739 = vld [vmem:[#allocation2 + $0x58] sm:$0xff]
      %v6740 = vld [vmem:[#allocation2 + $0x60] sm:$0xff]
      %v6741 = vld [vmem:[#allocation2 + $0x68] sm:$0xff]
      %v6742 = vld [vmem:[#allocation2 + $0x70] sm:$0xff]
      %v6743 = vld [vmem:[#allocation2 + $0x78] sm:$0xff]
      %v6744 = vld [vmem:[#allocation2 + $0x80] sm:$0xff]
      %v6745 = vld [vmem:[#allocation2 + $0x88] sm:$0xff]
      %v6746 = vld [vmem:[#allocation2 + $0x90] sm:$0xff]
      %v6747 = vld [vmem:[#allocation2 + $0x98] sm:$0xff]
      %v6748 = vld [vmem:[#allocation2 + $0xa0] sm:$0xff]
      %v6749 = vld [vmem:[#allocation2 + $0xa8] sm:$0xff]
      %v6750 = vld [vmem:[#allocation2 + $0xb0] sm:$0xff]
      %v6751 = vld [vmem:[#allocation2 + $0xb8] sm:$0xff]
      %v6752 = vld [vmem:[#allocation2 + $0xc0] sm:$0xff]
      %v6753 = vld [vmem:[#allocation2 + $0xc8] sm:$0xff]
      %v6754 = vld [vmem:[#allocation2 + $0xd0] sm:$0xff]
      %v6755 = vld [vmem:[#allocation2 + $0xd8] sm:$0xff]
      %v6756 = vld [vmem:[#allocation2 + $0xe0] sm:$0xff]
      %v6757 = vld [vmem:[#allocation2 + $0xe8] sm:$0xff]
      %v6758 = vld [vmem:[#allocation2 + $0xf0] sm:$0xff]
      %v6759 = vld [vmem:[#allocation2 + $0xf8] sm:$0xff]
      %v6760 = vld [vmem:[#allocation2 + $0x100] sm:$0xff]
      %v6761 = vld [vmem:[#allocation2 + $0x108] sm:$0xff]
      %v6762 = vld [vmem:[#allocation2 + $0x110] sm:$0xff]
      %v6763 = vld [vmem:[#allocation2 + $0x118] sm:$0xff]
      %v6764 = vld [vmem:[#allocation2 + $0x1] sm:$0xff]
      %v6765 = vld [vmem:[#allocation2 + $0x9] sm:$0xff]
      %v6766 = vld [vmem:[#allocation2 + $0x11] sm:$0xff]
      %v6767 = vld [vmem:[#allocation2 + $0x19] sm:$0xff]
      %v6768 = vld [vmem:[#allocation2 + $0x21] sm:$0xff]
      %v6769 = vld [vmem:[#allocation2 + $0x29] sm:$0xff]
      %v6770 = vld [vmem:[#allocation2 + $0x31] sm:$0xff]
      %v6771 = vld [vmem:[#allocation2 + $0x39] sm:$0xff]
      %v6772 = vld [vmem:[#allocation2 + $0x41] sm:$0xff]
      %v6773 = vld [vmem:[#allocation2 + $0x49] sm:$0xff]
      %v6774 = vld [vmem:[#allocation2 + $0x51] sm:$0xff]
      %v6775 = vld [vmem:[#allocation2 + $0x59] sm:$0xff]
      %v6776 = vld [vmem:[#allocation2 + $0x61] sm:$0xff]
      %v6777 = vld [vmem:[#allocation2 + $0x69] sm:$0xff]
      %v6778 = vld [vmem:[#allocation2 + $0x71] sm:$0xff]
      %v6779 = vld [vmem:[#allocation2 + $0x79] sm:$0xff]
      %v6780 = vld [vmem:[#allocation2 + $0x81] sm:$0xff]
      %v6781 = vld [vmem:[#allocation2 + $0x89] sm:$0xff]
      %v6782 = vld [vmem:[#allocation2 + $0x91] sm:$0xff]
      %v6783 = vld [vmem:[#allocation2 + $0x99] sm:$0xff]
      %v6784 = vld [vmem:[#allocation2 + $0xa1] sm:$0xff]
      %v6785 = vld [vmem:[#allocation2 + $0xa9] sm:$0xff]
      %v6786 = vld [vmem:[#allocation2 + $0xb1] sm:$0xff]
      %v6787 = vld [vmem:[#allocation2 + $0xb9] sm:$0xff]
      %v6788 = vld [vmem:[#allocation2 + $0xc1] sm:$0xff]
      %v6789 = vld [vmem:[#allocation2 + $0xc9] sm:$0xff]
      %v6790 = vld [vmem:[#allocation2 + $0xd1] sm:$0xff]
      %v6791 = vld [vmem:[#allocation2 + $0xd9] sm:$0xff]
      %v6792 = vld [vmem:[#allocation2 + $0xe1] sm:$0xff]
      %v6793 = vld [vmem:[#allocation2 + $0xe9] sm:$0xff]
      %v6794 = vld [vmem:[#allocation2 + $0xf1] sm:$0xff]
      %v6795 = vld [vmem:[#allocation2 + $0xf9] sm:$0xff]
      %v6796 = vld [vmem:[#allocation2 + $0x101] sm:$0xff]
      %v6797 = vld [vmem:[#allocation2 + $0x109] sm:$0xff]
      %v6798 = vld [vmem:[#allocation2 + $0x111] sm:$0xff]
      %v6799 = vld [vmem:[#allocation2 + $0x119] sm:$0xff]
      %v6800 = vld [vmem:[#allocation2 + $0x2] sm:$0xff]
      %v6801 = vld [vmem:[#allocation2 + $0xa] sm:$0xff]
      %v6802 = vld [vmem:[#allocation2 + $0x12] sm:$0xff]
      %v6803 = vld [vmem:[#allocation2 + $0x1a] sm:$0xff]
      %v6804 = vld [vmem:[#allocation2 + $0x22] sm:$0xff]
      %v6805 = vld [vmem:[#allocation2 + $0x2a] sm:$0xff]
      %v6806 = vld [vmem:[#allocation2 + $0x32] sm:$0xff]
      %v6807 = vld [vmem:[#allocation2 + $0x3a] sm:$0xff]
      %v6808 = vld [vmem:[#allocation2 + $0x42] sm:$0xff]
      %v6809 = vld [vmem:[#allocation2 + $0x4a] sm:$0xff]
      %v6810 = vld [vmem:[#allocation2 + $0x52] sm:$0xff]
      %v6811 = vld [vmem:[#allocation2 + $0x5a] sm:$0xff]
      %v6812 = vld [vmem:[#allocation2 + $0x62] sm:$0xff]
      %v6813 = vld [vmem:[#allocation2 + $0x6a] sm:$0xff]
      %v6814 = vld [vmem:[#allocation2 + $0x72] sm:$0xff]
      %v6815 = vld [vmem:[#allocation2 + $0x7a] sm:$0xff]
      %v6816 = vld [vmem:[#allocation2 + $0x82] sm:$0xff]
      %v6817 = vld [vmem:[#allocation2 + $0x8a] sm:$0xff]
      %v6818 = vld [vmem:[#allocation2 + $0x92] sm:$0xff]
      %v6819 = vld [vmem:[#allocation2 + $0x9a] sm:$0xff]
      %v6820 = vld [vmem:[#allocation2 + $0xa2] sm:$0xff]
      %v6821 = vld [vmem:[#allocation2 + $0xaa] sm:$0xff]
      %v6822 = vld [vmem:[#allocation2 + $0xb2] sm:$0xff]
      %v6823 = vld [vmem:[#allocation2 + $0xba] sm:$0xff]
      %v6824 = vld [vmem:[#allocation2 + $0xc2] sm:$0xff]
      %v6825 = vld [vmem:[#allocation2 + $0xca] sm:$0xff]
      %v6826 = vld [vmem:[#allocation2 + $0xd2] sm:$0xff]
      %v6827 = vld [vmem:[#allocation2 + $0xda] sm:$0xff]
      %v6828 = vld [vmem:[#allocation2 + $0xe2] sm:$0xff]
      %v6829 = vld [vmem:[#allocation2 + $0xea] sm:$0xff]
      %v6830 = vld [vmem:[#allocation2 + $0xf2] sm:$0xff]
      %v6831 = vld [vmem:[#allocation2 + $0xfa] sm:$0xff]
      %v6832 = vld [vmem:[#allocation2 + $0x102] sm:$0xff]
      %v6833 = vld [vmem:[#allocation2 + $0x10a] sm:$0xff]
      %v6834 = vld [vmem:[#allocation2 + $0x112] sm:$0xff]
      %v6835 = vld [vmem:[#allocation2 + $0x11a] sm:$0xff]
      %v6836 = vld [vmem:[#allocation2 + $0x122] sm:$0xff]
      %v6837 = vld [vmem:[#allocation2 + $0x12a] sm:$0xff]
      %v6838 = vld [vmem:[#allocation2 + $0x13] sm:$0xff]
      %v6839 = vld [vmem:[#allocation2 + $0x1b] sm:$0xff]
      %v6840 = vld [vmem:[#allocation2 + $0x23] sm:$0xff]
      %v6841 = vld [vmem:[#allocation2 + $0x2b] sm:$0xff]
      %v6842 = vld [vmem:[#allocation2 + $0x33] sm:$0xff]
      %v6843 = vld [vmem:[#allocation2 + $0x3b] sm:$0xff]
      %v6844 = vld [vmem:[#allocation2 + $0x43] sm:$0xff]
      %v6845 = vld [vmem:[#allocation2 + $0x4b] sm:$0xff]
      %v6846 = vld [vmem:[#allocation2 + $0x53] sm:$0xff]
      %v6847 = vld [vmem:[#allocation2 + $0x5b] sm:$0xff]
      %v6848 = vld [vmem:[#allocation2 + $0x63] sm:$0xff]
      %v6849 = vld [vmem:[#allocation2 + $0x6b] sm:$0xff]
      %v6850 = vld [vmem:[#allocation2 + $0x73] sm:$0xff]
      %v6851 = vld [vmem:[#allocation2 + $0x7b] sm:$0xff]
      %v6852 = vld [vmem:[#allocation2 + $0x83] sm:$0xff]
      %v6853 = vld [vmem:[#allocation2 + $0x8b] sm:$0xff]
      %v6854 = vld [vmem:[#allocation2 + $0x93] sm:$0xff]
      %v6855 = vld [vmem:[#allocation2 + $0x9b] sm:$0xff]
      %v6856 = vld [vmem:[#allocation2 + $0xa3] sm:$0xff]
      %v6857 = vld [vmem:[#allocation2 + $0xab] sm:$0xff]
      %v6858 = vld [vmem:[#allocation2 + $0xb3] sm:$0xff]
      %v6859 = vld [vmem:[#allocation2 + $0xbb] sm:$0xff]
      %v6860 = vld [vmem:[#allocation2 + $0xc3] sm:$0xff]
      %v6861 = vld [vmem:[#allocation2 + $0xcb] sm:$0xff]
      %v6862 = vld [vmem:[#allocation2 + $0xd3] sm:$0xff]
      %v6863 = vld [vmem:[#allocation2 + $0xdb] sm:$0xff]
      %v6864 = vld [vmem:[#allocation2 + $0xe3] sm:$0xff]
      %v6865 = vld [vmem:[#allocation2 + $0xeb] sm:$0xff]
      %v6866 = vld [vmem:[#allocation2 + $0xf3] sm:$0xff]
      %v6867 = vld [vmem:[#allocation2 + $0xfb] sm:$0xff]
      %v6868 = vld [vmem:[#allocation2 + $0x103] sm:$0xff]
      %v6869 = vld [vmem:[#allocation2 + $0x10b] sm:$0xff]
      %v6870 = vld [vmem:[#allocation2 + $0x113] sm:$0xff]
      %v6871 = vld [vmem:[#allocation2 + $0x11b] sm:$0xff]
      %v6872 = vld [vmem:[#allocation2 + $0x123] sm:$0xff]
      %v6873 = vld [vmem:[#allocation2 + $0x12b] sm:$0xff]
      %v6874 = vld [vmem:[#allocation2 + $0x14] sm:$0xff]
      %v6875 = vld [vmem:[#allocation2 + $0x1c] sm:$0xff]
      %v6876 = vld [vmem:[#allocation2 + $0x24] sm:$0xff]
      %v6877 = vld [vmem:[#allocation2 + $0x2c] sm:$0xff]
      %v6878 = vld [vmem:[#allocation2 + $0x34] sm:$0xff]
      %v6879 = vld [vmem:[#allocation2 + $0x3c] sm:$0xff]
      %v6880 = vld [vmem:[#allocation2 + $0x44] sm:$0xff]
      %v6881 = vld [vmem:[#allocation2 + $0x4c] sm:$0xff]
      %v6882 = vld [vmem:[#allocation2 + $0x54] sm:$0xff]
      %v6883 = vld [vmem:[#allocation2 + $0x5c] sm:$0xff]
      %v6884 = vld [vmem:[#allocation2 + $0x64] sm:$0xff]
      %v6885 = vld [vmem:[#allocation2 + $0x6c] sm:$0xff]
      %v6886 = vld [vmem:[#allocation2 + $0x74] sm:$0xff]
      %v6887 = vld [vmem:[#allocation2 + $0x7c] sm:$0xff]
      %v6888 = vld [vmem:[#allocation2 + $0x84] sm:$0xff]
      %v6889 = vld [vmem:[#allocation2 + $0x8c] sm:$0xff]
      %v6890 = vld [vmem:[#allocation2 + $0x94] sm:$0xff]
      %v6891 = vld [vmem:[#allocation2 + $0x9c] sm:$0xff]
      %v6892 = vld [vmem:[#allocation2 + $0xa4] sm:$0xff]
      %v6893 = vld [vmem:[#allocation2 + $0xac] sm:$0xff]
      %v6894 = vld [vmem:[#allocation2 + $0xb4] sm:$0xff]
      %v6895 = vld [vmem:[#allocation2 + $0xbc] sm:$0xff]
      %v6896 = vld [vmem:[#allocation2 + $0xc4] sm:$0xff]
      %v6897 = vld [vmem:[#allocation2 + $0xcc] sm:$0xff]
      %v6898 = vld [vmem:[#allocation2 + $0xd4] sm:$0xff]
      %v6899 = vld [vmem:[#allocation2 + $0xdc] sm:$0xff]
      %v6900 = vld [vmem:[#allocation2 + $0xe4] sm:$0xff]
      %v6901 = vld [vmem:[#allocation2 + $0xec] sm:$0xff]
      %v6902 = vld [vmem:[#allocation2 + $0xf4] sm:$0xff]
      %v6903 = vld [vmem:[#allocation2 + $0xfc] sm:$0xff]
      %v6904 = vld [vmem:[#allocation2 + $0x104] sm:$0xff]
      %v6905 = vld [vmem:[#allocation2 + $0x10c] sm:$0xff]
      %v6906 = vld [vmem:[#allocation2 + $0x114] sm:$0xff]
      %v6907 = vld [vmem:[#allocation2 + $0x11c] sm:$0xff]
      %v6908 = vld [vmem:[#allocation2 + $0x124] sm:$0xff]
      %v6909 = vld [vmem:[#allocation2 + $0x12c] sm:$0xff]
      %v6910 = vld [vmem:[#allocation2 + $0x134] sm:$0xff]
      %v6911 = vld [vmem:[#allocation2 + $0x13c] sm:$0xff]
      %v6912 = vld [vmem:[#allocation2 + $0x25] sm:$0xff]
      %v6913 = vld [vmem:[#allocation2 + $0x2d] sm:$0xff]
      %v6914 = vld [vmem:[#allocation2 + $0x35] sm:$0xff]
      %v6915 = vld [vmem:[#allocation2 + $0x3d] sm:$0xff]
      %v6916 = vld [vmem:[#allocation2 + $0x45] sm:$0xff]
      %v6917 = vld [vmem:[#allocation2 + $0x4d] sm:$0xff]
      %v6918 = vld [vmem:[#allocation2 + $0x55] sm:$0xff]
      %v6919 = vld [vmem:[#allocation2 + $0x5d] sm:$0xff]
      %v6920 = vld [vmem:[#allocation2 + $0x65] sm:$0xff]
      %v6921 = vld [vmem:[#allocation2 + $0x6d] sm:$0xff]
      %v6922 = vld [vmem:[#allocation2 + $0x75] sm:$0xff]
      %v6923 = vld [vmem:[#allocation2 + $0x7d] sm:$0xff]
      %v6924 = vld [vmem:[#allocation2 + $0x85] sm:$0xff]
      %v6925 = vld [vmem:[#allocation2 + $0x8d] sm:$0xff]
      %v6926 = vld [vmem:[#allocation2 + $0x95] sm:$0xff]
      %v6927 = vld [vmem:[#allocation2 + $0x9d] sm:$0xff]
      %v6928 = vld [vmem:[#allocation2 + $0xa5] sm:$0xff]
      %v6929 = vld [vmem:[#allocation2 + $0xad] sm:$0xff]
      %v6930 = vld [vmem:[#allocation2 + $0xb5] sm:$0xff]
      %v6931 = vld [vmem:[#allocation2 + $0xbd] sm:$0xff]
      %v6932 = vld [vmem:[#allocation2 + $0xc5] sm:$0xff]
      %v6933 = vld [vmem:[#allocation2 + $0xcd] sm:$0xff]
      %v6934 = vld [vmem:[#allocation2 + $0xd5] sm:$0xff]
      %v6935 = vld [vmem:[#allocation2 + $0xdd] sm:$0xff]
      %v6936 = vld [vmem:[#allocation2 + $0xe5] sm:$0xff]
      %v6937 = vld [vmem:[#allocation2 + $0xed] sm:$0xff]
      %v6938 = vld [vmem:[#allocation2 + $0xf5] sm:$0xff]
      %v6939 = vld [vmem:[#allocation2 + $0xfd] sm:$0xff]
      %v6940 = vld [vmem:[#allocation2 + $0x105] sm:$0xff]
      %v6941 = vld [vmem:[#allocation2 + $0x10d] sm:$0xff]
      %v6942 = vld [vmem:[#allocation2 + $0x115] sm:$0xff]
      %v6943 = vld [vmem:[#allocation2 + $0x11d] sm:$0xff]
      %v6944 = vld [vmem:[#allocation2 + $0x125] sm:$0xff]
      %v6945 = vld [vmem:[#allocation2 + $0x12d] sm:$0xff]
      %v6946 = vld [vmem:[#allocation2 + $0x135] sm:$0xff]
      %v6947 = vld [vmem:[#allocation2 + $0x13d] sm:$0xff]
      %v6948 = vld [vmem:[#allocation2 + $0x26] sm:$0xff]
      %v6949 = vld [vmem:[#allocation2 + $0x2e] sm:$0xff]
      %v6950 = vld [vmem:[#allocation2 + $0x36] sm:$0xff]
      %v6951 = vld [vmem:[#allocation2 + $0x3e] sm:$0xff]
      %v6952 = vld [vmem:[#allocation2 + $0x46] sm:$0xff]
      %v6953 = vld [vmem:[#allocation2 + $0x4e] sm:$0xff]
      %v6954 = vld [vmem:[#allocation2 + $0x56] sm:$0xff]
      %v6955 = vld [vmem:[#allocation2 + $0x5e] sm:$0xff]
      %v6956 = vld [vmem:[#allocation2 + $0x66] sm:$0xff]
      %v6957 = vld [vmem:[#allocation2 + $0x6e] sm:$0xff]
      %v6958 = vld [vmem:[#allocation2 + $0x76] sm:$0xff]
      %v6959 = vld [vmem:[#allocation2 + $0x7e] sm:$0xff]
      %v6960 = vld [vmem:[#allocation2 + $0x86] sm:$0xff]
      %v6961 = vld [vmem:[#allocation2 + $0x8e] sm:$0xff]
      %v6962 = vld [vmem:[#allocation2 + $0x96] sm:$0xff]
      %v6963 = vld [vmem:[#allocation2 + $0x9e] sm:$0xff]
      %v6964 = vld [vmem:[#allocation2 + $0xa6] sm:$0xff]
      %v6965 = vld [vmem:[#allocation2 + $0xae] sm:$0xff]
      %v6966 = vld [vmem:[#allocation2 + $0xb6] sm:$0xff]
      %v6967 = vld [vmem:[#allocation2 + $0xbe] sm:$0xff]
      %v6968 = vld [vmem:[#allocation2 + $0xc6] sm:$0xff]
      %v6969 = vld [vmem:[#allocation2 + $0xce] sm:$0xff]
      %v6970 = vld [vmem:[#allocation2 + $0xd6] sm:$0xff]
      %v6971 = vld [vmem:[#allocation2 + $0xde] sm:$0xff]
      %v6972 = vld [vmem:[#allocation2 + $0xe6] sm:$0xff]
      %v6973 = vld [vmem:[#allocation2 + $0xee] sm:$0xff]
      %v6974 = vld [vmem:[#allocation2 + $0xf6] sm:$0xff]
      %v6975 = vld [vmem:[#allocation2 + $0xfe] sm:$0xff]
      %v6976 = vld [vmem:[#allocation2 + $0x106] sm:$0xff]
      %v6977 = vld [vmem:[#allocation2 + $0x10e] sm:$0xff]
      %v6978 = vld [vmem:[#allocation2 + $0x116] sm:$0xff]
      %v6979 = vld [vmem:[#allocation2 + $0x11e] sm:$0xff]
      %v6980 = vld [vmem:[#allocation2 + $0x126] sm:$0xff]
      %v6981 = vld [vmem:[#allocation2 + $0x12e] sm:$0xff]
      %v6982 = vld [vmem:[#allocation2 + $0x136] sm:$0xff]
      %v6983 = vld [vmem:[#allocation2 + $0x13e] sm:$0xff]
      %7020 = vrot.lane.b32.xlu0 %v6764, 32
      %v7021 = vpop.permute.xlu0 %7020
      %7022 = vrot.lane.b32.xlu0 %v6765, 32
      %v7023 = vpop.permute.xlu0 %7022
      %7024 = vrot.lane.b32.xlu0 %v6766, 32
      %v7025 = vpop.permute.xlu0 %7024
      %7026 = vrot.lane.b32.xlu0 %v6767, 32
      %v7027 = vpop.permute.xlu0 %7026
      %7028 = vrot.lane.b32.xlu0 %v6768, 32
      %v7029 = vpop.permute.xlu0 %7028
      %7030 = vrot.lane.b32.xlu0 %v6769, 32
      %v7031 = vpop.permute.xlu0 %7030
      %7032 = vrot.lane.b32.xlu0 %v6770, 32
      %v7033 = vpop.permute.xlu0 %7032
      %7034 = vrot.lane.b32.xlu0 %v6771, 32
      %v7035 = vpop.permute.xlu0 %7034
      %7036 = vrot.lane.b32.xlu0 %v6772, 32
      %v7037 = vpop.permute.xlu0 %7036
      %7038 = vrot.lane.b32.xlu0 %v6773, 32
      %v7039 = vpop.permute.xlu0 %7038
      %7040 = vrot.lane.b32.xlu0 %v6774, 32
      %v7041 = vpop.permute.xlu0 %7040
      %7042 = vrot.lane.b32.xlu0 %v6775, 32
      %v7043 = vpop.permute.xlu0 %7042
      %7044 = vrot.lane.b32.xlu0 %v6776, 32
      %v7045 = vpop.permute.xlu0 %7044
      %7046 = vrot.lane.b32.xlu0 %v6777, 32
      %v7047 = vpop.permute.xlu0 %7046
      %7048 = vrot.lane.b32.xlu0 %v6778, 32
      %v7049 = vpop.permute.xlu0 %7048
      %7050 = vrot.lane.b32.xlu0 %v6779, 32
      %v7051 = vpop.permute.xlu0 %7050
      %7052 = vrot.lane.b32.xlu0 %v6780, 32
      %v7053 = vpop.permute.xlu0 %7052
      %7054 = vrot.lane.b32.xlu0 %v6781, 32
      %v7055 = vpop.permute.xlu0 %7054
      %7056 = vrot.lane.b32.xlu0 %v6782, 32
      %v7057 = vpop.permute.xlu0 %7056
      %7058 = vrot.lane.b32.xlu0 %v6783, 32
      %v7059 = vpop.permute.xlu0 %7058
      %7060 = vrot.lane.b32.xlu0 %v6784, 32
      %v7061 = vpop.permute.xlu0 %7060
      %7062 = vrot.lane.b32.xlu0 %v6785, 32
      %v7063 = vpop.permute.xlu0 %7062
      %7064 = vrot.lane.b32.xlu0 %v6786, 32
      %v7065 = vpop.permute.xlu0 %7064
      %7066 = vrot.lane.b32.xlu0 %v6787, 32
      %v7067 = vpop.permute.xlu0 %7066
      %7068 = vrot.lane.b32.xlu0 %v6788, 32
      %v7069 = vpop.permute.xlu0 %7068
      %7070 = vrot.lane.b32.xlu0 %v6789, 32
      %v7071 = vpop.permute.xlu0 %7070
      %7072 = vrot.lane.b32.xlu0 %v6790, 32
      %v7073 = vpop.permute.xlu0 %7072
      %7074 = vrot.lane.b32.xlu0 %v6791, 32
      %v7075 = vpop.permute.xlu0 %7074
      %7076 = vrot.lane.b32.xlu0 %v6792, 32
      %v7077 = vpop.permute.xlu0 %7076
      %7078 = vrot.lane.b32.xlu0 %v6793, 32
      %v7079 = vpop.permute.xlu0 %7078
      %7080 = vrot.lane.b32.xlu0 %v6794, 32
      %v7081 = vpop.permute.xlu0 %7080
      %7082 = vrot.lane.b32.xlu0 %v6795, 32
      %v7083 = vpop.permute.xlu0 %7082
      %7084 = vrot.lane.b32.xlu0 %v6796, 32
      %v7085 = vpop.permute.xlu0 %7084
      %7086 = vrot.lane.b32.xlu0 %v6797, 32
      %v7087 = vpop.permute.xlu0 %7086
      %7088 = vrot.lane.b32.xlu0 %v6798, 32
      %v7089 = vpop.permute.xlu0 %7088
      %7090 = vrot.lane.b32.xlu0 %v6799, 32
      %v7091 = vpop.permute.xlu0 %7090
      %7164 = vrot.lane.b32.xlu0 %v6800, 64
      %v7165 = vpop.permute.xlu0 %7164
      %7166 = vrot.lane.b32.xlu0 %v6801, 64
      %v7167 = vpop.permute.xlu0 %7166
      %7168 = vrot.lane.b32.xlu0 %v6802, 64
      %v7169 = vpop.permute.xlu0 %7168
      %7170 = vrot.lane.b32.xlu0 %v6803, 64
      %v7171 = vpop.permute.xlu0 %7170
      %7172 = vrot.lane.b32.xlu0 %v6804, 64
      %v7173 = vpop.permute.xlu0 %7172
      %7174 = vrot.lane.b32.xlu0 %v6805, 64
      %v7175 = vpop.permute.xlu0 %7174
      %7176 = vrot.lane.b32.xlu0 %v6806, 64
      %v7177 = vpop.permute.xlu0 %7176
      %7178 = vrot.lane.b32.xlu0 %v6807, 64
      %v7179 = vpop.permute.xlu0 %7178
      %7180 = vrot.lane.b32.xlu0 %v6808, 64
      %v7181 = vpop.permute.xlu0 %7180
      %7182 = vrot.lane.b32.xlu0 %v6809, 64
      %v7183 = vpop.permute.xlu0 %7182
      %7184 = vrot.lane.b32.xlu0 %v6810, 64
      %v7185 = vpop.permute.xlu0 %7184
      %7186 = vrot.lane.b32.xlu0 %v6811, 64
      %v7187 = vpop.permute.xlu0 %7186
      %7188 = vrot.lane.b32.xlu0 %v6812, 64
      %v7189 = vpop.permute.xlu0 %7188
      %7190 = vrot.lane.b32.xlu0 %v6813, 64
      %v7191 = vpop.permute.xlu0 %7190
      %7192 = vrot.lane.b32.xlu0 %v6814, 64
      %v7193 = vpop.permute.xlu0 %7192
      %7194 = vrot.lane.b32.xlu0 %v6815, 64
      %v7195 = vpop.permute.xlu0 %7194
      %7196 = vrot.lane.b32.xlu0 %v6816, 64
      %v7197 = vpop.permute.xlu0 %7196
      %7198 = vrot.lane.b32.xlu0 %v6817, 64
      %v7199 = vpop.permute.xlu0 %7198
      %7200 = vrot.lane.b32.xlu0 %v6818, 64
      %v7201 = vpop.permute.xlu0 %7200
      %7202 = vrot.lane.b32.xlu0 %v6819, 64
      %v7203 = vpop.permute.xlu0 %7202
      %7204 = vrot.lane.b32.xlu0 %v6820, 64
      %v7205 = vpop.permute.xlu0 %7204
      %7206 = vrot.lane.b32.xlu0 %v6821, 64
      %v7207 = vpop.permute.xlu0 %7206
      %7208 = vrot.lane.b32.xlu0 %v6822, 64
      %v7209 = vpop.permute.xlu0 %7208
      %7210 = vrot.lane.b32.xlu0 %v6823, 64
      %v7211 = vpop.permute.xlu0 %7210
      %7212 = vrot.lane.b32.xlu0 %v6824, 64
      %v7213 = vpop.permute.xlu0 %7212
      %7214 = vrot.lane.b32.xlu0 %v6825, 64
      %v7215 = vpop.permute.xlu0 %7214
      %7216 = vrot.lane.b32.xlu0 %v6826, 64
      %v7217 = vpop.permute.xlu0 %7216
      %7218 = vrot.lane.b32.xlu0 %v6827, 64
      %v7219 = vpop.permute.xlu0 %7218
      %7220 = vrot.lane.b32.xlu0 %v6828, 64
      %v7221 = vpop.permute.xlu0 %7220
      %7222 = vrot.lane.b32.xlu0 %v6829, 64
      %v7223 = vpop.permute.xlu0 %7222
      %7224 = vrot.lane.b32.xlu0 %v6830, 64
      %v7225 = vpop.permute.xlu0 %7224
      %7226 = vrot.lane.b32.xlu0 %v6831, 64
      %v7227 = vpop.permute.xlu0 %7226
      %7228 = vrot.lane.b32.xlu0 %v6832, 64
      %v7229 = vpop.permute.xlu0 %7228
      %7230 = vrot.lane.b32.xlu0 %v6833, 64
      %v7231 = vpop.permute.xlu0 %7230
      %7232 = vrot.lane.b32.xlu0 %v6834, 64
      %v7233 = vpop.permute.xlu0 %7232
      %7234 = vrot.lane.b32.xlu0 %v6835, 64
      %v7235 = vpop.permute.xlu0 %7234
      %7274 = vrot.lane.b32.xlu0 %v6802, 96
      %v7275 = vpop.permute.xlu0 %7274
      %7276 = vrot.lane.b32.xlu0 %v6803, 96
      %v7277 = vpop.permute.xlu0 %7276
      %7278 = vrot.lane.b32.xlu0 %v6804, 96
      %v7279 = vpop.permute.xlu0 %7278
      %7280 = vrot.lane.b32.xlu0 %v6805, 96
      %v7281 = vpop.permute.xlu0 %7280
      %7282 = vrot.lane.b32.xlu0 %v6806, 96
      %v7283 = vpop.permute.xlu0 %7282
      %7284 = vrot.lane.b32.xlu0 %v6807, 96
      %v7285 = vpop.permute.xlu0 %7284
      %7286 = vrot.lane.b32.xlu0 %v6808, 96
      %v7287 = vpop.permute.xlu0 %7286
      %7288 = vrot.lane.b32.xlu0 %v6809, 96
      %v7289 = vpop.permute.xlu0 %7288
      %7290 = vrot.lane.b32.xlu0 %v6810, 96
      %v7291 = vpop.permute.xlu0 %7290
      %7292 = vrot.lane.b32.xlu0 %v6811, 96
      %v7293 = vpop.permute.xlu0 %7292
      %7294 = vrot.lane.b32.xlu0 %v6812, 96
      %v7295 = vpop.permute.xlu0 %7294
      %7296 = vrot.lane.b32.xlu0 %v6813, 96
      %v7297 = vpop.permute.xlu0 %7296
      %7298 = vrot.lane.b32.xlu0 %v6814, 96
      %v7299 = vpop.permute.xlu0 %7298
      %7300 = vrot.lane.b32.xlu0 %v6815, 96
      %v7301 = vpop.permute.xlu0 %7300
      %7302 = vrot.lane.b32.xlu0 %v6816, 96
      %v7303 = vpop.permute.xlu0 %7302
      %7304 = vrot.lane.b32.xlu0 %v6817, 96
      %v7305 = vpop.permute.xlu0 %7304
      %7306 = vrot.lane.b32.xlu0 %v6818, 96
      %v7307 = vpop.permute.xlu0 %7306
      %7308 = vrot.lane.b32.xlu0 %v6819, 96
      %v7309 = vpop.permute.xlu0 %7308
      %7310 = vrot.lane.b32.xlu0 %v6820, 96
      %v7311 = vpop.permute.xlu0 %7310
      %7312 = vrot.lane.b32.xlu0 %v6821, 96
      %v7313 = vpop.permute.xlu0 %7312
      %7314 = vrot.lane.b32.xlu0 %v6822, 96
      %v7315 = vpop.permute.xlu0 %7314
      %7316 = vrot.lane.b32.xlu0 %v6823, 96
      %v7317 = vpop.permute.xlu0 %7316
      %7318 = vrot.lane.b32.xlu0 %v6824, 96
      %v7319 = vpop.permute.xlu0 %7318
      %7320 = vrot.lane.b32.xlu0 %v6825, 96
      %v7321 = vpop.permute.xlu0 %7320
      %7322 = vrot.lane.b32.xlu0 %v6826, 96
      %v7323 = vpop.permute.xlu0 %7322
      %7324 = vrot.lane.b32.xlu0 %v6827, 96
      %v7325 = vpop.permute.xlu0 %7324
      %7326 = vrot.lane.b32.xlu0 %v6828, 96
      %v7327 = vpop.permute.xlu0 %7326
      %7328 = vrot.lane.b32.xlu0 %v6829, 96
      %v7329 = vpop.permute.xlu0 %7328
      %7330 = vrot.lane.b32.xlu0 %v6830, 96
      %v7331 = vpop.permute.xlu0 %7330
      %7332 = vrot.lane.b32.xlu0 %v6831, 96
      %v7333 = vpop.permute.xlu0 %7332
      %7334 = vrot.lane.b32.xlu0 %v6832, 96
      %v7335 = vpop.permute.xlu0 %7334
      %7336 = vrot.lane.b32.xlu0 %v6833, 96
      %v7337 = vpop.permute.xlu0 %7336
      %7338 = vrot.lane.b32.xlu0 %v6834, 96
      %v7339 = vpop.permute.xlu0 %7338
      %7340 = vrot.lane.b32.xlu0 %v6835, 96
      %v7341 = vpop.permute.xlu0 %7340
      %7342 = vrot.lane.b32.xlu0 %v6836, 96
      %v7343 = vpop.permute.xlu0 %7342
      %7344 = vrot.lane.b32.xlu0 %v6837, 96
      %v7345 = vpop.permute.xlu0 %7344
      %7418 = vrot.lane.b32.xlu0 %v6874, 32
      %v7419 = vpop.permute.xlu0 %7418
      %7420 = vrot.lane.b32.xlu0 %v6875, 32
      %v7421 = vpop.permute.xlu0 %7420
      %7422 = vrot.lane.b32.xlu0 %v6876, 32
      %v7423 = vpop.permute.xlu0 %7422
      %7424 = vrot.lane.b32.xlu0 %v6877, 32
      %v7425 = vpop.permute.xlu0 %7424
      %7426 = vrot.lane.b32.xlu0 %v6878, 32
      %v7427 = vpop.permute.xlu0 %7426
      %7428 = vrot.lane.b32.xlu0 %v6879, 32
      %v7429 = vpop.permute.xlu0 %7428
      %7430 = vrot.lane.b32.xlu0 %v6880, 32
      %v7431 = vpop.permute.xlu0 %7430
      %7432 = vrot.lane.b32.xlu0 %v6881, 32
      %v7433 = vpop.permute.xlu0 %7432
      %7434 = vrot.lane.b32.xlu0 %v6882, 32
      %v7435 = vpop.permute.xlu0 %7434
      %7436 = vrot.lane.b32.xlu0 %v6883, 32
      %v7437 = vpop.permute.xlu0 %7436
      %7438 = vrot.lane.b32.xlu0 %v6884, 32
      %v7439 = vpop.permute.xlu0 %7438
      %7440 = vrot.lane.b32.xlu0 %v6885, 32
      %v7441 = vpop.permute.xlu0 %7440
      %7442 = vrot.lane.b32.xlu0 %v6886, 32
      %v7443 = vpop.permute.xlu0 %7442
      %7444 = vrot.lane.b32.xlu0 %v6887, 32
      %v7445 = vpop.permute.xlu0 %7444
      %7446 = vrot.lane.b32.xlu0 %v6888, 32
      %v7447 = vpop.permute.xlu0 %7446
      %7448 = vrot.lane.b32.xlu0 %v6889, 32
      %v7449 = vpop.permute.xlu0 %7448
      %7450 = vrot.lane.b32.xlu0 %v6890, 32
      %v7451 = vpop.permute.xlu0 %7450
      %7452 = vrot.lane.b32.xlu0 %v6891, 32
      %v7453 = vpop.permute.xlu0 %7452
      %7454 = vrot.lane.b32.xlu0 %v6892, 32
      %v7455 = vpop.permute.xlu0 %7454
      %7456 = vrot.lane.b32.xlu0 %v6893, 32
      %v7457 = vpop.permute.xlu0 %7456
      %7458 = vrot.lane.b32.xlu0 %v6894, 32
      %v7459 = vpop.permute.xlu0 %7458
      %7460 = vrot.lane.b32.xlu0 %v6895, 32
      %v7461 = vpop.permute.xlu0 %7460
      %7462 = vrot.lane.b32.xlu0 %v6896, 32
      %v7463 = vpop.permute.xlu0 %7462
      %7464 = vrot.lane.b32.xlu0 %v6897, 32
      %v7465 = vpop.permute.xlu0 %7464
      %7466 = vrot.lane.b32.xlu0 %v6898, 32
      %v7467 = vpop.permute.xlu0 %7466
      %7468 = vrot.lane.b32.xlu0 %v6899, 32
      %v7469 = vpop.permute.xlu0 %7468
      %7470 = vrot.lane.b32.xlu0 %v6900, 32
      %v7471 = vpop.permute.xlu0 %7470
      %7472 = vrot.lane.b32.xlu0 %v6901, 32
      %v7473 = vpop.permute.xlu0 %7472
      %7474 = vrot.lane.b32.xlu0 %v6902, 32
      %v7475 = vpop.permute.xlu0 %7474
      %7476 = vrot.lane.b32.xlu0 %v6903, 32
      %v7477 = vpop.permute.xlu0 %7476
      %7478 = vrot.lane.b32.xlu0 %v6904, 32
      %v7479 = vpop.permute.xlu0 %7478
      %7480 = vrot.lane.b32.xlu0 %v6905, 32
      %v7481 = vpop.permute.xlu0 %7480
      %7482 = vrot.lane.b32.xlu0 %v6906, 32
      %v7483 = vpop.permute.xlu0 %7482
      %7484 = vrot.lane.b32.xlu0 %v6907, 32
      %v7485 = vpop.permute.xlu0 %7484
      %7486 = vrot.lane.b32.xlu0 %v6908, 32
      %v7487 = vpop.permute.xlu0 %7486
      %7488 = vrot.lane.b32.xlu0 %v6909, 32
      %v7489 = vpop.permute.xlu0 %7488
      %7528 = vrot.lane.b32.xlu0 %v6876, 64
      %v7529 = vpop.permute.xlu0 %7528
      %7530 = vrot.lane.b32.xlu0 %v6877, 64
      %v7531 = vpop.permute.xlu0 %7530
      %7532 = vrot.lane.b32.xlu0 %v6878, 64
      %v7533 = vpop.permute.xlu0 %7532
      %7534 = vrot.lane.b32.xlu0 %v6879, 64
      %v7535 = vpop.permute.xlu0 %7534
      %7536 = vrot.lane.b32.xlu0 %v6880, 64
      %v7537 = vpop.permute.xlu0 %7536
      %7538 = vrot.lane.b32.xlu0 %v6881, 64
      %v7539 = vpop.permute.xlu0 %7538
      %7540 = vrot.lane.b32.xlu0 %v6882, 64
      %v7541 = vpop.permute.xlu0 %7540
      %7542 = vrot.lane.b32.xlu0 %v6883, 64
      %v7543 = vpop.permute.xlu0 %7542
      %7544 = vrot.lane.b32.xlu0 %v6884, 64
      %v7545 = vpop.permute.xlu0 %7544
      %7546 = vrot.lane.b32.xlu0 %v6885, 64
      %v7547 = vpop.permute.xlu0 %7546
      %7548 = vrot.lane.b32.xlu0 %v6886, 64
      %v7549 = vpop.permute.xlu0 %7548
      %7550 = vrot.lane.b32.xlu0 %v6887, 64
      %v7551 = vpop.permute.xlu0 %7550
      %7552 = vrot.lane.b32.xlu0 %v6888, 64
      %v7553 = vpop.permute.xlu0 %7552
      %7554 = vrot.lane.b32.xlu0 %v6889, 64
      %v7555 = vpop.permute.xlu0 %7554
      %7556 = vrot.lane.b32.xlu0 %v6890, 64
      %v7557 = vpop.permute.xlu0 %7556
      %7558 = vrot.lane.b32.xlu0 %v6891, 64
      %v7559 = vpop.permute.xlu0 %7558
      %7560 = vrot.lane.b32.xlu0 %v6892, 64
      %v7561 = vpop.permute.xlu0 %7560
      %7562 = vrot.lane.b32.xlu0 %v6893, 64
      %v7563 = vpop.permute.xlu0 %7562
      %7564 = vrot.lane.b32.xlu0 %v6894, 64
      %v7565 = vpop.permute.xlu0 %7564
      %7566 = vrot.lane.b32.xlu0 %v6895, 64
      %v7567 = vpop.permute.xlu0 %7566
      %7568 = vrot.lane.b32.xlu0 %v6896, 64
      %v7569 = vpop.permute.xlu0 %7568
      %7570 = vrot.lane.b32.xlu0 %v6897, 64
      %v7571 = vpop.permute.xlu0 %7570
      %7572 = vrot.lane.b32.xlu0 %v6898, 64
      %v7573 = vpop.permute.xlu0 %7572
      %7574 = vrot.lane.b32.xlu0 %v6899, 64
      %v7575 = vpop.permute.xlu0 %7574
      %7576 = vrot.lane.b32.xlu0 %v6900, 64
      %v7577 = vpop.permute.xlu0 %7576
      %7578 = vrot.lane.b32.xlu0 %v6901, 64
      %v7579 = vpop.permute.xlu0 %7578
      %7580 = vrot.lane.b32.xlu0 %v6902, 64
      %v7581 = vpop.permute.xlu0 %7580
      %7582 = vrot.lane.b32.xlu0 %v6903, 64
      %v7583 = vpop.permute.xlu0 %7582
      %7584 = vrot.lane.b32.xlu0 %v6904, 64
      %v7585 = vpop.permute.xlu0 %7584
      %7586 = vrot.lane.b32.xlu0 %v6905, 64
      %v7587 = vpop.permute.xlu0 %7586
      %7588 = vrot.lane.b32.xlu0 %v6906, 64
      %v7589 = vpop.permute.xlu0 %7588
      %7590 = vrot.lane.b32.xlu0 %v6907, 64
      %v7591 = vpop.permute.xlu0 %7590
      %7592 = vrot.lane.b32.xlu0 %v6908, 64
      %v7593 = vpop.permute.xlu0 %7592
      %7594 = vrot.lane.b32.xlu0 %v6909, 64
      %v7595 = vpop.permute.xlu0 %7594
      %7596 = vrot.lane.b32.xlu0 %v6910, 64
      %v7597 = vpop.permute.xlu0 %7596
      %7598 = vrot.lane.b32.xlu0 %v6911, 64
      %v7599 = vpop.permute.xlu0 %7598
      %7672 = vrot.lane.b32.xlu0 %v6912, 96
      %v7673 = vpop.permute.xlu0 %7672
      %7674 = vrot.lane.b32.xlu0 %v6913, 96
      %v7675 = vpop.permute.xlu0 %7674
      %7676 = vrot.lane.b32.xlu0 %v6914, 96
      %v7677 = vpop.permute.xlu0 %7676
      %7678 = vrot.lane.b32.xlu0 %v6915, 96
      %v7679 = vpop.permute.xlu0 %7678
      %7680 = vrot.lane.b32.xlu0 %v6916, 96
      %v7681 = vpop.permute.xlu0 %7680
      %7682 = vrot.lane.b32.xlu0 %v6917, 96
      %v7683 = vpop.permute.xlu0 %7682
      %7684 = vrot.lane.b32.xlu0 %v6918, 96
      %v7685 = vpop.permute.xlu0 %7684
      %7686 = vrot.lane.b32.xlu0 %v6919, 96
      %v7687 = vpop.permute.xlu0 %7686
      %7688 = vrot.lane.b32.xlu0 %v6920, 96
      %v7689 = vpop.permute.xlu0 %7688
      %7690 = vrot.lane.b32.xlu0 %v6921, 96
      %v7691 = vpop.permute.xlu0 %7690
      %7692 = vrot.lane.b32.xlu0 %v6922, 96
      %v7693 = vpop.permute.xlu0 %7692
      %7694 = vrot.lane.b32.xlu0 %v6923, 96
      %v7695 = vpop.permute.xlu0 %7694
      %7696 = vrot.lane.b32.xlu0 %v6924, 96
      %v7697 = vpop.permute.xlu0 %7696
      %7698 = vrot.lane.b32.xlu0 %v6925, 96
      %v7699 = vpop.permute.xlu0 %7698
      %7700 = vrot.lane.b32.xlu0 %v6926, 96
      %v7701 = vpop.permute.xlu0 %7700
      %7702 = vrot.lane.b32.xlu0 %v6927, 96
      %v7703 = vpop.permute.xlu0 %7702
      %7704 = vrot.lane.b32.xlu0 %v6928, 96
      %v7705 = vpop.permute.xlu0 %7704
      %7706 = vrot.lane.b32.xlu0 %v6929, 96
      %v7707 = vpop.permute.xlu0 %7706
      %7708 = vrot.lane.b32.xlu0 %v6930, 96
      %v7709 = vpop.permute.xlu0 %7708
      %7710 = vrot.lane.b32.xlu0 %v6931, 96
      %v7711 = vpop.permute.xlu0 %7710
      %7712 = vrot.lane.b32.xlu0 %v6932, 96
      %v7713 = vpop.permute.xlu0 %7712
      %7714 = vrot.lane.b32.xlu0 %v6933, 96
      %v7715 = vpop.permute.xlu0 %7714
      %7716 = vrot.lane.b32.xlu0 %v6934, 96
      %v7717 = vpop.permute.xlu0 %7716
      %7718 = vrot.lane.b32.xlu0 %v6935, 96
      %v7719 = vpop.permute.xlu0 %7718
      %7720 = vrot.lane.b32.xlu0 %v6936, 96
      %v7721 = vpop.permute.xlu0 %7720
      %7722 = vrot.lane.b32.xlu0 %v6937, 96
      %v7723 = vpop.permute.xlu0 %7722
      %7724 = vrot.lane.b32.xlu0 %v6938, 96
      %v7725 = vpop.permute.xlu0 %7724
      %7726 = vrot.lane.b32.xlu0 %v6939, 96
      %v7727 = vpop.permute.xlu0 %7726
      %7728 = vrot.lane.b32.xlu0 %v6940, 96
      %v7729 = vpop.permute.xlu0 %7728
      %7730 = vrot.lane.b32.xlu0 %v6941, 96
      %v7731 = vpop.permute.xlu0 %7730
      %7732 = vrot.lane.b32.xlu0 %v6942, 96
      %v7733 = vpop.permute.xlu0 %7732
      %7734 = vrot.lane.b32.xlu0 %v6943, 96
      %v7735 = vpop.permute.xlu0 %7734
      %7736 = vrot.lane.b32.xlu0 %v6944, 96
      %v7737 = vpop.permute.xlu0 %7736
      %7738 = vrot.lane.b32.xlu0 %v6945, 96
      %v7739 = vpop.permute.xlu0 %7738
      %7740 = vrot.lane.b32.xlu0 %v6946, 96
      %v7741 = vpop.permute.xlu0 %7740
      %7742 = vrot.lane.b32.xlu0 %v6947, 96
      %v7743 = vpop.permute.xlu0 %7742
      %v7780 = vsel %vm442, %v6728, %v7021
      %v7781 = vsel %vm442, %v6729, %v7023
      %v7782 = vsel %vm442, %v6730, %v7025
      %v7783 = vsel %vm442, %v6731, %v7027
      %v7784 = vsel %vm442, %v6732, %v7029
      %v7785 = vsel %vm442, %v6733, %v7031
      %v7786 = vsel %vm442, %v6734, %v7033
      %v7787 = vsel %vm442, %v6735, %v7035
      %v7788 = vsel %vm442, %v6736, %v7037
      %v7789 = vsel %vm442, %v6737, %v7039
      %v7790 = vsel %vm442, %v6738, %v7041
      %v7791 = vsel %vm442, %v6739, %v7043
      %v7792 = vsel %vm442, %v6740, %v7045
      %v7793 = vsel %vm442, %v6741, %v7047
      %v7794 = vsel %vm442, %v6742, %v7049
      %v7795 = vsel %vm442, %v6743, %v7051
      %v7796 = vsel %vm442, %v6744, %v7053
      %v7797 = vsel %vm442, %v6745, %v7055
      %v7798 = vsel %vm442, %v6746, %v7057
      %v7799 = vsel %vm442, %v6747, %v7059
      %v7800 = vsel %vm442, %v6748, %v7061
      %v7801 = vsel %vm442, %v6749, %v7063
      %v7802 = vsel %vm442, %v6750, %v7065
      %v7803 = vsel %vm442, %v6751, %v7067
      %v7804 = vsel %vm442, %v6752, %v7069
      %v7805 = vsel %vm442, %v6753, %v7071
      %v7806 = vsel %vm442, %v6754, %v7073
      %v7807 = vsel %vm442, %v6755, %v7075
      %v7808 = vsel %vm442, %v6756, %v7077
      %v7809 = vsel %vm442, %v6757, %v7079
      %v7810 = vsel %vm442, %v6758, %v7081
      %v7811 = vsel %vm442, %v6759, %v7083
      %v7812 = vsel %vm442, %v6760, %v7085
      %v7813 = vsel %vm442, %v6761, %v7087
      %v7814 = vsel %vm442, %v6762, %v7089
      %v7815 = vsel %vm442, %v6763, %v7091
      %v7816 = vsel %vm453, %v7780, %v7165
      %v7817 = vsel %vm453, %v7781, %v7167
      %v7818 = vsel %vm453, %v7782, %v7169
      %v7819 = vsel %vm453, %v7783, %v7171
      %v7820 = vsel %vm453, %v7784, %v7173
      %v7821 = vsel %vm453, %v7785, %v7175
      %v7822 = vsel %vm453, %v7786, %v7177
      %v7823 = vsel %vm453, %v7787, %v7179
      %v7824 = vsel %vm453, %v7788, %v7181
      %v7825 = vsel %vm453, %v7789, %v7183
      %v7826 = vsel %vm453, %v7790, %v7185
      %v7827 = vsel %vm453, %v7791, %v7187
      %v7828 = vsel %vm453, %v7792, %v7189
      %v7829 = vsel %vm453, %v7793, %v7191
      %v7830 = vsel %vm453, %v7794, %v7193
      %v7831 = vsel %vm453, %v7795, %v7195
      %v7832 = vsel %vm453, %v7796, %v7197
      %v7833 = vsel %vm453, %v7797, %v7199
      %v7834 = vsel %vm453, %v7798, %v7201
      %v7835 = vsel %vm453, %v7799, %v7203
      %v7836 = vsel %vm453, %v7800, %v7205
      %v7837 = vsel %vm453, %v7801, %v7207
      %v7838 = vsel %vm453, %v7802, %v7209
      %v7839 = vsel %vm453, %v7803, %v7211
      %v7840 = vsel %vm453, %v7804, %v7213
      %v7841 = vsel %vm453, %v7805, %v7215
      %v7842 = vsel %vm453, %v7806, %v7217
      %v7843 = vsel %vm453, %v7807, %v7219
      %v7844 = vsel %vm453, %v7808, %v7221
      %v7845 = vsel %vm453, %v7809, %v7223
      %v7846 = vsel %vm453, %v7810, %v7225
      %v7847 = vsel %vm453, %v7811, %v7227
      %v7848 = vsel %vm453, %v7812, %v7229
      %v7849 = vsel %vm453, %v7813, %v7231
      %v7850 = vsel %vm453, %v7814, %v7233
      %v7851 = vsel %vm453, %v7815, %v7235
      %v7852 = vsel %vm3491, %v7816, %v7275
      %v7853 = vsel %vm3491, %v7817, %v7277
      %v7854 = vsel %vm3491, %v7818, %v7279
      %v7855 = vsel %vm3491, %v7819, %v7281
      %v7856 = vsel %vm3491, %v7820, %v7283
      %v7857 = vsel %vm3491, %v7821, %v7285
      %v7858 = vsel %vm3491, %v7822, %v7287
      %v7859 = vsel %vm3491, %v7823, %v7289
      %v7860 = vsel %vm3491, %v7824, %v7291
      %v7861 = vsel %vm3491, %v7825, %v7293
      %v7862 = vsel %vm3491, %v7826, %v7295
      %v7863 = vsel %vm3491, %v7827, %v7297
      %v7864 = vsel %vm3491, %v7828, %v7299
      %v7865 = vsel %vm3491, %v7829, %v7301
      %v7866 = vsel %vm3491, %v7830, %v7303
      %v7867 = vsel %vm3491, %v7831, %v7305
      %v7868 = vsel %vm3491, %v7832, %v7307
      %v7869 = vsel %vm3491, %v7833, %v7309
      %v7870 = vsel %vm3491, %v7834, %v7311
      %v7871 = vsel %vm3491, %v7835, %v7313
      %v7872 = vsel %vm3491, %v7836, %v7315
      %v7873 = vsel %vm3491, %v7837, %v7317
      %v7874 = vsel %vm3491, %v7838, %v7319
      %v7875 = vsel %vm3491, %v7839, %v7321
      %v7876 = vsel %vm3491, %v7840, %v7323
      %v7877 = vsel %vm3491, %v7841, %v7325
      %v7878 = vsel %vm3491, %v7842, %v7327
      %v7879 = vsel %vm3491, %v7843, %v7329
      %v7880 = vsel %vm3491, %v7844, %v7331
      %v7881 = vsel %vm3491, %v7845, %v7333
      %v7882 = vsel %vm3491, %v7846, %v7335
      %v7883 = vsel %vm3491, %v7847, %v7337
      %v7884 = vsel %vm3491, %v7848, %v7339
      %v7885 = vsel %vm3491, %v7849, %v7341
      %v7886 = vsel %vm3491, %v7850, %v7343
      %v7887 = vsel %vm3491, %v7851, %v7345
      %v7888 = vsel %vm442, %v6838, %v7419
      %v7889 = vsel %vm442, %v6839, %v7421
      %v7890 = vsel %vm442, %v6840, %v7423
      %v7891 = vsel %vm442, %v6841, %v7425
      %v7892 = vsel %vm442, %v6842, %v7427
      %v7893 = vsel %vm442, %v6843, %v7429
      %v7894 = vsel %vm442, %v6844, %v7431
      %v7895 = vsel %vm442, %v6845, %v7433
      %v7896 = vsel %vm442, %v6846, %v7435
      %v7897 = vsel %vm442, %v6847, %v7437
      %v7898 = vsel %vm442, %v6848, %v7439
      %v7899 = vsel %vm442, %v6849, %v7441
      %v7900 = vsel %vm442, %v6850, %v7443
      %v7901 = vsel %vm442, %v6851, %v7445
      %v7902 = vsel %vm442, %v6852, %v7447
      %v7903 = vsel %vm442, %v6853, %v7449
      %v7904 = vsel %vm442, %v6854, %v7451
      %v7905 = vsel %vm442, %v6855, %v7453
      %v7906 = vsel %vm442, %v6856, %v7455
      %v7907 = vsel %vm442, %v6857, %v7457
      %v7908 = vsel %vm442, %v6858, %v7459
      %v7909 = vsel %vm442, %v6859, %v7461
      %v7910 = vsel %vm442, %v6860, %v7463
      %v7911 = vsel %vm442, %v6861, %v7465
      %v7912 = vsel %vm442, %v6862, %v7467
      %v7913 = vsel %vm442, %v6863, %v7469
      %v7914 = vsel %vm442, %v6864, %v7471
      %v7915 = vsel %vm442, %v6865, %v7473
      %v7916 = vsel %vm442, %v6866, %v7475
      %v7917 = vsel %vm442, %v6867, %v7477
      %v7918 = vsel %vm442, %v6868, %v7479
      %v7919 = vsel %vm442, %v6869, %v7481
      %v7920 = vsel %vm442, %v6870, %v7483
      %v7921 = vsel %vm442, %v6871, %v7485
      %v7922 = vsel %vm442, %v6872, %v7487
      %v7923 = vsel %vm442, %v6873, %v7489
      %v7924 = vsel %vm453, %v7888, %v7529
      %v7925 = vsel %vm453, %v7889, %v7531
      %v7926 = vsel %vm453, %v7890, %v7533
      %v7927 = vsel %vm453, %v7891, %v7535
      %v7928 = vsel %vm453, %v7892, %v7537
      %v7929 = vsel %vm453, %v7893, %v7539
      %v7930 = vsel %vm453, %v7894, %v7541
      %v7931 = vsel %vm453, %v7895, %v7543
      %v7932 = vsel %vm453, %v7896, %v7545
      %v7933 = vsel %vm453, %v7897, %v7547
      %v7934 = vsel %vm453, %v7898, %v7549
      %v7935 = vsel %vm453, %v7899, %v7551
      %v7936 = vsel %vm453, %v7900, %v7553
      %v7937 = vsel %vm453, %v7901, %v7555
      %v7938 = vsel %vm453, %v7902, %v7557
      %v7939 = vsel %vm453, %v7903, %v7559
      %v7940 = vsel %vm453, %v7904, %v7561
      %v7941 = vsel %vm453, %v7905, %v7563
      %v7942 = vsel %vm453, %v7906, %v7565
      %v7943 = vsel %vm453, %v7907, %v7567
      %v7944 = vsel %vm453, %v7908, %v7569
      %v7945 = vsel %vm453, %v7909, %v7571
      %v7946 = vsel %vm453, %v7910, %v7573
      %v7947 = vsel %vm453, %v7911, %v7575
      %v7948 = vsel %vm453, %v7912, %v7577
      %v7949 = vsel %vm453, %v7913, %v7579
      %v7950 = vsel %vm453, %v7914, %v7581
      %v7951 = vsel %vm453, %v7915, %v7583
      %v7952 = vsel %vm453, %v7916, %v7585
      %v7953 = vsel %vm453, %v7917, %v7587
      %v7954 = vsel %vm453, %v7918, %v7589
      %v7955 = vsel %vm453, %v7919, %v7591
      %v7956 = vsel %vm453, %v7920, %v7593
      %v7957 = vsel %vm453, %v7921, %v7595
      %v7958 = vsel %vm453, %v7922, %v7597
      %v7959 = vsel %vm453, %v7923, %v7599
      %v7960 = vsel %vm3491, %v7924, %v7673
      %v7961 = vsel %vm3491, %v7925, %v7675
      %v7962 = vsel %vm3491, %v7926, %v7677
      %v7963 = vsel %vm3491, %v7927, %v7679
      %v7964 = vsel %vm3491, %v7928, %v7681
      %v7965 = vsel %vm3491, %v7929, %v7683
      %v7966 = vsel %vm3491, %v7930, %v7685
      %v7967 = vsel %vm3491, %v7931, %v7687
      %v7968 = vsel %vm3491, %v7932, %v7689
      %v7969 = vsel %vm3491, %v7933, %v7691
      %v7970 = vsel %vm3491, %v7934, %v7693
      %v7971 = vsel %vm3491, %v7935, %v7695
      %v7972 = vsel %vm3491, %v7936, %v7697
      %v7973 = vsel %vm3491, %v7937, %v7699
      %v7974 = vsel %vm3491, %v7938, %v7701
      %v7975 = vsel %vm3491, %v7939, %v7703
      %v7976 = vsel %vm3491, %v7940, %v7705
      %v7977 = vsel %vm3491, %v7941, %v7707
      %v7978 = vsel %vm3491, %v7942, %v7709
      %v7979 = vsel %vm3491, %v7943, %v7711
      %v7980 = vsel %vm3491, %v7944, %v7713
      %v7981 = vsel %vm3491, %v7945, %v7715
      %v7982 = vsel %vm3491, %v7946, %v7717
      %v7983 = vsel %vm3491, %v7947, %v7719
      %v7984 = vsel %vm3491, %v7948, %v7721
      %v7985 = vsel %vm3491, %v7949, %v7723
      %v7986 = vsel %vm3491, %v7950, %v7725
      %v7987 = vsel %vm3491, %v7951, %v7727
      %v7988 = vsel %vm3491, %v7952, %v7729
      %v7989 = vsel %vm3491, %v7953, %v7731
      %v7990 = vsel %vm3491, %v7954, %v7733
      %v7991 = vsel %vm3491, %v7955, %v7735
      %v7992 = vsel %vm3491, %v7956, %v7737
      %v7993 = vsel %vm3491, %v7957, %v7739
      %v7994 = vsel %vm3491, %v7958, %v7741
      %v7995 = vsel %vm3491, %v7959, %v7743
      %v7996 = vpack.c.bf16 %v7853, %v7852
      %v7997 = vpack.c.bf16 %v7961, %v7960
      %v7998 = vpack.c.bf16 %v6949, %v6948
      %v7999 = vpack.c.bf16 %v7855, %v7854
      %v8000 = vpack.c.bf16 %v7963, %v7962
      %v8001 = vpack.c.bf16 %v6951, %v6950
      %v8002 = vpack.c.bf16 %v7857, %v7856
      %v8003 = vpack.c.bf16 %v7965, %v7964
      %v8004 = vpack.c.bf16 %v6953, %v6952
      %v8005 = vpack.c.bf16 %v7859, %v7858
      %v8006 = vpack.c.bf16 %v7967, %v7966
      %v8007 = vpack.c.bf16 %v6955, %v6954
      %v8008 = vpack.c.bf16 %v7861, %v7860
      %v8009 = vpack.c.bf16 %v7969, %v7968
      %v8010 = vpack.c.bf16 %v6957, %v6956
      %v8011 = vpack.c.bf16 %v7863, %v7862
      %v8012 = vpack.c.bf16 %v7971, %v7970
      %v8013 = vpack.c.bf16 %v6959, %v6958
      %v8014 = vpack.c.bf16 %v7865, %v7864
      %v8015 = vpack.c.bf16 %v7973, %v7972
      %v8016 = vpack.c.bf16 %v6961, %v6960
      %v8017 = vpack.c.bf16 %v7867, %v7866
      %v8018 = vpack.c.bf16 %v7975, %v7974
      %v8019 = vpack.c.bf16 %v6963, %v6962
      %v8020 = vpack.c.bf16 %v7869, %v7868
      %v8021 = vpack.c.bf16 %v7977, %v7976
      %v8022 = vpack.c.bf16 %v6965, %v6964
      %v8023 = vpack.c.bf16 %v7871, %v7870
      %v8024 = vpack.c.bf16 %v7979, %v7978
      %v8025 = vpack.c.bf16 %v6967, %v6966
      %v8026 = vpack.c.bf16 %v7873, %v7872
      %v8027 = vpack.c.bf16 %v7981, %v7980
      %v8028 = vpack.c.bf16 %v6969, %v6968
      %v8029 = vpack.c.bf16 %v7875, %v7874
      %v8030 = vpack.c.bf16 %v7983, %v7982
      %v8031 = vpack.c.bf16 %v6971, %v6970
      %v8032 = vpack.c.bf16 %v7877, %v7876
      %v8033 = vpack.c.bf16 %v7985, %v7984
      %v8034 = vpack.c.bf16 %v6973, %v6972
      %v8035 = vpack.c.bf16 %v7879, %v7878
      %v8036 = vpack.c.bf16 %v7987, %v7986
      %v8037 = vpack.c.bf16 %v6975, %v6974
      %v8038 = vpack.c.bf16 %v7881, %v7880
      %v8039 = vpack.c.bf16 %v7989, %v7988
      %v8040 = vpack.c.bf16 %v6977, %v6976
      %v8041 = vpack.c.bf16 %v7883, %v7882
      %v8042 = vpack.c.bf16 %v7991, %v7990
      %v8043 = vpack.c.bf16 %v6979, %v6978
      %v8044 = vpack.c.bf16 %v7885, %v7884
      %v8045 = vpack.c.bf16 %v7993, %v7992
      %v8046 = vpack.c.bf16 %v6981, %v6980
      %v8047 = vpack.c.bf16 %v7887, %v7886
      %v8048 = vpack.c.bf16 %v7995, %v7994
      %v8049 = vpack.c.bf16 %v6983, %v6982
      %v8050 = vld [vmem:[%s11] sm:$0xf]
      %v8051 = vld [vmem:[%s11 + $0x4] sm:$0xf]
      %v8052 = vld [vmem:[%s11 + $0x8] sm:$0xf]
      %v8053 = vld [vmem:[%s11 + $0xc] sm:$0xf]
      %v8054 = vld [vmem:[%s11 + $0x10] sm:$0xf]
      %v8055 = vld [vmem:[%s11 + $0x14] sm:$0xf]
      %v8056 = vld [vmem:[%s11 + $0x18] sm:$0xf]
      %v8057 = vld [vmem:[%s11 + $0x1c] sm:$0xf]
      %v8058 = vld [vmem:[%s11 + $0x20] sm:$0xf]
      %v8059 = vld [vmem:[%s11 + $0x24] sm:$0xf]
      %v8060 = vld [vmem:[%s11 + $0x28] sm:$0xf]
      %v8061 = vld [vmem:[%s11 + $0x2c] sm:$0xf]
      %v8062 = vld [vmem:[%s11 + $0x30] sm:$0xf]
      %v8063 = vld [vmem:[%s11 + $0x34] sm:$0xf]
      %v8064 = vld [vmem:[%s11 + $0x38] sm:$0xf]
      %v8065 = vld [vmem:[%s11 + $0x3c] sm:$0xf]
      %v8066 = vld [vmem:[%s11 + $0x40] sm:$0xf]
      %v8067 = vld [vmem:[%s11 + $0x44] sm:$0xf]
      %v8068 = vld [vmem:[%s11 + $0x48] sm:$0xf]
      %v8069 = vld [vmem:[%s11 + $0x4c] sm:$0xf]
      %v8070 = vld [vmem:[%s11 + $0x50] sm:$0xf]
      %v8071 = vld [vmem:[%s11 + $0x54] sm:$0xf]
      %v8072 = vld [vmem:[%s11 + $0x58] sm:$0xf]
      %v8073 = vld [vmem:[%s11 + $0x5c] sm:$0xf]
      %v8074 = vld [vmem:[%s11 + $0x60] sm:$0xf]
      %v8075 = vld [vmem:[%s11 + $0x64] sm:$0xf]
      %v8076 = vld [vmem:[%s11 + $0x68] sm:$0xf]
      %v8077 = vld [vmem:[%s11 + $0x6c] sm:$0xf]
      %v8078 = vld [vmem:[%s11 + $0x70] sm:$0xf]
      %v8079 = vld [vmem:[%s11 + $0x74] sm:$0xf]
      %v8080 = vld [vmem:[%s11 + $0x78] sm:$0xf]
      %v8081 = vld [vmem:[%s11 + $0x7c] sm:$0xf]
      %v8082 = vld [vmem:[%s11 + $0x80] sm:$0xf]
      %v8083 = vld [vmem:[%s11 + $0x84] sm:$0xf]
      %v8084 = vld [vmem:[%s11 + $0x88] sm:$0xf]
      %v8085 = vld [vmem:[%s11 + $0x8c] sm:$0xf]
      %v8086 = vld [vmem:[%s12] sm:$0x1]
      %v8088 = vlaneseq
      %v8089 = vshrl.u32 %v8088, 7
      %v8090 = vsub.s32 0, %v8089
      %v8091 = vrot.slane %v8086, %v8090
      %v8129 = vunpack.c.l.b16 %v8050
      %v8130 = vunpack.c.l.b16 %v8051
      %v8131 = vunpack.c.l.b16 %v8052
      %v8132 = vunpack.c.l.b16 %v8053
      %v8133 = vunpack.c.l.b16 %v8054
      %v8134 = vunpack.c.l.b16 %v8055
      %v8135 = vunpack.c.l.b16 %v8056
      %v8136 = vunpack.c.l.b16 %v8057
      %v8137 = vunpack.c.l.b16 %v8058
      %v8138 = vunpack.c.l.b16 %v8059
      %v8139 = vunpack.c.l.b16 %v8060
      %v8140 = vunpack.c.l.b16 %v8061
      %v8141 = vunpack.c.l.b16 %v8062
      %v8142 = vunpack.c.l.b16 %v8063
      %v8143 = vunpack.c.l.b16 %v8064
      %v8144 = vunpack.c.l.b16 %v8065
      %v8145 = vunpack.c.l.b16 %v8066
      %v8146 = vunpack.c.l.b16 %v8067
      %v8147 = vunpack.c.l.b16 %v8068
      %v8148 = vunpack.c.l.b16 %v8069
      %v8149 = vunpack.c.l.b16 %v8070
      %v8150 = vunpack.c.l.b16 %v8071
      %v8151 = vunpack.c.l.b16 %v8072
      %v8152 = vunpack.c.l.b16 %v8073
      %v8153 = vunpack.c.l.b16 %v8074
      %v8154 = vunpack.c.l.b16 %v8075
      %v8155 = vunpack.c.l.b16 %v8076
      %v8156 = vunpack.c.l.b16 %v8077
      %v8157 = vunpack.c.l.b16 %v8078
      %v8158 = vunpack.c.l.b16 %v8079
      %v8159 = vunpack.c.l.b16 %v8080
      %v8160 = vunpack.c.l.b16 %v8081
      %v8161 = vunpack.c.l.b16 %v8082
      %v8162 = vunpack.c.l.b16 %v8083
      %v8163 = vunpack.c.l.b16 %v8084
      %v8164 = vunpack.c.l.b16 %v8085
      %v8165 = vpack.c.b16 %v8130, %v8129
      %v8166 = vpack.c.b16 %v8132, %v8131
      %v8167 = vpack.c.b16 %v8134, %v8133
      %v8168 = vpack.c.b16 %v8136, %v8135
      %v8169 = vpack.c.b16 %v8138, %v8137
      %v8170 = vpack.c.b16 %v8140, %v8139
      %v8171 = vpack.c.b16 %v8142, %v8141
      %v8172 = vpack.c.b16 %v8144, %v8143
      %v8173 = vpack.c.b16 %v8146, %v8145
      %v8174 = vpack.c.b16 %v8148, %v8147
      %v8175 = vpack.c.b16 %v8150, %v8149
      %v8176 = vpack.c.b16 %v8152, %v8151
      %v8177 = vpack.c.b16 %v8154, %v8153
      %v8178 = vpack.c.b16 %v8156, %v8155
      %v8179 = vpack.c.b16 %v8158, %v8157
      %v8180 = vpack.c.b16 %v8160, %v8159
      %v8181 = vpack.c.b16 %v8162, %v8161
      %v8182 = vpack.c.b16 %v8164, %v8163
      %v8202 = vsel %vm442, %v7998, 0
      %v8205 = vsel %vm442, %v8001, 0
      %v8208 = vsel %vm442, %v8004, 0
      %v8211 = vsel %vm442, %v8007, 0
      %v8214 = vsel %vm442, %v8010, 0
      %v8217 = vsel %vm442, %v8013, 0
      %v8220 = vsel %vm442, %v8016, 0
      %v8223 = vsel %vm442, %v8019, 0
      %v8226 = vsel %vm442, %v8022, 0
      %v8229 = vsel %vm442, %v8025, 0
      %v8232 = vsel %vm442, %v8028, 0
      %v8235 = vsel %vm442, %v8031, 0
      %v8238 = vsel %vm442, %v8034, 0
      %v8241 = vsel %vm442, %v8037, 0
      %v8244 = vsel %vm442, %v8040, 0
      %v8247 = vsel %vm442, %v8043, 0
      %v8250 = vsel %vm442, %v8046, 0
      %v8253 = vsel %vm442, %v8049, 0
      %8255 = vmatprep.subr.bf16.mxu0 0
      %8256 = vmatpush1.bf16.msra.mxu0 %v8172
      %8257 = vmatprep.subr.bf16.mxu0 0
      %8258 = vmatpush1.bf16.msra.mxu0 %v8171
      %8259 = vmatprep.subr.bf16.mxu0 0
      %8260 = vmatpush1.bf16.msra.mxu0 %v8170
      %8261 = vmatprep.subr.bf16.mxu0 0
      %8262 = vmatpush1.bf16.msra.mxu0 %v8169
      %8263 = vmatprep.subr.bf16.mxu0 0
      %8264 = vmatpush1.bf16.msra.mxu0 %v8168
      %8265 = vmatprep.subr.bf16.mxu0 0
      %8266 = vmatpush1.bf16.msra.mxu0 %v8167
      %8267 = vmatprep.subr.bf16.mxu0 0
      %8268 = vmatpush1.bf16.msra.mxu0 %v8166
      %8269 = vmatprep.subr.bf16.mxu0 0
      %8270 = vmatpush1.bf16.msra.mxu0 %v8165
      %8271 = vmatprep.subr.bf16.mxu0 0
      %8272 = vmatpush2.bf16.msra.mxu0 %v8180
      %8273 = vmatprep.subr.bf16.mxu0 0
      %8274 = vmatpush2.bf16.msra.mxu0 %v8179
      %8275 = vmatprep.subr.bf16.mxu0 0
      %8276 = vmatpush2.bf16.msra.mxu0 %v8178
      %8277 = vmatprep.subr.bf16.mxu0 0
      %8278 = vmatpush2.bf16.msra.mxu0 %v8177
      %8279 = vmatprep.subr.bf16.mxu0 0
      %8280 = vmatpush2.bf16.msra.mxu0 %v8176
      %8281 = vmatprep.subr.bf16.mxu0 0
      %8282 = vmatpush2.bf16.msra.mxu0 %v8175
      %8283 = vmatprep.subr.bf16.mxu0 0
      %8284 = vmatpush2.bf16.msra.mxu0 %v8174
      %8285 = vmatprep.subr.bf16.mxu0 0
      %8286 = vmatpush2.bf16.msra.mxu0 %v8173
      %8287 = vmatprep.mubr.bf16.mxu0 %v7997
      %8288 = vmatmul.mubr.bf16.gmra.mxu0 %v7996
      %v8289 = vpop.f32.mrf.mxu0
      %v8290 = vadd.f32 %v8091, %v8289
      %v8291 = vpop.f32.mrf.mxu0
      %v8292 = vpop.f32.mrf.mxu0
      %v8293 = vadd.f32 %v8091, %v8292
      %v8294 = vpop.f32.mrf.mxu0
      %8295 = vmatprep.mubr.bf16.mxu0 %v8000
      %8296 = vmatmul.mubr.bf16.gmra.mxu0 %v7999
      %v8297 = vpop.f32.mrf.mxu0
      %v8298 = vadd.f32 %v8091, %v8297
      %v8299 = vpop.f32.mrf.mxu0
      %v8300 = vpop.f32.mrf.mxu0
      %v8301 = vadd.f32 %v8091, %v8300
      %v8302 = vpop.f32.mrf.mxu0
      %8303 = vmatprep.mubr.bf16.mxu0 %v8003
      %8304 = vmatmul.mubr.bf16.gmra.mxu0 %v8002
      %v8305 = vpop.f32.mrf.mxu0
      %v8306 = vadd.f32 %v8091, %v8305
      %v8307 = vpop.f32.mrf.mxu0
      %v8308 = vpop.f32.mrf.mxu0
      %v8309 = vadd.f32 %v8091, %v8308
      %v8310 = vpop.f32.mrf.mxu0
      %8311 = vmatprep.mubr.bf16.mxu0 %v8006
      %8312 = vmatmul.mubr.bf16.gmra.mxu0 %v8005
      %v8313 = vpop.f32.mrf.mxu0
      %v8314 = vadd.f32 %v8091, %v8313
      %v8315 = vpop.f32.mrf.mxu0
      %v8316 = vpop.f32.mrf.mxu0
      %v8317 = vadd.f32 %v8091, %v8316
      %v8318 = vpop.f32.mrf.mxu0
      %8319 = vmatprep.mubr.bf16.mxu0 %v8009
      %8320 = vmatmul.mubr.bf16.gmra.mxu0 %v8008
      %v8321 = vpop.f32.mrf.mxu0
      %v8322 = vadd.f32 %v8091, %v8321
      %v8323 = vpop.f32.mrf.mxu0
      %v8324 = vpop.f32.mrf.mxu0
      %v8325 = vadd.f32 %v8091, %v8324
      %v8326 = vpop.f32.mrf.mxu0
      %8327 = vmatprep.mubr.bf16.mxu0 %v8012
      %8328 = vmatmul.mubr.bf16.gmra.mxu0 %v8011
      %v8329 = vpop.f32.mrf.mxu0
      %v8330 = vadd.f32 %v8091, %v8329
      %v8331 = vpop.f32.mrf.mxu0
      %v8332 = vpop.f32.mrf.mxu0
      %v8333 = vadd.f32 %v8091, %v8332
      %v8334 = vpop.f32.mrf.mxu0
      %8335 = vmatprep.mubr.bf16.mxu0 %v8015
      %8336 = vmatmul.mubr.bf16.gmra.mxu0 %v8014
      %v8337 = vpop.f32.mrf.mxu0
      %v8338 = vadd.f32 %v8091, %v8337
      %v8339 = vpop.f32.mrf.mxu0
      %v8340 = vpop.f32.mrf.mxu0
      %v8341 = vadd.f32 %v8091, %v8340
      %v8342 = vpop.f32.mrf.mxu0
      %8343 = vmatprep.mubr.bf16.mxu0 %v8018
      %8344 = vmatmul.mubr.bf16.gmra.mxu0 %v8017
      %v8345 = vpop.f32.mrf.mxu0
      %v8346 = vadd.f32 %v8091, %v8345
      %v8347 = vpop.f32.mrf.mxu0
      %v8348 = vpop.f32.mrf.mxu0
      %v8349 = vadd.f32 %v8091, %v8348
      %v8350 = vpop.f32.mrf.mxu0
      %8351 = vmatprep.mubr.bf16.mxu0 %v8021
      %8352 = vmatmul.mubr.bf16.gmra.mxu0 %v8020
      %v8353 = vpop.f32.mrf.mxu0
      %v8354 = vadd.f32 %v8091, %v8353
      %v8355 = vpop.f32.mrf.mxu0
      %v8356 = vpop.f32.mrf.mxu0
      %v8357 = vadd.f32 %v8091, %v8356
      %v8358 = vpop.f32.mrf.mxu0
      %8359 = vmatprep.mubr.bf16.mxu0 %v8024
      %8360 = vmatmul.mubr.bf16.gmra.mxu0 %v8023
      %v8361 = vpop.f32.mrf.mxu0
      %v8362 = vadd.f32 %v8091, %v8361
      %v8363 = vpop.f32.mrf.mxu0
      %v8364 = vpop.f32.mrf.mxu0
      %v8365 = vadd.f32 %v8091, %v8364
      %v8366 = vpop.f32.mrf.mxu0
      %8367 = vmatprep.mubr.bf16.mxu0 %v8027
      %8368 = vmatmul.mubr.bf16.gmra.mxu0 %v8026
      %v8369 = vpop.f32.mrf.mxu0
      %v8370 = vadd.f32 %v8091, %v8369
      %v8371 = vpop.f32.mrf.mxu0
      %v8372 = vpop.f32.mrf.mxu0
      %v8373 = vadd.f32 %v8091, %v8372
      %v8374 = vpop.f32.mrf.mxu0
      %8375 = vmatprep.mubr.bf16.mxu0 %v8030
      %8376 = vmatmul.mubr.bf16.gmra.mxu0 %v8029
      %v8377 = vpop.f32.mrf.mxu0
      %v8378 = vadd.f32 %v8091, %v8377
      %v8379 = vpop.f32.mrf.mxu0
      %v8380 = vpop.f32.mrf.mxu0
      %v8381 = vadd.f32 %v8091, %v8380
      %v8382 = vpop.f32.mrf.mxu0
      %8383 = vmatprep.mubr.bf16.mxu0 %v8033
      %8384 = vmatmul.mubr.bf16.gmra.mxu0 %v8032
      %v8385 = vpop.f32.mrf.mxu0
      %v8386 = vadd.f32 %v8091, %v8385
      %v8387 = vpop.f32.mrf.mxu0
      %v8388 = vpop.f32.mrf.mxu0
      %v8389 = vadd.f32 %v8091, %v8388
      %v8390 = vpop.f32.mrf.mxu0
      %8391 = vmatprep.mubr.bf16.mxu0 %v8036
      %8392 = vmatmul.mubr.bf16.gmra.mxu0 %v8035
      %v8393 = vpop.f32.mrf.mxu0
      %v8394 = vadd.f32 %v8091, %v8393
      %v8395 = vpop.f32.mrf.mxu0
      %v8396 = vpop.f32.mrf.mxu0
      %v8397 = vadd.f32 %v8091, %v8396
      %v8398 = vpop.f32.mrf.mxu0
      %8399 = vmatprep.mubr.bf16.mxu0 %v8039
      %8400 = vmatmul.mubr.bf16.gmra.mxu0 %v8038
      %v8401 = vpop.f32.mrf.mxu0
      %v8402 = vadd.f32 %v8091, %v8401
      %v8403 = vpop.f32.mrf.mxu0
      %v8404 = vpop.f32.mrf.mxu0
      %v8405 = vadd.f32 %v8091, %v8404
      %v8406 = vpop.f32.mrf.mxu0
      %8407 = vmatprep.mubr.bf16.mxu0 %v8042
      %8408 = vmatmul.mubr.bf16.gmra.mxu0 %v8041
      %v8409 = vpop.f32.mrf.mxu0
      %v8410 = vadd.f32 %v8091, %v8409
      %v8411 = vpop.f32.mrf.mxu0
      %v8412 = vpop.f32.mrf.mxu0
      %v8413 = vadd.f32 %v8091, %v8412
      %v8414 = vpop.f32.mrf.mxu0
      %8415 = vmatprep.mubr.bf16.mxu0 %v8045
      %8416 = vmatmul.mubr.bf16.gmra.mxu0 %v8044
      %v8417 = vpop.f32.mrf.mxu0
      %v8418 = vadd.f32 %v8091, %v8417
      %v8419 = vpop.f32.mrf.mxu0
      %v8420 = vpop.f32.mrf.mxu0
      %v8421 = vadd.f32 %v8091, %v8420
      %v8422 = vpop.f32.mrf.mxu0
      %8423 = vmatprep.mubr.bf16.mxu0 %v8048
      %8424 = vmatmul.mubr.bf16.gmra.mxu0 %v8047
      %v8425 = vpop.f32.mrf.mxu0
      %v8426 = vadd.f32 %v8091, %v8425
      %v8427 = vpop.f32.mrf.mxu0
      %v8428 = vpop.f32.mrf.mxu0
      %v8429 = vadd.f32 %v8091, %v8428
      %v8430 = vpop.f32.mrf.mxu0
      %8431 = vdwg.mxu0
      %8432 = vmatprep.subr.bf16.mxu0 0
      %8433 = vmatpush1.bf16.msra.mxu0 0
      %8434 = vmatprep.subr.bf16.mxu0 0
      %8435 = vmatpush1.bf16.msra.mxu0 0
      %8436 = vmatprep.subr.bf16.mxu0 0
      %8437 = vmatpush1.bf16.msra.mxu0 0
      %8438 = vmatprep.subr.bf16.mxu0 0
      %8439 = vmatpush1.bf16.msra.mxu0 0
      %8440 = vmatprep.subr.bf16.mxu0 0
      %8441 = vmatpush1.bf16.msra.mxu0 0
      %8442 = vmatprep.subr.bf16.mxu0 0
      %8443 = vmatpush1.bf16.msra.mxu0 0
      %8444 = vmatprep.subr.bf16.mxu0 0
      %8445 = vmatpush1.bf16.msra.mxu0 %v8182
      %8446 = vmatprep.subr.bf16.mxu0 0
      %8447 = vmatpush1.bf16.msra.mxu0 %v8181
      %8448 = vmatprep.subr.bf16.mxu0 0
      %8449 = vmatpush2.bf16.msra.mxu0 0
      %8450 = vmatprep.subr.bf16.mxu0 0
      %8451 = vmatpush2.bf16.msra.mxu0 0
      %8452 = vmatprep.subr.bf16.mxu0 0
      %8453 = vmatpush2.bf16.msra.mxu0 0
      %8454 = vmatprep.subr.bf16.mxu0 0
      %8455 = vmatpush2.bf16.msra.mxu0 0
      %8456 = vmatprep.subr.bf16.mxu0 0
      %8457 = vmatpush2.bf16.msra.mxu0 0
      %8458 = vmatprep.subr.bf16.mxu0 0
      %8459 = vmatpush2.bf16.msra.mxu0 0
      %8460 = vmatprep.subr.bf16.mxu0 0
      %8461 = vmatpush2.bf16.msra.mxu0 0
      %8462 = vmatprep.subr.bf16.mxu0 0
      %8463 = vmatpush2.bf16.msra.mxu0 0
      %8464 = vmatprep.mubr.bf16.mxu0 0
      %8465 = vmatmul.mubr.bf16.gmra.mxu0 %v8202
      %v8466 = vpop.f32.mrf.mxu0
      %v8467 = vadd.f32 %v8290, %v8466
      %v8468 = vpop.f32.mrf.mxu0
      %v8469 = vpop.f32.mrf.mxu0
      %v8470 = vadd.f32 %v8293, %v8469
      %v8471 = vpop.f32.mrf.mxu0
      %8472 = vmatprep.mubr.bf16.mxu0 0
      %8473 = vmatmul.mubr.bf16.gmra.mxu0 %v8205
      %v8474 = vpop.f32.mrf.mxu0
      %v8475 = vadd.f32 %v8298, %v8474
      %v8476 = vpop.f32.mrf.mxu0
      %v8477 = vpop.f32.mrf.mxu0
      %v8478 = vadd.f32 %v8301, %v8477
      %v8479 = vpop.f32.mrf.mxu0
      %8480 = vmatprep.mubr.bf16.mxu0 0
      %8481 = vmatmul.mubr.bf16.gmra.mxu0 %v8208
      %v8482 = vpop.f32.mrf.mxu0
      %v8483 = vadd.f32 %v8306, %v8482
      %v8484 = vpop.f32.mrf.mxu0
      %v8485 = vpop.f32.mrf.mxu0
      %v8486 = vadd.f32 %v8309, %v8485
      %v8487 = vpop.f32.mrf.mxu0
      %8488 = vmatprep.mubr.bf16.mxu0 0
      %8489 = vmatmul.mubr.bf16.gmra.mxu0 %v8211
      %v8490 = vpop.f32.mrf.mxu0
      %v8491 = vadd.f32 %v8314, %v8490
      %v8492 = vpop.f32.mrf.mxu0
      %v8493 = vpop.f32.mrf.mxu0
      %v8494 = vadd.f32 %v8317, %v8493
      %v8495 = vpop.f32.mrf.mxu0
      %8496 = vmatprep.mubr.bf16.mxu0 0
      %8497 = vmatmul.mubr.bf16.gmra.mxu0 %v8214
      %v8498 = vpop.f32.mrf.mxu0
      %v8499 = vadd.f32 %v8322, %v8498
      %v8500 = vpop.f32.mrf.mxu0
      %v8501 = vpop.f32.mrf.mxu0
      %v8502 = vadd.f32 %v8325, %v8501
      %v8503 = vpop.f32.mrf.mxu0
      %8504 = vmatprep.mubr.bf16.mxu0 0
      %8505 = vmatmul.mubr.bf16.gmra.mxu0 %v8217
      %v8506 = vpop.f32.mrf.mxu0
      %v8507 = vadd.f32 %v8330, %v8506
      %v8508 = vpop.f32.mrf.mxu0
      %v8509 = vpop.f32.mrf.mxu0
      %v8510 = vadd.f32 %v8333, %v8509
      %v8511 = vpop.f32.mrf.mxu0
      %8512 = vmatprep.mubr.bf16.mxu0 0
      %8513 = vmatmul.mubr.bf16.gmra.mxu0 %v8220
      %v8514 = vpop.f32.mrf.mxu0
      %v8515 = vadd.f32 %v8338, %v8514
      %v8516 = vpop.f32.mrf.mxu0
      %v8517 = vpop.f32.mrf.mxu0
      %v8518 = vadd.f32 %v8341, %v8517
      %v8519 = vpop.f32.mrf.mxu0
      %8520 = vmatprep.mubr.bf16.mxu0 0
      %8521 = vmatmul.mubr.bf16.gmra.mxu0 %v8223
      %v8522 = vpop.f32.mrf.mxu0
      %v8523 = vadd.f32 %v8346, %v8522
      %v8524 = vpop.f32.mrf.mxu0
      %v8525 = vpop.f32.mrf.mxu0
      %v8526 = vadd.f32 %v8349, %v8525
      %v8527 = vpop.f32.mrf.mxu0
      %8528 = vmatprep.mubr.bf16.mxu0 0
      %8529 = vmatmul.mubr.bf16.gmra.mxu0 %v8226
      %v8530 = vpop.f32.mrf.mxu0
      %v8531 = vadd.f32 %v8354, %v8530
      %v8532 = vpop.f32.mrf.mxu0
      %v8533 = vpop.f32.mrf.mxu0
      %v8534 = vadd.f32 %v8357, %v8533
      %v8535 = vpop.f32.mrf.mxu0
      %8536 = vmatprep.mubr.bf16.mxu0 0
      %8537 = vmatmul.mubr.bf16.gmra.mxu0 %v8229
      %v8538 = vpop.f32.mrf.mxu0
      %v8539 = vadd.f32 %v8362, %v8538
      %v8540 = vpop.f32.mrf.mxu0
      %v8541 = vpop.f32.mrf.mxu0
      %v8542 = vadd.f32 %v8365, %v8541
      %v8543 = vpop.f32.mrf.mxu0
      %8544 = vmatprep.mubr.bf16.mxu0 0
      %8545 = vmatmul.mubr.bf16.gmra.mxu0 %v8232
      %v8546 = vpop.f32.mrf.mxu0
      %v8547 = vadd.f32 %v8370, %v8546
      %v8548 = vpop.f32.mrf.mxu0
      %v8549 = vpop.f32.mrf.mxu0
      %v8550 = vadd.f32 %v8373, %v8549
      %v8551 = vpop.f32.mrf.mxu0
      %8552 = vmatprep.mubr.bf16.mxu0 0
      %8553 = vmatmul.mubr.bf16.gmra.mxu0 %v8235
      %v8554 = vpop.f32.mrf.mxu0
      %v8555 = vadd.f32 %v8378, %v8554
      %v8556 = vpop.f32.mrf.mxu0
      %v8557 = vpop.f32.mrf.mxu0
      %v8558 = vadd.f32 %v8381, %v8557
      %v8559 = vpop.f32.mrf.mxu0
      %8560 = vmatprep.mubr.bf16.mxu0 0
      %8561 = vmatmul.mubr.bf16.gmra.mxu0 %v8238
      %v8562 = vpop.f32.mrf.mxu0
      %v8563 = vadd.f32 %v8386, %v8562
      %v8564 = vpop.f32.mrf.mxu0
      %v8565 = vpop.f32.mrf.mxu0
      %v8566 = vadd.f32 %v8389, %v8565
      %v8567 = vpop.f32.mrf.mxu0
      %8568 = vmatprep.mubr.bf16.mxu0 0
      %8569 = vmatmul.mubr.bf16.gmra.mxu0 %v8241
      %v8570 = vpop.f32.mrf.mxu0
      %v8571 = vadd.f32 %v8394, %v8570
      %v8572 = vpop.f32.mrf.mxu0
      %v8573 = vpop.f32.mrf.mxu0
      %v8574 = vadd.f32 %v8397, %v8573
      %v8575 = vpop.f32.mrf.mxu0
      %8576 = vmatprep.mubr.bf16.mxu0 0
      %8577 = vmatmul.mubr.bf16.gmra.mxu0 %v8244
      %v8578 = vpop.f32.mrf.mxu0
      %v8579 = vadd.f32 %v8402, %v8578
      %v8580 = vpop.f32.mrf.mxu0
      %v8581 = vpop.f32.mrf.mxu0
      %v8582 = vadd.f32 %v8405, %v8581
      %v8583 = vpop.f32.mrf.mxu0
      %8584 = vmatprep.mubr.bf16.mxu0 0
      %8585 = vmatmul.mubr.bf16.gmra.mxu0 %v8247
      %v8586 = vpop.f32.mrf.mxu0
      %v8587 = vadd.f32 %v8410, %v8586
      %v8588 = vpop.f32.mrf.mxu0
      %v8589 = vpop.f32.mrf.mxu0
      %v8590 = vadd.f32 %v8413, %v8589
      %v8591 = vpop.f32.mrf.mxu0
      %8592 = vmatprep.mubr.bf16.mxu0 0
      %8593 = vmatmul.mubr.bf16.gmra.mxu0 %v8250
      %v8594 = vpop.f32.mrf.mxu0
      %v8595 = vadd.f32 %v8418, %v8594
      %v8596 = vpop.f32.mrf.mxu0
      %v8597 = vpop.f32.mrf.mxu0
      %v8598 = vadd.f32 %v8421, %v8597
      %v8599 = vpop.f32.mrf.mxu0
      %8600 = vmatprep.mubr.bf16.mxu0 0
      %8601 = vmatmul.mubr.bf16.gmra.mxu0 %v8253
      %v8602 = vpop.f32.mrf.mxu0
      %v8603 = vadd.f32 %v8426, %v8602
      %v8604 = vpop.f32.mrf.mxu0
      %v8605 = vpop.f32.mrf.mxu0
      %v8606 = vadd.f32 %v8429, %v8605
      %v8607 = vpop.f32.mrf.mxu0
      %8608 = vdwg.mxu0
      %v8609 = vxor.u32 %v8467, 2147483648
      %v8610 = vxor.u32 %v8470, 2147483648
      %v8611 = vxor.u32 %v8475, 2147483648
      %v8612 = vxor.u32 %v8478, 2147483648
      %v8613 = vxor.u32 %v8483, 2147483648
      %v8614 = vxor.u32 %v8486, 2147483648
      %v8615 = vxor.u32 %v8491, 2147483648
      %v8616 = vxor.u32 %v8494, 2147483648
      %v8617 = vxor.u32 %v8499, 2147483648
      %v8618 = vxor.u32 %v8502, 2147483648
      %v8619 = vxor.u32 %v8507, 2147483648
      %v8620 = vxor.u32 %v8510, 2147483648
      %v8621 = vxor.u32 %v8515, 2147483648
      %v8622 = vxor.u32 %v8518, 2147483648
      %v8623 = vxor.u32 %v8523, 2147483648
      %v8624 = vxor.u32 %v8526, 2147483648
      %v8625 = vxor.u32 %v8531, 2147483648
      %v8626 = vxor.u32 %v8534, 2147483648
      %v8627 = vxor.u32 %v8539, 2147483648
      %v8628 = vxor.u32 %v8542, 2147483648
      %v8629 = vxor.u32 %v8547, 2147483648
      %v8630 = vxor.u32 %v8550, 2147483648
      %v8631 = vxor.u32 %v8555, 2147483648
      %v8632 = vxor.u32 %v8558, 2147483648
      %v8633 = vxor.u32 %v8563, 2147483648
      %v8634 = vxor.u32 %v8566, 2147483648
      %v8635 = vxor.u32 %v8571, 2147483648
      %v8636 = vxor.u32 %v8574, 2147483648
      %v8637 = vxor.u32 %v8579, 2147483648
      %v8638 = vxor.u32 %v8582, 2147483648
      %v8639 = vxor.u32 %v8587, 2147483648
      %v8640 = vxor.u32 %v8590, 2147483648
      %v8641 = vxor.u32 %v8595, 2147483648
      %v8642 = vxor.u32 %v8598, 2147483648
      %v8643 = vxor.u32 %v8603, 2147483648
      %v8644 = vxor.u32 %v8606, 2147483648
      %v8645 = vmul.f32 %v8609, 1.442695
      %v8646 = vpow.pop %v8645
      %v8647 = vmul.f32 %v8610, 1.442695
      %v8648 = vpow.pop %v8647
      %v8649 = vmul.f32 %v8611, 1.442695
      %v8650 = vpow.pop %v8649
      %v8651 = vmul.f32 %v8612, 1.442695
      %v8652 = vpow.pop %v8651
      %v8653 = vmul.f32 %v8613, 1.442695
      %v8654 = vpow.pop %v8653
      %v8655 = vmul.f32 %v8614, 1.442695
      %v8656 = vpow.pop %v8655
      %v8657 = vmul.f32 %v8615, 1.442695
      %v8658 = vpow.pop %v8657
      %v8659 = vmul.f32 %v8616, 1.442695
      %v8660 = vpow.pop %v8659
      %v8661 = vmul.f32 %v8617, 1.442695
      %v8662 = vpow.pop %v8661
      %v8663 = vmul.f32 %v8618, 1.442695
      %v8664 = vpow.pop %v8663
      %v8665 = vmul.f32 %v8619, 1.442695
      %v8666 = vpow.pop %v8665
      %v8667 = vmul.f32 %v8620, 1.442695
      %v8668 = vpow.pop %v8667
      %v8669 = vmul.f32 %v8621, 1.442695
      %v8670 = vpow.pop %v8669
      %v8671 = vmul.f32 %v8622, 1.442695
      %v8672 = vpow.pop %v8671
      %v8673 = vmul.f32 %v8623, 1.442695
      %v8674 = vpow.pop %v8673
      %v8675 = vmul.f32 %v8624, 1.442695
      %v8676 = vpow.pop %v8675
      %v8677 = vmul.f32 %v8625, 1.442695
      %v8678 = vpow.pop %v8677
      %v8679 = vmul.f32 %v8626, 1.442695
      %v8680 = vpow.pop %v8679
      %v8681 = vmul.f32 %v8627, 1.442695
      %v8682 = vpow.pop %v8681
      %v8683 = vmul.f32 %v8628, 1.442695
      %v8684 = vpow.pop %v8683
      %v8685 = vmul.f32 %v8629, 1.442695
      %v8686 = vpow.pop %v8685
      %v8687 = vmul.f32 %v8630, 1.442695
      %v8688 = vpow.pop %v8687
      %v8689 = vmul.f32 %v8631, 1.442695
      %v8690 = vpow.pop %v8689
      %v8691 = vmul.f32 %v8632, 1.442695
      %v8692 = vpow.pop %v8691
      %v8693 = vmul.f32 %v8633, 1.442695
      %v8694 = vpow.pop %v8693
      %v8695 = vmul.f32 %v8634, 1.442695
      %v8696 = vpow.pop %v8695
      %v8697 = vmul.f32 %v8635, 1.442695
      %v8698 = vpow.pop %v8697
      %v8699 = vmul.f32 %v8636, 1.442695
      %v8700 = vpow.pop %v8699
      %v8701 = vmul.f32 %v8637, 1.442695
      %v8702 = vpow.pop %v8701
      %v8703 = vmul.f32 %v8638, 1.442695
      %v8704 = vpow.pop %v8703
      %v8705 = vmul.f32 %v8639, 1.442695
      %v8706 = vpow.pop %v8705
      %v8707 = vmul.f32 %v8640, 1.442695
      %v8708 = vpow.pop %v8707
      %v8709 = vmul.f32 %v8641, 1.442695
      %v8710 = vpow.pop %v8709
      %v8711 = vmul.f32 %v8642, 1.442695
      %v8712 = vpow.pop %v8711
      %v8713 = vmul.f32 %v8643, 1.442695
      %v8714 = vpow.pop %v8713
      %v8715 = vmul.f32 %v8644, 1.442695
      %v8716 = vpow.pop %v8715
      %v8717 = vadd.f32 %v8646, 1.0
      %v8718 = vadd.f32 %v8648, 1.0
      %v8719 = vadd.f32 %v8650, 1.0
      %v8720 = vadd.f32 %v8652, 1.0
      %v8721 = vadd.f32 %v8654, 1.0
      %v8722 = vadd.f32 %v8656, 1.0
      %v8723 = vadd.f32 %v8658, 1.0
      %v8724 = vadd.f32 %v8660, 1.0
      %v8725 = vadd.f32 %v8662, 1.0
      %v8726 = vadd.f32 %v8664, 1.0
      %v8727 = vadd.f32 %v8666, 1.0
      %v8728 = vadd.f32 %v8668, 1.0
      %v8729 = vadd.f32 %v8670, 1.0
      %v8730 = vadd.f32 %v8672, 1.0
      %v8731 = vadd.f32 %v8674, 1.0
      %v8732 = vadd.f32 %v8676, 1.0
      %v8733 = vadd.f32 %v8678, 1.0
      %v8734 = vadd.f32 %v8680, 1.0
      %v8735 = vadd.f32 %v8682, 1.0
      %v8736 = vadd.f32 %v8684, 1.0
      %v8737 = vadd.f32 %v8686, 1.0
      %v8738 = vadd.f32 %v8688, 1.0
      %v8739 = vadd.f32 %v8690, 1.0
      %v8740 = vadd.f32 %v8692, 1.0
      %v8741 = vadd.f32 %v8694, 1.0
      %v8742 = vadd.f32 %v8696, 1.0
      %v8743 = vadd.f32 %v8698, 1.0
      %v8744 = vadd.f32 %v8700, 1.0
      %v8745 = vadd.f32 %v8702, 1.0
      %v8746 = vadd.f32 %v8704, 1.0
      %v8747 = vadd.f32 %v8706, 1.0
      %v8748 = vadd.f32 %v8708, 1.0
      %v8749 = vadd.f32 %v8710, 1.0
      %v8750 = vadd.f32 %v8712, 1.0
      %v8751 = vadd.f32 %v8714, 1.0
      %v8752 = vadd.f32 %v8716, 1.0
      %v8753 = vrcp.pop %v8717
      %v8754 = vmul.f32 1.0, %v8753
      %v8755 = vrcp.pop %v8718
      %v8756 = vmul.f32 1.0, %v8755
      %v8757 = vrcp.pop %v8719
      %v8758 = vmul.f32 1.0, %v8757
      %v8759 = vrcp.pop %v8720
      %v8760 = vmul.f32 1.0, %v8759
      %v8761 = vrcp.pop %v8721
      %v8762 = vmul.f32 1.0, %v8761
      %v8763 = vrcp.pop %v8722
      %v8764 = vmul.f32 1.0, %v8763
      %v8765 = vrcp.pop %v8723
      %v8766 = vmul.f32 1.0, %v8765
      %v8767 = vrcp.pop %v8724
      %v8768 = vmul.f32 1.0, %v8767
      %v8769 = vrcp.pop %v8725
      %v8770 = vmul.f32 1.0, %v8769
      %v8771 = vrcp.pop %v8726
      %v8772 = vmul.f32 1.0, %v8771
      %v8773 = vrcp.pop %v8727
      %v8774 = vmul.f32 1.0, %v8773
      %v8775 = vrcp.pop %v8728
      %v8776 = vmul.f32 1.0, %v8775
      %v8777 = vrcp.pop %v8729
      %v8778 = vmul.f32 1.0, %v8777
      %v8779 = vrcp.pop %v8730
      %v8780 = vmul.f32 1.0, %v8779
      %v8781 = vrcp.pop %v8731
      %v8782 = vmul.f32 1.0, %v8781
      %v8783 = vrcp.pop %v8732
      %v8784 = vmul.f32 1.0, %v8783
      %v8785 = vrcp.pop %v8733
      %v8786 = vmul.f32 1.0, %v8785
      %v8787 = vrcp.pop %v8734
      %v8788 = vmul.f32 1.0, %v8787
      %v8789 = vrcp.pop %v8735
      %v8790 = vmul.f32 1.0, %v8789
      %v8791 = vrcp.pop %v8736
      %v8792 = vmul.f32 1.0, %v8791
      %v8793 = vrcp.pop %v8737
      %v8794 = vmul.f32 1.0, %v8793
      %v8795 = vrcp.pop %v8738
      %v8796 = vmul.f32 1.0, %v8795
      %v8797 = vrcp.pop %v8739
      %v8798 = vmul.f32 1.0, %v8797
      %v8799 = vrcp.pop %v8740
      %v8800 = vmul.f32 1.0, %v8799
      %v8801 = vrcp.pop %v8741
      %v8802 = vmul.f32 1.0, %v8801
      %v8803 = vrcp.pop %v8742
      %v8804 = vmul.f32 1.0, %v8803
      %v8805 = vrcp.pop %v8743
      %v8806 = vmul.f32 1.0, %v8805
      %v8807 = vrcp.pop %v8744
      %v8808 = vmul.f32 1.0, %v8807
      %v8809 = vrcp.pop %v8745
      %v8810 = vmul.f32 1.0, %v8809
      %v8811 = vrcp.pop %v8746
      %v8812 = vmul.f32 1.0, %v8811
      %v8813 = vrcp.pop %v8747
      %v8814 = vmul.f32 1.0, %v8813
      %v8815 = vrcp.pop %v8748
      %v8816 = vmul.f32 1.0, %v8815
      %v8817 = vrcp.pop %v8749
      %v8818 = vmul.f32 1.0, %v8817
      %v8819 = vrcp.pop %v8750
      %v8820 = vmul.f32 1.0, %v8819
      %v8821 = vrcp.pop %v8751
      %v8822 = vmul.f32 1.0, %v8821
      %v8823 = vrcp.pop %v8752
      %v8824 = vmul.f32 1.0, %v8823
      %8825 = vst.msk [vmem:[%s440] sm:$0xff] %vm2083, %v8754
      %8826 = vst.msk [vmem:[%s440 + $0x8] sm:$0xff] %vm2083, %v8756
      %8827 = vst.msk [vmem:[%s440 + $0x10] sm:$0xff] %vm2083, %v8758
      %8828 = vst.msk [vmem:[%s440 + $0x18] sm:$0xff] %vm2083, %v8760
      %8829 = vst.msk [vmem:[%s440 + $0x20] sm:$0xff] %vm2083, %v8762
      %8830 = vst.msk [vmem:[%s440 + $0x28] sm:$0xff] %vm2083, %v8764
      %8831 = vst.msk [vmem:[%s440 + $0x30] sm:$0xff] %vm2083, %v8766
      %8832 = vst.msk [vmem:[%s440 + $0x38] sm:$0xff] %vm2083, %v8768
      %8833 = vst.msk [vmem:[%s440 + $0x40] sm:$0xff] %vm2083, %v8770
      %8834 = vst.msk [vmem:[%s440 + $0x48] sm:$0xff] %vm2083, %v8772
      %8835 = vst.msk [vmem:[%s440 + $0x50] sm:$0xff] %vm2083, %v8774
      %8836 = vst.msk [vmem:[%s440 + $0x58] sm:$0xff] %vm2083, %v8776
      %8837 = vst.msk [vmem:[%s440 + $0x60] sm:$0xff] %vm2083, %v8778
      %8838 = vst.msk [vmem:[%s440 + $0x68] sm:$0xff] %vm2083, %v8780
      %8839 = vst.msk [vmem:[%s440 + $0x70] sm:$0xff] %vm2083, %v8782
      %8840 = vst.msk [vmem:[%s440 + $0x78] sm:$0xff] %vm2083, %v8784
      %8841 = vst.msk [vmem:[%s440 + $0x80] sm:$0xff] %vm2083, %v8786
      %8842 = vst.msk [vmem:[%s440 + $0x88] sm:$0xff] %vm2083, %v8788
      %8843 = vst.msk [vmem:[%s440 + $0x90] sm:$0xff] %vm2083, %v8790
      %8844 = vst.msk [vmem:[%s440 + $0x98] sm:$0xff] %vm2083, %v8792
      %8845 = vst.msk [vmem:[%s440 + $0xa0] sm:$0xff] %vm2083, %v8794
      %8846 = vst.msk [vmem:[%s440 + $0xa8] sm:$0xff] %vm2083, %v8796
      %8847 = vst.msk [vmem:[%s440 + $0xb0] sm:$0xff] %vm2083, %v8798
      %8848 = vst.msk [vmem:[%s440 + $0xb8] sm:$0xff] %vm2083, %v8800
      %8849 = vst.msk [vmem:[%s440 + $0xc0] sm:$0xff] %vm2083, %v8802
      %8850 = vst.msk [vmem:[%s440 + $0xc8] sm:$0xff] %vm2083, %v8804
      %8851 = vst.msk [vmem:[%s440 + $0xd0] sm:$0xff] %vm2083, %v8806
      %8852 = vst.msk [vmem:[%s440 + $0xd8] sm:$0xff] %vm2083, %v8808
      %8853 = vst.msk [vmem:[%s440 + $0xe0] sm:$0xff] %vm2083, %v8810
      %8854 = vst.msk [vmem:[%s440 + $0xe8] sm:$0xff] %vm2083, %v8812
      %8855 = vst.msk [vmem:[%s440 + $0xf0] sm:$0xff] %vm2083, %v8814
      %8856 = vst.msk [vmem:[%s440 + $0xf8] sm:$0xff] %vm2083, %v8816
      %8857 = vst.msk [vmem:[%s440 + $0x100] sm:$0xff] %vm2083, %v8818
      %8858 = vst.msk [vmem:[%s440 + $0x108] sm:$0xff] %vm2083, %v8820
      %8859 = vst.msk [vmem:[%s440 + $0x110] sm:$0xff] %vm2083, %v8822
      %8860 = vst.msk [vmem:[%s440 + $0x118] sm:$0xff] %vm2083, %v8824
      %p8861 = scmp.lt.s32.totalorder %s24, 1
      %s8862 = scalar_select %p8861, %s24, 1
      %s8863 = smul.addr %s8862, 36
      %s8864 = smul.addr %s8863, 8
      %s8865 = scalar_lea.vmem %s13, %s8864
      // Predicated region
      $region73: #{carpet_patch_autoencoder.1} parent=71 // pred_check
        %p8866 = pneg %p320
      $region74: #{carpet_patch_autoencoder.1} parent=71 // pred_check_branch
        %8868 = sbr.rel (%p8866) target = $region76
      $region75: #{carpet_patch_autoencoder.1} parent=71 // pred_region
        _
      $region76: #{carpet_patch_autoencoder.1} parent=71 // pred_fallthru
        _
    $region72: #{carpet_patch_autoencoder.1} parent=5 // pred_fallthru
      _
    %p8869 = scmp.le.s32.totalorder 2, %s19
    // Predicated region
    $region77: #{carpet_patch_autoencoder.1} parent=5 // pred_check
      %p8870 = pneg %p8869
    $region78: #{carpet_patch_autoencoder.1} parent=5 // pred_check_branch
      %8872 = sbr.rel (%p8870) target = $region80
    $region79: #{carpet_patch_autoencoder.1} parent=5 // pred_region
      %s8873 = ssub.s32 %s19, 2
      // Predicated region
      $region81: #{carpet_patch_autoencoder.1} parent=79 // pred_check
        %p8874 = pneg %p326
      $region82: #{carpet_patch_autoencoder.1} parent=79 // pred_check_branch
        %8876 = sbr.rel (%p8874) target = $region84
      $region83: #{carpet_patch_autoencoder.1} parent=79 // pred_region
        %p8877 = scmp.lt.s32.totalorder %s25, 1
        %s8878 = scalar_select %p8877, %s25, 1
        %s8879 = smul.addr %s8878, 36
        %s8880 = smul.addr %s8879, 8
        %s8881 = scalar_lea.vmem %s13, %s8880
      $region84: #{carpet_patch_autoencoder.1} parent=79 // pred_fallthru
        _
    $region80: #{carpet_patch_autoencoder.1} parent=5 // pred_fallthru
      _
  $region6: #{carpet_patch_autoencoder.1} parent=0 // loop_footer
    %s23 = sadd.s32 1, %s19
  $region7: #{carpet_patch_autoencoder.1} parent=0 // loop_footer_branch
    %18 = sbr.rel target = $region3
  $region8: #{carpet_patch_autoencoder.1} parent=0 // loop_exit
    _

</llo_original>
